<compile_context>
chip_gen: v5e
topology: v5e:2x2
jax: 0.10.0
libtpu: 0.0.40
codegen_flags: <defaults>
</compile_context>

<pallas_src>
import jax
import jax.numpy as jnp
from jax.experimental import pallas as pl
from jax.experimental.pallas import tpu as pltpu

F32 = jnp.float32
BF16 = jnp.bfloat16

# ---- small, deterministic configuration (scaled-down AlexNet) -----------------------------
B = 2                      # batch
IN_CH, IN_HW = 3, 64       # input image: (B, 3, 64, 64) -> features output (B, C5, 1, 1)
C1, C2, C3, C4, C5 = 16, 32, 48, 32, 32
FC_DIM = 256               # classifier hidden width (stands in for 4096)
IN_FEAT = C5 * 6 * 6       # after AdaptiveAvgPool2d((6,6)) + flatten = 1152
NBIT = 32                  # hash bits
NCLASS = 10                # number of classes
EPS_MOE = 2.220446049250313e-16   # np.finfo(float).eps used by SparseDispatcher.combine
EPS_NORM = 1e-12                  # F.normalize default eps

# ---- static geometry of the flattened feature maps ----------------------------------------
S2D = (IN_HW + 4) // 4          # 17: space-to-depth grid for conv1 (stride-4 folding)
H1 = 15                         # conv1 output map (15x15)
A1_ROWS = (H1 - 1) * S2D + H1   # 253: conv1 output rows in flat (width-stride 17) layout
M1_ROWS = 2 * 6 * S2D + 13      # 217: pool1 window anchors
P2_W = 7 + 4                    # 11: conv2 padded width (pad=2)
P2_ROWS = P2_W * P2_W           # 121
A2_ROWS = (7 - 1) * P2_W + 7    # 73: conv2 output rows
M2_ROWS = 2 * 2 * P2_W + 5      # 49: pool2 window anchors
P3_W = 3 + 2                    # 5: conv3/4/5 padded width (pad=1)
P3_ROWS = P3_W * P3_W           # 25
R3_ROWS = (3 - 1) * P3_W + 3    # 13: conv3/4/5 output rows
R3_OFF = P3_W + 1               # 6: first interior row of the padded 5x5 map


# =============================== in-kernel helpers =========================================

def _same_conv(src_ref, w_ref, b_ref, *, rows, wstride, ksize):
    """Same-padding stride-1 conv on a flattened zero-padded map held in a VMEM ref.

    For tap (dh, dw) the source rows are a contiguous slice at a constant flat offset, so
    each tap is ONE (rows, Cin) x (Cin, Cout) MXU dot accumulated in f32 (no im2col)."""
    pad = (ksize - 1) // 2
    base = pad * wstride + pad
    acc = None
    for dh in range(ksize):
        for dw in range(ksize):
            t = dh * ksize + dw
            off = (dh - pad) * wstride + (dw - pad)
            lhs = src_ref[base + off: base + off + rows, :].astype(BF16)
            part = jnp.dot(lhs, w_ref[t], preferred_element_type=jnp.float32)
            acc = part if acc is None else acc + part
    return jnp.maximum(acc + b_ref[...], 0.0)


def _pool_windows(src_ref, *, rows, wstride):
    """m[r] = max over the 3x3 window anchored at flat position r (9 contiguous slices)."""
    m = None
    for dh in range(3):
        for dw in range(3):
            off = dh * wstride + dw
            v = src_ref[off: off + rows, :]
            m = v if m is None else jnp.maximum(m, v)
    return m


# =============================== the fused kernel ==========================================

def _alexnet_kernel(x_ref,
                    w1_ref, b1_ref, w2_ref, b2_ref, w3_ref, b3_ref,
                    w4_ref, b4_ref, w5_ref, b5_ref,
                    s2_ref, s3_ref, m13_ref,
                    wf1_ref, bf1_ref, wf2_ref, bf2_ref,
                    wm1_ref, wm2_ref, wce_ref, bce_ref,
                    u_ref, v_ref,
                    a1, p2, a2, p3, p4, p5):
    # ---- conv1 + ReLU: 11x11 stride-4 pad-2 conv == 3x3 VALID conv on the 4x4
    #      space-to-depth input (17x17x48), flattened to (289, 48); output stored in the
    #      flat (width-stride 17) layout.  9 taps, each one (253, 48) x (48, 16) dot.
    acc = None
    for dh in range(3):
        for dw in range(3):
            t = dh * 3 + dw
            off = dh * S2D + dw
            lhs = x_ref[0, off: off + A1_ROWS, :]                 # bf16 (253, 48)
            part = jnp.dot(lhs, w1_ref[t], preferred_element_type=jnp.float32)
            acc = part if acc is None else acc + part
    a1[...] = jnp.maximum(acc + b1_ref[...], 0.0)                 # (253, 16) f32

    # ---- MaxPool2d(3,2) on the 15x15 map + re-pad for conv2: window max then a one-hot
    #      selection matmul that does the stride-2 subsample AND the zero-pad embedding.
    m1 = _pool_windows(a1, rows=M1_ROWS, wstride=S2D)             # (217, 16)
    p2[...] = jnp.dot(s2_ref[...], m1.astype(BF16),
                      preferred_element_type=jnp.float32)         # (121, 16)

    # ---- conv2 + ReLU: 5x5 pad-2 on the 7x7 map (flat padded 11x11), 25 taps.
    a2[...] = _same_conv(p2, w2_ref, b2_ref, rows=A2_ROWS, wstride=P2_W, ksize=5)  # (73, 32)

    # ---- MaxPool2d(3,2) on the 7x7 map + re-pad for conv3.
    m2 = _pool_windows(a2, rows=M2_ROWS, wstride=P2_W)            # (49, 32)
    p3[...] = jnp.dot(s3_ref[...], m2.astype(BF16),
                      preferred_element_type=jnp.float32)         # (25, 32)

    # ---- conv3 / conv4 / conv5 (3x3 pad-1 + ReLU each) on the 3x3 map (flat padded 5x5).
    #      The interior mask zeroes the pad-column garbage before the result is reused as
    #      the next conv's padding; only the 1-px border of the scratch is re-zeroed.
    mask = m13_ref[...]                                           # (13, 1)
    zeros_top3 = jnp.zeros((R3_OFF, C3), F32)
    zeros_top4 = jnp.zeros((R3_OFF, C4), F32)

    h3 = _same_conv(p3, w3_ref, b3_ref, rows=R3_ROWS, wstride=P3_W, ksize=3) * mask
    p4[0:R3_OFF, :] = zeros_top3
    p4[R3_OFF + R3_ROWS:P3_ROWS, :] = zeros_top3
    p4[R3_OFF:R3_OFF + R3_ROWS, :] = h3                           # (13, 48) into (25, 48)

    h4 = _same_conv(p4, w4_ref, b4_ref, rows=R3_ROWS, wstride=P3_W, ksize=3) * mask
    p5[0:R3_OFF, :] = zeros_top4
    p5[R3_OFF + R3_ROWS:P3_ROWS, :] = zeros_top4
    p5[R3_OFF:R3_OFF + R3_ROWS, :] = h4                           # (13, 32) into (25, 32)

    h5 = _same_conv(p5, w5_ref, b5_ref, rows=R3_ROWS, wstride=P3_W, ksize=3) * mask

    # ---- MaxPool2d(3,2) on the 3x3 map == global max: pads are masked to 0 and the values
    #      are post-ReLU (>= 0), so the max over all 13 flat rows equals the window max.
    g = jnp.max(h5, axis=0, keepdims=True)                        # (1, 32) f32

    # ---- AdaptiveAvgPool2d((6,6)) of the 1x1 map + flatten + classifier Linear, folded:
    #      fc1(flatten(replicate(g))) == g @ sum_{h,w} W1  (weight summed at init time).
    h = jnp.dot(g.astype(BF16), wf1_ref[...], preferred_element_type=jnp.float32)
    h = jnp.maximum(h + bf1_ref[...], 0.0)                        # (1, 256)
    h = jnp.dot(h.astype(BF16), wf2_ref[...], preferred_element_type=jnp.float32)
    h = jnp.maximum(h + bf2_ref[...], 0.0)                        # (1, 256)

    # ---- MoE (eval, k=1): gate == softmax of one logit == 1.0 exactly; all experts alias
    #      the same hash_fc, so the expert runs once and the gate is folded away.
    e = jnp.dot(h.astype(BF16), wm1_ref[...], preferred_element_type=jnp.float32)
    e = jnp.maximum(e, 0.0)
    e = jnp.dot(e.astype(BF16), wm2_ref[...], preferred_element_type=jnp.float32)  # (1, 32)
    # SparseDispatcher.combine: gate * exp(expert); zeros -> eps; log
    val = jnp.exp(e)
    val = jnp.where(val == 0.0, EPS_MOE, val)
    vlog = jnp.log(val)

    # ---- F.normalize(v, dim=1) + ce_fc
    nrm = jnp.sqrt(jnp.sum(vlog * vlog, axis=-1, keepdims=True))
    vn = vlog / jnp.maximum(nrm, EPS_NORM)
    u = jnp.dot(vn, wce_ref[...], preferred_element_type=jnp.float32) + bce_ref[...]

    u_ref[0] = u                                                  # (1, NCLASS)
    v_ref[0] = vn                                                 # (1, NBIT)


# =============================== wrapper ===================================================

def _const_spec(shape):
    """Whole-array BlockSpec whose block index never changes (weight stays VMEM-resident)."""
    zeros = (0,) * len(shape)
    return pl.BlockSpec(tuple(shape), lambda b: zeros)


def alexnet_forward(weights, x):
    """x: (B, 3, 64, 64) NCHW f32.  Returns (u, v) = (logits, normalized hash codes)."""
    # Only XLA glue in the forward: NCHW->NHWC, conv1's pad-2, and the exact 4x4
    # space-to-depth folding of conv1's stride; ~55 KB, done once on the raw input.
    xh = jnp.transpose(x, (0, 2, 3, 1))
    xp = jnp.pad(xh, ((0, 0), (2, 2), (2, 2), (0, 0)))            # (B, 68, 68, 3)
    xs = xp.reshape(B, S2D, 4, S2D, 4, IN_CH).transpose(0, 1, 3, 2, 4, 5)
    xs = xs.reshape(B, S2D * S2D, 4 * 4 * IN_CH).astype(BF16)     # (B, 289, 48)

    in_specs = [pl.BlockSpec((1, S2D * S2D, 4 * 4 * IN_CH), lambda b: (b, 0, 0))]
    in_specs += [_const_spec(w.shape) for w in weights]

    flops = B * 2 * (9 * A1_ROWS * 48 * C1 + 25 * A2_ROWS * C1 * C2
                     + 9 * R3_ROWS * (C2 * C3 + C3 * C4 + C4 * C5)
                     + P2_ROWS * M1_ROWS * C1 + P3_ROWS * M2_ROWS * C2
                     + C5 * FC_DIM + 2 * FC_DIM * FC_DIM + FC_DIM * NBIT + NBIT * NCLASS)
    nbytes = xs.size * 2 + sum(int(w.size) * w.dtype.itemsize for w in weights) \
        + B * (NCLASS + NBIT) * 4

    u3, v3 = pl.pallas_call(
        _alexnet_kernel,
        out_shape=(jax.ShapeDtypeStruct((B, 1, NCLASS), F32),
                   jax.ShapeDtypeStruct((B, 1, NBIT), F32)),
        grid_spec=pltpu.PrefetchScalarGridSpec(
            num_scalar_prefetch=0,
            grid=(B,),
            in_specs=in_specs,
            out_specs=(pl.BlockSpec((1, 1, NCLASS), lambda b: (b, 0, 0)),
                       pl.BlockSpec((1, 1, NBIT), lambda b: (b, 0, 0))),
            scratch_shapes=[pltpu.VMEM((A1_ROWS, C1), F32),   # conv1 out (flat 15x15)
                            pltpu.VMEM((P2_ROWS, C1), F32),   # conv2 padded input (11x11)
                            pltpu.VMEM((A2_ROWS, C2), F32),   # conv2 out (flat 7x7)
                            pltpu.VMEM((P3_ROWS, C2), F32),   # conv3 padded input (5x5)
                            pltpu.VMEM((P3_ROWS, C3), F32),   # conv4 padded input (5x5)
                            pltpu.VMEM((P3_ROWS, C4), F32)]), # conv5 padded input (5x5)
        compiler_params=pltpu.CompilerParams(dimension_semantics=("parallel",)),
        cost_estimate=pl.CostEstimate(flops=int(flops),
                                      transcendentals=int(B * (2 * NBIT + 1)),
                                      bytes_accessed=int(nbytes)),
    )(xs, *weights)
    return u3[:, 0, :], v3[:, 0, :]


# =============================== parameters ================================================

def init_params(key):
    ks = list(jax.random.split(key, 20))

    def conv_w(k, oc, ic, kh, kw):
        return jax.random.normal(k, (oc, ic, kh, kw), F32) / jnp.sqrt(float(ic * kh * kw))

    def lin_w(k, fin, fout):
        return jax.random.normal(k, (fin, fout), F32) / jnp.sqrt(float(fin))

    p = {}
    p["conv1_w"], p["conv1_b"] = conv_w(ks[0], C1, IN_CH, 11, 11), 0.01 * jax.random.normal(ks[1], (C1,), F32)
    p["conv2_w"], p["conv2_b"] = conv_w(ks[2], C2, C1, 5, 5),      0.01 * jax.random.normal(ks[3], (C2,), F32)
    p["conv3_w"], p["conv3_b"] = conv_w(ks[4], C3, C2, 3, 3),      0.01 * jax.random.normal(ks[5], (C3,), F32)
    p["conv4_w"], p["conv4_b"] = conv_w(ks[6], C4, C3, 3, 3),      0.01 * jax.random.normal(ks[7], (C4,), F32)
    p["conv5_w"], p["conv5_b"] = conv_w(ks[8], C5, C4, 3, 3),      0.01 * jax.random.normal(ks[9], (C5,), F32)
    # classifier Linear weights stored pre-transposed as (in, out); fc1 rows follow the torch
    # NCHW flatten order (c, h, w).
    p["fc1_w"], p["fc1_b"] = lin_w(ks[10], IN_FEAT, FC_DIM), 0.01 * jax.random.normal(ks[11], (FC_DIM,), F32)
    p["fc2_w"], p["fc2_b"] = lin_w(ks[12], FC_DIM, FC_DIM),  0.01 * jax.random.normal(ks[13], (FC_DIM,), F32)
    # MoE gating weight is zero-initialized in the reference; with k=1 the combined gate is
    # exactly 1.0 in eval mode, so it never affects the output (kept for parameter parity).
    p["w_gate"] = jnp.zeros((FC_DIM, 4), F32)
    # MoE shared expert (hash_fc): Linear(in,in,bias=False) -> ReLU -> Linear(in,nbit,bias=False)
    p["moe_fc1_w"] = lin_w(ks[14], FC_DIM, FC_DIM)
    p["moe_fc2_w"] = lin_w(ks[15], FC_DIM, NBIT)
    # ce_fc = Linear(nbit, nclass)
    p["ce_w"], p["ce_b"] = lin_w(ks[16], NBIT, NCLASS), 0.01 * jax.random.normal(ks[17], (NCLASS,), F32)
    return p


def pack_params(p):
    """Init-time (outside the jitted forward) weight layout, folding and bf16 casting."""

    def tapw(w):  # torch (Cout, Cin, k, k) -> tap-major (k*k, Cin, Cout) bf16
        cout, cin, kh, kw = w.shape
        return jnp.transpose(w, (2, 3, 1, 0)).reshape(kh * kw, cin, cout).astype(BF16)

    def rowb(b):
        return b.astype(F32).reshape(1, -1)

    # conv1 weight as a 3x3 conv over the 4x4 space-to-depth channels (rh, rw, cin);
    # taps (kh=11, kw=11) that fall outside the 11x11 kernel are zero.
    w1 = jnp.pad(p["conv1_w"], ((0, 0), (0, 0), (0, 1), (0, 1)))          # (C1, 3, 12, 12)
    w1 = jnp.transpose(w1, (2, 3, 1, 0))                                  # (12, 12, 3, C1)
    w1 = w1.reshape(3, 4, 3, 4, IN_CH, C1).transpose(0, 2, 1, 3, 4, 5)    # (dh,dw,rh,rw,ci,C1)
    w1t = w1.reshape(9, 4 * 4 * IN_CH, C1).astype(BF16)

    # Pool selection / re-padding matrices: one-hot rows pick the stride-2 window anchors,
    # all-zero rows produce the next conv's zero padding.
    r2 = [(pi + 2) * P2_W + (pj + 2) for pi in range(7) for pj in range(7)]
    c2 = [2 * pi * S2D + 2 * pj for pi in range(7) for pj in range(7)]
    s2 = jnp.zeros((P2_ROWS, M1_ROWS), F32).at[jnp.array(r2), jnp.array(c2)].set(1.0).astype(BF16)

    r3 = [(pi + 1) * P3_W + (pj + 1) for pi in range(3) for pj in range(3)]
    c3 = [2 * pi * P2_W + 2 * pj for pi in range(3) for pj in range(3)]
    s3 = jnp.zeros((P3_ROWS, M2_ROWS), F32).at[jnp.array(r3), jnp.array(c3)].set(1.0).astype(BF16)

    # Interior mask for the flat 5x5-padded 3x3 maps (zeroes pad-column garbage).
    m13 = jnp.array([1.0 if (r % P3_W) < 3 else 0.0 for r in range(R3_ROWS)],
                    F32).reshape(R3_ROWS, 1)

    # AdaptiveAvgPool2d((6,6)) of a 1x1 map replicates it, so
    # fc1(flatten(...)) == g @ sum_{h,w} W1[:, (c,h,w)]; fold the sum into the weight.
    wf1 = p["fc1_w"].reshape(C5, 36, FC_DIM).sum(axis=1).astype(BF16)     # (C5, FC_DIM)

    return (w1t, rowb(p["conv1_b"]),
            tapw(p["conv2_w"]), rowb(p["conv2_b"]),
            tapw(p["conv3_w"]), rowb(p["conv3_b"]),
            tapw(p["conv4_w"]), rowb(p["conv4_b"]),
            tapw(p["conv5_w"]), rowb(p["conv5_b"]),
            s2, s3, m13,
            wf1, rowb(p["fc1_b"]),
            p["fc2_w"].astype(BF16), rowb(p["fc2_b"]),
            p["moe_fc1_w"].astype(BF16), p["moe_fc2_w"].astype(BF16),
            p["ce_w"].astype(F32), rowb(p["ce_b"]))


# =============================== main ======================================================

if __name__ == "__main__":
    key = jax.random.PRNGKey(0)
    params = init_params(key)
    weights = pack_params(params)          # all weight prep hoisted out of the jitted forward
    x = jax.random.normal(jax.random.fold_in(key, 123), (B, IN_CH, IN_HW, IN_HW), F32)

    fwd = jax.jit(alexnet_forward)
    u, v = fwd(weights, x)
    jax.block_until_ready((u, v))

    assert u.shape == (B, NCLASS), u.shape
    assert v.shape == (B, NBIT), v.shape
    assert bool(jnp.all(jnp.isfinite(u))) and bool(jnp.all(jnp.isfinite(v)))
    print("KERNEL_OK")
</pallas_src>

<mosaic_0001>
module attributes {stable_mosaic.version = 11 : i64} {
  func.func @_alexnet_kernel(%arg0: i32, %arg1: memref<1x289x48xbf16, #tpu.memory_space<vmem>>, %arg2: memref<9x48x16xbf16, #tpu.memory_space<vmem>>, %arg3: memref<1x16xf32, #tpu.memory_space<vmem>>, %arg4: memref<25x16x32xbf16, #tpu.memory_space<vmem>>, %arg5: memref<1x32xf32, #tpu.memory_space<vmem>>, %arg6: memref<9x32x48xbf16, #tpu.memory_space<vmem>>, %arg7: memref<1x48xf32, #tpu.memory_space<vmem>>, %arg8: memref<9x48x32xbf16, #tpu.memory_space<vmem>>, %arg9: memref<1x32xf32, #tpu.memory_space<vmem>>, %arg10: memref<9x32x32xbf16, #tpu.memory_space<vmem>>, %arg11: memref<1x32xf32, #tpu.memory_space<vmem>>, %arg12: memref<121x217xbf16, #tpu.memory_space<vmem>>, %arg13: memref<25x49xbf16, #tpu.memory_space<vmem>>, %arg14: memref<13x1xf32, #tpu.memory_space<vmem>>, %arg15: memref<32x256xbf16, #tpu.memory_space<vmem>>, %arg16: memref<1x256xf32, #tpu.memory_space<vmem>>, %arg17: memref<256x256xbf16, #tpu.memory_space<vmem>>, %arg18: memref<1x256xf32, #tpu.memory_space<vmem>>, %arg19: memref<256x256xbf16, #tpu.memory_space<vmem>>, %arg20: memref<256x32xbf16, #tpu.memory_space<vmem>>, %arg21: memref<32x10xf32, #tpu.memory_space<vmem>>, %arg22: memref<1x10xf32, #tpu.memory_space<vmem>>, %arg23: memref<1x1x10xf32, #tpu.memory_space<vmem>>, %arg24: memref<1x1x32xf32, #tpu.memory_space<vmem>>, %arg25: memref<253x16xf32, #tpu.memory_space<vmem>>, %arg26: memref<121x16xf32, #tpu.memory_space<vmem>>, %arg27: memref<73x32xf32, #tpu.memory_space<vmem>>, %arg28: memref<25x32xf32, #tpu.memory_space<vmem>>, %arg29: memref<25x48xf32, #tpu.memory_space<vmem>>, %arg30: memref<25x32xf32, #tpu.memory_space<vmem>>) attributes {dimension_semantics = [#tpu.dimension_semantics<parallel>], iteration_bounds = array<i64: 2>, scalar_prefetch = 0 : i64, scratch_operands = 6 : i64, tpu.core_type = #tpu.core_type<tc>, window_params = [{transform_indices = @transform_0, window_bounds = array<i64: 1, 289, 48>}, {pipeline_mode = #tpu.pipeline_mode<synchronous>, transform_indices = @transform_1, window_bounds = array<i64: 9, 48, 16>}, {pipeline_mode = #tpu.pipeline_mode<synchronous>, transform_indices = @transform_2, window_bounds = array<i64: 1, 16>}, {pipeline_mode = #tpu.pipeline_mode<synchronous>, transform_indices = @transform_3, window_bounds = array<i64: 25, 16, 32>}, {pipeline_mode = #tpu.pipeline_mode<synchronous>, transform_indices = @transform_4, window_bounds = array<i64: 1, 32>}, {pipeline_mode = #tpu.pipeline_mode<synchronous>, transform_indices = @transform_5, window_bounds = array<i64: 9, 32, 48>}, {pipeline_mode = #tpu.pipeline_mode<synchronous>, transform_indices = @transform_6, window_bounds = array<i64: 1, 48>}, {pipeline_mode = #tpu.pipeline_mode<synchronous>, transform_indices = @transform_7, window_bounds = array<i64: 9, 48, 32>}, {pipeline_mode = #tpu.pipeline_mode<synchronous>, transform_indices = @transform_8, window_bounds = array<i64: 1, 32>}, {pipeline_mode = #tpu.pipeline_mode<synchronous>, transform_indices = @transform_9, window_bounds = array<i64: 9, 32, 32>}, {pipeline_mode = #tpu.pipeline_mode<synchronous>, transform_indices = @transform_10, window_bounds = array<i64: 1, 32>}, {pipeline_mode = #tpu.pipeline_mode<synchronous>, transform_indices = @transform_11, window_bounds = array<i64: 121, 217>}, {pipeline_mode = #tpu.pipeline_mode<synchronous>, transform_indices = @transform_12, window_bounds = array<i64: 25, 49>}, {pipeline_mode = #tpu.pipeline_mode<synchronous>, transform_indices = @transform_13, window_bounds = array<i64: 13, 1>}, {pipeline_mode = #tpu.pipeline_mode<synchronous>, transform_indices = @transform_14, window_bounds = array<i64: 32, 256>}, {pipeline_mode = #tpu.pipeline_mode<synchronous>, transform_indices = @transform_15, window_bounds = array<i64: 1, 256>}, {pipeline_mode = #tpu.pipeline_mode<synchronous>, transform_indices = @transform_16, window_bounds = array<i64: 256, 256>}, {pipeline_mode = #tpu.pipeline_mode<synchronous>, transform_indices = @transform_17, window_bounds = array<i64: 1, 256>}, {pipeline_mode = #tpu.pipeline_mode<synchronous>, transform_indices = @transform_18, window_bounds = array<i64: 256, 256>}, {pipeline_mode = #tpu.pipeline_mode<synchronous>, transform_indices = @transform_19, window_bounds = array<i64: 256, 32>}, {pipeline_mode = #tpu.pipeline_mode<synchronous>, transform_indices = @transform_20, window_bounds = array<i64: 32, 10>}, {pipeline_mode = #tpu.pipeline_mode<synchronous>, transform_indices = @transform_21, window_bounds = array<i64: 1, 10>}, {transform_indices = @transform_22, window_bounds = array<i64: 1, 1, 10>}, {transform_indices = @transform_23, window_bounds = array<i64: 1, 1, 32>}]} {
    %c0 = arith.constant 0 : index
    %c0_0 = arith.constant 0 : index
    %c0_1 = arith.constant 0 : index
    %0 = vector.load %arg1[%c0, %c0_0, %c0_1] : memref<1x289x48xbf16, #tpu.memory_space<vmem>>, vector<1x253x48xbf16>
    %1 = vector.shape_cast %0 : vector<1x253x48xbf16> to vector<253x48xbf16>
    %c0_2 = arith.constant 0 : index
    %c0_3 = arith.constant 0 : index
    %c0_4 = arith.constant 0 : index
    %2 = vector.load %arg2[%c0_2, %c0_3, %c0_4] : memref<9x48x16xbf16, #tpu.memory_space<vmem>>, vector<1x48x16xbf16>
    %3 = vector.shape_cast %2 : vector<1x48x16xbf16> to vector<48x16xbf16>
    %cst = arith.constant dense<0.000000e+00> : vector<253x16xf32>
    %4 = tpu.matmul %1, %3, %cst {dimension_numbers = #tpu.dot_dimension_numbers<[1], [0], [0], [1], [0, 0, 1, 1], [], []>} : vector<253x48xbf16>, vector<48x16xbf16>, vector<253x16xf32> -> vector<253x16xf32>
    %c0_5 = arith.constant 0 : index
    %c1 = arith.constant 1 : index
    %c0_6 = arith.constant 0 : index
    %5 = vector.load %arg1[%c0_5, %c1, %c0_6] : memref<1x289x48xbf16, #tpu.memory_space<vmem>>, vector<1x253x48xbf16>
    %6 = vector.shape_cast %5 : vector<1x253x48xbf16> to vector<253x48xbf16>
    %c1_7 = arith.constant 1 : index
    %c0_8 = arith.constant 0 : index
    %c0_9 = arith.constant 0 : index
    %7 = vector.load %arg2[%c1_7, %c0_8, %c0_9] : memref<9x48x16xbf16, #tpu.memory_space<vmem>>, vector<1x48x16xbf16>
    %8 = vector.shape_cast %7 : vector<1x48x16xbf16> to vector<48x16xbf16>
    %cst_10 = arith.constant dense<0.000000e+00> : vector<253x16xf32>
    %9 = tpu.matmul %6, %8, %cst_10 {dimension_numbers = #tpu.dot_dimension_numbers<[1], [0], [0], [1], [0, 0, 1, 1], [], []>} : vector<253x48xbf16>, vector<48x16xbf16>, vector<253x16xf32> -> vector<253x16xf32>
    %10 = arith.addf %4, %9 : vector<253x16xf32>
    %c0_11 = arith.constant 0 : index
    %c2 = arith.constant 2 : index
    %c0_12 = arith.constant 0 : index
    %11 = vector.load %arg1[%c0_11, %c2, %c0_12] : memref<1x289x48xbf16, #tpu.memory_space<vmem>>, vector<1x253x48xbf16>
    %12 = vector.shape_cast %11 : vector<1x253x48xbf16> to vector<253x48xbf16>
    %c2_13 = arith.constant 2 : index
    %c0_14 = arith.constant 0 : index
    %c0_15 = arith.constant 0 : index
    %13 = vector.load %arg2[%c2_13, %c0_14, %c0_15] : memref<9x48x16xbf16, #tpu.memory_space<vmem>>, vector<1x48x16xbf16>
    %14 = vector.shape_cast %13 : vector<1x48x16xbf16> to vector<48x16xbf16>
    %cst_16 = arith.constant dense<0.000000e+00> : vector<253x16xf32>
    %15 = tpu.matmul %12, %14, %cst_16 {dimension_numbers = #tpu.dot_dimension_numbers<[1], [0], [0], [1], [0, 0, 1, 1], [], []>} : vector<253x48xbf16>, vector<48x16xbf16>, vector<253x16xf32> -> vector<253x16xf32>
    %16 = arith.addf %10, %15 : vector<253x16xf32>
    %c0_17 = arith.constant 0 : index
    %c17 = arith.constant 17 : index
    %c0_18 = arith.constant 0 : index
    %17 = vector.load %arg1[%c0_17, %c17, %c0_18] : memref<1x289x48xbf16, #tpu.memory_space<vmem>>, vector<1x253x48xbf16>
    %18 = vector.shape_cast %17 : vector<1x253x48xbf16> to vector<253x48xbf16>
    %c3 = arith.constant 3 : index
    %c0_19 = arith.constant 0 : index
    %c0_20 = arith.constant 0 : index
    %19 = vector.load %arg2[%c3, %c0_19, %c0_20] : memref<9x48x16xbf16, #tpu.memory_space<vmem>>, vector<1x48x16xbf16>
    %20 = vector.shape_cast %19 : vector<1x48x16xbf16> to vector<48x16xbf16>
    %cst_21 = arith.constant dense<0.000000e+00> : vector<253x16xf32>
    %21 = tpu.matmul %18, %20, %cst_21 {dimension_numbers = #tpu.dot_dimension_numbers<[1], [0], [0], [1], [0, 0, 1, 1], [], []>} : vector<253x48xbf16>, vector<48x16xbf16>, vector<253x16xf32> -> vector<253x16xf32>
    %22 = arith.addf %16, %21 : vector<253x16xf32>
    %c0_22 = arith.constant 0 : index
    %c18 = arith.constant 18 : index
    %c0_23 = arith.constant 0 : index
    %23 = vector.load %arg1[%c0_22, %c18, %c0_23] : memref<1x289x48xbf16, #tpu.memory_space<vmem>>, vector<1x253x48xbf16>
    %24 = vector.shape_cast %23 : vector<1x253x48xbf16> to vector<253x48xbf16>
    %c4 = arith.constant 4 : index
    %c0_24 = arith.constant 0 : index
    %c0_25 = arith.constant 0 : index
    %25 = vector.load %arg2[%c4, %c0_24, %c0_25] : memref<9x48x16xbf16, #tpu.memory_space<vmem>>, vector<1x48x16xbf16>
    %26 = vector.shape_cast %25 : vector<1x48x16xbf16> to vector<48x16xbf16>
    %cst_26 = arith.constant dense<0.000000e+00> : vector<253x16xf32>
    %27 = tpu.matmul %24, %26, %cst_26 {dimension_numbers = #tpu.dot_dimension_numbers<[1], [0], [0], [1], [0, 0, 1, 1], [], []>} : vector<253x48xbf16>, vector<48x16xbf16>, vector<253x16xf32> -> vector<253x16xf32>
    %28 = arith.addf %22, %27 : vector<253x16xf32>
    %c0_27 = arith.constant 0 : index
    %c19 = arith.constant 19 : index
    %c0_28 = arith.constant 0 : index
    %29 = vector.load %arg1[%c0_27, %c19, %c0_28] : memref<1x289x48xbf16, #tpu.memory_space<vmem>>, vector<1x253x48xbf16>
    %30 = vector.shape_cast %29 : vector<1x253x48xbf16> to vector<253x48xbf16>
    %c5 = arith.constant 5 : index
    %c0_29 = arith.constant 0 : index
    %c0_30 = arith.constant 0 : index
    %31 = vector.load %arg2[%c5, %c0_29, %c0_30] : memref<9x48x16xbf16, #tpu.memory_space<vmem>>, vector<1x48x16xbf16>
    %32 = vector.shape_cast %31 : vector<1x48x16xbf16> to vector<48x16xbf16>
    %cst_31 = arith.constant dense<0.000000e+00> : vector<253x16xf32>
    %33 = tpu.matmul %30, %32, %cst_31 {dimension_numbers = #tpu.dot_dimension_numbers<[1], [0], [0], [1], [0, 0, 1, 1], [], []>} : vector<253x48xbf16>, vector<48x16xbf16>, vector<253x16xf32> -> vector<253x16xf32>
    %34 = arith.addf %28, %33 : vector<253x16xf32>
    %c0_32 = arith.constant 0 : index
    %c34 = arith.constant 34 : index
    %c0_33 = arith.constant 0 : index
    %35 = vector.load %arg1[%c0_32, %c34, %c0_33] : memref<1x289x48xbf16, #tpu.memory_space<vmem>>, vector<1x253x48xbf16>
    %36 = vector.shape_cast %35 : vector<1x253x48xbf16> to vector<253x48xbf16>
    %c6 = arith.constant 6 : index
    %c0_34 = arith.constant 0 : index
    %c0_35 = arith.constant 0 : index
    %37 = vector.load %arg2[%c6, %c0_34, %c0_35] : memref<9x48x16xbf16, #tpu.memory_space<vmem>>, vector<1x48x16xbf16>
    %38 = vector.shape_cast %37 : vector<1x48x16xbf16> to vector<48x16xbf16>
    %cst_36 = arith.constant dense<0.000000e+00> : vector<253x16xf32>
    %39 = tpu.matmul %36, %38, %cst_36 {dimension_numbers = #tpu.dot_dimension_numbers<[1], [0], [0], [1], [0, 0, 1, 1], [], []>} : vector<253x48xbf16>, vector<48x16xbf16>, vector<253x16xf32> -> vector<253x16xf32>
    %40 = arith.addf %34, %39 : vector<253x16xf32>
    %c0_37 = arith.constant 0 : index
    %c35 = arith.constant 35 : index
    %c0_38 = arith.constant 0 : index
    %41 = vector.load %arg1[%c0_37, %c35, %c0_38] : memref<1x289x48xbf16, #tpu.memory_space<vmem>>, vector<1x253x48xbf16>
    %42 = vector.shape_cast %41 : vector<1x253x48xbf16> to vector<253x48xbf16>
    %c7 = arith.constant 7 : index
    %c0_39 = arith.constant 0 : index
    %c0_40 = arith.constant 0 : index
    %43 = vector.load %arg2[%c7, %c0_39, %c0_40] : memref<9x48x16xbf16, #tpu.memory_space<vmem>>, vector<1x48x16xbf16>
    %44 = vector.shape_cast %43 : vector<1x48x16xbf16> to vector<48x16xbf16>
    %cst_41 = arith.constant dense<0.000000e+00> : vector<253x16xf32>
    %45 = tpu.matmul %42, %44, %cst_41 {dimension_numbers = #tpu.dot_dimension_numbers<[1], [0], [0], [1], [0, 0, 1, 1], [], []>} : vector<253x48xbf16>, vector<48x16xbf16>, vector<253x16xf32> -> vector<253x16xf32>
    %46 = arith.addf %40, %45 : vector<253x16xf32>
    %c0_42 = arith.constant 0 : index
    %c36 = arith.constant 36 : index
    %c0_43 = arith.constant 0 : index
    %47 = vector.load %arg1[%c0_42, %c36, %c0_43] : memref<1x289x48xbf16, #tpu.memory_space<vmem>>, vector<1x253x48xbf16>
    %48 = vector.shape_cast %47 : vector<1x253x48xbf16> to vector<253x48xbf16>
    %c8 = arith.constant 8 : index
    %c0_44 = arith.constant 0 : index
    %c0_45 = arith.constant 0 : index
    %49 = vector.load %arg2[%c8, %c0_44, %c0_45] : memref<9x48x16xbf16, #tpu.memory_space<vmem>>, vector<1x48x16xbf16>
    %50 = vector.shape_cast %49 : vector<1x48x16xbf16> to vector<48x16xbf16>
    %cst_46 = arith.constant dense<0.000000e+00> : vector<253x16xf32>
    %51 = tpu.matmul %48, %50, %cst_46 {dimension_numbers = #tpu.dot_dimension_numbers<[1], [0], [0], [1], [0, 0, 1, 1], [], []>} : vector<253x48xbf16>, vector<48x16xbf16>, vector<253x16xf32> -> vector<253x16xf32>
    %52 = arith.addf %46, %51 : vector<253x16xf32>
    %c0_47 = arith.constant 0 : index
    %c0_48 = arith.constant 0 : index
    %53 = vector.load %arg3[%c0_47, %c0_48] : memref<1x16xf32, #tpu.memory_space<vmem>>, vector<1x16xf32>
    %54 = vector.broadcast %53 : vector<1x16xf32> to vector<253x16xf32>
    %55 = arith.addf %52, %54 : vector<253x16xf32>
    %cst_49 = arith.constant 0.000000e+00 : f32
    %56 = vector.broadcast %cst_49 : f32 to vector<253x16xf32>
    %57 = arith.maximumf %55, %56 : vector<253x16xf32>
    %c0_50 = arith.constant 0 : index
    %c0_51 = arith.constant 0 : index
    %58 = vector.load %arg25[%c0_50, %c0_51] : memref<253x16xf32, #tpu.memory_space<vmem>>, vector<253x16xf32>
    tpu.vector_store %arg25[%c0_50, %c0_51], %57 {strides = array<i32>} : memref<253x16xf32, #tpu.memory_space<vmem>>, vector<253x16xf32>,
    %c0_52 = arith.constant 0 : index
    %c0_53 = arith.constant 0 : index
    %59 = vector.load %arg25[%c0_52, %c0_53] : memref<253x16xf32, #tpu.memory_space<vmem>>, vector<217x16xf32>
    %c1_54 = arith.constant 1 : index
    %c0_55 = arith.constant 0 : index
    %60 = vector.load %arg25[%c1_54, %c0_55] : memref<253x16xf32, #tpu.memory_space<vmem>>, vector<217x16xf32>
    %61 = arith.maximumf %59, %60 : vector<217x16xf32>
    %c2_56 = arith.constant 2 : index
    %c0_57 = arith.constant 0 : index
    %62 = vector.load %arg25[%c2_56, %c0_57] : memref<253x16xf32, #tpu.memory_space<vmem>>, vector<217x16xf32>
    %63 = arith.maximumf %61, %62 : vector<217x16xf32>
    %c17_58 = arith.constant 17 : index
    %c0_59 = arith.constant 0 : index
    %64 = vector.load %arg25[%c17_58, %c0_59] : memref<253x16xf32, #tpu.memory_space<vmem>>, vector<217x16xf32>
    %65 = arith.maximumf %63, %64 : vector<217x16xf32>
    %c18_60 = arith.constant 18 : index
    %c0_61 = arith.constant 0 : index
    %66 = vector.load %arg25[%c18_60, %c0_61] : memref<253x16xf32, #tpu.memory_space<vmem>>, vector<217x16xf32>
    %67 = arith.maximumf %65, %66 : vector<217x16xf32>
    %c19_62 = arith.constant 19 : index
    %c0_63 = arith.constant 0 : index
    %68 = vector.load %arg25[%c19_62, %c0_63] : memref<253x16xf32, #tpu.memory_space<vmem>>, vector<217x16xf32>
    %69 = arith.maximumf %67, %68 : vector<217x16xf32>
    %c34_64 = arith.constant 34 : index
    %c0_65 = arith.constant 0 : index
    %70 = vector.load %arg25[%c34_64, %c0_65] : memref<253x16xf32, #tpu.memory_space<vmem>>, vector<217x16xf32>
    %71 = arith.maximumf %69, %70 : vector<217x16xf32>
    %c35_66 = arith.constant 35 : index
    %c0_67 = arith.constant 0 : index
    %72 = vector.load %arg25[%c35_66, %c0_67] : memref<253x16xf32, #tpu.memory_space<vmem>>, vector<217x16xf32>
    %73 = arith.maximumf %71, %72 : vector<217x16xf32>
    %c36_68 = arith.constant 36 : index
    %c0_69 = arith.constant 0 : index
    %74 = vector.load %arg25[%c36_68, %c0_69] : memref<253x16xf32, #tpu.memory_space<vmem>>, vector<217x16xf32>
    %75 = arith.maximumf %73, %74 : vector<217x16xf32>
    %c0_70 = arith.constant 0 : index
    %c0_71 = arith.constant 0 : index
    %76 = vector.load %arg12[%c0_70, %c0_71] : memref<121x217xbf16, #tpu.memory_space<vmem>>, vector<121x217xbf16>
    %77 = arith.truncf %75 : vector<217x16xf32> to vector<217x16xbf16>
    %cst_72 = arith.constant dense<0.000000e+00> : vector<121x16xf32>
    %78 = tpu.matmul %76, %77, %cst_72 {dimension_numbers = #tpu.dot_dimension_numbers<[1], [0], [0], [1], [0, 0, 1, 1], [], []>} : vector<121x217xbf16>, vector<217x16xbf16>, vector<121x16xf32> -> vector<121x16xf32>
    %c0_73 = arith.constant 0 : index
    %c0_74 = arith.constant 0 : index
    %79 = vector.load %arg26[%c0_73, %c0_74] : memref<121x16xf32, #tpu.memory_space<vmem>>, vector<121x16xf32>
    tpu.vector_store %arg26[%c0_73, %c0_74], %78 {strides = array<i32>} : memref<121x16xf32, #tpu.memory_space<vmem>>, vector<121x16xf32>,
    %c0_75 = arith.constant 0 : index
    %c0_76 = arith.constant 0 : index
    %80 = vector.load %arg26[%c0_75, %c0_76] : memref<121x16xf32, #tpu.memory_space<vmem>>, vector<73x16xf32>
    %81 = arith.truncf %80 : vector<73x16xf32> to vector<73x16xbf16>
    %c0_77 = arith.constant 0 : index
    %c0_78 = arith.constant 0 : index
    %c0_79 = arith.constant 0 : index
    %82 = vector.load %arg4[%c0_77, %c0_78, %c0_79] : memref<25x16x32xbf16, #tpu.memory_space<vmem>>, vector<1x16x32xbf16>
    %83 = vector.shape_cast %82 : vector<1x16x32xbf16> to vector<16x32xbf16>
    %cst_80 = arith.constant dense<0.000000e+00> : vector<73x32xf32>
    %84 = tpu.matmul %81, %83, %cst_80 {dimension_numbers = #tpu.dot_dimension_numbers<[1], [0], [0], [1], [0, 0, 1, 1], [], []>} : vector<73x16xbf16>, vector<16x32xbf16>, vector<73x32xf32> -> vector<73x32xf32>
    %c1_81 = arith.constant 1 : index
    %c0_82 = arith.constant 0 : index
    %85 = vector.load %arg26[%c1_81, %c0_82] : memref<121x16xf32, #tpu.memory_space<vmem>>, vector<73x16xf32>
    %86 = arith.truncf %85 : vector<73x16xf32> to vector<73x16xbf16>
    %c1_83 = arith.constant 1 : index
    %c0_84 = arith.constant 0 : index
    %c0_85 = arith.constant 0 : index
    %87 = vector.load %arg4[%c1_83, %c0_84, %c0_85] : memref<25x16x32xbf16, #tpu.memory_space<vmem>>, vector<1x16x32xbf16>
    %88 = vector.shape_cast %87 : vector<1x16x32xbf16> to vector<16x32xbf16>
    %cst_86 = arith.constant dense<0.000000e+00> : vector<73x32xf32>
    %89 = tpu.matmul %86, %88, %cst_86 {dimension_numbers = #tpu.dot_dimension_numbers<[1], [0], [0], [1], [0, 0, 1, 1], [], []>} : vector<73x16xbf16>, vector<16x32xbf16>, vector<73x32xf32> -> vector<73x32xf32>
    %90 = arith.addf %84, %89 : vector<73x32xf32>
    %c2_87 = arith.constant 2 : index
    %c0_88 = arith.constant 0 : index
    %91 = vector.load %arg26[%c2_87, %c0_88] : memref<121x16xf32, #tpu.memory_space<vmem>>, vector<73x16xf32>
    %92 = arith.truncf %91 : vector<73x16xf32> to vector<73x16xbf16>
    %c2_89 = arith.constant 2 : index
    %c0_90 = arith.constant 0 : index
    %c0_91 = arith.constant 0 : index
    %93 = vector.load %arg4[%c2_89, %c0_90, %c0_91] : memref<25x16x32xbf16, #tpu.memory_space<vmem>>, vector<1x16x32xbf16>
    %94 = vector.shape_cast %93 : vector<1x16x32xbf16> to vector<16x32xbf16>
    %cst_92 = arith.constant dense<0.000000e+00> : vector<73x32xf32>
    %95 = tpu.matmul %92, %94, %cst_92 {dimension_numbers = #tpu.dot_dimension_numbers<[1], [0], [0], [1], [0, 0, 1, 1], [], []>} : vector<73x16xbf16>, vector<16x32xbf16>, vector<73x32xf32> -> vector<73x32xf32>
    %96 = arith.addf %90, %95 : vector<73x32xf32>
    %c3_93 = arith.constant 3 : index
    %c0_94 = arith.constant 0 : index
    %97 = vector.load %arg26[%c3_93, %c0_94] : memref<121x16xf32, #tpu.memory_space<vmem>>, vector<73x16xf32>
    %98 = arith.truncf %97 : vector<73x16xf32> to vector<73x16xbf16>
    %c3_95 = arith.constant 3 : index
    %c0_96 = arith.constant 0 : index
    %c0_97 = arith.constant 0 : index
    %99 = vector.load %arg4[%c3_95, %c0_96, %c0_97] : memref<25x16x32xbf16, #tpu.memory_space<vmem>>, vector<1x16x32xbf16>
    %100 = vector.shape_cast %99 : vector<1x16x32xbf16> to vector<16x32xbf16>
    %cst_98 = arith.constant dense<0.000000e+00> : vector<73x32xf32>
    %101 = tpu.matmul %98, %100, %cst_98 {dimension_numbers = #tpu.dot_dimension_numbers<[1], [0], [0], [1], [0, 0, 1, 1], [], []>} : vector<73x16xbf16>, vector<16x32xbf16>, vector<73x32xf32> -> vector<73x32xf32>
    %102 = arith.addf %96, %101 : vector<73x32xf32>
    %c4_99 = arith.constant 4 : index
    %c0_100 = arith.constant 0 : index
    %103 = vector.load %arg26[%c4_99, %c0_100] : memref<121x16xf32, #tpu.memory_space<vmem>>, vector<73x16xf32>
    %104 = arith.truncf %103 : vector<73x16xf32> to vector<73x16xbf16>
    %c4_101 = arith.constant 4 : index
    %c0_102 = arith.constant 0 : index
    %c0_103 = arith.constant 0 : index
    %105 = vector.load %arg4[%c4_101, %c0_102, %c0_103] : memref<25x16x32xbf16, #tpu.memory_space<vmem>>, vector<1x16x32xbf16>
    %106 = vector.shape_cast %105 : vector<1x16x32xbf16> to vector<16x32xbf16>
    %cst_104 = arith.constant dense<0.000000e+00> : vector<73x32xf32>
    %107 = tpu.matmul %104, %106, %cst_104 {dimension_numbers = #tpu.dot_dimension_numbers<[1], [0], [0], [1], [0, 0, 1, 1], [], []>} : vector<73x16xbf16>, vector<16x32xbf16>, vector<73x32xf32> -> vector<73x32xf32>
    %108 = arith.addf %102, %107 : vector<73x32xf32>
    %c11 = arith.constant 11 : index
    %c0_105 = arith.constant 0 : index
    %109 = vector.load %arg26[%c11, %c0_105] : memref<121x16xf32, #tpu.memory_space<vmem>>, vector<73x16xf32>
    %110 = arith.truncf %109 : vector<73x16xf32> to vector<73x16xbf16>
    %c5_106 = arith.constant 5 : index
    %c0_107 = arith.constant 0 : index
    %c0_108 = arith.constant 0 : index
    %111 = vector.load %arg4[%c5_106, %c0_107, %c0_108] : memref<25x16x32xbf16, #tpu.memory_space<vmem>>, vector<1x16x32xbf16>
    %112 = vector.shape_cast %111 : vector<1x16x32xbf16> to vector<16x32xbf16>
    %cst_109 = arith.constant dense<0.000000e+00> : vector<73x32xf32>
    %113 = tpu.matmul %110, %112, %cst_109 {dimension_numbers = #tpu.dot_dimension_numbers<[1], [0], [0], [1], [0, 0, 1, 1], [], []>} : vector<73x16xbf16>, vector<16x32xbf16>, vector<73x32xf32> -> vector<73x32xf32>
    %114 = arith.addf %108, %113 : vector<73x32xf32>
    %c12 = arith.constant 12 : index
    %c0_110 = arith.constant 0 : index
    %115 = vector.load %arg26[%c12, %c0_110] : memref<121x16xf32, #tpu.memory_space<vmem>>, vector<73x16xf32>
    %116 = arith.truncf %115 : vector<73x16xf32> to vector<73x16xbf16>
    %c6_111 = arith.constant 6 : index
    %c0_112 = arith.constant 0 : index
    %c0_113 = arith.constant 0 : index
    %117 = vector.load %arg4[%c6_111, %c0_112, %c0_113] : memref<25x16x32xbf16, #tpu.memory_space<vmem>>, vector<1x16x32xbf16>
    %118 = vector.shape_cast %117 : vector<1x16x32xbf16> to vector<16x32xbf16>
    %cst_114 = arith.constant dense<0.000000e+00> : vector<73x32xf32>
    %119 = tpu.matmul %116, %118, %cst_114 {dimension_numbers = #tpu.dot_dimension_numbers<[1], [0], [0], [1], [0, 0, 1, 1], [], []>} : vector<73x16xbf16>, vector<16x32xbf16>, vector<73x32xf32> -> vector<73x32xf32>
    %120 = arith.addf %114, %119 : vector<73x32xf32>
    %c13 = arith.constant 13 : index
    %c0_115 = arith.constant 0 : index
    %121 = vector.load %arg26[%c13, %c0_115] : memref<121x16xf32, #tpu.memory_space<vmem>>, vector<73x16xf32>
    %122 = arith.truncf %121 : vector<73x16xf32> to vector<73x16xbf16>
    %c7_116 = arith.constant 7 : index
    %c0_117 = arith.constant 0 : index
    %c0_118 = arith.constant 0 : index
    %123 = vector.load %arg4[%c7_116, %c0_117, %c0_118] : memref<25x16x32xbf16, #tpu.memory_space<vmem>>, vector<1x16x32xbf16>
    %124 = vector.shape_cast %123 : vector<1x16x32xbf16> to vector<16x32xbf16>
    %cst_119 = arith.constant dense<0.000000e+00> : vector<73x32xf32>
    %125 = tpu.matmul %122, %124, %cst_119 {dimension_numbers = #tpu.dot_dimension_numbers<[1], [0], [0], [1], [0, 0, 1, 1], [], []>} : vector<73x16xbf16>, vector<16x32xbf16>, vector<73x32xf32> -> vector<73x32xf32>
    %126 = arith.addf %120, %125 : vector<73x32xf32>
    %c14 = arith.constant 14 : index
    %c0_120 = arith.constant 0 : index
    %127 = vector.load %arg26[%c14, %c0_120] : memref<121x16xf32, #tpu.memory_space<vmem>>, vector<73x16xf32>
    %128 = arith.truncf %127 : vector<73x16xf32> to vector<73x16xbf16>
    %c8_121 = arith.constant 8 : index
    %c0_122 = arith.constant 0 : index
    %c0_123 = arith.constant 0 : index
    %129 = vector.load %arg4[%c8_121, %c0_122, %c0_123] : memref<25x16x32xbf16, #tpu.memory_space<vmem>>, vector<1x16x32xbf16>
    %130 = vector.shape_cast %129 : vector<1x16x32xbf16> to vector<16x32xbf16>
    %cst_124 = arith.constant dense<0.000000e+00> : vector<73x32xf32>
    %131 = tpu.matmul %128, %130, %cst_124 {dimension_numbers = #tpu.dot_dimension_numbers<[1], [0], [0], [1], [0, 0, 1, 1], [], []>} : vector<73x16xbf16>, vector<16x32xbf16>, vector<73x32xf32> -> vector<73x32xf32>
    %132 = arith.addf %126, %131 : vector<73x32xf32>
    %c15 = arith.constant 15 : index
    %c0_125 = arith.constant 0 : index
    %133 = vector.load %arg26[%c15, %c0_125] : memref<121x16xf32, #tpu.memory_space<vmem>>, vector<73x16xf32>
    %134 = arith.truncf %133 : vector<73x16xf32> to vector<73x16xbf16>
    %c9 = arith.constant 9 : index
    %c0_126 = arith.constant 0 : index
    %c0_127 = arith.constant 0 : index
    %135 = vector.load %arg4[%c9, %c0_126, %c0_127] : memref<25x16x32xbf16, #tpu.memory_space<vmem>>, vector<1x16x32xbf16>
    %136 = vector.shape_cast %135 : vector<1x16x32xbf16> to vector<16x32xbf16>
    %cst_128 = arith.constant dense<0.000000e+00> : vector<73x32xf32>
    %137 = tpu.matmul %134, %136, %cst_128 {dimension_numbers = #tpu.dot_dimension_numbers<[1], [0], [0], [1], [0, 0, 1, 1], [], []>} : vector<73x16xbf16>, vector<16x32xbf16>, vector<73x32xf32> -> vector<73x32xf32>
    %138 = arith.addf %132, %137 : vector<73x32xf32>
    %c22 = arith.constant 22 : index
    %c0_129 = arith.constant 0 : index
    %139 = vector.load %arg26[%c22, %c0_129] : memref<121x16xf32, #tpu.memory_space<vmem>>, vector<73x16xf32>
    %140 = arith.truncf %139 : vector<73x16xf32> to vector<73x16xbf16>
    %c10 = arith.constant 10 : index
    %c0_130 = arith.constant 0 : index
    %c0_131 = arith.constant 0 : index
    %141 = vector.load %arg4[%c10, %c0_130, %c0_131] : memref<25x16x32xbf16, #tpu.memory_space<vmem>>, vector<1x16x32xbf16>
    %142 = vector.shape_cast %141 : vector<1x16x32xbf16> to vector<16x32xbf16>
    %cst_132 = arith.constant dense<0.000000e+00> : vector<73x32xf32>
    %143 = tpu.matmul %140, %142, %cst_132 {dimension_numbers = #tpu.dot_dimension_numbers<[1], [0], [0], [1], [0, 0, 1, 1], [], []>} : vector<73x16xbf16>, vector<16x32xbf16>, vector<73x32xf32> -> vector<73x32xf32>
    %144 = arith.addf %138, %143 : vector<73x32xf32>
    %c23 = arith.constant 23 : index
    %c0_133 = arith.constant 0 : index
    %145 = vector.load %arg26[%c23, %c0_133] : memref<121x16xf32, #tpu.memory_space<vmem>>, vector<73x16xf32>
    %146 = arith.truncf %145 : vector<73x16xf32> to vector<73x16xbf16>
    %c11_134 = arith.constant 11 : index
    %c0_135 = arith.constant 0 : index
    %c0_136 = arith.constant 0 : index
    %147 = vector.load %arg4[%c11_134, %c0_135, %c0_136] : memref<25x16x32xbf16, #tpu.memory_space<vmem>>, vector<1x16x32xbf16>
    %148 = vector.shape_cast %147 : vector<1x16x32xbf16> to vector<16x32xbf16>
    %cst_137 = arith.constant dense<0.000000e+00> : vector<73x32xf32>
    %149 = tpu.matmul %146, %148, %cst_137 {dimension_numbers = #tpu.dot_dimension_numbers<[1], [0], [0], [1], [0, 0, 1, 1], [], []>} : vector<73x16xbf16>, vector<16x32xbf16>, vector<73x32xf32> -> vector<73x32xf32>
    %150 = arith.addf %144, %149 : vector<73x32xf32>
    %c24 = arith.constant 24 : index
    %c0_138 = arith.constant 0 : index
    %151 = vector.load %arg26[%c24, %c0_138] : memref<121x16xf32, #tpu.memory_space<vmem>>, vector<73x16xf32>
    %152 = arith.truncf %151 : vector<73x16xf32> to vector<73x16xbf16>
    %c12_139 = arith.constant 12 : index
    %c0_140 = arith.constant 0 : index
    %c0_141 = arith.constant 0 : index
    %153 = vector.load %arg4[%c12_139, %c0_140, %c0_141] : memref<25x16x32xbf16, #tpu.memory_space<vmem>>, vector<1x16x32xbf16>
    %154 = vector.shape_cast %153 : vector<1x16x32xbf16> to vector<16x32xbf16>
    %cst_142 = arith.constant dense<0.000000e+00> : vector<73x32xf32>
    %155 = tpu.matmul %152, %154, %cst_142 {dimension_numbers = #tpu.dot_dimension_numbers<[1], [0], [0], [1], [0, 0, 1, 1], [], []>} : vector<73x16xbf16>, vector<16x32xbf16>, vector<73x32xf32> -> vector<73x32xf32>
    %156 = arith.addf %150, %155 : vector<73x32xf32>
    %c25 = arith.constant 25 : index
    %c0_143 = arith.constant 0 : index
    %157 = vector.load %arg26[%c25, %c0_143] : memref<121x16xf32, #tpu.memory_space<vmem>>, vector<73x16xf32>
    %158 = arith.truncf %157 : vector<73x16xf32> to vector<73x16xbf16>
    %c13_144 = arith.constant 13 : index
    %c0_145 = arith.constant 0 : index
    %c0_146 = arith.constant 0 : index
    %159 = vector.load %arg4[%c13_144, %c0_145, %c0_146] : memref<25x16x32xbf16, #tpu.memory_space<vmem>>, vector<1x16x32xbf16>
    %160 = vector.shape_cast %159 : vector<1x16x32xbf16> to vector<16x32xbf16>
    %cst_147 = arith.constant dense<0.000000e+00> : vector<73x32xf32>
    %161 = tpu.matmul %158, %160, %cst_147 {dimension_numbers = #tpu.dot_dimension_numbers<[1], [0], [0], [1], [0, 0, 1, 1], [], []>} : vector<73x16xbf16>, vector<16x32xbf16>, vector<73x32xf32> -> vector<73x32xf32>
    %162 = arith.addf %156, %161 : vector<73x32xf32>
    %c26 = arith.constant 26 : index
    %c0_148 = arith.constant 0 : index
    %163 = vector.load %arg26[%c26, %c0_148] : memref<121x16xf32, #tpu.memory_space<vmem>>, vector<73x16xf32>
    %164 = arith.truncf %163 : vector<73x16xf32> to vector<73x16xbf16>
    %c14_149 = arith.constant 14 : index
    %c0_150 = arith.constant 0 : index
    %c0_151 = arith.constant 0 : index
    %165 = vector.load %arg4[%c14_149, %c0_150, %c0_151] : memref<25x16x32xbf16, #tpu.memory_space<vmem>>, vector<1x16x32xbf16>
    %166 = vector.shape_cast %165 : vector<1x16x32xbf16> to vector<16x32xbf16>
    %cst_152 = arith.constant dense<0.000000e+00> : vector<73x32xf32>
    %167 = tpu.matmul %164, %166, %cst_152 {dimension_numbers = #tpu.dot_dimension_numbers<[1], [0], [0], [1], [0, 0, 1, 1], [], []>} : vector<73x16xbf16>, vector<16x32xbf16>, vector<73x32xf32> -> vector<73x32xf32>
    %168 = arith.addf %162, %167 : vector<73x32xf32>
    %c33 = arith.constant 33 : index
    %c0_153 = arith.constant 0 : index
    %169 = vector.load %arg26[%c33, %c0_153] : memref<121x16xf32, #tpu.memory_space<vmem>>, vector<73x16xf32>
    %170 = arith.truncf %169 : vector<73x16xf32> to vector<73x16xbf16>
    %c15_154 = arith.constant 15 : index
    %c0_155 = arith.constant 0 : index
    %c0_156 = arith.constant 0 : index
    %171 = vector.load %arg4[%c15_154, %c0_155, %c0_156] : memref<25x16x32xbf16, #tpu.memory_space<vmem>>, vector<1x16x32xbf16>
    %172 = vector.shape_cast %171 : vector<1x16x32xbf16> to vector<16x32xbf16>
    %cst_157 = arith.constant dense<0.000000e+00> : vector<73x32xf32>
    %173 = tpu.matmul %170, %172, %cst_157 {dimension_numbers = #tpu.dot_dimension_numbers<[1], [0], [0], [1], [0, 0, 1, 1], [], []>} : vector<73x16xbf16>, vector<16x32xbf16>, vector<73x32xf32> -> vector<73x32xf32>
    %174 = arith.addf %168, %173 : vector<73x32xf32>
    %c34_158 = arith.constant 34 : index
    %c0_159 = arith.constant 0 : index
    %175 = vector.load %arg26[%c34_158, %c0_159] : memref<121x16xf32, #tpu.memory_space<vmem>>, vector<73x16xf32>
    %176 = arith.truncf %175 : vector<73x16xf32> to vector<73x16xbf16>
    %c16 = arith.constant 16 : index
    %c0_160 = arith.constant 0 : index
    %c0_161 = arith.constant 0 : index
    %177 = vector.load %arg4[%c16, %c0_160, %c0_161] : memref<25x16x32xbf16, #tpu.memory_space<vmem>>, vector<1x16x32xbf16>
    %178 = vector.shape_cast %177 : vector<1x16x32xbf16> to vector<16x32xbf16>
    %cst_162 = arith.constant dense<0.000000e+00> : vector<73x32xf32>
    %179 = tpu.matmul %176, %178, %cst_162 {dimension_numbers = #tpu.dot_dimension_numbers<[1], [0], [0], [1], [0, 0, 1, 1], [], []>} : vector<73x16xbf16>, vector<16x32xbf16>, vector<73x32xf32> -> vector<73x32xf32>
    %180 = arith.addf %174, %179 : vector<73x32xf32>
    %c35_163 = arith.constant 35 : index
    %c0_164 = arith.constant 0 : index
    %181 = vector.load %arg26[%c35_163, %c0_164] : memref<121x16xf32, #tpu.memory_space<vmem>>, vector<73x16xf32>
    %182 = arith.truncf %181 : vector<73x16xf32> to vector<73x16xbf16>
    %c17_165 = arith.constant 17 : index
    %c0_166 = arith.constant 0 : index
    %c0_167 = arith.constant 0 : index
    %183 = vector.load %arg4[%c17_165, %c0_166, %c0_167] : memref<25x16x32xbf16, #tpu.memory_space<vmem>>, vector<1x16x32xbf16>
    %184 = vector.shape_cast %183 : vector<1x16x32xbf16> to vector<16x32xbf16>
    %cst_168 = arith.constant dense<0.000000e+00> : vector<73x32xf32>
    %185 = tpu.matmul %182, %184, %cst_168 {dimension_numbers = #tpu.dot_dimension_numbers<[1], [0], [0], [1], [0, 0, 1, 1], [], []>} : vector<73x16xbf16>, vector<16x32xbf16>, vector<73x32xf32> -> vector<73x32xf32>
    %186 = arith.addf %180, %185 : vector<73x32xf32>
    %c36_169 = arith.constant 36 : index
    %c0_170 = arith.constant 0 : index
    %187 = vector.load %arg26[%c36_169, %c0_170] : memref<121x16xf32, #tpu.memory_space<vmem>>, vector<73x16xf32>
    %188 = arith.truncf %187 : vector<73x16xf32> to vector<73x16xbf16>
    %c18_171 = arith.constant 18 : index
    %c0_172 = arith.constant 0 : index
    %c0_173 = arith.constant 0 : index
    %189 = vector.load %arg4[%c18_171, %c0_172, %c0_173] : memref<25x16x32xbf16, #tpu.memory_space<vmem>>, vector<1x16x32xbf16>
    %190 = vector.shape_cast %189 : vector<1x16x32xbf16> to vector<16x32xbf16>
    %cst_174 = arith.constant dense<0.000000e+00> : vector<73x32xf32>
    %191 = tpu.matmul %188, %190, %cst_174 {dimension_numbers = #tpu.dot_dimension_numbers<[1], [0], [0], [1], [0, 0, 1, 1], [], []>} : vector<73x16xbf16>, vector<16x32xbf16>, vector<73x32xf32> -> vector<73x32xf32>
    %192 = arith.addf %186, %191 : vector<73x32xf32>
    %c37 = arith.constant 37 : index
    %c0_175 = arith.constant 0 : index
    %193 = vector.load %arg26[%c37, %c0_175] : memref<121x16xf32, #tpu.memory_space<vmem>>, vector<73x16xf32>
    %194 = arith.truncf %193 : vector<73x16xf32> to vector<73x16xbf16>
    %c19_176 = arith.constant 19 : index
    %c0_177 = arith.constant 0 : index
    %c0_178 = arith.constant 0 : index
    %195 = vector.load %arg4[%c19_176, %c0_177, %c0_178] : memref<25x16x32xbf16, #tpu.memory_space<vmem>>, vector<1x16x32xbf16>
    %196 = vector.shape_cast %195 : vector<1x16x32xbf16> to vector<16x32xbf16>
    %cst_179 = arith.constant dense<0.000000e+00> : vector<73x32xf32>
    %197 = tpu.matmul %194, %196, %cst_179 {dimension_numbers = #tpu.dot_dimension_numbers<[1], [0], [0], [1], [0, 0, 1, 1], [], []>} : vector<73x16xbf16>, vector<16x32xbf16>, vector<73x32xf32> -> vector<73x32xf32>
    %198 = arith.addf %192, %197 : vector<73x32xf32>
    %c44 = arith.constant 44 : index
    %c0_180 = arith.constant 0 : index
    %199 = vector.load %arg26[%c44, %c0_180] : memref<121x16xf32, #tpu.memory_space<vmem>>, vector<73x16xf32>
    %200 = arith.truncf %199 : vector<73x16xf32> to vector<73x16xbf16>
    %c20 = arith.constant 20 : index
    %c0_181 = arith.constant 0 : index
    %c0_182 = arith.constant 0 : index
    %201 = vector.load %arg4[%c20, %c0_181, %c0_182] : memref<25x16x32xbf16, #tpu.memory_space<vmem>>, vector<1x16x32xbf16>
    %202 = vector.shape_cast %201 : vector<1x16x32xbf16> to vector<16x32xbf16>
    %cst_183 = arith.constant dense<0.000000e+00> : vector<73x32xf32>
    %203 = tpu.matmul %200, %202, %cst_183 {dimension_numbers = #tpu.dot_dimension_numbers<[1], [0], [0], [1], [0, 0, 1, 1], [], []>} : vector<73x16xbf16>, vector<16x32xbf16>, vector<73x32xf32> -> vector<73x32xf32>
    %204 = arith.addf %198, %203 : vector<73x32xf32>
    %c45 = arith.constant 45 : index
    %c0_184 = arith.constant 0 : index
    %205 = vector.load %arg26[%c45, %c0_184] : memref<121x16xf32, #tpu.memory_space<vmem>>, vector<73x16xf32>
    %206 = arith.truncf %205 : vector<73x16xf32> to vector<73x16xbf16>
    %c21 = arith.constant 21 : index
    %c0_185 = arith.constant 0 : index
    %c0_186 = arith.constant 0 : index
    %207 = vector.load %arg4[%c21, %c0_185, %c0_186] : memref<25x16x32xbf16, #tpu.memory_space<vmem>>, vector<1x16x32xbf16>
    %208 = vector.shape_cast %207 : vector<1x16x32xbf16> to vector<16x32xbf16>
    %cst_187 = arith.constant dense<0.000000e+00> : vector<73x32xf32>
    %209 = tpu.matmul %206, %208, %cst_187 {dimension_numbers = #tpu.dot_dimension_numbers<[1], [0], [0], [1], [0, 0, 1, 1], [], []>} : vector<73x16xbf16>, vector<16x32xbf16>, vector<73x32xf32> -> vector<73x32xf32>
    %210 = arith.addf %204, %209 : vector<73x32xf32>
    %c46 = arith.constant 46 : index
    %c0_188 = arith.constant 0 : index
    %211 = vector.load %arg26[%c46, %c0_188] : memref<121x16xf32, #tpu.memory_space<vmem>>, vector<73x16xf32>
    %212 = arith.truncf %211 : vector<73x16xf32> to vector<73x16xbf16>
    %c22_189 = arith.constant 22 : index
    %c0_190 = arith.constant 0 : index
    %c0_191 = arith.constant 0 : index
    %213 = vector.load %arg4[%c22_189, %c0_190, %c0_191] : memref<25x16x32xbf16, #tpu.memory_space<vmem>>, vector<1x16x32xbf16>
    %214 = vector.shape_cast %213 : vector<1x16x32xbf16> to vector<16x32xbf16>
    %cst_192 = arith.constant dense<0.000000e+00> : vector<73x32xf32>
    %215 = tpu.matmul %212, %214, %cst_192 {dimension_numbers = #tpu.dot_dimension_numbers<[1], [0], [0], [1], [0, 0, 1, 1], [], []>} : vector<73x16xbf16>, vector<16x32xbf16>, vector<73x32xf32> -> vector<73x32xf32>
    %216 = arith.addf %210, %215 : vector<73x32xf32>
    %c47 = arith.constant 47 : index
    %c0_193 = arith.constant 0 : index
    %217 = vector.load %arg26[%c47, %c0_193] : memref<121x16xf32, #tpu.memory_space<vmem>>, vector<73x16xf32>
    %218 = arith.truncf %217 : vector<73x16xf32> to vector<73x16xbf16>
    %c23_194 = arith.constant 23 : index
    %c0_195 = arith.constant 0 : index
    %c0_196 = arith.constant 0 : index
    %219 = vector.load %arg4[%c23_194, %c0_195, %c0_196] : memref<25x16x32xbf16, #tpu.memory_space<vmem>>, vector<1x16x32xbf16>
    %220 = vector.shape_cast %219 : vector<1x16x32xbf16> to vector<16x32xbf16>
    %cst_197 = arith.constant dense<0.000000e+00> : vector<73x32xf32>
    %221 = tpu.matmul %218, %220, %cst_197 {dimension_numbers = #tpu.dot_dimension_numbers<[1], [0], [0], [1], [0, 0, 1, 1], [], []>} : vector<73x16xbf16>, vector<16x32xbf16>, vector<73x32xf32> -> vector<73x32xf32>
    %222 = arith.addf %216, %221 : vector<73x32xf32>
    %c48 = arith.constant 48 : index
    %c0_198 = arith.constant 0 : index
    %223 = vector.load %arg26[%c48, %c0_198] : memref<121x16xf32, #tpu.memory_space<vmem>>, vector<73x16xf32>
    %224 = arith.truncf %223 : vector<73x16xf32> to vector<73x16xbf16>
    %c24_199 = arith.constant 24 : index
    %c0_200 = arith.constant 0 : index
    %c0_201 = arith.constant 0 : index
    %225 = vector.load %arg4[%c24_199, %c0_200, %c0_201] : memref<25x16x32xbf16, #tpu.memory_space<vmem>>, vector<1x16x32xbf16>
    %226 = vector.shape_cast %225 : vector<1x16x32xbf16> to vector<16x32xbf16>
    %cst_202 = arith.constant dense<0.000000e+00> : vector<73x32xf32>
    %227 = tpu.matmul %224, %226, %cst_202 {dimension_numbers = #tpu.dot_dimension_numbers<[1], [0], [0], [1], [0, 0, 1, 1], [], []>} : vector<73x16xbf16>, vector<16x32xbf16>, vector<73x32xf32> -> vector<73x32xf32>
    %228 = arith.addf %222, %227 : vector<73x32xf32>
    %c0_203 = arith.constant 0 : index
    %c0_204 = arith.constant 0 : index
    %229 = vector.load %arg5[%c0_203, %c0_204] : memref<1x32xf32, #tpu.memory_space<vmem>>, vector<1x32xf32>
    %230 = vector.broadcast %229 : vector<1x32xf32> to vector<73x32xf32>
    %231 = arith.addf %228, %230 : vector<73x32xf32>
    %cst_205 = arith.constant 0.000000e+00 : f32
    %232 = vector.broadcast %cst_205 : f32 to vector<73x32xf32>
    %233 = arith.maximumf %231, %232 : vector<73x32xf32>
    %c0_206 = arith.constant 0 : index
    %c0_207 = arith.constant 0 : index
    %234 = vector.load %arg27[%c0_206, %c0_207] : memref<73x32xf32, #tpu.memory_space<vmem>>, vector<73x32xf32>
    tpu.vector_store %arg27[%c0_206, %c0_207], %233 {strides = array<i32>} : memref<73x32xf32, #tpu.memory_space<vmem>>, vector<73x32xf32>,
    %c0_208 = arith.constant 0 : index
    %c0_209 = arith.constant 0 : index
    %235 = vector.load %arg27[%c0_208, %c0_209] : memref<73x32xf32, #tpu.memory_space<vmem>>, vector<49x32xf32>
    %c1_210 = arith.constant 1 : index
    %c0_211 = arith.constant 0 : index
    %236 = vector.load %arg27[%c1_210, %c0_211] : memref<73x32xf32, #tpu.memory_space<vmem>>, vector<49x32xf32>
    %237 = arith.maximumf %235, %236 : vector<49x32xf32>
    %c2_212 = arith.constant 2 : index
    %c0_213 = arith.constant 0 : index
    %238 = vector.load %arg27[%c2_212, %c0_213] : memref<73x32xf32, #tpu.memory_space<vmem>>, vector<49x32xf32>
    %239 = arith.maximumf %237, %238 : vector<49x32xf32>
    %c11_214 = arith.constant 11 : index
    %c0_215 = arith.constant 0 : index
    %240 = vector.load %arg27[%c11_214, %c0_215] : memref<73x32xf32, #tpu.memory_space<vmem>>, vector<49x32xf32>
    %241 = arith.maximumf %239, %240 : vector<49x32xf32>
    %c12_216 = arith.constant 12 : index
    %c0_217 = arith.constant 0 : index
    %242 = vector.load %arg27[%c12_216, %c0_217] : memref<73x32xf32, #tpu.memory_space<vmem>>, vector<49x32xf32>
    %243 = arith.maximumf %241, %242 : vector<49x32xf32>
    %c13_218 = arith.constant 13 : index
    %c0_219 = arith.constant 0 : index
    %244 = vector.load %arg27[%c13_218, %c0_219] : memref<73x32xf32, #tpu.memory_space<vmem>>, vector<49x32xf32>
    %245 = arith.maximumf %243, %244 : vector<49x32xf32>
    %c22_220 = arith.constant 22 : index
    %c0_221 = arith.constant 0 : index
    %246 = vector.load %arg27[%c22_220, %c0_221] : memref<73x32xf32, #tpu.memory_space<vmem>>, vector<49x32xf32>
    %247 = arith.maximumf %245, %246 : vector<49x32xf32>
    %c23_222 = arith.constant 23 : index
    %c0_223 = arith.constant 0 : index
    %248 = vector.load %arg27[%c23_222, %c0_223] : memref<73x32xf32, #tpu.memory_space<vmem>>, vector<49x32xf32>
    %249 = arith.maximumf %247, %248 : vector<49x32xf32>
    %c24_224 = arith.constant 24 : index
    %c0_225 = arith.constant 0 : index
    %250 = vector.load %arg27[%c24_224, %c0_225] : memref<73x32xf32, #tpu.memory_space<vmem>>, vector<49x32xf32>
    %251 = arith.maximumf %249, %250 : vector<49x32xf32>
    %c0_226 = arith.constant 0 : index
    %c0_227 = arith.constant 0 : index
    %252 = vector.load %arg13[%c0_226, %c0_227] : memref<25x49xbf16, #tpu.memory_space<vmem>>, vector<25x49xbf16>
    %253 = arith.truncf %251 : vector<49x32xf32> to vector<49x32xbf16>
    %cst_228 = arith.constant dense<0.000000e+00> : vector<25x32xf32>
    %254 = tpu.matmul %252, %253, %cst_228 {dimension_numbers = #tpu.dot_dimension_numbers<[1], [0], [0], [1], [0, 0, 1, 1], [], []>} : vector<25x49xbf16>, vector<49x32xbf16>, vector<25x32xf32> -> vector<25x32xf32>
    %c0_229 = arith.constant 0 : index
    %c0_230 = arith.constant 0 : index
    %255 = vector.load %arg28[%c0_229, %c0_230] : memref<25x32xf32, #tpu.memory_space<vmem>>, vector<25x32xf32>
    tpu.vector_store %arg28[%c0_229, %c0_230], %254 {strides = array<i32>} : memref<25x32xf32, #tpu.memory_space<vmem>>, vector<25x32xf32>,
    %c0_231 = arith.constant 0 : index
    %c0_232 = arith.constant 0 : index
    %256 = vector.load %arg14[%c0_231, %c0_232] : memref<13x1xf32, #tpu.memory_space<vmem>>, vector<13x1xf32>
    %cst_233 = arith.constant 0.000000e+00 : f32
    %257 = vector.broadcast %cst_233 : f32 to vector<6x48xf32>
    %cst_234 = arith.constant 0.000000e+00 : f32
    %258 = vector.broadcast %cst_234 : f32 to vector<6x32xf32>
    %c0_235 = arith.constant 0 : index
    %c0_236 = arith.constant 0 : index
    %259 = vector.load %arg28[%c0_235, %c0_236] : memref<25x32xf32, #tpu.memory_space<vmem>>, vector<13x32xf32>
    %260 = arith.truncf %259 : vector<13x32xf32> to vector<13x32xbf16>
    %c0_237 = arith.constant 0 : index
    %c0_238 = arith.constant 0 : index
    %c0_239 = arith.constant 0 : index
    %261 = vector.load %arg6[%c0_237, %c0_238, %c0_239] : memref<9x32x48xbf16, #tpu.memory_space<vmem>>, vector<1x32x48xbf16>
    %262 = vector.shape_cast %261 : vector<1x32x48xbf16> to vector<32x48xbf16>
    %cst_240 = arith.constant dense<0.000000e+00> : vector<13x48xf32>
    %263 = tpu.matmul %260, %262, %cst_240 {dimension_numbers = #tpu.dot_dimension_numbers<[1], [0], [0], [1], [0, 0, 1, 1], [], []>} : vector<13x32xbf16>, vector<32x48xbf16>, vector<13x48xf32> -> vector<13x48xf32>
    %c1_241 = arith.constant 1 : index
    %c0_242 = arith.constant 0 : index
    %264 = vector.load %arg28[%c1_241, %c0_242] : memref<25x32xf32, #tpu.memory_space<vmem>>, vector<13x32xf32>
    %265 = arith.truncf %264 : vector<13x32xf32> to vector<13x32xbf16>
    %c1_243 = arith.constant 1 : index
    %c0_244 = arith.constant 0 : index
    %c0_245 = arith.constant 0 : index
    %266 = vector.load %arg6[%c1_243, %c0_244, %c0_245] : memref<9x32x48xbf16, #tpu.memory_space<vmem>>, vector<1x32x48xbf16>
    %267 = vector.shape_cast %266 : vector<1x32x48xbf16> to vector<32x48xbf16>
    %cst_246 = arith.constant dense<0.000000e+00> : vector<13x48xf32>
    %268 = tpu.matmul %265, %267, %cst_246 {dimension_numbers = #tpu.dot_dimension_numbers<[1], [0], [0], [1], [0, 0, 1, 1], [], []>} : vector<13x32xbf16>, vector<32x48xbf16>, vector<13x48xf32> -> vector<13x48xf32>
    %269 = arith.addf %263, %268 : vector<13x48xf32>
    %c2_247 = arith.constant 2 : index
    %c0_248 = arith.constant 0 : index
    %270 = vector.load %arg28[%c2_247, %c0_248] : memref<25x32xf32, #tpu.memory_space<vmem>>, vector<13x32xf32>
    %271 = arith.truncf %270 : vector<13x32xf32> to vector<13x32xbf16>
    %c2_249 = arith.constant 2 : index
    %c0_250 = arith.constant 0 : index
    %c0_251 = arith.constant 0 : index
    %272 = vector.load %arg6[%c2_249, %c0_250, %c0_251] : memref<9x32x48xbf16, #tpu.memory_space<vmem>>, vector<1x32x48xbf16>
    %273 = vector.shape_cast %272 : vector<1x32x48xbf16> to vector<32x48xbf16>
    %cst_252 = arith.constant dense<0.000000e+00> : vector<13x48xf32>
    %274 = tpu.matmul %271, %273, %cst_252 {dimension_numbers = #tpu.dot_dimension_numbers<[1], [0], [0], [1], [0, 0, 1, 1], [], []>} : vector<13x32xbf16>, vector<32x48xbf16>, vector<13x48xf32> -> vector<13x48xf32>
    %275 = arith.addf %269, %274 : vector<13x48xf32>
    %c5_253 = arith.constant 5 : index
    %c0_254 = arith.constant 0 : index
    %276 = vector.load %arg28[%c5_253, %c0_254] : memref<25x32xf32, #tpu.memory_space<vmem>>, vector<13x32xf32>
    %277 = arith.truncf %276 : vector<13x32xf32> to vector<13x32xbf16>
    %c3_255 = arith.constant 3 : index
    %c0_256 = arith.constant 0 : index
    %c0_257 = arith.constant 0 : index
    %278 = vector.load %arg6[%c3_255, %c0_256, %c0_257] : memref<9x32x48xbf16, #tpu.memory_space<vmem>>, vector<1x32x48xbf16>
    %279 = vector.shape_cast %278 : vector<1x32x48xbf16> to vector<32x48xbf16>
    %cst_258 = arith.constant dense<0.000000e+00> : vector<13x48xf32>
    %280 = tpu.matmul %277, %279, %cst_258 {dimension_numbers = #tpu.dot_dimension_numbers<[1], [0], [0], [1], [0, 0, 1, 1], [], []>} : vector<13x32xbf16>, vector<32x48xbf16>, vector<13x48xf32> -> vector<13x48xf32>
    %281 = arith.addf %275, %280 : vector<13x48xf32>
    %c6_259 = arith.constant 6 : index
    %c0_260 = arith.constant 0 : index
    %282 = vector.load %arg28[%c6_259, %c0_260] : memref<25x32xf32, #tpu.memory_space<vmem>>, vector<13x32xf32>
    %283 = arith.truncf %282 : vector<13x32xf32> to vector<13x32xbf16>
    %c4_261 = arith.constant 4 : index
    %c0_262 = arith.constant 0 : index
    %c0_263 = arith.constant 0 : index
    %284 = vector.load %arg6[%c4_261, %c0_262, %c0_263] : memref<9x32x48xbf16, #tpu.memory_space<vmem>>, vector<1x32x48xbf16>
    %285 = vector.shape_cast %284 : vector<1x32x48xbf16> to vector<32x48xbf16>
    %cst_264 = arith.constant dense<0.000000e+00> : vector<13x48xf32>
    %286 = tpu.matmul %283, %285, %cst_264 {dimension_numbers = #tpu.dot_dimension_numbers<[1], [0], [0], [1], [0, 0, 1, 1], [], []>} : vector<13x32xbf16>, vector<32x48xbf16>, vector<13x48xf32> -> vector<13x48xf32>
    %287 = arith.addf %281, %286 : vector<13x48xf32>
    %c7_265 = arith.constant 7 : index
    %c0_266 = arith.constant 0 : index
    %288 = vector.load %arg28[%c7_265, %c0_266] : memref<25x32xf32, #tpu.memory_space<vmem>>, vector<13x32xf32>
    %289 = arith.truncf %288 : vector<13x32xf32> to vector<13x32xbf16>
    %c5_267 = arith.constant 5 : index
    %c0_268 = arith.constant 0 : index
    %c0_269 = arith.constant 0 : index
    %290 = vector.load %arg6[%c5_267, %c0_268, %c0_269] : memref<9x32x48xbf16, #tpu.memory_space<vmem>>, vector<1x32x48xbf16>
    %291 = vector.shape_cast %290 : vector<1x32x48xbf16> to vector<32x48xbf16>
    %cst_270 = arith.constant dense<0.000000e+00> : vector<13x48xf32>
    %292 = tpu.matmul %289, %291, %cst_270 {dimension_numbers = #tpu.dot_dimension_numbers<[1], [0], [0], [1], [0, 0, 1, 1], [], []>} : vector<13x32xbf16>, vector<32x48xbf16>, vector<13x48xf32> -> vector<13x48xf32>
    %293 = arith.addf %287, %292 : vector<13x48xf32>
    %c10_271 = arith.constant 10 : index
    %c0_272 = arith.constant 0 : index
    %294 = vector.load %arg28[%c10_271, %c0_272] : memref<25x32xf32, #tpu.memory_space<vmem>>, vector<13x32xf32>
    %295 = arith.truncf %294 : vector<13x32xf32> to vector<13x32xbf16>
    %c6_273 = arith.constant 6 : index
    %c0_274 = arith.constant 0 : index
    %c0_275 = arith.constant 0 : index
    %296 = vector.load %arg6[%c6_273, %c0_274, %c0_275] : memref<9x32x48xbf16, #tpu.memory_space<vmem>>, vector<1x32x48xbf16>
    %297 = vector.shape_cast %296 : vector<1x32x48xbf16> to vector<32x48xbf16>
    %cst_276 = arith.constant dense<0.000000e+00> : vector<13x48xf32>
    %298 = tpu.matmul %295, %297, %cst_276 {dimension_numbers = #tpu.dot_dimension_numbers<[1], [0], [0], [1], [0, 0, 1, 1], [], []>} : vector<13x32xbf16>, vector<32x48xbf16>, vector<13x48xf32> -> vector<13x48xf32>
    %299 = arith.addf %293, %298 : vector<13x48xf32>
    %c11_277 = arith.constant 11 : index
    %c0_278 = arith.constant 0 : index
    %300 = vector.load %arg28[%c11_277, %c0_278] : memref<25x32xf32, #tpu.memory_space<vmem>>, vector<13x32xf32>
    %301 = arith.truncf %300 : vector<13x32xf32> to vector<13x32xbf16>
    %c7_279 = arith.constant 7 : index
    %c0_280 = arith.constant 0 : index
    %c0_281 = arith.constant 0 : index
    %302 = vector.load %arg6[%c7_279, %c0_280, %c0_281] : memref<9x32x48xbf16, #tpu.memory_space<vmem>>, vector<1x32x48xbf16>
    %303 = vector.shape_cast %302 : vector<1x32x48xbf16> to vector<32x48xbf16>
    %cst_282 = arith.constant dense<0.000000e+00> : vector<13x48xf32>
    %304 = tpu.matmul %301, %303, %cst_282 {dimension_numbers = #tpu.dot_dimension_numbers<[1], [0], [0], [1], [0, 0, 1, 1], [], []>} : vector<13x32xbf16>, vector<32x48xbf16>, vector<13x48xf32> -> vector<13x48xf32>
    %305 = arith.addf %299, %304 : vector<13x48xf32>
    %c12_283 = arith.constant 12 : index
    %c0_284 = arith.constant 0 : index
    %306 = vector.load %arg28[%c12_283, %c0_284] : memref<25x32xf32, #tpu.memory_space<vmem>>, vector<13x32xf32>
    %307 = arith.truncf %306 : vector<13x32xf32> to vector<13x32xbf16>
    %c8_285 = arith.constant 8 : index
    %c0_286 = arith.constant 0 : index
    %c0_287 = arith.constant 0 : index
    %308 = vector.load %arg6[%c8_285, %c0_286, %c0_287] : memref<9x32x48xbf16, #tpu.memory_space<vmem>>, vector<1x32x48xbf16>
    %309 = vector.shape_cast %308 : vector<1x32x48xbf16> to vector<32x48xbf16>
    %cst_288 = arith.constant dense<0.000000e+00> : vector<13x48xf32>
    %310 = tpu.matmul %307, %309, %cst_288 {dimension_numbers = #tpu.dot_dimension_numbers<[1], [0], [0], [1], [0, 0, 1, 1], [], []>} : vector<13x32xbf16>, vector<32x48xbf16>, vector<13x48xf32> -> vector<13x48xf32>
    %311 = arith.addf %305, %310 : vector<13x48xf32>
    %c0_289 = arith.constant 0 : index
    %c0_290 = arith.constant 0 : index
    %312 = vector.load %arg7[%c0_289, %c0_290] : memref<1x48xf32, #tpu.memory_space<vmem>>, vector<1x48xf32>
    %313 = vector.broadcast %312 : vector<1x48xf32> to vector<13x48xf32>
    %314 = arith.addf %311, %313 : vector<13x48xf32>
    %cst_291 = arith.constant 0.000000e+00 : f32
    %315 = vector.broadcast %cst_291 : f32 to vector<13x48xf32>
    %316 = arith.maximumf %314, %315 : vector<13x48xf32>
    %317 = vector.broadcast %256 : vector<13x1xf32> to vector<13x48xf32>
    %318 = arith.mulf %316, %317 : vector<13x48xf32>
    %c0_292 = arith.constant 0 : index
    %c0_293 = arith.constant 0 : index
    %319 = vector.load %arg29[%c0_292, %c0_293] : memref<25x48xf32, #tpu.memory_space<vmem>>, vector<6x48xf32>
    tpu.vector_store %arg29[%c0_292, %c0_293], %257 {strides = array<i32>} : memref<25x48xf32, #tpu.memory_space<vmem>>, vector<6x48xf32>,
    %c19_294 = arith.constant 19 : index
    %c0_295 = arith.constant 0 : index
    %320 = vector.load %arg29[%c19_294, %c0_295] : memref<25x48xf32, #tpu.memory_space<vmem>>, vector<6x48xf32>
    tpu.vector_store %arg29[%c19_294, %c0_295], %257 {strides = array<i32>} : memref<25x48xf32, #tpu.memory_space<vmem>>, vector<6x48xf32>,
    %c6_296 = arith.constant 6 : index
    %c0_297 = arith.constant 0 : index
    %321 = vector.load %arg29[%c6_296, %c0_297] : memref<25x48xf32, #tpu.memory_space<vmem>>, vector<13x48xf32>
    tpu.vector_store %arg29[%c6_296, %c0_297], %318 {strides = array<i32>} : memref<25x48xf32, #tpu.memory_space<vmem>>, vector<13x48xf32>,
    %c0_298 = arith.constant 0 : index
    %c0_299 = arith.constant 0 : index
    %322 = vector.load %arg29[%c0_298, %c0_299] : memref<25x48xf32, #tpu.memory_space<vmem>>, vector<13x48xf32>
    %323 = arith.truncf %322 : vector<13x48xf32> to vector<13x48xbf16>
    %c0_300 = arith.constant 0 : index
    %c0_301 = arith.constant 0 : index
    %c0_302 = arith.constant 0 : index
    %324 = vector.load %arg8[%c0_300, %c0_301, %c0_302] : memref<9x48x32xbf16, #tpu.memory_space<vmem>>, vector<1x48x32xbf16>
    %325 = vector.shape_cast %324 : vector<1x48x32xbf16> to vector<48x32xbf16>
    %cst_303 = arith.constant dense<0.000000e+00> : vector<13x32xf32>
    %326 = tpu.matmul %323, %325, %cst_303 {dimension_numbers = #tpu.dot_dimension_numbers<[1], [0], [0], [1], [0, 0, 1, 1], [], []>} : vector<13x48xbf16>, vector<48x32xbf16>, vector<13x32xf32> -> vector<13x32xf32>
    %c1_304 = arith.constant 1 : index
    %c0_305 = arith.constant 0 : index
    %327 = vector.load %arg29[%c1_304, %c0_305] : memref<25x48xf32, #tpu.memory_space<vmem>>, vector<13x48xf32>
    %328 = arith.truncf %327 : vector<13x48xf32> to vector<13x48xbf16>
    %c1_306 = arith.constant 1 : index
    %c0_307 = arith.constant 0 : index
    %c0_308 = arith.constant 0 : index
    %329 = vector.load %arg8[%c1_306, %c0_307, %c0_308] : memref<9x48x32xbf16, #tpu.memory_space<vmem>>, vector<1x48x32xbf16>
    %330 = vector.shape_cast %329 : vector<1x48x32xbf16> to vector<48x32xbf16>
    %cst_309 = arith.constant dense<0.000000e+00> : vector<13x32xf32>
    %331 = tpu.matmul %328, %330, %cst_309 {dimension_numbers = #tpu.dot_dimension_numbers<[1], [0], [0], [1], [0, 0, 1, 1], [], []>} : vector<13x48xbf16>, vector<48x32xbf16>, vector<13x32xf32> -> vector<13x32xf32>
    %332 = arith.addf %326, %331 : vector<13x32xf32>
    %c2_310 = arith.constant 2 : index
    %c0_311 = arith.constant 0 : index
    %333 = vector.load %arg29[%c2_310, %c0_311] : memref<25x48xf32, #tpu.memory_space<vmem>>, vector<13x48xf32>
    %334 = arith.truncf %333 : vector<13x48xf32> to vector<13x48xbf16>
    %c2_312 = arith.constant 2 : index
    %c0_313 = arith.constant 0 : index
    %c0_314 = arith.constant 0 : index
    %335 = vector.load %arg8[%c2_312, %c0_313, %c0_314] : memref<9x48x32xbf16, #tpu.memory_space<vmem>>, vector<1x48x32xbf16>
    %336 = vector.shape_cast %335 : vector<1x48x32xbf16> to vector<48x32xbf16>
    %cst_315 = arith.constant dense<0.000000e+00> : vector<13x32xf32>
    %337 = tpu.matmul %334, %336, %cst_315 {dimension_numbers = #tpu.dot_dimension_numbers<[1], [0], [0], [1], [0, 0, 1, 1], [], []>} : vector<13x48xbf16>, vector<48x32xbf16>, vector<13x32xf32> -> vector<13x32xf32>
    %338 = arith.addf %332, %337 : vector<13x32xf32>
    %c5_316 = arith.constant 5 : index
    %c0_317 = arith.constant 0 : index
    %339 = vector.load %arg29[%c5_316, %c0_317] : memref<25x48xf32, #tpu.memory_space<vmem>>, vector<13x48xf32>
    %340 = arith.truncf %339 : vector<13x48xf32> to vector<13x48xbf16>
    %c3_318 = arith.constant 3 : index
    %c0_319 = arith.constant 0 : index
    %c0_320 = arith.constant 0 : index
    %341 = vector.load %arg8[%c3_318, %c0_319, %c0_320] : memref<9x48x32xbf16, #tpu.memory_space<vmem>>, vector<1x48x32xbf16>
    %342 = vector.shape_cast %341 : vector<1x48x32xbf16> to vector<48x32xbf16>
    %cst_321 = arith.constant dense<0.000000e+00> : vector<13x32xf32>
    %343 = tpu.matmul %340, %342, %cst_321 {dimension_numbers = #tpu.dot_dimension_numbers<[1], [0], [0], [1], [0, 0, 1, 1], [], []>} : vector<13x48xbf16>, vector<48x32xbf16>, vector<13x32xf32> -> vector<13x32xf32>
    %344 = arith.addf %338, %343 : vector<13x32xf32>
    %c6_322 = arith.constant 6 : index
    %c0_323 = arith.constant 0 : index
    %345 = vector.load %arg29[%c6_322, %c0_323] : memref<25x48xf32, #tpu.memory_space<vmem>>, vector<13x48xf32>
    %346 = arith.truncf %345 : vector<13x48xf32> to vector<13x48xbf16>
    %c4_324 = arith.constant 4 : index
    %c0_325 = arith.constant 0 : index
    %c0_326 = arith.constant 0 : index
    %347 = vector.load %arg8[%c4_324, %c0_325, %c0_326] : memref<9x48x32xbf16, #tpu.memory_space<vmem>>, vector<1x48x32xbf16>
    %348 = vector.shape_cast %347 : vector<1x48x32xbf16> to vector<48x32xbf16>
    %cst_327 = arith.constant dense<0.000000e+00> : vector<13x32xf32>
    %349 = tpu.matmul %346, %348, %cst_327 {dimension_numbers = #tpu.dot_dimension_numbers<[1], [0], [0], [1], [0, 0, 1, 1], [], []>} : vector<13x48xbf16>, vector<48x32xbf16>, vector<13x32xf32> -> vector<13x32xf32>
    %350 = arith.addf %344, %349 : vector<13x32xf32>
    %c7_328 = arith.constant 7 : index
    %c0_329 = arith.constant 0 : index
    %351 = vector.load %arg29[%c7_328, %c0_329] : memref<25x48xf32, #tpu.memory_space<vmem>>, vector<13x48xf32>
    %352 = arith.truncf %351 : vector<13x48xf32> to vector<13x48xbf16>
    %c5_330 = arith.constant 5 : index
    %c0_331 = arith.constant 0 : index
    %c0_332 = arith.constant 0 : index
    %353 = vector.load %arg8[%c5_330, %c0_331, %c0_332] : memref<9x48x32xbf16, #tpu.memory_space<vmem>>, vector<1x48x32xbf16>
    %354 = vector.shape_cast %353 : vector<1x48x32xbf16> to vector<48x32xbf16>
    %cst_333 = arith.constant dense<0.000000e+00> : vector<13x32xf32>
    %355 = tpu.matmul %352, %354, %cst_333 {dimension_numbers = #tpu.dot_dimension_numbers<[1], [0], [0], [1], [0, 0, 1, 1], [], []>} : vector<13x48xbf16>, vector<48x32xbf16>, vector<13x32xf32> -> vector<13x32xf32>
    %356 = arith.addf %350, %355 : vector<13x32xf32>
    %c10_334 = arith.constant 10 : index
    %c0_335 = arith.constant 0 : index
    %357 = vector.load %arg29[%c10_334, %c0_335] : memref<25x48xf32, #tpu.memory_space<vmem>>, vector<13x48xf32>
    %358 = arith.truncf %357 : vector<13x48xf32> to vector<13x48xbf16>
    %c6_336 = arith.constant 6 : index
    %c0_337 = arith.constant 0 : index
    %c0_338 = arith.constant 0 : index
    %359 = vector.load %arg8[%c6_336, %c0_337, %c0_338] : memref<9x48x32xbf16, #tpu.memory_space<vmem>>, vector<1x48x32xbf16>
    %360 = vector.shape_cast %359 : vector<1x48x32xbf16> to vector<48x32xbf16>
    %cst_339 = arith.constant dense<0.000000e+00> : vector<13x32xf32>
    %361 = tpu.matmul %358, %360, %cst_339 {dimension_numbers = #tpu.dot_dimension_numbers<[1], [0], [0], [1], [0, 0, 1, 1], [], []>} : vector<13x48xbf16>, vector<48x32xbf16>, vector<13x32xf32> -> vector<13x32xf32>
    %362 = arith.addf %356, %361 : vector<13x32xf32>
    %c11_340 = arith.constant 11 : index
    %c0_341 = arith.constant 0 : index
    %363 = vector.load %arg29[%c11_340, %c0_341] : memref<25x48xf32, #tpu.memory_space<vmem>>, vector<13x48xf32>
    %364 = arith.truncf %363 : vector<13x48xf32> to vector<13x48xbf16>
    %c7_342 = arith.constant 7 : index
    %c0_343 = arith.constant 0 : index
    %c0_344 = arith.constant 0 : index
    %365 = vector.load %arg8[%c7_342, %c0_343, %c0_344] : memref<9x48x32xbf16, #tpu.memory_space<vmem>>, vector<1x48x32xbf16>
    %366 = vector.shape_cast %365 : vector<1x48x32xbf16> to vector<48x32xbf16>
    %cst_345 = arith.constant dense<0.000000e+00> : vector<13x32xf32>
    %367 = tpu.matmul %364, %366, %cst_345 {dimension_numbers = #tpu.dot_dimension_numbers<[1], [0], [0], [1], [0, 0, 1, 1], [], []>} : vector<13x48xbf16>, vector<48x32xbf16>, vector<13x32xf32> -> vector<13x32xf32>
    %368 = arith.addf %362, %367 : vector<13x32xf32>
    %c12_346 = arith.constant 12 : index
    %c0_347 = arith.constant 0 : index
    %369 = vector.load %arg29[%c12_346, %c0_347] : memref<25x48xf32, #tpu.memory_space<vmem>>, vector<13x48xf32>
    %370 = arith.truncf %369 : vector<13x48xf32> to vector<13x48xbf16>
    %c8_348 = arith.constant 8 : index
    %c0_349 = arith.constant 0 : index
    %c0_350 = arith.constant 0 : index
    %371 = vector.load %arg8[%c8_348, %c0_349, %c0_350] : memref<9x48x32xbf16, #tpu.memory_space<vmem>>, vector<1x48x32xbf16>
    %372 = vector.shape_cast %371 : vector<1x48x32xbf16> to vector<48x32xbf16>
    %cst_351 = arith.constant dense<0.000000e+00> : vector<13x32xf32>
    %373 = tpu.matmul %370, %372, %cst_351 {dimension_numbers = #tpu.dot_dimension_numbers<[1], [0], [0], [1], [0, 0, 1, 1], [], []>} : vector<13x48xbf16>, vector<48x32xbf16>, vector<13x32xf32> -> vector<13x32xf32>
    %374 = arith.addf %368, %373 : vector<13x32xf32>
    %c0_352 = arith.constant 0 : index
    %c0_353 = arith.constant 0 : index
    %375 = vector.load %arg9[%c0_352, %c0_353] : memref<1x32xf32, #tpu.memory_space<vmem>>, vector<1x32xf32>
    %376 = vector.broadcast %375 : vector<1x32xf32> to vector<13x32xf32>
    %377 = arith.addf %374, %376 : vector<13x32xf32>
    %cst_354 = arith.constant 0.000000e+00 : f32
    %378 = vector.broadcast %cst_354 : f32 to vector<13x32xf32>
    %379 = arith.maximumf %377, %378 : vector<13x32xf32>
    %380 = vector.broadcast %256 : vector<13x1xf32> to vector<13x32xf32>
    %381 = arith.mulf %379, %380 : vector<13x32xf32>
    %c0_355 = arith.constant 0 : index
    %c0_356 = arith.constant 0 : index
    %382 = vector.load %arg30[%c0_355, %c0_356] : memref<25x32xf32, #tpu.memory_space<vmem>>, vector<6x32xf32>
    tpu.vector_store %arg30[%c0_355, %c0_356], %258 {strides = array<i32>} : memref<25x32xf32, #tpu.memory_space<vmem>>, vector<6x32xf32>,
    %c19_357 = arith.constant 19 : index
    %c0_358 = arith.constant 0 : index
    %383 = vector.load %arg30[%c19_357, %c0_358] : memref<25x32xf32, #tpu.memory_space<vmem>>, vector<6x32xf32>
    tpu.vector_store %arg30[%c19_357, %c0_358], %258 {strides = array<i32>} : memref<25x32xf32, #tpu.memory_space<vmem>>, vector<6x32xf32>,
    %c6_359 = arith.constant 6 : index
    %c0_360 = arith.constant 0 : index
    %384 = vector.load %arg30[%c6_359, %c0_360] : memref<25x32xf32, #tpu.memory_space<vmem>>, vector<13x32xf32>
    tpu.vector_store %arg30[%c6_359, %c0_360], %381 {strides = array<i32>} : memref<25x32xf32, #tpu.memory_space<vmem>>, vector<13x32xf32>,
    %c0_361 = arith.constant 0 : index
    %c0_362 = arith.constant 0 : index
    %385 = vector.load %arg30[%c0_361, %c0_362] : memref<25x32xf32, #tpu.memory_space<vmem>>, vector<13x32xf32>
    %386 = arith.truncf %385 : vector<13x32xf32> to vector<13x32xbf16>
    %c0_363 = arith.constant 0 : index
    %c0_364 = arith.constant 0 : index
    %c0_365 = arith.constant 0 : index
    %387 = vector.load %arg10[%c0_363, %c0_364, %c0_365] : memref<9x32x32xbf16, #tpu.memory_space<vmem>>, vector<1x32x32xbf16>
    %388 = vector.shape_cast %387 : vector<1x32x32xbf16> to vector<32x32xbf16>
    %cst_366 = arith.constant dense<0.000000e+00> : vector<13x32xf32>
    %389 = tpu.matmul %386, %388, %cst_366 {dimension_numbers = #tpu.dot_dimension_numbers<[1], [0], [0], [1], [0, 0, 1, 1], [], []>} : vector<13x32xbf16>, vector<32x32xbf16>, vector<13x32xf32> -> vector<13x32xf32>
    %c1_367 = arith.constant 1 : index
    %c0_368 = arith.constant 0 : index
    %390 = vector.load %arg30[%c1_367, %c0_368] : memref<25x32xf32, #tpu.memory_space<vmem>>, vector<13x32xf32>
    %391 = arith.truncf %390 : vector<13x32xf32> to vector<13x32xbf16>
    %c1_369 = arith.constant 1 : index
    %c0_370 = arith.constant 0 : index
    %c0_371 = arith.constant 0 : index
    %392 = vector.load %arg10[%c1_369, %c0_370, %c0_371] : memref<9x32x32xbf16, #tpu.memory_space<vmem>>, vector<1x32x32xbf16>
    %393 = vector.shape_cast %392 : vector<1x32x32xbf16> to vector<32x32xbf16>
    %cst_372 = arith.constant dense<0.000000e+00> : vector<13x32xf32>
    %394 = tpu.matmul %391, %393, %cst_372 {dimension_numbers = #tpu.dot_dimension_numbers<[1], [0], [0], [1], [0, 0, 1, 1], [], []>} : vector<13x32xbf16>, vector<32x32xbf16>, vector<13x32xf32> -> vector<13x32xf32>
    %395 = arith.addf %389, %394 : vector<13x32xf32>
    %c2_373 = arith.constant 2 : index
    %c0_374 = arith.constant 0 : index
    %396 = vector.load %arg30[%c2_373, %c0_374] : memref<25x32xf32, #tpu.memory_space<vmem>>, vector<13x32xf32>
    %397 = arith.truncf %396 : vector<13x32xf32> to vector<13x32xbf16>
    %c2_375 = arith.constant 2 : index
    %c0_376 = arith.constant 0 : index
    %c0_377 = arith.constant 0 : index
    %398 = vector.load %arg10[%c2_375, %c0_376, %c0_377] : memref<9x32x32xbf16, #tpu.memory_space<vmem>>, vector<1x32x32xbf16>
    %399 = vector.shape_cast %398 : vector<1x32x32xbf16> to vector<32x32xbf16>
    %cst_378 = arith.constant dense<0.000000e+00> : vector<13x32xf32>
    %400 = tpu.matmul %397, %399, %cst_378 {dimension_numbers = #tpu.dot_dimension_numbers<[1], [0], [0], [1], [0, 0, 1, 1], [], []>} : vector<13x32xbf16>, vector<32x32xbf16>, vector<13x32xf32> -> vector<13x32xf32>
    %401 = arith.addf %395, %400 : vector<13x32xf32>
    %c5_379 = arith.constant 5 : index
    %c0_380 = arith.constant 0 : index
    %402 = vector.load %arg30[%c5_379, %c0_380] : memref<25x32xf32, #tpu.memory_space<vmem>>, vector<13x32xf32>
    %403 = arith.truncf %402 : vector<13x32xf32> to vector<13x32xbf16>
    %c3_381 = arith.constant 3 : index
    %c0_382 = arith.constant 0 : index
    %c0_383 = arith.constant 0 : index
    %404 = vector.load %arg10[%c3_381, %c0_382, %c0_383] : memref<9x32x32xbf16, #tpu.memory_space<vmem>>, vector<1x32x32xbf16>
    %405 = vector.shape_cast %404 : vector<1x32x32xbf16> to vector<32x32xbf16>
    %cst_384 = arith.constant dense<0.000000e+00> : vector<13x32xf32>
    %406 = tpu.matmul %403, %405, %cst_384 {dimension_numbers = #tpu.dot_dimension_numbers<[1], [0], [0], [1], [0, 0, 1, 1], [], []>} : vector<13x32xbf16>, vector<32x32xbf16>, vector<13x32xf32> -> vector<13x32xf32>
    %407 = arith.addf %401, %406 : vector<13x32xf32>
    %c6_385 = arith.constant 6 : index
    %c0_386 = arith.constant 0 : index
    %408 = vector.load %arg30[%c6_385, %c0_386] : memref<25x32xf32, #tpu.memory_space<vmem>>, vector<13x32xf32>
    %409 = arith.truncf %408 : vector<13x32xf32> to vector<13x32xbf16>
    %c4_387 = arith.constant 4 : index
    %c0_388 = arith.constant 0 : index
    %c0_389 = arith.constant 0 : index
    %410 = vector.load %arg10[%c4_387, %c0_388, %c0_389] : memref<9x32x32xbf16, #tpu.memory_space<vmem>>, vector<1x32x32xbf16>
    %411 = vector.shape_cast %410 : vector<1x32x32xbf16> to vector<32x32xbf16>
    %cst_390 = arith.constant dense<0.000000e+00> : vector<13x32xf32>
    %412 = tpu.matmul %409, %411, %cst_390 {dimension_numbers = #tpu.dot_dimension_numbers<[1], [0], [0], [1], [0, 0, 1, 1], [], []>} : vector<13x32xbf16>, vector<32x32xbf16>, vector<13x32xf32> -> vector<13x32xf32>
    %413 = arith.addf %407, %412 : vector<13x32xf32>
    %c7_391 = arith.constant 7 : index
    %c0_392 = arith.constant 0 : index
    %414 = vector.load %arg30[%c7_391, %c0_392] : memref<25x32xf32, #tpu.memory_space<vmem>>, vector<13x32xf32>
    %415 = arith.truncf %414 : vector<13x32xf32> to vector<13x32xbf16>
    %c5_393 = arith.constant 5 : index
    %c0_394 = arith.constant 0 : index
    %c0_395 = arith.constant 0 : index
    %416 = vector.load %arg10[%c5_393, %c0_394, %c0_395] : memref<9x32x32xbf16, #tpu.memory_space<vmem>>, vector<1x32x32xbf16>
    %417 = vector.shape_cast %416 : vector<1x32x32xbf16> to vector<32x32xbf16>
    %cst_396 = arith.constant dense<0.000000e+00> : vector<13x32xf32>
    %418 = tpu.matmul %415, %417, %cst_396 {dimension_numbers = #tpu.dot_dimension_numbers<[1], [0], [0], [1], [0, 0, 1, 1], [], []>} : vector<13x32xbf16>, vector<32x32xbf16>, vector<13x32xf32> -> vector<13x32xf32>
    %419 = arith.addf %413, %418 : vector<13x32xf32>
    %c10_397 = arith.constant 10 : index
    %c0_398 = arith.constant 0 : index
    %420 = vector.load %arg30[%c10_397, %c0_398] : memref<25x32xf32, #tpu.memory_space<vmem>>, vector<13x32xf32>
    %421 = arith.truncf %420 : vector<13x32xf32> to vector<13x32xbf16>
    %c6_399 = arith.constant 6 : index
    %c0_400 = arith.constant 0 : index
    %c0_401 = arith.constant 0 : index
    %422 = vector.load %arg10[%c6_399, %c0_400, %c0_401] : memref<9x32x32xbf16, #tpu.memory_space<vmem>>, vector<1x32x32xbf16>
    %423 = vector.shape_cast %422 : vector<1x32x32xbf16> to vector<32x32xbf16>
    %cst_402 = arith.constant dense<0.000000e+00> : vector<13x32xf32>
    %424 = tpu.matmul %421, %423, %cst_402 {dimension_numbers = #tpu.dot_dimension_numbers<[1], [0], [0], [1], [0, 0, 1, 1], [], []>} : vector<13x32xbf16>, vector<32x32xbf16>, vector<13x32xf32> -> vector<13x32xf32>
    %425 = arith.addf %419, %424 : vector<13x32xf32>
    %c11_403 = arith.constant 11 : index
    %c0_404 = arith.constant 0 : index
    %426 = vector.load %arg30[%c11_403, %c0_404] : memref<25x32xf32, #tpu.memory_space<vmem>>, vector<13x32xf32>
    %427 = arith.truncf %426 : vector<13x32xf32> to vector<13x32xbf16>
    %c7_405 = arith.constant 7 : index
    %c0_406 = arith.constant 0 : index
    %c0_407 = arith.constant 0 : index
    %428 = vector.load %arg10[%c7_405, %c0_406, %c0_407] : memref<9x32x32xbf16, #tpu.memory_space<vmem>>, vector<1x32x32xbf16>
    %429 = vector.shape_cast %428 : vector<1x32x32xbf16> to vector<32x32xbf16>
    %cst_408 = arith.constant dense<0.000000e+00> : vector<13x32xf32>
    %430 = tpu.matmul %427, %429, %cst_408 {dimension_numbers = #tpu.dot_dimension_numbers<[1], [0], [0], [1], [0, 0, 1, 1], [], []>} : vector<13x32xbf16>, vector<32x32xbf16>, vector<13x32xf32> -> vector<13x32xf32>
    %431 = arith.addf %425, %430 : vector<13x32xf32>
    %c12_409 = arith.constant 12 : index
    %c0_410 = arith.constant 0 : index
    %432 = vector.load %arg30[%c12_409, %c0_410] : memref<25x32xf32, #tpu.memory_space<vmem>>, vector<13x32xf32>
    %433 = arith.truncf %432 : vector<13x32xf32> to vector<13x32xbf16>
    %c8_411 = arith.constant 8 : index
    %c0_412 = arith.constant 0 : index
    %c0_413 = arith.constant 0 : index
    %434 = vector.load %arg10[%c8_411, %c0_412, %c0_413] : memref<9x32x32xbf16, #tpu.memory_space<vmem>>, vector<1x32x32xbf16>
    %435 = vector.shape_cast %434 : vector<1x32x32xbf16> to vector<32x32xbf16>
    %cst_414 = arith.constant dense<0.000000e+00> : vector<13x32xf32>
    %436 = tpu.matmul %433, %435, %cst_414 {dimension_numbers = #tpu.dot_dimension_numbers<[1], [0], [0], [1], [0, 0, 1, 1], [], []>} : vector<13x32xbf16>, vector<32x32xbf16>, vector<13x32xf32> -> vector<13x32xf32>
    %437 = arith.addf %431, %436 : vector<13x32xf32>
    %c0_415 = arith.constant 0 : index
    %c0_416 = arith.constant 0 : index
    %438 = vector.load %arg11[%c0_415, %c0_416] : memref<1x32xf32, #tpu.memory_space<vmem>>, vector<1x32xf32>
    %439 = vector.broadcast %438 : vector<1x32xf32> to vector<13x32xf32>
    %440 = arith.addf %437, %439 : vector<13x32xf32>
    %cst_417 = arith.constant 0.000000e+00 : f32
    %441 = vector.broadcast %cst_417 : f32 to vector<13x32xf32>
    %442 = arith.maximumf %440, %441 : vector<13x32xf32>
    %443 = vector.broadcast %256 : vector<13x1xf32> to vector<13x32xf32>
    %444 = arith.mulf %442, %443 : vector<13x32xf32>
    %cst_418 = arith.constant dense<0xFF800000> : vector<32xf32>
    %445 = vector.multi_reduction <maximumf>, %444, %cst_418 [0] : vector<13x32xf32> to vector<32xf32>
    %446 = vector.shape_cast %445 : vector<32xf32> to vector<1x32xf32>
    %447 = arith.truncf %446 : vector<1x32xf32> to vector<1x32xbf16>
    %c0_419 = arith.constant 0 : index
    %c0_420 = arith.constant 0 : index
    %448 = vector.load %arg15[%c0_419, %c0_420] : memref<32x256xbf16, #tpu.memory_space<vmem>>, vector<32x256xbf16>
    %cst_421 = arith.constant dense<0.000000e+00> : vector<1x256xf32>
    %449 = tpu.matmul %447, %448, %cst_421 {dimension_numbers = #tpu.dot_dimension_numbers<[1], [0], [0], [1], [0, 0, 1, 1], [], []>} : vector<1x32xbf16>, vector<32x256xbf16>, vector<1x256xf32> -> vector<1x256xf32>
    %c0_422 = arith.constant 0 : index
    %c0_423 = arith.constant 0 : index
    %450 = vector.load %arg16[%c0_422, %c0_423] : memref<1x256xf32, #tpu.memory_space<vmem>>, vector<1x256xf32>
    %451 = arith.addf %449, %450 : vector<1x256xf32>
    %cst_424 = arith.constant 0.000000e+00 : f32
    %452 = vector.broadcast %cst_424 : f32 to vector<1x256xf32>
    %453 = arith.maximumf %451, %452 : vector<1x256xf32>
    %454 = arith.truncf %453 : vector<1x256xf32> to vector<1x256xbf16>
    %c0_425 = arith.constant 0 : index
    %c0_426 = arith.constant 0 : index
    %455 = vector.load %arg17[%c0_425, %c0_426] : memref<256x256xbf16, #tpu.memory_space<vmem>>, vector<256x256xbf16>
    %cst_427 = arith.constant dense<0.000000e+00> : vector<1x256xf32>
    %456 = tpu.matmul %454, %455, %cst_427 {dimension_numbers = #tpu.dot_dimension_numbers<[1], [0], [0], [1], [0, 0, 1, 1], [], []>} : vector<1x256xbf16>, vector<256x256xbf16>, vector<1x256xf32> -> vector<1x256xf32>
    %c0_428 = arith.constant 0 : index
    %c0_429 = arith.constant 0 : index
    %457 = vector.load %arg18[%c0_428, %c0_429] : memref<1x256xf32, #tpu.memory_space<vmem>>, vector<1x256xf32>
    %458 = arith.addf %456, %457 : vector<1x256xf32>
    %cst_430 = arith.constant 0.000000e+00 : f32
    %459 = vector.broadcast %cst_430 : f32 to vector<1x256xf32>
    %460 = arith.maximumf %458, %459 : vector<1x256xf32>
    %461 = arith.truncf %460 : vector<1x256xf32> to vector<1x256xbf16>
    %c0_431 = arith.constant 0 : index
    %c0_432 = arith.constant 0 : index
    %462 = vector.load %arg19[%c0_431, %c0_432] : memref<256x256xbf16, #tpu.memory_space<vmem>>, vector<256x256xbf16>
    %cst_433 = arith.constant dense<0.000000e+00> : vector<1x256xf32>
    %463 = tpu.matmul %461, %462, %cst_433 {dimension_numbers = #tpu.dot_dimension_numbers<[1], [0], [0], [1], [0, 0, 1, 1], [], []>} : vector<1x256xbf16>, vector<256x256xbf16>, vector<1x256xf32> -> vector<1x256xf32>
    %cst_434 = arith.constant 0.000000e+00 : f32
    %464 = vector.broadcast %cst_434 : f32 to vector<1x256xf32>
    %465 = arith.maximumf %463, %464 : vector<1x256xf32>
    %466 = arith.truncf %465 : vector<1x256xf32> to vector<1x256xbf16>
    %c0_435 = arith.constant 0 : index
    %c0_436 = arith.constant 0 : index
    %467 = vector.load %arg20[%c0_435, %c0_436] : memref<256x32xbf16, #tpu.memory_space<vmem>>, vector<256x32xbf16>
    %cst_437 = arith.constant dense<0.000000e+00> : vector<1x32xf32>
    %468 = tpu.matmul %466, %467, %cst_437 {dimension_numbers = #tpu.dot_dimension_numbers<[1], [0], [0], [1], [0, 0, 1, 1], [], []>} : vector<1x256xbf16>, vector<256x32xbf16>, vector<1x32xf32> -> vector<1x32xf32>
    %469 = math.exp %468 : vector<1x32xf32>
    %cst_438 = arith.constant 0.000000e+00 : f32
    %470 = vector.broadcast %cst_438 : f32 to vector<1x32xf32>
    %471 = arith.cmpf oeq, %469, %470 : vector<1x32xf32>
    %cst_439 = arith.constant 2.22044605E-16 : f32
    %472 = vector.broadcast %cst_439 : f32 to vector<1x32xf32>
    %473 = arith.select %471, %472, %469 : vector<1x32xi1>, vector<1x32xf32>
    %474 = math.log %473 : vector<1x32xf32>
    %475 = arith.mulf %474, %474 : vector<1x32xf32>
    %cst_440 = arith.constant dense<0.000000e+00> : vector<1xf32>
    %476 = vector.multi_reduction <add>, %475, %cst_440 [1] : vector<1x32xf32> to vector<1xf32>
    %477 = vector.shape_cast %476 : vector<1xf32> to vector<1x1xf32>
    %478 = math.sqrt %477 : vector<1x1xf32>
    %cst_441 = arith.constant 9.99999996E-13 : f32
    %479 = vector.broadcast %cst_441 : f32 to vector<1x1xf32>
    %480 = arith.maximumf %478, %479 : vector<1x1xf32>
    %481 = vector.broadcast %480 : vector<1x1xf32> to vector<1x32xf32>
    %482 = arith.divf %474, %481 : vector<1x32xf32>
    %c0_442 = arith.constant 0 : index
    %c0_443 = arith.constant 0 : index
    %483 = vector.load %arg21[%c0_442, %c0_443] : memref<32x10xf32, #tpu.memory_space<vmem>>, vector<32x10xf32>
    %cst_444 = arith.constant dense<0.000000e+00> : vector<1x10xf32>
    %484 = tpu.matmul %482, %483, %cst_444 {dimension_numbers = #tpu.dot_dimension_numbers<[1], [0], [0], [1], [0, 0, 1, 1], [], []>} : vector<1x32xf32>, vector<32x10xf32>, vector<1x10xf32> -> vector<1x10xf32>
    %c0_445 = arith.constant 0 : index
    %c0_446 = arith.constant 0 : index
    %485 = vector.load %arg22[%c0_445, %c0_446] : memref<1x10xf32, #tpu.memory_space<vmem>>, vector<1x10xf32>
    %486 = arith.addf %484, %485 : vector<1x10xf32>
    %c0_447 = arith.constant 0 : index
    %c0_448 = arith.constant 0 : index
    %c0_449 = arith.constant 0 : index
    %487 = vector.load %arg23[%c0_447, %c0_448, %c0_449] : memref<1x1x10xf32, #tpu.memory_space<vmem>>, vector<1x1x10xf32>
    %488 = vector.shape_cast %487 : vector<1x1x10xf32> to vector<1x10xf32>
    %489 = vector.shape_cast %486 : vector<1x10xf32> to vector<1x1x10xf32>
    tpu.vector_store %arg23[%c0_447, %c0_448, %c0_449], %489 {strides = array<i32>} : memref<1x1x10xf32, #tpu.memory_space<vmem>>, vector<1x1x10xf32>,
    %c0_450 = arith.constant 0 : index
    %c0_451 = arith.constant 0 : index
    %c0_452 = arith.constant 0 : index
    %490 = vector.load %arg24[%c0_450, %c0_451, %c0_452] : memref<1x1x32xf32, #tpu.memory_space<vmem>>, vector<1x1x32xf32>
    %491 = vector.shape_cast %490 : vector<1x1x32xf32> to vector<1x32xf32>
    %492 = vector.shape_cast %482 : vector<1x32xf32> to vector<1x1x32xf32>
    tpu.vector_store %arg24[%c0_450, %c0_451, %c0_452], %492 {strides = array<i32>} : memref<1x1x32xf32, #tpu.memory_space<vmem>>, vector<1x1x32xf32>,
    return
  }
  func.func @transform_0(%arg0: i32) -> (i32, i32, i32) {
    %c0_i32 = arith.constant 0 : i32
    %c0_i32_0 = arith.constant 0 : i32
    %c0_i32_1 = arith.constant 0 : i32
    return %arg0, %c0_i32, %c0_i32_0 : i32, i32, i32
  }
  func.func @transform_1(%arg0: i32) -> (i32, i32, i32) {
    %c0_i32 = arith.constant 0 : i32
    %c0_i32_0 = arith.constant 0 : i32
    %c0_i32_1 = arith.constant 0 : i32
    %c0_i32_2 = arith.constant 0 : i32
    return %c0_i32, %c0_i32_0, %c0_i32_1 : i32, i32, i32
  }
  func.func @transform_2(%arg0: i32) -> (i32, i32) {
    %c0_i32 = arith.constant 0 : i32
    %c0_i32_0 = arith.constant 0 : i32
    %c0_i32_1 = arith.constant 0 : i32
    return %c0_i32, %c0_i32_0 : i32, i32
  }
  func.func @transform_3(%arg0: i32) -> (i32, i32, i32) {
    %c0_i32 = arith.constant 0 : i32
    %c0_i32_0 = arith.constant 0 : i32
    %c0_i32_1 = arith.constant 0 : i32
    %c0_i32_2 = arith.constant 0 : i32
    return %c0_i32, %c0_i32_0, %c0_i32_1 : i32, i32, i32
  }
  func.func @transform_4(%arg0: i32) -> (i32, i32) {
    %c0_i32 = arith.constant 0 : i32
    %c0_i32_0 = arith.constant 0 : i32
    %c0_i32_1 = arith.constant 0 : i32
    return %c0_i32, %c0_i32_0 : i32, i32
  }
  func.func @transform_5(%arg0: i32) -> (i32, i32, i32) {
    %c0_i32 = arith.constant 0 : i32
    %c0_i32_0 = arith.constant 0 : i32
    %c0_i32_1 = arith.constant 0 : i32
    %c0_i32_2 = arith.constant 0 : i32
    return %c0_i32, %c0_i32_0, %c0_i32_1 : i32, i32, i32
  }
  func.func @transform_6(%arg0: i32) -> (i32, i32) {
    %c0_i32 = arith.constant 0 : i32
    %c0_i32_0 = arith.constant 0 : i32
    %c0_i32_1 = arith.constant 0 : i32
    return %c0_i32, %c0_i32_0 : i32, i32
  }
  func.func @transform_7(%arg0: i32) -> (i32, i32, i32) {
    %c0_i32 = arith.constant 0 : i32
    %c0_i32_0 = arith.constant 0 : i32
    %c0_i32_1 = arith.constant 0 : i32
    %c0_i32_2 = arith.constant 0 : i32
    return %c0_i32, %c0_i32_0, %c0_i32_1 : i32, i32, i32
  }
  func.func @transform_8(%arg0: i32) -> (i32, i32) {
    %c0_i32 = arith.constant 0 : i32
    %c0_i32_0 = arith.constant 0 : i32
    %c0_i32_1 = arith.constant 0 : i32
    return %c0_i32, %c0_i32_0 : i32, i32
  }
  func.func @transform_9(%arg0: i32) -> (i32, i32, i32) {
    %c0_i32 = arith.constant 0 : i32
    %c0_i32_0 = arith.constant 0 : i32
    %c0_i32_1 = arith.constant 0 : i32
    %c0_i32_2 = arith.constant 0 : i32
    return %c0_i32, %c0_i32_0, %c0_i32_1 : i32, i32, i32
  }
  func.func @transform_10(%arg0: i32) -> (i32, i32) {
    %c0_i32 = arith.constant 0 : i32
    %c0_i32_0 = arith.constant 0 : i32
    %c0_i32_1 = arith.constant 0 : i32
    return %c0_i32, %c0_i32_0 : i32, i32
  }
  func.func @transform_11(%arg0: i32) -> (i32, i32) {
    %c0_i32 = arith.constant 0 : i32
    %c0_i32_0 = arith.constant 0 : i32
    %c0_i32_1 = arith.constant 0 : i32
    return %c0_i32, %c0_i32_0 : i32, i32
  }
  func.func @transform_12(%arg0: i32) -> (i32, i32) {
    %c0_i32 = arith.constant 0 : i32
    %c0_i32_0 = arith.constant 0 : i32
    %c0_i32_1 = arith.constant 0 : i32
    return %c0_i32, %c0_i32_0 : i32, i32
  }
  func.func @transform_13(%arg0: i32) -> (i32, i32) {
    %c0_i32 = arith.constant 0 : i32
    %c0_i32_0 = arith.constant 0 : i32
    %c0_i32_1 = arith.constant 0 : i32
    return %c0_i32, %c0_i32_0 : i32, i32
  }
  func.func @transform_14(%arg0: i32) -> (i32, i32) {
    %c0_i32 = arith.constant 0 : i32
    %c0_i32_0 = arith.constant 0 : i32
    %c0_i32_1 = arith.constant 0 : i32
    return %c0_i32, %c0_i32_0 : i32, i32
  }
  func.func @transform_15(%arg0: i32) -> (i32, i32) {
    %c0_i32 = arith.constant 0 : i32
    %c0_i32_0 = arith.constant 0 : i32
    %c0_i32_1 = arith.constant 0 : i32
    return %c0_i32, %c0_i32_0 : i32, i32
  }
  func.func @transform_16(%arg0: i32) -> (i32, i32) {
    %c0_i32 = arith.constant 0 : i32
    %c0_i32_0 = arith.constant 0 : i32
    %c0_i32_1 = arith.constant 0 : i32
    return %c0_i32, %c0_i32_0 : i32, i32
  }
  func.func @transform_17(%arg0: i32) -> (i32, i32) {
    %c0_i32 = arith.constant 0 : i32
    %c0_i32_0 = arith.constant 0 : i32
    %c0_i32_1 = arith.constant 0 : i32
    return %c0_i32, %c0_i32_0 : i32, i32
  }
  func.func @transform_18(%arg0: i32) -> (i32, i32) {
    %c0_i32 = arith.constant 0 : i32
    %c0_i32_0 = arith.constant 0 : i32
    %c0_i32_1 = arith.constant 0 : i32
    return %c0_i32, %c0_i32_0 : i32, i32
  }
  func.func @transform_19(%arg0: i32) -> (i32, i32) {
    %c0_i32 = arith.constant 0 : i32
    %c0_i32_0 = arith.constant 0 : i32
    %c0_i32_1 = arith.constant 0 : i32
    return %c0_i32, %c0_i32_0 : i32, i32
  }
  func.func @transform_20(%arg0: i32) -> (i32, i32) {
    %c0_i32 = arith.constant 0 : i32
    %c0_i32_0 = arith.constant 0 : i32
    %c0_i32_1 = arith.constant 0 : i32
    return %c0_i32, %c0_i32_0 : i32, i32
  }
  func.func @transform_21(%arg0: i32) -> (i32, i32) {
    %c0_i32 = arith.constant 0 : i32
    %c0_i32_0 = arith.constant 0 : i32
    %c0_i32_1 = arith.constant 0 : i32
    return %c0_i32, %c0_i32_0 : i32, i32
  }
  func.func @transform_22(%arg0: i32) -> (i32, i32, i32) {
    %c0_i32 = arith.constant 0 : i32
    %c0_i32_0 = arith.constant 0 : i32
    %c0_i32_1 = arith.constant 0 : i32
    return %arg0, %c0_i32, %c0_i32_0 : i32, i32, i32
  }
  func.func @transform_23(%arg0: i32) -> (i32, i32, i32) {
    %c0_i32 = arith.constant 0 : i32
    %c0_i32_0 = arith.constant 0 : i32
    %c0_i32_1 = arith.constant 0 : i32
    return %arg0, %c0_i32, %c0_i32_0 : i32, i32, i32
  }
}

</mosaic_0001>

<llo_original>
// kernel: alexnet_forward.1
$region0: #{alexnet_forward.1}
  #allocation0 [shape = 'u32[]', space=smem, size = 0x4, offset = 0x4, fixed_abs, tag = 'smem constant byte address 0x4 - core index']
  #allocation1 [shape = 'u32[72,128]{1,0:T(1,128)}', space=vmem, size = 0x9000, scoped, tag = 'internal scratch']
  #allocation2 [shape = 'f32[253,16]{1,0:T(8,128)}', space=vmem, size = 0x20000, scoped, tag = 'scratch operand']
  #allocation3 [shape = 'f32[121,16]{1,0:T(8,128)}', space=vmem, size = 0x10000, scoped, tag = 'scratch operand']
  #allocation4 [shape = 'f32[73,32]{1,0:T(8,128)}', space=vmem, size = 0xa000, scoped, tag = 'scratch operand']
  #allocation5 [shape = 'f32[25,32]{1,0:T(8,128)}', space=vmem, size = 0x4000, scoped, tag = 'scratch operand']
  #allocation6 [shape = 'f32[25,48]{1,0:T(8,128)}', space=vmem, size = 0x4000, scoped, tag = 'scratch operand']
  #allocation7 [shape = 'f32[25,32]{1,0:T(8,128)}', space=vmem, size = 0x4000, scoped, tag = 'scratch operand']
  %s0 = inlined_call_operand.vmem [shape: bf16[2,289,48], index: 0, kind: input, shape index: {}]
  %s1 = inlined_call_operand.vmem [shape: bf16[9,48,16], index: 1, kind: input, shape index: {}]
  %s2 = inlined_call_operand.vmem [shape: f32[1,16], index: 2, kind: input, shape index: {}]
  %s3 = inlined_call_operand.vmem [shape: bf16[25,16,32], index: 3, kind: input, shape index: {}]
  %s4 = inlined_call_operand.vmem [shape: f32[1,32], index: 4, kind: input, shape index: {}]
  %s5 = inlined_call_operand.vmem [shape: bf16[9,32,48], index: 5, kind: input, shape index: {}]
  %s6 = inlined_call_operand.vmem [shape: f32[1,48], index: 6, kind: input, shape index: {}]
  %s7 = inlined_call_operand.vmem [shape: bf16[9,48,32], index: 7, kind: input, shape index: {}]
  %s8 = inlined_call_operand.vmem [shape: f32[1,32], index: 8, kind: input, shape index: {}]
  %s9 = inlined_call_operand.vmem [shape: bf16[9,32,32], index: 9, kind: input, shape index: {}]
  %s10 = inlined_call_operand.vmem [shape: f32[1,32], index: 10, kind: input, shape index: {}]
  %s11 = inlined_call_operand.vmem [shape: bf16[121,217], index: 11, kind: input, shape index: {}]
  %s12 = inlined_call_operand.vmem [shape: bf16[25,49], index: 12, kind: input, shape index: {}]
  %s13 = inlined_call_operand.vmem [shape: f32[13,1], index: 13, kind: input, shape index: {}]
  %s14 = inlined_call_operand.vmem [shape: bf16[32,256], index: 14, kind: input, shape index: {}]
  %s15 = inlined_call_operand.vmem [shape: f32[1,256], index: 15, kind: input, shape index: {}]
  %s16 = inlined_call_operand.vmem [shape: bf16[256,256], index: 16, kind: input, shape index: {}]
  %s17 = inlined_call_operand.vmem [shape: f32[1,256], index: 17, kind: input, shape index: {}]
  %s18 = inlined_call_operand.vmem [shape: bf16[256,256], index: 18, kind: input, shape index: {}]
  %s19 = inlined_call_operand.vmem [shape: bf16[256,32], index: 19, kind: input, shape index: {}]
  %s20 = inlined_call_operand.vmem [shape: f32[32,10], index: 20, kind: input, shape index: {}]
  %s21 = inlined_call_operand.vmem [shape: f32[1,10], index: 21, kind: input, shape index: {}]
  %s22 = inlined_call_operand.hbm [shape: f32[2,1,10], index: 22, kind: output, shape index: {0}]
  %s23 = inlined_call_operand.hbm [shape: f32[2,1,32], index: 23, kind: output, shape index: {1}]
  %24 = xla_tuple %s22, %s23
  %s25 = sld [smem:[#allocation0]]
  $region129: #{alexnet_forward.1} parent=0
    _
  %s27 = ssub.s32 1, %s25
  %s28 = scalar_select 0, %s27, %s25
  $region1: #{alexnet_forward.1} parent=0
    #allocation8 [shape = 'u8[1024]{0}', space=vmem, size = 0x400, scoped, tag = 'output window, operand 0']
    #allocation9 [shape = 's32[2]{0}', space=sflag, size = 0x8, scoped, tag = 'scoped memory for alexnet_forward.1']
    #allocation10 [shape = 'u8[1024]{0}', space=vmem, size = 0x400, scoped, tag = 'output window, operand 1']
    #allocation11 [shape = 's32[2]{0}', space=sflag, size = 0x8, scoped, tag = 'scoped memory for alexnet_forward.1']
    %29 = vsyncpa [#allocation9], 0
    %s30 = scalar_lea.sflag [#allocation9], 1
    %31 = vsyncpa %s30, 0
    %32 = vsyncpa [#allocation11], 0
    %s33 = scalar_lea.sflag [#allocation11], 1
    %34 = vsyncpa %s33, 0
    loop: start=0, step=1, limit=4
    $region2: #{alexnet_forward.1} parent=1 // loop_pre_header
      _
    $region3: #{alexnet_forward.1} parent=1 // loop_header
      %s36 = sphi 0, %s40
      %p37 = scmp.ge.s32.totalorder %s36, 4
      %s46 = sphi 0, %s48
      %s49 = sphi 0, %s46
      %s50 = sphi 0, %s49
      %s66 = sphi 0, %s50
      %s70 = sphi 0, %s70
      %s72 = sphi 0, %s70
      %s73 = sphi 0, %s72
      %s87 = sphi 0, %s73
      %s91 = sphi 0, %s91
      %s93 = sphi 0, %s91
      %s94 = sphi 0, %s93
      %s108 = sphi 0, %s94
      %s112 = sphi 0, %s112
      %s114 = sphi 0, %s112
      %s115 = sphi 0, %s114
      %s129 = sphi 0, %s115
      %s133 = sphi 0, %s133
      %s135 = sphi 0, %s133
      %s136 = sphi 0, %s135
      %s150 = sphi 0, %s136
      %s154 = sphi 0, %s154
      %s156 = sphi 0, %s154
      %s157 = sphi 0, %s156
      %s171 = sphi 0, %s157
      %s175 = sphi 0, %s175
      %s177 = sphi 0, %s175
      %s178 = sphi 0, %s177
      %s192 = sphi 0, %s178
      %s196 = sphi 0, %s196
      %s198 = sphi 0, %s196
      %s199 = sphi 0, %s198
      %s213 = sphi 0, %s199
      %s217 = sphi 0, %s217
      %s219 = sphi 0, %s217
      %s220 = sphi 0, %s219
      %s234 = sphi 0, %s220
      %s238 = sphi 0, %s238
      %s240 = sphi 0, %s238
      %s241 = sphi 0, %s240
      %s255 = sphi 0, %s241
      %s259 = sphi 0, %s259
      %s261 = sphi 0, %s259
      %s262 = sphi 0, %s261
      %s276 = sphi 0, %s262
      %s280 = sphi 0, %s280
      %s282 = sphi 0, %s280
      %s283 = sphi 0, %s282
      %s297 = sphi 0, %s283
      %s301 = sphi 0, %s301
      %s303 = sphi 0, %s301
      %s304 = sphi 0, %s303
      %s318 = sphi 0, %s304
      %s322 = sphi 0, %s322
      %s324 = sphi 0, %s322
      %s325 = sphi 0, %s324
      %s339 = sphi 0, %s325
      %s343 = sphi 0, %s343
      %s345 = sphi 0, %s343
      %s346 = sphi 0, %s345
      %s360 = sphi 0, %s346
      %s364 = sphi 0, %s364
      %s366 = sphi 0, %s364
      %s367 = sphi 0, %s366
      %s381 = sphi 0, %s367
      %s385 = sphi 0, %s385
      %s387 = sphi 0, %s385
      %s388 = sphi 0, %s387
      %s402 = sphi 0, %s388
      %s406 = sphi 0, %s406
      %s408 = sphi 0, %s406
      %s409 = sphi 0, %s408
      %s423 = sphi 0, %s409
      %s427 = sphi 0, %s427
      %s429 = sphi 0, %s427
      %s430 = sphi 0, %s429
      %s444 = sphi 0, %s430
      %s448 = sphi 0, %s448
      %s450 = sphi 0, %s448
      %s451 = sphi 0, %s450
      %s465 = sphi 0, %s451
      %s469 = sphi 0, %s469
      %s471 = sphi 0, %s469
      %s472 = sphi 0, %s471
      %s486 = sphi 0, %s472
      %s490 = sphi 0, %s490
      %s492 = sphi 0, %s490
      %s493 = sphi 0, %s492
      %s507 = sphi 0, %s493
      %s513 = sphi 0, %s515
      %s516 = sphi 0, %s513
      %s517 = sphi 0, %s516
      %s533 = sphi 0, %s517
      %s539 = sphi 0, %s541
      %s542 = sphi 0, %s539
      %s543 = sphi 0, %s542
      %s559 = sphi 0, %s543
    $region4: #{alexnet_forward.1} parent=1 // loop_header_branch
      %39 = sbr.rel (%p37) target = $region8
    $region5: #{alexnet_forward.1} parent=1 // loop_body
      %s41 = ssub.s32 %s36, 1
      %s42 = ssub.s32 %s36, 2
      %s43 = sadd.s32 %s36, 1
      %s44 = ssub.s32 %s36, %s43
      %p45 = scmp.eq.s32.totalorder %s44, 0
      %s47 = sadd.s32 %s46, 1
      %s48 = scalar_select %p45, %s46, %s47
      %p51 = pneg %p45
      %p52 = scmp.eq.s32.totalorder %s36, 1
      %p53 = por %p51, %p52
      %p54 = scmp.ne.s32.totalorder %s46, %s49
      %p55 = scmp.eq.s32.totalorder %s36, 0
      %p56 = por %p54, %p55
      %p57 = scmp.ne.s32.totalorder %s46, %s49
      %p58 = scmp.eq.s32.totalorder %s41, 1
      %p59 = por %p57, %p58
      %p60 = scmp.ne.s32.totalorder %s49, %s50
      %p61 = scmp.eq.s32.totalorder %s41, 0
      %p62 = por %p60, %p61
      %p63 = scmp.ne.s32.totalorder %s49, %s50
      %p64 = scmp.eq.s32.totalorder %s42, 1
      %p65 = por %p63, %p64
      %p67 = scmp.ne.s32.totalorder %s50, %s66
      %p68 = scmp.eq.s32.totalorder %s42, 0
      %p69 = por %p67, %p68
      %s71 = sadd.s32 %s70, 1
      %p74 = scmp.eq.s32.totalorder %s36, 1
      %p75 = scmp.ne.s32.totalorder %s70, %s72
      %p76 = scmp.eq.s32.totalorder %s36, 0
      %p77 = por %p75, %p76
      %p78 = scmp.ne.s32.totalorder %s70, %s72
      %p79 = scmp.eq.s32.totalorder %s41, 1
      %p80 = por %p78, %p79
      %p81 = scmp.ne.s32.totalorder %s72, %s73
      %p82 = scmp.eq.s32.totalorder %s41, 0
      %p83 = por %p81, %p82
      %p84 = scmp.ne.s32.totalorder %s72, %s73
      %p85 = scmp.eq.s32.totalorder %s42, 1
      %p86 = por %p84, %p85
      %p88 = scmp.ne.s32.totalorder %s73, %s87
      %p89 = scmp.eq.s32.totalorder %s42, 0
      %p90 = por %p88, %p89
      %s92 = sadd.s32 %s91, 1
      %p95 = scmp.eq.s32.totalorder %s36, 1
      %p96 = scmp.ne.s32.totalorder %s91, %s93
      %p97 = scmp.eq.s32.totalorder %s36, 0
      %p98 = por %p96, %p97
      %p99 = scmp.ne.s32.totalorder %s91, %s93
      %p100 = scmp.eq.s32.totalorder %s41, 1
      %p101 = por %p99, %p100
      %p102 = scmp.ne.s32.totalorder %s93, %s94
      %p103 = scmp.eq.s32.totalorder %s41, 0
      %p104 = por %p102, %p103
      %p105 = scmp.ne.s32.totalorder %s93, %s94
      %p106 = scmp.eq.s32.totalorder %s42, 1
      %p107 = por %p105, %p106
      %p109 = scmp.ne.s32.totalorder %s94, %s108
      %p110 = scmp.eq.s32.totalorder %s42, 0
      %p111 = por %p109, %p110
      %s113 = sadd.s32 %s112, 1
      %p116 = scmp.eq.s32.totalorder %s36, 1
      %p117 = scmp.ne.s32.totalorder %s112, %s114
      %p118 = scmp.eq.s32.totalorder %s36, 0
      %p119 = por %p117, %p118
      %p120 = scmp.ne.s32.totalorder %s112, %s114
      %p121 = scmp.eq.s32.totalorder %s41, 1
      %p122 = por %p120, %p121
      %p123 = scmp.ne.s32.totalorder %s114, %s115
      %p124 = scmp.eq.s32.totalorder %s41, 0
      %p125 = por %p123, %p124
      %p126 = scmp.ne.s32.totalorder %s114, %s115
      %p127 = scmp.eq.s32.totalorder %s42, 1
      %p128 = por %p126, %p127
      %p130 = scmp.ne.s32.totalorder %s115, %s129
      %p131 = scmp.eq.s32.totalorder %s42, 0
      %p132 = por %p130, %p131
      %s134 = sadd.s32 %s133, 1
      %p137 = scmp.eq.s32.totalorder %s36, 1
      %p138 = scmp.ne.s32.totalorder %s133, %s135
      %p139 = scmp.eq.s32.totalorder %s36, 0
      %p140 = por %p138, %p139
      %p141 = scmp.ne.s32.totalorder %s133, %s135
      %p142 = scmp.eq.s32.totalorder %s41, 1
      %p143 = por %p141, %p142
      %p144 = scmp.ne.s32.totalorder %s135, %s136
      %p145 = scmp.eq.s32.totalorder %s41, 0
      %p146 = por %p144, %p145
      %p147 = scmp.ne.s32.totalorder %s135, %s136
      %p148 = scmp.eq.s32.totalorder %s42, 1
      %p149 = por %p147, %p148
      %p151 = scmp.ne.s32.totalorder %s136, %s150
      %p152 = scmp.eq.s32.totalorder %s42, 0
      %p153 = por %p151, %p152
      %s155 = sadd.s32 %s154, 1
      %p158 = scmp.eq.s32.totalorder %s36, 1
      %p159 = scmp.ne.s32.totalorder %s154, %s156
      %p160 = scmp.eq.s32.totalorder %s36, 0
      %p161 = por %p159, %p160
      %p162 = scmp.ne.s32.totalorder %s154, %s156
      %p163 = scmp.eq.s32.totalorder %s41, 1
      %p164 = por %p162, %p163
      %p165 = scmp.ne.s32.totalorder %s156, %s157
      %p166 = scmp.eq.s32.totalorder %s41, 0
      %p167 = por %p165, %p166
      %p168 = scmp.ne.s32.totalorder %s156, %s157
      %p169 = scmp.eq.s32.totalorder %s42, 1
      %p170 = por %p168, %p169
      %p172 = scmp.ne.s32.totalorder %s157, %s171
      %p173 = scmp.eq.s32.totalorder %s42, 0
      %p174 = por %p172, %p173
      %s176 = sadd.s32 %s175, 1
      %p179 = scmp.eq.s32.totalorder %s36, 1
      %p180 = scmp.ne.s32.totalorder %s175, %s177
      %p181 = scmp.eq.s32.totalorder %s36, 0
      %p182 = por %p180, %p181
      %p183 = scmp.ne.s32.totalorder %s175, %s177
      %p184 = scmp.eq.s32.totalorder %s41, 1
      %p185 = por %p183, %p184
      %p186 = scmp.ne.s32.totalorder %s177, %s178
      %p187 = scmp.eq.s32.totalorder %s41, 0
      %p188 = por %p186, %p187
      %p189 = scmp.ne.s32.totalorder %s177, %s178
      %p190 = scmp.eq.s32.totalorder %s42, 1
      %p191 = por %p189, %p190
      %p193 = scmp.ne.s32.totalorder %s178, %s192
      %p194 = scmp.eq.s32.totalorder %s42, 0
      %p195 = por %p193, %p194
      %s197 = sadd.s32 %s196, 1
      %p200 = scmp.eq.s32.totalorder %s36, 1
      %p201 = scmp.ne.s32.totalorder %s196, %s198
      %p202 = scmp.eq.s32.totalorder %s36, 0
      %p203 = por %p201, %p202
      %p204 = scmp.ne.s32.totalorder %s196, %s198
      %p205 = scmp.eq.s32.totalorder %s41, 1
      %p206 = por %p204, %p205
      %p207 = scmp.ne.s32.totalorder %s198, %s199
      %p208 = scmp.eq.s32.totalorder %s41, 0
      %p209 = por %p207, %p208
      %p210 = scmp.ne.s32.totalorder %s198, %s199
      %p211 = scmp.eq.s32.totalorder %s42, 1
      %p212 = por %p210, %p211
      %p214 = scmp.ne.s32.totalorder %s199, %s213
      %p215 = scmp.eq.s32.totalorder %s42, 0
      %p216 = por %p214, %p215
      %s218 = sadd.s32 %s217, 1
      %p221 = scmp.eq.s32.totalorder %s36, 1
      %p222 = scmp.ne.s32.totalorder %s217, %s219
      %p223 = scmp.eq.s32.totalorder %s36, 0
      %p224 = por %p222, %p223
      %p225 = scmp.ne.s32.totalorder %s217, %s219
      %p226 = scmp.eq.s32.totalorder %s41, 1
      %p227 = por %p225, %p226
      %p228 = scmp.ne.s32.totalorder %s219, %s220
      %p229 = scmp.eq.s32.totalorder %s41, 0
      %p230 = por %p228, %p229
      %p231 = scmp.ne.s32.totalorder %s219, %s220
      %p232 = scmp.eq.s32.totalorder %s42, 1
      %p233 = por %p231, %p232
      %p235 = scmp.ne.s32.totalorder %s220, %s234
      %p236 = scmp.eq.s32.totalorder %s42, 0
      %p237 = por %p235, %p236
      %s239 = sadd.s32 %s238, 1
      %p242 = scmp.eq.s32.totalorder %s36, 1
      %p243 = scmp.ne.s32.totalorder %s238, %s240
      %p244 = scmp.eq.s32.totalorder %s36, 0
      %p245 = por %p243, %p244
      %p246 = scmp.ne.s32.totalorder %s238, %s240
      %p247 = scmp.eq.s32.totalorder %s41, 1
      %p248 = por %p246, %p247
      %p249 = scmp.ne.s32.totalorder %s240, %s241
      %p250 = scmp.eq.s32.totalorder %s41, 0
      %p251 = por %p249, %p250
      %p252 = scmp.ne.s32.totalorder %s240, %s241
      %p253 = scmp.eq.s32.totalorder %s42, 1
      %p254 = por %p252, %p253
      %p256 = scmp.ne.s32.totalorder %s241, %s255
      %p257 = scmp.eq.s32.totalorder %s42, 0
      %p258 = por %p256, %p257
      %s260 = sadd.s32 %s259, 1
      %p263 = scmp.eq.s32.totalorder %s36, 1
      %p264 = scmp.ne.s32.totalorder %s259, %s261
      %p265 = scmp.eq.s32.totalorder %s36, 0
      %p266 = por %p264, %p265
      %p267 = scmp.ne.s32.totalorder %s259, %s261
      %p268 = scmp.eq.s32.totalorder %s41, 1
      %p269 = por %p267, %p268
      %p270 = scmp.ne.s32.totalorder %s261, %s262
      %p271 = scmp.eq.s32.totalorder %s41, 0
      %p272 = por %p270, %p271
      %p273 = scmp.ne.s32.totalorder %s261, %s262
      %p274 = scmp.eq.s32.totalorder %s42, 1
      %p275 = por %p273, %p274
      %p277 = scmp.ne.s32.totalorder %s262, %s276
      %p278 = scmp.eq.s32.totalorder %s42, 0
      %p279 = por %p277, %p278
      %s281 = sadd.s32 %s280, 1
      %p284 = scmp.eq.s32.totalorder %s36, 1
      %p285 = scmp.ne.s32.totalorder %s280, %s282
      %p286 = scmp.eq.s32.totalorder %s36, 0
      %p287 = por %p285, %p286
      %p288 = scmp.ne.s32.totalorder %s280, %s282
      %p289 = scmp.eq.s32.totalorder %s41, 1
      %p290 = por %p288, %p289
      %p291 = scmp.ne.s32.totalorder %s282, %s283
      %p292 = scmp.eq.s32.totalorder %s41, 0
      %p293 = por %p291, %p292
      %p294 = scmp.ne.s32.totalorder %s282, %s283
      %p295 = scmp.eq.s32.totalorder %s42, 1
      %p296 = por %p294, %p295
      %p298 = scmp.ne.s32.totalorder %s283, %s297
      %p299 = scmp.eq.s32.totalorder %s42, 0
      %p300 = por %p298, %p299
      %s302 = sadd.s32 %s301, 1
      %p305 = scmp.eq.s32.totalorder %s36, 1
      %p306 = scmp.ne.s32.totalorder %s301, %s303
      %p307 = scmp.eq.s32.totalorder %s36, 0
      %p308 = por %p306, %p307
      %p309 = scmp.ne.s32.totalorder %s301, %s303
      %p310 = scmp.eq.s32.totalorder %s41, 1
      %p311 = por %p309, %p310
      %p312 = scmp.ne.s32.totalorder %s303, %s304
      %p313 = scmp.eq.s32.totalorder %s41, 0
      %p314 = por %p312, %p313
      %p315 = scmp.ne.s32.totalorder %s303, %s304
      %p316 = scmp.eq.s32.totalorder %s42, 1
      %p317 = por %p315, %p316
      %p319 = scmp.ne.s32.totalorder %s304, %s318
      %p320 = scmp.eq.s32.totalorder %s42, 0
      %p321 = por %p319, %p320
      %s323 = sadd.s32 %s322, 1
      %p326 = scmp.eq.s32.totalorder %s36, 1
      %p327 = scmp.ne.s32.totalorder %s322, %s324
      %p328 = scmp.eq.s32.totalorder %s36, 0
      %p329 = por %p327, %p328
      %p330 = scmp.ne.s32.totalorder %s322, %s324
      %p331 = scmp.eq.s32.totalorder %s41, 1
      %p332 = por %p330, %p331
      %p333 = scmp.ne.s32.totalorder %s324, %s325
      %p334 = scmp.eq.s32.totalorder %s41, 0
      %p335 = por %p333, %p334
      %p336 = scmp.ne.s32.totalorder %s324, %s325
      %p337 = scmp.eq.s32.totalorder %s42, 1
      %p338 = por %p336, %p337
      %p340 = scmp.ne.s32.totalorder %s325, %s339
      %p341 = scmp.eq.s32.totalorder %s42, 0
      %p342 = por %p340, %p341
      %s344 = sadd.s32 %s343, 1
      %p347 = scmp.eq.s32.totalorder %s36, 1
      %p348 = scmp.ne.s32.totalorder %s343, %s345
      %p349 = scmp.eq.s32.totalorder %s36, 0
      %p350 = por %p348, %p349
      %p351 = scmp.ne.s32.totalorder %s343, %s345
      %p352 = scmp.eq.s32.totalorder %s41, 1
      %p353 = por %p351, %p352
      %p354 = scmp.ne.s32.totalorder %s345, %s346
      %p355 = scmp.eq.s32.totalorder %s41, 0
      %p356 = por %p354, %p355
      %p357 = scmp.ne.s32.totalorder %s345, %s346
      %p358 = scmp.eq.s32.totalorder %s42, 1
      %p359 = por %p357, %p358
      %p361 = scmp.ne.s32.totalorder %s346, %s360
      %p362 = scmp.eq.s32.totalorder %s42, 0
      %p363 = por %p361, %p362
      %s365 = sadd.s32 %s364, 1
      %p368 = scmp.eq.s32.totalorder %s36, 1
      %p369 = scmp.ne.s32.totalorder %s364, %s366
      %p370 = scmp.eq.s32.totalorder %s36, 0
      %p371 = por %p369, %p370
      %p372 = scmp.ne.s32.totalorder %s364, %s366
      %p373 = scmp.eq.s32.totalorder %s41, 1
      %p374 = por %p372, %p373
      %p375 = scmp.ne.s32.totalorder %s366, %s367
      %p376 = scmp.eq.s32.totalorder %s41, 0
      %p377 = por %p375, %p376
      %p378 = scmp.ne.s32.totalorder %s366, %s367
      %p379 = scmp.eq.s32.totalorder %s42, 1
      %p380 = por %p378, %p379
      %p382 = scmp.ne.s32.totalorder %s367, %s381
      %p383 = scmp.eq.s32.totalorder %s42, 0
      %p384 = por %p382, %p383
      %s386 = sadd.s32 %s385, 1
      %p389 = scmp.eq.s32.totalorder %s36, 1
      %p390 = scmp.ne.s32.totalorder %s385, %s387
      %p391 = scmp.eq.s32.totalorder %s36, 0
      %p392 = por %p390, %p391
      %p393 = scmp.ne.s32.totalorder %s385, %s387
      %p394 = scmp.eq.s32.totalorder %s41, 1
      %p395 = por %p393, %p394
      %p396 = scmp.ne.s32.totalorder %s387, %s388
      %p397 = scmp.eq.s32.totalorder %s41, 0
      %p398 = por %p396, %p397
      %p399 = scmp.ne.s32.totalorder %s387, %s388
      %p400 = scmp.eq.s32.totalorder %s42, 1
      %p401 = por %p399, %p400
      %p403 = scmp.ne.s32.totalorder %s388, %s402
      %p404 = scmp.eq.s32.totalorder %s42, 0
      %p405 = por %p403, %p404
      %s407 = sadd.s32 %s406, 1
      %p410 = scmp.eq.s32.totalorder %s36, 1
      %p411 = scmp.ne.s32.totalorder %s406, %s408
      %p412 = scmp.eq.s32.totalorder %s36, 0
      %p413 = por %p411, %p412
      %p414 = scmp.ne.s32.totalorder %s406, %s408
      %p415 = scmp.eq.s32.totalorder %s41, 1
      %p416 = por %p414, %p415
      %p417 = scmp.ne.s32.totalorder %s408, %s409
      %p418 = scmp.eq.s32.totalorder %s41, 0
      %p419 = por %p417, %p418
      %p420 = scmp.ne.s32.totalorder %s408, %s409
      %p421 = scmp.eq.s32.totalorder %s42, 1
      %p422 = por %p420, %p421
      %p424 = scmp.ne.s32.totalorder %s409, %s423
      %p425 = scmp.eq.s32.totalorder %s42, 0
      %p426 = por %p424, %p425
      %s428 = sadd.s32 %s427, 1
      %p431 = scmp.eq.s32.totalorder %s36, 1
      %p432 = scmp.ne.s32.totalorder %s427, %s429
      %p433 = scmp.eq.s32.totalorder %s36, 0
      %p434 = por %p432, %p433
      %p435 = scmp.ne.s32.totalorder %s427, %s429
      %p436 = scmp.eq.s32.totalorder %s41, 1
      %p437 = por %p435, %p436
      %p438 = scmp.ne.s32.totalorder %s429, %s430
      %p439 = scmp.eq.s32.totalorder %s41, 0
      %p440 = por %p438, %p439
      %p441 = scmp.ne.s32.totalorder %s429, %s430
      %p442 = scmp.eq.s32.totalorder %s42, 1
      %p443 = por %p441, %p442
      %p445 = scmp.ne.s32.totalorder %s430, %s444
      %p446 = scmp.eq.s32.totalorder %s42, 0
      %p447 = por %p445, %p446
      %s449 = sadd.s32 %s448, 1
      %p452 = scmp.eq.s32.totalorder %s36, 1
      %p453 = scmp.ne.s32.totalorder %s448, %s450
      %p454 = scmp.eq.s32.totalorder %s36, 0
      %p455 = por %p453, %p454
      %p456 = scmp.ne.s32.totalorder %s448, %s450
      %p457 = scmp.eq.s32.totalorder %s41, 1
      %p458 = por %p456, %p457
      %p459 = scmp.ne.s32.totalorder %s450, %s451
      %p460 = scmp.eq.s32.totalorder %s41, 0
      %p461 = por %p459, %p460
      %p462 = scmp.ne.s32.totalorder %s450, %s451
      %p463 = scmp.eq.s32.totalorder %s42, 1
      %p464 = por %p462, %p463
      %p466 = scmp.ne.s32.totalorder %s451, %s465
      %p467 = scmp.eq.s32.totalorder %s42, 0
      %p468 = por %p466, %p467
      %s470 = sadd.s32 %s469, 1
      %p473 = scmp.eq.s32.totalorder %s36, 1
      %p474 = scmp.ne.s32.totalorder %s469, %s471
      %p475 = scmp.eq.s32.totalorder %s36, 0
      %p476 = por %p474, %p475
      %p477 = scmp.ne.s32.totalorder %s469, %s471
      %p478 = scmp.eq.s32.totalorder %s41, 1
      %p479 = por %p477, %p478
      %p480 = scmp.ne.s32.totalorder %s471, %s472
      %p481 = scmp.eq.s32.totalorder %s41, 0
      %p482 = por %p480, %p481
      %p483 = scmp.ne.s32.totalorder %s471, %s472
      %p484 = scmp.eq.s32.totalorder %s42, 1
      %p485 = por %p483, %p484
      %p487 = scmp.ne.s32.totalorder %s472, %s486
      %p488 = scmp.eq.s32.totalorder %s42, 0
      %p489 = por %p487, %p488
      %s491 = sadd.s32 %s490, 1
      %p494 = scmp.eq.s32.totalorder %s36, 1
      %p495 = scmp.ne.s32.totalorder %s490, %s492
      %p496 = scmp.eq.s32.totalorder %s36, 0
      %p497 = por %p495, %p496
      %p498 = scmp.ne.s32.totalorder %s490, %s492
      %p499 = scmp.eq.s32.totalorder %s41, 1
      %p500 = por %p498, %p499
      %p501 = scmp.ne.s32.totalorder %s492, %s493
      %p502 = scmp.eq.s32.totalorder %s41, 0
      %p503 = por %p501, %p502
      %p504 = scmp.ne.s32.totalorder %s492, %s493
      %p505 = scmp.eq.s32.totalorder %s42, 1
      %p506 = por %p504, %p505
      %p508 = scmp.ne.s32.totalorder %s493, %s507
      %p509 = scmp.eq.s32.totalorder %s42, 0
      %p510 = por %p508, %p509
      %s511 = ssub.s32 %s36, %s43
      %p512 = scmp.eq.s32.totalorder %s511, 0
      %s514 = sadd.s32 %s513, 1
      %s515 = scalar_select %p512, %s513, %s514
      %p518 = pneg %p512
      %p519 = scmp.eq.s32.totalorder %s36, 1
      %p520 = por %p518, %p519
      %p521 = scmp.ne.s32.totalorder %s513, %s516
      %p522 = scmp.eq.s32.totalorder %s36, 0
      %p523 = por %p521, %p522
      %p524 = scmp.ne.s32.totalorder %s513, %s516
      %p525 = scmp.eq.s32.totalorder %s41, 1
      %p526 = por %p524, %p525
      %p527 = scmp.ne.s32.totalorder %s516, %s517
      %p528 = scmp.eq.s32.totalorder %s41, 0
      %p529 = por %p527, %p528
      %p530 = scmp.ne.s32.totalorder %s516, %s517
      %p531 = scmp.eq.s32.totalorder %s42, 1
      %p532 = por %p530, %p531
      %p534 = scmp.ne.s32.totalorder %s517, %s533
      %p535 = scmp.eq.s32.totalorder %s42, 0
      %p536 = por %p534, %p535
      %s537 = ssub.s32 %s36, %s43
      %p538 = scmp.eq.s32.totalorder %s537, 0
      %s540 = sadd.s32 %s539, 1
      %s541 = scalar_select %p538, %s539, %s540
      %p544 = pneg %p538
      %p545 = scmp.eq.s32.totalorder %s36, 1
      %p546 = por %p544, %p545
      %p547 = scmp.ne.s32.totalorder %s539, %s542
      %p548 = scmp.eq.s32.totalorder %s36, 0
      %p549 = por %p547, %p548
      %p550 = scmp.ne.s32.totalorder %s539, %s542
      %p551 = scmp.eq.s32.totalorder %s41, 1
      %p552 = por %p550, %p551
      %p553 = scmp.ne.s32.totalorder %s542, %s543
      %p554 = scmp.eq.s32.totalorder %s41, 0
      %p555 = por %p553, %p554
      %p556 = scmp.ne.s32.totalorder %s542, %s543
      %p557 = scmp.eq.s32.totalorder %s42, 1
      %p558 = por %p556, %p557
      %p560 = scmp.ne.s32.totalorder %s543, %s559
      %p561 = scmp.eq.s32.totalorder %s42, 0
      %p562 = por %p560, %p561
      %p563 = scmp.le.s32.totalorder 1, %s36
      %p564 = scmp.lt.s32.totalorder %s36, 3
      %p565 = pnand %p563, %p564
      %p566 = pneg %p565
      // Predicated region
      $region9: #{alexnet_forward.1} parent=5 // pred_check
        _
      $region10: #{alexnet_forward.1} parent=5 // pred_check_branch
        %568 = sbr.rel (%p565) target = $region12
      $region11: #{alexnet_forward.1} parent=5 // pred_region
        %s569 = ssub.s32 %s36, 1
        // Predicated region
        $region13: #{alexnet_forward.1} parent=11 // pred_check
          %p570 = pneg %p83
        $region14: #{alexnet_forward.1} parent=11 // pred_check_branch
          %572 = sbr.rel (%p570) target = $region16
        $region15: #{alexnet_forward.1} parent=11 // pred_region
          _
        $region16: #{alexnet_forward.1} parent=11 // pred_fallthru
          _
        // Predicated region
        $region17: #{alexnet_forward.1} parent=11 // pred_check
          %p573 = pneg %p104
        $region18: #{alexnet_forward.1} parent=11 // pred_check_branch
          %575 = sbr.rel (%p573) target = $region20
        $region19: #{alexnet_forward.1} parent=11 // pred_region
          _
        $region20: #{alexnet_forward.1} parent=11 // pred_fallthru
          _
        // Predicated region
        $region21: #{alexnet_forward.1} parent=11 // pred_check
          %p576 = pneg %p125
        $region22: #{alexnet_forward.1} parent=11 // pred_check_branch
          %578 = sbr.rel (%p576) target = $region24
        $region23: #{alexnet_forward.1} parent=11 // pred_region
          _
        $region24: #{alexnet_forward.1} parent=11 // pred_fallthru
          _
        // Predicated region
        $region25: #{alexnet_forward.1} parent=11 // pred_check
          %p579 = pneg %p146
        $region26: #{alexnet_forward.1} parent=11 // pred_check_branch
          %581 = sbr.rel (%p579) target = $region28
        $region27: #{alexnet_forward.1} parent=11 // pred_region
          _
        $region28: #{alexnet_forward.1} parent=11 // pred_fallthru
          _
        // Predicated region
        $region29: #{alexnet_forward.1} parent=11 // pred_check
          %p582 = pneg %p167
        $region30: #{alexnet_forward.1} parent=11 // pred_check_branch
          %584 = sbr.rel (%p582) target = $region32
        $region31: #{alexnet_forward.1} parent=11 // pred_region
          _
        $region32: #{alexnet_forward.1} parent=11 // pred_fallthru
          _
        // Predicated region
        $region33: #{alexnet_forward.1} parent=11 // pred_check
          %p585 = pneg %p188
        $region34: #{alexnet_forward.1} parent=11 // pred_check_branch
          %587 = sbr.rel (%p585) target = $region36
        $region35: #{alexnet_forward.1} parent=11 // pred_region
          _
        $region36: #{alexnet_forward.1} parent=11 // pred_fallthru
          _
        // Predicated region
        $region37: #{alexnet_forward.1} parent=11 // pred_check
          %p588 = pneg %p209
        $region38: #{alexnet_forward.1} parent=11 // pred_check_branch
          %590 = sbr.rel (%p588) target = $region40
        $region39: #{alexnet_forward.1} parent=11 // pred_region
          _
        $region40: #{alexnet_forward.1} parent=11 // pred_fallthru
          _
        // Predicated region
        $region41: #{alexnet_forward.1} parent=11 // pred_check
          %p591 = pneg %p230
        $region42: #{alexnet_forward.1} parent=11 // pred_check_branch
          %593 = sbr.rel (%p591) target = $region44
        $region43: #{alexnet_forward.1} parent=11 // pred_region
          _
        $region44: #{alexnet_forward.1} parent=11 // pred_fallthru
          _
        // Predicated region
        $region45: #{alexnet_forward.1} parent=11 // pred_check
          %p594 = pneg %p251
        $region46: #{alexnet_forward.1} parent=11 // pred_check_branch
          %596 = sbr.rel (%p594) target = $region48
        $region47: #{alexnet_forward.1} parent=11 // pred_region
          _
        $region48: #{alexnet_forward.1} parent=11 // pred_fallthru
          _
        // Predicated region
        $region49: #{alexnet_forward.1} parent=11 // pred_check
          %p597 = pneg %p272
        $region50: #{alexnet_forward.1} parent=11 // pred_check_branch
          %599 = sbr.rel (%p597) target = $region52
        $region51: #{alexnet_forward.1} parent=11 // pred_region
          _
        $region52: #{alexnet_forward.1} parent=11 // pred_fallthru
          _
        // Predicated region
        $region53: #{alexnet_forward.1} parent=11 // pred_check
          %p600 = pneg %p293
        $region54: #{alexnet_forward.1} parent=11 // pred_check_branch
          %602 = sbr.rel (%p600) target = $region56
        $region55: #{alexnet_forward.1} parent=11 // pred_region
          _
        $region56: #{alexnet_forward.1} parent=11 // pred_fallthru
          _
        // Predicated region
        $region57: #{alexnet_forward.1} parent=11 // pred_check
          %p603 = pneg %p314
        $region58: #{alexnet_forward.1} parent=11 // pred_check_branch
          %605 = sbr.rel (%p603) target = $region60
        $region59: #{alexnet_forward.1} parent=11 // pred_region
          _
        $region60: #{alexnet_forward.1} parent=11 // pred_fallthru
          _
        // Predicated region
        $region61: #{alexnet_forward.1} parent=11 // pred_check
          %p606 = pneg %p335
        $region62: #{alexnet_forward.1} parent=11 // pred_check_branch
          %608 = sbr.rel (%p606) target = $region64
        $region63: #{alexnet_forward.1} parent=11 // pred_region
          _
        $region64: #{alexnet_forward.1} parent=11 // pred_fallthru
          _
        // Predicated region
        $region65: #{alexnet_forward.1} parent=11 // pred_check
          %p609 = pneg %p356
        $region66: #{alexnet_forward.1} parent=11 // pred_check_branch
          %611 = sbr.rel (%p609) target = $region68
        $region67: #{alexnet_forward.1} parent=11 // pred_region
          _
        $region68: #{alexnet_forward.1} parent=11 // pred_fallthru
          _
        // Predicated region
        $region69: #{alexnet_forward.1} parent=11 // pred_check
          %p612 = pneg %p377
        $region70: #{alexnet_forward.1} parent=11 // pred_check_branch
          %614 = sbr.rel (%p612) target = $region72
        $region71: #{alexnet_forward.1} parent=11 // pred_region
          _
        $region72: #{alexnet_forward.1} parent=11 // pred_fallthru
          _
        // Predicated region
        $region73: #{alexnet_forward.1} parent=11 // pred_check
          %p615 = pneg %p398
        $region74: #{alexnet_forward.1} parent=11 // pred_check_branch
          %617 = sbr.rel (%p615) target = $region76
        $region75: #{alexnet_forward.1} parent=11 // pred_region
          _
        $region76: #{alexnet_forward.1} parent=11 // pred_fallthru
          _
        // Predicated region
        $region77: #{alexnet_forward.1} parent=11 // pred_check
          %p618 = pneg %p419
        $region78: #{alexnet_forward.1} parent=11 // pred_check_branch
          %620 = sbr.rel (%p618) target = $region80
        $region79: #{alexnet_forward.1} parent=11 // pred_region
          _
        $region80: #{alexnet_forward.1} parent=11 // pred_fallthru
          _
        // Predicated region
        $region81: #{alexnet_forward.1} parent=11 // pred_check
          %p621 = pneg %p440
        $region82: #{alexnet_forward.1} parent=11 // pred_check_branch
          %623 = sbr.rel (%p621) target = $region84
        $region83: #{alexnet_forward.1} parent=11 // pred_region
          _
        $region84: #{alexnet_forward.1} parent=11 // pred_fallthru
          _
        // Predicated region
        $region85: #{alexnet_forward.1} parent=11 // pred_check
          %p624 = pneg %p461
        $region86: #{alexnet_forward.1} parent=11 // pred_check_branch
          %626 = sbr.rel (%p624) target = $region88
        $region87: #{alexnet_forward.1} parent=11 // pred_region
          _
        $region88: #{alexnet_forward.1} parent=11 // pred_fallthru
          _
        // Predicated region
        $region89: #{alexnet_forward.1} parent=11 // pred_check
          %p627 = pneg %p482
        $region90: #{alexnet_forward.1} parent=11 // pred_check_branch
          %629 = sbr.rel (%p627) target = $region92
        $region91: #{alexnet_forward.1} parent=11 // pred_region
          _
        $region92: #{alexnet_forward.1} parent=11 // pred_fallthru
          _
        // Predicated region
        $region93: #{alexnet_forward.1} parent=11 // pred_check
          %p630 = pneg %p503
        $region94: #{alexnet_forward.1} parent=11 // pred_check_branch
          %632 = sbr.rel (%p630) target = $region96
        $region95: #{alexnet_forward.1} parent=11 // pred_region
          _
        $region96: #{alexnet_forward.1} parent=11 // pred_fallthru
          _
      $region12: #{alexnet_forward.1} parent=5 // pred_fallthru
        _
      %p633 = scmp.lt.s32.totalorder %s36, 2
      // Predicated region
      $region97: #{alexnet_forward.1} parent=5 // pred_check
        %p634 = pneg %p633
      $region98: #{alexnet_forward.1} parent=5 // pred_check_branch
        %636 = sbr.rel (%p634) target = $region100
      $region99: #{alexnet_forward.1} parent=5 // pred_region
        // Predicated region
        $region101: #{alexnet_forward.1} parent=99 // pred_check
          %p637 = pneg %p56
        $region102: #{alexnet_forward.1} parent=99 // pred_check_branch
          %639 = sbr.rel (%p637) target = $region104
        $region103: #{alexnet_forward.1} parent=99 // pred_region
          %p640 = scmp.lt.s32.totalorder %s36, 1
          %s641 = scalar_select %p640, %s36, 1
          %s642 = smul.addr %s641, 37
          %s643 = smul.addr %s642, 4
          %s644 = scalar_lea.vmem %s0, %s643
        $region104: #{alexnet_forward.1} parent=99 // pred_fallthru
          _
      $region100: #{alexnet_forward.1} parent=5 // pred_fallthru
        _
      %p645 = scmp.le.s32.totalorder 1, %s36
      %p646 = scmp.lt.s32.totalorder %s36, 3
      %p647 = pnand %p645, %p646
      %p648 = pneg %p647
      // Predicated region
      $region105: #{alexnet_forward.1} parent=5 // pred_check
        _
      $region106: #{alexnet_forward.1} parent=5 // pred_check_branch
        %650 = sbr.rel (%p647) target = $region108
      $region107: #{alexnet_forward.1} parent=5 // pred_region
        %s651 = ssub.s32 %s36, 1
        %p652 = scmp.lt.s32.totalorder %s41, 1
        %s653 = scalar_select %p652, %s41, 1
        %s654 = smul.addr %s653, 37
        %s655 = smul.addr %s654, 4
        %s656 = scalar_lea.vmem %s0, %s655
        %p657 = pneg %p62
        %p658 = pneg %p59
        %p659 = pneg %p83
        %p660 = pneg %p80
        %p661 = pneg %p104
        %p662 = pneg %p101
        %p663 = pneg %p125
        %p664 = pneg %p122
        %p665 = pneg %p146
        %p666 = pneg %p143
        %p667 = pneg %p167
        %p668 = pneg %p164
        %p669 = pneg %p188
        %p670 = pneg %p185
        %p671 = pneg %p209
        %p672 = pneg %p206
        %p673 = pneg %p230
        %p674 = pneg %p227
        %p675 = pneg %p251
        %p676 = pneg %p248
        %p677 = pneg %p272
        %p678 = pneg %p269
        %p679 = pneg %p293
        %p680 = pneg %p290
        %p681 = pneg %p314
        %p682 = pneg %p311
        %p683 = pneg %p335
        %p684 = pneg %p332
        %p685 = pneg %p356
        %p686 = pneg %p353
        %p687 = pneg %p377
        %p688 = pneg %p374
        %p689 = pneg %p398
        %p690 = pneg %p395
        %p691 = pneg %p419
        %p692 = pneg %p416
        %p693 = pneg %p440
        %p694 = pneg %p437
        %p695 = pneg %p461
        %p696 = pneg %p458
        %p697 = pneg %p482
        %p698 = pneg %p479
        %p699 = pneg %p503
        %p700 = pneg %p500
        %p701 = pneg %p529
        %p702 = pneg %p526
        %s703 = sand.u32 %s516, 1
        %s704 = scalar_lea.sflag [#allocation9], %s703
        %s705 = sand.u32 %s516, 1
        %s706 = scalar_lea.vmem [#allocation8], %s705
        %p707 = pneg %p555
        %p708 = pneg %p552
        %s709 = sand.u32 %s542, 1
        %s710 = scalar_lea.sflag [#allocation11], %s709
        %s711 = sand.u32 %s542, 1
        %s712 = scalar_lea.vmem [#allocation10], %s711
        %p713 = scmp.lt.s32.totalorder %s41, 1
        %s714 = scalar_select %p713, %s41, 1
        %s715 = smul.addr %s714, 37
        %s716 = smul.addr %s715, 4
        %s717 = scalar_lea.vmem %s0, %s716
        %v719 = vld [vmem:[%s717] sm:$0xf]
        %v720 = vld [vmem:[%s717 + $0x4] sm:$0xf]
        %v721 = vld [vmem:[%s717 + $0x8] sm:$0xf]
        %v722 = vld [vmem:[%s717 + $0xc] sm:$0xf]
        %v723 = vld [vmem:[%s717 + $0x10] sm:$0xf]
        %v724 = vld [vmem:[%s717 + $0x14] sm:$0xf]
        %v725 = vld [vmem:[%s717 + $0x18] sm:$0xf]
        %v726 = vld [vmem:[%s717 + $0x1c] sm:$0xf]
        %v727 = vld [vmem:[%s717 + $0x20] sm:$0xf]
        %v728 = vld [vmem:[%s717 + $0x24] sm:$0xf]
        %v729 = vld [vmem:[%s717 + $0x28] sm:$0xf]
        %v730 = vld [vmem:[%s717 + $0x2c] sm:$0xf]
        %v731 = vld [vmem:[%s717 + $0x30] sm:$0xf]
        %v732 = vld [vmem:[%s717 + $0x34] sm:$0xf]
        %v733 = vld [vmem:[%s717 + $0x38] sm:$0xf]
        %v734 = vld [vmem:[%s717 + $0x3c] sm:$0xf]
        %v735 = vld [vmem:[%s717 + $0x40] sm:$0xf]
        %v736 = vld [vmem:[%s717 + $0x44] sm:$0xf]
        %v737 = vld [vmem:[%s717 + $0x48] sm:$0xf]
        %v738 = vld [vmem:[%s717 + $0x4c] sm:$0xf]
        %v739 = vld [vmem:[%s717 + $0x50] sm:$0xf]
        %v740 = vld [vmem:[%s717 + $0x54] sm:$0xf]
        %v741 = vld [vmem:[%s717 + $0x58] sm:$0xf]
        %v742 = vld [vmem:[%s717 + $0x5c] sm:$0xf]
        %v743 = vld [vmem:[%s717 + $0x60] sm:$0xf]
        %v744 = vld [vmem:[%s717 + $0x64] sm:$0xf]
        %v745 = vld [vmem:[%s717 + $0x68] sm:$0xf]
        %v746 = vld [vmem:[%s717 + $0x6c] sm:$0xf]
        %v747 = vld [vmem:[%s717 + $0x70] sm:$0xf]
        %v748 = vld [vmem:[%s717 + $0x74] sm:$0xf]
        %v749 = vld [vmem:[%s717 + $0x78] sm:$0xf]
        %v750 = vld [vmem:[%s717 + $0x7c] sm:$0x7]
        %v751 = vld [vmem:[%s1] sm:$0xf]
        %v752 = vld [vmem:[%s1 + $0x4] sm:$0xf]
        %v753 = vld [vmem:[%s1 + $0x8] sm:$0xf]
        %v754 = vld [vmem:[%s1 + $0xc] sm:$0xf]
        %v755 = vld [vmem:[%s1 + $0x10] sm:$0xf]
        %v756 = vld [vmem:[%s1 + $0x14] sm:$0xf]
        %s757 = scalar_lea.vmem %s1, 24
        %v758 = vld [vmem:[%s757] sm:$0xf]
        %v759 = vld [vmem:[%s757 + $0x4] sm:$0xf]
        %v760 = vld [vmem:[%s757 + $0x8] sm:$0xf]
        %v761 = vld [vmem:[%s757 + $0xc] sm:$0xf]
        %v762 = vld [vmem:[%s757 + $0x10] sm:$0xf]
        %v763 = vld [vmem:[%s757 + $0x14] sm:$0xf]
        %v796 = vunpack.c.l.b16 %v719
        %v797 = vunpack.c.l.b16 %v720
        %v798 = vunpack.c.l.b16 %v721
        %v799 = vunpack.c.l.b16 %v722
        %v800 = vunpack.c.l.b16 %v723
        %v801 = vunpack.c.l.b16 %v724
        %v802 = vunpack.c.l.b16 %v725
        %v803 = vunpack.c.l.b16 %v726
        %v804 = vunpack.c.l.b16 %v727
        %v805 = vunpack.c.l.b16 %v728
        %v806 = vunpack.c.l.b16 %v729
        %v807 = vunpack.c.l.b16 %v730
        %v808 = vunpack.c.l.b16 %v731
        %v809 = vunpack.c.l.b16 %v732
        %v810 = vunpack.c.l.b16 %v733
        %v811 = vunpack.c.l.b16 %v734
        %v812 = vunpack.c.l.b16 %v735
        %v813 = vunpack.c.l.b16 %v736
        %v814 = vunpack.c.l.b16 %v737
        %v815 = vunpack.c.l.b16 %v738
        %v816 = vunpack.c.l.b16 %v739
        %v817 = vunpack.c.l.b16 %v740
        %v818 = vunpack.c.l.b16 %v741
        %v819 = vunpack.c.l.b16 %v742
        %v820 = vunpack.c.l.b16 %v743
        %v821 = vunpack.c.l.b16 %v744
        %v822 = vunpack.c.l.b16 %v745
        %v823 = vunpack.c.l.b16 %v746
        %v824 = vunpack.c.l.b16 %v747
        %v825 = vunpack.c.l.b16 %v748
        %v826 = vunpack.c.l.b16 %v749
        %v827 = vunpack.c.l.b16 %v750
        %v828 = vpack.c.b16 %v797, %v796
        %v829 = vpack.c.b16 %v799, %v798
        %v830 = vpack.c.b16 %v801, %v800
        %v831 = vpack.c.b16 %v803, %v802
        %v832 = vpack.c.b16 %v805, %v804
        %v833 = vpack.c.b16 %v807, %v806
        %v834 = vpack.c.b16 %v809, %v808
        %v835 = vpack.c.b16 %v811, %v810
        %v836 = vpack.c.b16 %v813, %v812
        %v837 = vpack.c.b16 %v815, %v814
        %v838 = vpack.c.b16 %v817, %v816
        %v839 = vpack.c.b16 %v819, %v818
        %v840 = vpack.c.b16 %v821, %v820
        %v841 = vpack.c.b16 %v823, %v822
        %v842 = vpack.c.b16 %v825, %v824
        %v843 = vpack.c.b16 %v827, %v826
        %vm844 = vsmask.f32 7424
        %v846 = vshrl.u32 %v828, 16
        %v848 = vshll.u32 %v828, 16
        %v850 = vrot.slane %v848, 1
        %v851 = vor.u32 %v846, %v850
        %v853 = vshll.u32 %v829, 16
        %v855 = vrot.slane %v853, 1
        %v856 = vsel %vm844, %v851, %v855
        %v857 = vshrl.u32 %v829, 16
        %v859 = vor.u32 %v857, %v855
        %v861 = vshll.u32 %v830, 16
        %v863 = vrot.slane %v861, 1
        %v864 = vsel %vm844, %v859, %v863
        %v865 = vshrl.u32 %v830, 16
        %v867 = vor.u32 %v865, %v863
        %v869 = vshll.u32 %v831, 16
        %v871 = vrot.slane %v869, 1
        %v872 = vsel %vm844, %v867, %v871
        %v873 = vshrl.u32 %v831, 16
        %v875 = vor.u32 %v873, %v871
        %v877 = vshll.u32 %v832, 16
        %v879 = vrot.slane %v877, 1
        %v880 = vsel %vm844, %v875, %v879
        %v881 = vshrl.u32 %v832, 16
        %v883 = vor.u32 %v881, %v879
        %v885 = vshll.u32 %v833, 16
        %v887 = vrot.slane %v885, 1
        %v888 = vsel %vm844, %v883, %v887
        %v889 = vshrl.u32 %v833, 16
        %v891 = vor.u32 %v889, %v887
        %v893 = vshll.u32 %v834, 16
        %v895 = vrot.slane %v893, 1
        %v896 = vsel %vm844, %v891, %v895
        %v897 = vshrl.u32 %v834, 16
        %v899 = vor.u32 %v897, %v895
        %v901 = vshll.u32 %v835, 16
        %v903 = vrot.slane %v901, 1
        %v904 = vsel %vm844, %v899, %v903
        %v905 = vshrl.u32 %v835, 16
        %v907 = vor.u32 %v905, %v903
        %v909 = vshll.u32 %v836, 16
        %v911 = vrot.slane %v909, 1
        %v912 = vsel %vm844, %v907, %v911
        %v913 = vshrl.u32 %v836, 16
        %v915 = vor.u32 %v913, %v911
        %v917 = vshll.u32 %v837, 16
        %v919 = vrot.slane %v917, 1
        %v920 = vsel %vm844, %v915, %v919
        %v921 = vshrl.u32 %v837, 16
        %v923 = vor.u32 %v921, %v919
        %v925 = vshll.u32 %v838, 16
        %v927 = vrot.slane %v925, 1
        %v928 = vsel %vm844, %v923, %v927
        %v929 = vshrl.u32 %v838, 16
        %v931 = vor.u32 %v929, %v927
        %v933 = vshll.u32 %v839, 16
        %v935 = vrot.slane %v933, 1
        %v936 = vsel %vm844, %v931, %v935
        %v937 = vshrl.u32 %v839, 16
        %v939 = vor.u32 %v937, %v935
        %v941 = vshll.u32 %v840, 16
        %v943 = vrot.slane %v941, 1
        %v944 = vsel %vm844, %v939, %v943
        %v945 = vshrl.u32 %v840, 16
        %v947 = vor.u32 %v945, %v943
        %v949 = vshll.u32 %v841, 16
        %v951 = vrot.slane %v949, 1
        %v952 = vsel %vm844, %v947, %v951
        %v953 = vshrl.u32 %v841, 16
        %v955 = vor.u32 %v953, %v951
        %v957 = vshll.u32 %v842, 16
        %v959 = vrot.slane %v957, 1
        %v960 = vsel %vm844, %v955, %v959
        %v961 = vshrl.u32 %v842, 16
        %v963 = vor.u32 %v961, %v959
        %v965 = vshll.u32 %v843, 16
        %v967 = vrot.slane %v965, 1
        %v968 = vsel %vm844, %v963, %v967
        %v969 = vshrl.u32 %v843, 16
        %v971 = vor.u32 %v969, %v967
        %v978 = vunpack.c.l.b16 %v758
        %v979 = vunpack.c.l.b16 %v759
        %v980 = vunpack.c.l.b16 %v760
        %v981 = vunpack.c.l.b16 %v761
        %v982 = vunpack.c.l.b16 %v762
        %v983 = vunpack.c.l.b16 %v763
        %v984 = vpack.c.b16 %v979, %v978
        %v985 = vpack.c.b16 %v981, %v980
        %v986 = vpack.c.b16 %v983, %v982
        %vm990 = vcmask 392192
        %v992 = vsel %vm990, %v856, 0
        %v995 = vsel %vm990, %v864, 0
        %v998 = vsel %vm990, %v872, 0
        %v1001 = vsel %vm990, %v880, 0
        %v1004 = vsel %vm990, %v888, 0
        %v1007 = vsel %vm990, %v896, 0
        %v1010 = vsel %vm990, %v904, 0
        %v1013 = vsel %vm990, %v912, 0
        %v1016 = vsel %vm990, %v920, 0
        %v1019 = vsel %vm990, %v928, 0
        %v1022 = vsel %vm990, %v936, 0
        %v1025 = vsel %vm990, %v944, 0
        %v1028 = vsel %vm990, %v952, 0
        %v1031 = vsel %vm990, %v960, 0
        %v1034 = vsel %vm990, %v968, 0
        %v1037 = vsel %vm990, %v971, 0
        %1039 = vmatpush.bf16.msra.mxu0 0
        %1040 = vmatpush.bf16.msra.mxu0 0
        %1041 = vmatpush.bf16.msra.mxu0 0
        %1042 = vmatpush.bf16.msra.mxu0 0
        %1043 = vmatpush.bf16.msra.mxu0 0
        %1044 = vmatpush.bf16.msra.mxu0 %v986
        %1045 = vmatpush.bf16.msra.mxu0 %v985
        %1046 = vmatpush.bf16.msra.mxu0 %v984
        %1047 = vmatmul.bf16.gmra.mxu0 %v992
        %v1048 = vpop.f32.mrf.mxu0
        %v1049 = vadd.f32 0.0, %v1048
        %v1050 = vpop.f32.mrf.mxu0
        %v1051 = vadd.f32 0.0, %v1050
        %1052 = vmatmul.bf16.gmra.mxu0 %v995
        %v1053 = vpop.f32.mrf.mxu0
        %v1054 = vadd.f32 0.0, %v1053
        %v1055 = vpop.f32.mrf.mxu0
        %v1056 = vadd.f32 0.0, %v1055
        %1057 = vmatmul.bf16.gmra.mxu0 %v998
        %v1058 = vpop.f32.mrf.mxu0
        %v1059 = vadd.f32 0.0, %v1058
        %v1060 = vpop.f32.mrf.mxu0
        %v1061 = vadd.f32 0.0, %v1060
        %1062 = vmatmul.bf16.gmra.mxu0 %v1001
        %v1063 = vpop.f32.mrf.mxu0
        %v1064 = vadd.f32 0.0, %v1063
        %v1065 = vpop.f32.mrf.mxu0
        %v1066 = vadd.f32 0.0, %v1065
        %1067 = vmatmul.bf16.gmra.mxu0 %v1004
        %v1068 = vpop.f32.mrf.mxu0
        %v1069 = vadd.f32 0.0, %v1068
        %v1070 = vpop.f32.mrf.mxu0
        %v1071 = vadd.f32 0.0, %v1070
        %1072 = vmatmul.bf16.gmra.mxu0 %v1007
        %v1073 = vpop.f32.mrf.mxu0
        %v1074 = vadd.f32 0.0, %v1073
        %v1075 = vpop.f32.mrf.mxu0
        %v1076 = vadd.f32 0.0, %v1075
        %1077 = vmatmul.bf16.gmra.mxu0 %v1010
        %v1078 = vpop.f32.mrf.mxu0
        %v1079 = vadd.f32 0.0, %v1078
        %v1080 = vpop.f32.mrf.mxu0
        %v1081 = vadd.f32 0.0, %v1080
        %1082 = vmatmul.bf16.gmra.mxu0 %v1013
        %v1083 = vpop.f32.mrf.mxu0
        %v1084 = vadd.f32 0.0, %v1083
        %v1085 = vpop.f32.mrf.mxu0
        %v1086 = vadd.f32 0.0, %v1085
        %1087 = vmatmul.bf16.gmra.mxu0 %v1016
        %v1088 = vpop.f32.mrf.mxu0
        %v1089 = vadd.f32 0.0, %v1088
        %v1090 = vpop.f32.mrf.mxu0
        %v1091 = vadd.f32 0.0, %v1090
        %1092 = vmatmul.bf16.gmra.mxu0 %v1019
        %v1093 = vpop.f32.mrf.mxu0
        %v1094 = vadd.f32 0.0, %v1093
        %v1095 = vpop.f32.mrf.mxu0
        %v1096 = vadd.f32 0.0, %v1095
        %1097 = vmatmul.bf16.gmra.mxu0 %v1022
        %v1098 = vpop.f32.mrf.mxu0
        %v1099 = vadd.f32 0.0, %v1098
        %v1100 = vpop.f32.mrf.mxu0
        %v1101 = vadd.f32 0.0, %v1100
        %1102 = vmatmul.bf16.gmra.mxu0 %v1025
        %v1103 = vpop.f32.mrf.mxu0
        %v1104 = vadd.f32 0.0, %v1103
        %v1105 = vpop.f32.mrf.mxu0
        %v1106 = vadd.f32 0.0, %v1105
        %1107 = vmatmul.bf16.gmra.mxu0 %v1028
        %v1108 = vpop.f32.mrf.mxu0
        %v1109 = vadd.f32 0.0, %v1108
        %v1110 = vpop.f32.mrf.mxu0
        %v1111 = vadd.f32 0.0, %v1110
        %1112 = vmatmul.bf16.gmra.mxu0 %v1031
        %v1113 = vpop.f32.mrf.mxu0
        %v1114 = vadd.f32 0.0, %v1113
        %v1115 = vpop.f32.mrf.mxu0
        %v1116 = vadd.f32 0.0, %v1115
        %1117 = vmatmul.bf16.gmra.mxu0 %v1034
        %v1118 = vpop.f32.mrf.mxu0
        %v1119 = vadd.f32 0.0, %v1118
        %v1120 = vpop.f32.mrf.mxu0
        %v1121 = vadd.f32 0.0, %v1120
        %1122 = vmatmul.bf16.gmra.mxu0 %v1037
        %v1123 = vpop.f32.mrf.mxu0
        %v1124 = vadd.f32 0.0, %v1123
        %v1125 = vpop.f32.mrf.mxu0
        %v1126 = vadd.f32 0.0, %v1125
        %1127 = vdwg.mxu0
        %v1134 = vunpack.c.l.b16 %v751
        %v1135 = vunpack.c.l.b16 %v752
        %v1136 = vunpack.c.l.b16 %v753
        %v1137 = vunpack.c.l.b16 %v754
        %v1138 = vunpack.c.l.b16 %v755
        %v1139 = vunpack.c.l.b16 %v756
        %v1140 = vpack.c.b16 %v1135, %v1134
        %v1141 = vpack.c.b16 %v1137, %v1136
        %v1142 = vpack.c.b16 %v1139, %v1138
        %v1146 = vsel %vm990, %v828, 0
        %v1148 = vsel %vm990, %v829, 0
        %v1150 = vsel %vm990, %v830, 0
        %v1152 = vsel %vm990, %v831, 0
        %v1154 = vsel %vm990, %v832, 0
        %v1156 = vsel %vm990, %v833, 0
        %v1158 = vsel %vm990, %v834, 0
        %v1160 = vsel %vm990, %v835, 0
        %v1162 = vsel %vm990, %v836, 0
        %v1164 = vsel %vm990, %v837, 0
        %v1166 = vsel %vm990, %v838, 0
        %v1168 = vsel %vm990, %v839, 0
        %v1170 = vsel %vm990, %v840, 0
        %v1172 = vsel %vm990, %v841, 0
        %v1174 = vsel %vm990, %v842, 0
        %v1176 = vsel %vm990, %v843, 0
        %1178 = vmatpush.bf16.msra.mxu0 0
        %1179 = vmatpush.bf16.msra.mxu0 0
        %1180 = vmatpush.bf16.msra.mxu0 0
        %1181 = vmatpush.bf16.msra.mxu0 0
        %1182 = vmatpush.bf16.msra.mxu0 0
        %1183 = vmatpush.bf16.msra.mxu0 %v1142
        %1184 = vmatpush.bf16.msra.mxu0 %v1141
        %1185 = vmatpush.bf16.msra.mxu0 %v1140
        %1186 = vmatmul.bf16.gmra.mxu0 %v1146
        %v1187 = vpop.f32.mrf.mxu0
        %v1188 = vadd.f32 %v1049, %v1187
        %v1189 = vpop.f32.mrf.mxu0
        %v1190 = vadd.f32 %v1051, %v1189
        %1191 = vmatmul.bf16.gmra.mxu0 %v1148
        %v1192 = vpop.f32.mrf.mxu0
        %v1193 = vadd.f32 %v1054, %v1192
        %v1194 = vpop.f32.mrf.mxu0
        %v1195 = vadd.f32 %v1056, %v1194
        %1196 = vmatmul.bf16.gmra.mxu0 %v1150
        %v1197 = vpop.f32.mrf.mxu0
        %v1198 = vadd.f32 %v1059, %v1197
        %v1199 = vpop.f32.mrf.mxu0
        %v1200 = vadd.f32 %v1061, %v1199
        %1201 = vmatmul.bf16.gmra.mxu0 %v1152
        %v1202 = vpop.f32.mrf.mxu0
        %v1203 = vadd.f32 %v1064, %v1202
        %v1204 = vpop.f32.mrf.mxu0
        %v1205 = vadd.f32 %v1066, %v1204
        %1206 = vmatmul.bf16.gmra.mxu0 %v1154
        %v1207 = vpop.f32.mrf.mxu0
        %v1208 = vadd.f32 %v1069, %v1207
        %v1209 = vpop.f32.mrf.mxu0
        %v1210 = vadd.f32 %v1071, %v1209
        %1211 = vmatmul.bf16.gmra.mxu0 %v1156
        %v1212 = vpop.f32.mrf.mxu0
        %v1213 = vadd.f32 %v1074, %v1212
        %v1214 = vpop.f32.mrf.mxu0
        %v1215 = vadd.f32 %v1076, %v1214
        %1216 = vmatmul.bf16.gmra.mxu0 %v1158
        %v1217 = vpop.f32.mrf.mxu0
        %v1218 = vadd.f32 %v1079, %v1217
        %v1219 = vpop.f32.mrf.mxu0
        %v1220 = vadd.f32 %v1081, %v1219
        %1221 = vmatmul.bf16.gmra.mxu0 %v1160
        %v1222 = vpop.f32.mrf.mxu0
        %v1223 = vadd.f32 %v1084, %v1222
        %v1224 = vpop.f32.mrf.mxu0
        %v1225 = vadd.f32 %v1086, %v1224
        %1226 = vmatmul.bf16.gmra.mxu0 %v1162
        %v1227 = vpop.f32.mrf.mxu0
        %v1228 = vadd.f32 %v1089, %v1227
        %v1229 = vpop.f32.mrf.mxu0
        %v1230 = vadd.f32 %v1091, %v1229
        %1231 = vmatmul.bf16.gmra.mxu0 %v1164
        %v1232 = vpop.f32.mrf.mxu0
        %v1233 = vadd.f32 %v1094, %v1232
        %v1234 = vpop.f32.mrf.mxu0
        %v1235 = vadd.f32 %v1096, %v1234
        %1236 = vmatmul.bf16.gmra.mxu0 %v1166
        %v1237 = vpop.f32.mrf.mxu0
        %v1238 = vadd.f32 %v1099, %v1237
        %v1239 = vpop.f32.mrf.mxu0
        %v1240 = vadd.f32 %v1101, %v1239
        %1241 = vmatmul.bf16.gmra.mxu0 %v1168
        %v1242 = vpop.f32.mrf.mxu0
        %v1243 = vadd.f32 %v1104, %v1242
        %v1244 = vpop.f32.mrf.mxu0
        %v1245 = vadd.f32 %v1106, %v1244
        %1246 = vmatmul.bf16.gmra.mxu0 %v1170
        %v1247 = vpop.f32.mrf.mxu0
        %v1248 = vadd.f32 %v1109, %v1247
        %v1249 = vpop.f32.mrf.mxu0
        %v1250 = vadd.f32 %v1111, %v1249
        %1251 = vmatmul.bf16.gmra.mxu0 %v1172
        %v1252 = vpop.f32.mrf.mxu0
        %v1253 = vadd.f32 %v1114, %v1252
        %v1254 = vpop.f32.mrf.mxu0
        %v1255 = vadd.f32 %v1116, %v1254
        %1256 = vmatmul.bf16.gmra.mxu0 %v1174
        %v1257 = vpop.f32.mrf.mxu0
        %v1258 = vadd.f32 %v1119, %v1257
        %v1259 = vpop.f32.mrf.mxu0
        %v1260 = vadd.f32 %v1121, %v1259
        %1261 = vmatmul.bf16.gmra.mxu0 %v1176
        %v1262 = vpop.f32.mrf.mxu0
        %v1263 = vadd.f32 %v1124, %v1262
        %v1264 = vpop.f32.mrf.mxu0
        %v1265 = vadd.f32 %v1126, %v1264
        %1266 = vdwg.mxu0
        %v1267 = vld [vmem:[%s717] sm:$0xe]
        %v1268 = vld [vmem:[%s717 + $0x7c] sm:$0xf]
        %s1269 = scalar_lea.vmem %s1, 48
        %v1270 = vld [vmem:[%s1269] sm:$0xf]
        %v1271 = vld [vmem:[%s1269 + $0x4] sm:$0xf]
        %v1272 = vld [vmem:[%s1269 + $0x8] sm:$0xf]
        %v1273 = vld [vmem:[%s1269 + $0xc] sm:$0xf]
        %v1274 = vld [vmem:[%s1269 + $0x10] sm:$0xf]
        %v1275 = vld [vmem:[%s1269 + $0x14] sm:$0xf]
        %v1278 = vunpack.c.l.b16 %v1267
        %v1279 = vunpack.c.l.b16 %v1268
        %v1280 = vpack.c.b16 %v797, %v1278
        %v1281 = vpack.c.b16 %v1279, %v826
        %vm1282 = vcmask 1046528
        %v1283 = vrot.slane %v1280, 1
        %v1284 = vrot.slane %v829, 1
        %v1285 = vsel %vm1282, %v1283, %v1284
        %v1286 = vrot.slane %v830, 1
        %v1287 = vsel %vm1282, %v1284, %v1286
        %v1288 = vrot.slane %v831, 1
        %v1289 = vsel %vm1282, %v1286, %v1288
        %v1290 = vrot.slane %v832, 1
        %v1291 = vsel %vm1282, %v1288, %v1290
        %v1292 = vrot.slane %v833, 1
        %v1293 = vsel %vm1282, %v1290, %v1292
        %v1294 = vrot.slane %v834, 1
        %v1295 = vsel %vm1282, %v1292, %v1294
        %v1296 = vrot.slane %v835, 1
        %v1297 = vsel %vm1282, %v1294, %v1296
        %v1298 = vrot.slane %v836, 1
        %v1299 = vsel %vm1282, %v1296, %v1298
        %v1300 = vrot.slane %v837, 1
        %v1301 = vsel %vm1282, %v1298, %v1300
        %v1302 = vrot.slane %v838, 1
        %v1303 = vsel %vm1282, %v1300, %v1302
        %v1304 = vrot.slane %v839, 1
        %v1305 = vsel %vm1282, %v1302, %v1304
        %v1306 = vrot.slane %v840, 1
        %v1307 = vsel %vm1282, %v1304, %v1306
        %v1308 = vrot.slane %v841, 1
        %v1309 = vsel %vm1282, %v1306, %v1308
        %v1310 = vrot.slane %v842, 1
        %v1311 = vsel %vm1282, %v1308, %v1310
        %v1312 = vrot.slane %v1281, 1
        %v1313 = vsel %vm1282, %v1310, %v1312
        %v1320 = vunpack.c.l.b16 %v1270
        %v1321 = vunpack.c.l.b16 %v1271
        %v1322 = vunpack.c.l.b16 %v1272
        %v1323 = vunpack.c.l.b16 %v1273
        %v1324 = vunpack.c.l.b16 %v1274
        %v1325 = vunpack.c.l.b16 %v1275
        %v1326 = vpack.c.b16 %v1321, %v1320
        %v1327 = vpack.c.b16 %v1323, %v1322
        %v1328 = vpack.c.b16 %v1325, %v1324
        %v1333 = vsel %vm990, %v1285, 0
        %v1336 = vsel %vm990, %v1287, 0
        %v1339 = vsel %vm990, %v1289, 0
        %v1342 = vsel %vm990, %v1291, 0
        %v1345 = vsel %vm990, %v1293, 0
        %v1348 = vsel %vm990, %v1295, 0
        %v1351 = vsel %vm990, %v1297, 0
        %v1354 = vsel %vm990, %v1299, 0
        %v1357 = vsel %vm990, %v1301, 0
        %v1360 = vsel %vm990, %v1303, 0
        %v1363 = vsel %vm990, %v1305, 0
        %v1366 = vsel %vm990, %v1307, 0
        %v1369 = vsel %vm990, %v1309, 0
        %v1372 = vsel %vm990, %v1311, 0
        %v1375 = vsel %vm990, %v1313, 0
        %v1378 = vsel %vm990, %v1312, 0
        %1380 = vmatpush.bf16.msra.mxu0 0
        %1381 = vmatpush.bf16.msra.mxu0 0
        %1382 = vmatpush.bf16.msra.mxu0 0
        %1383 = vmatpush.bf16.msra.mxu0 0
        %1384 = vmatpush.bf16.msra.mxu0 0
        %1385 = vmatpush.bf16.msra.mxu0 %v1328
        %1386 = vmatpush.bf16.msra.mxu0 %v1327
        %1387 = vmatpush.bf16.msra.mxu0 %v1326
        %1388 = vmatmul.bf16.gmra.mxu0 %v1333
        %v1389 = vpop.f32.mrf.mxu0
        %v1390 = vadd.f32 0.0, %v1389
        %v1391 = vpop.f32.mrf.mxu0
        %v1392 = vadd.f32 0.0, %v1391
        %1393 = vmatmul.bf16.gmra.mxu0 %v1336
        %v1394 = vpop.f32.mrf.mxu0
        %v1395 = vadd.f32 0.0, %v1394
        %v1396 = vpop.f32.mrf.mxu0
        %v1397 = vadd.f32 0.0, %v1396
        %1398 = vmatmul.bf16.gmra.mxu0 %v1339
        %v1399 = vpop.f32.mrf.mxu0
        %v1400 = vadd.f32 0.0, %v1399
        %v1401 = vpop.f32.mrf.mxu0
        %v1402 = vadd.f32 0.0, %v1401
        %1403 = vmatmul.bf16.gmra.mxu0 %v1342
        %v1404 = vpop.f32.mrf.mxu0
        %v1405 = vadd.f32 0.0, %v1404
        %v1406 = vpop.f32.mrf.mxu0
        %v1407 = vadd.f32 0.0, %v1406
        %1408 = vmatmul.bf16.gmra.mxu0 %v1345
        %v1409 = vpop.f32.mrf.mxu0
        %v1410 = vadd.f32 0.0, %v1409
        %v1411 = vpop.f32.mrf.mxu0
        %v1412 = vadd.f32 0.0, %v1411
        %1413 = vmatmul.bf16.gmra.mxu0 %v1348
        %v1414 = vpop.f32.mrf.mxu0
        %v1415 = vadd.f32 0.0, %v1414
        %v1416 = vpop.f32.mrf.mxu0
        %v1417 = vadd.f32 0.0, %v1416
        %1418 = vmatmul.bf16.gmra.mxu0 %v1351
        %v1419 = vpop.f32.mrf.mxu0
        %v1420 = vadd.f32 0.0, %v1419
        %v1421 = vpop.f32.mrf.mxu0
        %v1422 = vadd.f32 0.0, %v1421
        %1423 = vmatmul.bf16.gmra.mxu0 %v1354
        %v1424 = vpop.f32.mrf.mxu0
        %v1425 = vadd.f32 0.0, %v1424
        %v1426 = vpop.f32.mrf.mxu0
        %v1427 = vadd.f32 0.0, %v1426
        %1428 = vmatmul.bf16.gmra.mxu0 %v1357
        %v1429 = vpop.f32.mrf.mxu0
        %v1430 = vadd.f32 0.0, %v1429
        %v1431 = vpop.f32.mrf.mxu0
        %v1432 = vadd.f32 0.0, %v1431
        %1433 = vmatmul.bf16.gmra.mxu0 %v1360
        %v1434 = vpop.f32.mrf.mxu0
        %v1435 = vadd.f32 0.0, %v1434
        %v1436 = vpop.f32.mrf.mxu0
        %v1437 = vadd.f32 0.0, %v1436
        %1438 = vmatmul.bf16.gmra.mxu0 %v1363
        %v1439 = vpop.f32.mrf.mxu0
        %v1440 = vadd.f32 0.0, %v1439
        %v1441 = vpop.f32.mrf.mxu0
        %v1442 = vadd.f32 0.0, %v1441
        %1443 = vmatmul.bf16.gmra.mxu0 %v1366
        %v1444 = vpop.f32.mrf.mxu0
        %v1445 = vadd.f32 0.0, %v1444
        %v1446 = vpop.f32.mrf.mxu0
        %v1447 = vadd.f32 0.0, %v1446
        %1448 = vmatmul.bf16.gmra.mxu0 %v1369
        %v1449 = vpop.f32.mrf.mxu0
        %v1450 = vadd.f32 0.0, %v1449
        %v1451 = vpop.f32.mrf.mxu0
        %v1452 = vadd.f32 0.0, %v1451
        %1453 = vmatmul.bf16.gmra.mxu0 %v1372
        %v1454 = vpop.f32.mrf.mxu0
        %v1455 = vadd.f32 0.0, %v1454
        %v1456 = vpop.f32.mrf.mxu0
        %v1457 = vadd.f32 0.0, %v1456
        %1458 = vmatmul.bf16.gmra.mxu0 %v1375
        %v1459 = vpop.f32.mrf.mxu0
        %v1460 = vadd.f32 0.0, %v1459
        %v1461 = vpop.f32.mrf.mxu0
        %v1462 = vadd.f32 0.0, %v1461
        %1463 = vmatmul.bf16.gmra.mxu0 %v1378
        %v1464 = vpop.f32.mrf.mxu0
        %v1465 = vadd.f32 0.0, %v1464
        %v1466 = vpop.f32.mrf.mxu0
        %v1467 = vadd.f32 0.0, %v1466
        %1468 = vdwg.mxu0
        %v1469 = vadd.f32 %v1188, %v1390
        %v1470 = vadd.f32 %v1190, %v1392
        %v1471 = vadd.f32 %v1193, %v1395
        %v1472 = vadd.f32 %v1195, %v1397
        %v1473 = vadd.f32 %v1198, %v1400
        %v1474 = vadd.f32 %v1200, %v1402
        %v1475 = vadd.f32 %v1203, %v1405
        %v1476 = vadd.f32 %v1205, %v1407
        %v1477 = vadd.f32 %v1208, %v1410
        %v1478 = vadd.f32 %v1210, %v1412
        %v1479 = vadd.f32 %v1213, %v1415
        %v1480 = vadd.f32 %v1215, %v1417
        %v1481 = vadd.f32 %v1218, %v1420
        %v1482 = vadd.f32 %v1220, %v1422
        %v1483 = vadd.f32 %v1223, %v1425
        %v1484 = vadd.f32 %v1225, %v1427
        %v1485 = vadd.f32 %v1228, %v1430
        %v1486 = vadd.f32 %v1230, %v1432
        %v1487 = vadd.f32 %v1233, %v1435
        %v1488 = vadd.f32 %v1235, %v1437
        %v1489 = vadd.f32 %v1238, %v1440
        %v1490 = vadd.f32 %v1240, %v1442
        %v1491 = vadd.f32 %v1243, %v1445
        %v1492 = vadd.f32 %v1245, %v1447
        %v1493 = vadd.f32 %v1248, %v1450
        %v1494 = vadd.f32 %v1250, %v1452
        %v1495 = vadd.f32 %v1253, %v1455
        %v1496 = vadd.f32 %v1255, %v1457
        %v1497 = vadd.f32 %v1258, %v1460
        %v1498 = vadd.f32 %v1260, %v1462
        %v1499 = vadd.f32 %v1263, %v1465
        %v1500 = vadd.f32 %v1265, %v1467
        %v1501 = vld [vmem:[%s717 + $0x8] sm:$0xf]
        %v1502 = vld [vmem:[%s717 + $0xc] sm:$0xf]
        %v1503 = vld [vmem:[%s717 + $0x10] sm:$0xf]
        %v1504 = vld [vmem:[%s717 + $0x14] sm:$0xf]
        %v1505 = vld [vmem:[%s717 + $0x18] sm:$0xf]
        %v1506 = vld [vmem:[%s717 + $0x1c] sm:$0xf]
        %v1507 = vld [vmem:[%s717 + $0x20] sm:$0xf]
        %v1508 = vld [vmem:[%s717 + $0x24] sm:$0xf]
        %v1509 = vld [vmem:[%s717 + $0x28] sm:$0xf]
        %v1510 = vld [vmem:[%s717 + $0x2c] sm:$0xf]
        %v1511 = vld [vmem:[%s717 + $0x30] sm:$0xf]
        %v1512 = vld [vmem:[%s717 + $0x34] sm:$0xf]
        %v1513 = vld [vmem:[%s717 + $0x38] sm:$0xf]
        %v1514 = vld [vmem:[%s717 + $0x3c] sm:$0xf]
        %v1515 = vld [vmem:[%s717 + $0x40] sm:$0xf]
        %v1516 = vld [vmem:[%s717 + $0x44] sm:$0xf]
        %v1517 = vld [vmem:[%s717 + $0x48] sm:$0xf]
        %v1518 = vld [vmem:[%s717 + $0x4c] sm:$0xf]
        %v1519 = vld [vmem:[%s717 + $0x50] sm:$0xf]
        %v1520 = vld [vmem:[%s717 + $0x54] sm:$0xf]
        %v1521 = vld [vmem:[%s717 + $0x58] sm:$0xf]
        %v1522 = vld [vmem:[%s717 + $0x5c] sm:$0xf]
        %v1523 = vld [vmem:[%s717 + $0x60] sm:$0xf]
        %v1524 = vld [vmem:[%s717 + $0x64] sm:$0xf]
        %v1525 = vld [vmem:[%s717 + $0x68] sm:$0xf]
        %v1526 = vld [vmem:[%s717 + $0x6c] sm:$0xf]
        %v1527 = vld [vmem:[%s717 + $0x70] sm:$0xf]
        %v1528 = vld [vmem:[%s717 + $0x74] sm:$0xf]
        %v1529 = vld [vmem:[%s717 + $0x78] sm:$0xf]
        %v1530 = vld [vmem:[%s717 + $0x7c] sm:$0xf]
        %v1531 = vld [vmem:[%s717 + $0x80] sm:$0xf]
        %v1532 = vld [vmem:[%s717 + $0x84] sm:$0x7]
        %s1533 = scalar_lea.vmem %s1, 72
        %v1534 = vld [vmem:[%s1533] sm:$0xf]
        %v1535 = vld [vmem:[%s1533 + $0x4] sm:$0xf]
        %v1536 = vld [vmem:[%s1533 + $0x8] sm:$0xf]
        %v1537 = vld [vmem:[%s1533 + $0xc] sm:$0xf]
        %v1538 = vld [vmem:[%s1533 + $0x10] sm:$0xf]
        %v1539 = vld [vmem:[%s1533 + $0x14] sm:$0xf]
        %v1572 = vunpack.c.l.b16 %v1501
        %v1573 = vunpack.c.l.b16 %v1502
        %v1574 = vunpack.c.l.b16 %v1503
        %v1575 = vunpack.c.l.b16 %v1504
        %v1576 = vunpack.c.l.b16 %v1505
        %v1577 = vunpack.c.l.b16 %v1506
        %v1578 = vunpack.c.l.b16 %v1507
        %v1579 = vunpack.c.l.b16 %v1508
        %v1580 = vunpack.c.l.b16 %v1509
        %v1581 = vunpack.c.l.b16 %v1510
        %v1582 = vunpack.c.l.b16 %v1511
        %v1583 = vunpack.c.l.b16 %v1512
        %v1584 = vunpack.c.l.b16 %v1513
        %v1585 = vunpack.c.l.b16 %v1514
        %v1586 = vunpack.c.l.b16 %v1515
        %v1587 = vunpack.c.l.b16 %v1516
        %v1588 = vunpack.c.l.b16 %v1517
        %v1589 = vunpack.c.l.b16 %v1518
        %v1590 = vunpack.c.l.b16 %v1519
        %v1591 = vunpack.c.l.b16 %v1520
        %v1592 = vunpack.c.l.b16 %v1521
        %v1593 = vunpack.c.l.b16 %v1522
        %v1594 = vunpack.c.l.b16 %v1523
        %v1595 = vunpack.c.l.b16 %v1524
        %v1596 = vunpack.c.l.b16 %v1525
        %v1597 = vunpack.c.l.b16 %v1526
        %v1598 = vunpack.c.l.b16 %v1527
        %v1599 = vunpack.c.l.b16 %v1528
        %v1600 = vunpack.c.l.b16 %v1529
        %v1601 = vunpack.c.l.b16 %v1530
        %v1602 = vunpack.c.l.b16 %v1531
        %v1603 = vunpack.c.l.b16 %v1532
        %v1604 = vpack.c.b16 %v1573, %v1572
        %v1605 = vpack.c.b16 %v1575, %v1574
        %v1606 = vpack.c.b16 %v1577, %v1576
        %v1607 = vpack.c.b16 %v1579, %v1578
        %v1608 = vpack.c.b16 %v1581, %v1580
        %v1609 = vpack.c.b16 %v1583, %v1582
        %v1610 = vpack.c.b16 %v1585, %v1584
        %v1611 = vpack.c.b16 %v1587, %v1586
        %v1612 = vpack.c.b16 %v1589, %v1588
        %v1613 = vpack.c.b16 %v1591, %v1590
        %v1614 = vpack.c.b16 %v1593, %v1592
        %v1615 = vpack.c.b16 %v1595, %v1594
        %v1616 = vpack.c.b16 %v1597, %v1596
        %v1617 = vpack.c.b16 %v1599, %v1598
        %v1618 = vpack.c.b16 %v1601, %v1600
        %v1619 = vpack.c.b16 %v1603, %v1602
        %v1621 = vshrl.u32 %v1604, 16
        %v1623 = vshll.u32 %v1604, 16
        %v1625 = vrot.slane %v1623, 1
        %v1626 = vor.u32 %v1621, %v1625
        %v1628 = vshll.u32 %v1605, 16
        %v1630 = vrot.slane %v1628, 1
        %v1631 = vsel %vm844, %v1626, %v1630
        %v1632 = vshrl.u32 %v1605, 16
        %v1634 = vor.u32 %v1632, %v1630
        %v1636 = vshll.u32 %v1606, 16
        %v1638 = vrot.slane %v1636, 1
        %v1639 = vsel %vm844, %v1634, %v1638
        %v1640 = vshrl.u32 %v1606, 16
        %v1642 = vor.u32 %v1640, %v1638
        %v1644 = vshll.u32 %v1607, 16
        %v1646 = vrot.slane %v1644, 1
        %v1647 = vsel %vm844, %v1642, %v1646
        %v1648 = vshrl.u32 %v1607, 16
        %v1650 = vor.u32 %v1648, %v1646
        %v1652 = vshll.u32 %v1608, 16
        %v1654 = vrot.slane %v1652, 1
        %v1655 = vsel %vm844, %v1650, %v1654
        %v1656 = vshrl.u32 %v1608, 16
        %v1658 = vor.u32 %v1656, %v1654
        %v1660 = vshll.u32 %v1609, 16
        %v1662 = vrot.slane %v1660, 1
        %v1663 = vsel %vm844, %v1658, %v1662
        %v1664 = vshrl.u32 %v1609, 16
        %v1666 = vor.u32 %v1664, %v1662
        %v1668 = vshll.u32 %v1610, 16
        %v1670 = vrot.slane %v1668, 1
        %v1671 = vsel %vm844, %v1666, %v1670
        %v1672 = vshrl.u32 %v1610, 16
        %v1674 = vor.u32 %v1672, %v1670
        %v1676 = vshll.u32 %v1611, 16
        %v1678 = vrot.slane %v1676, 1
        %v1679 = vsel %vm844, %v1674, %v1678
        %v1680 = vshrl.u32 %v1611, 16
        %v1682 = vor.u32 %v1680, %v1678
        %v1684 = vshll.u32 %v1612, 16
        %v1686 = vrot.slane %v1684, 1
        %v1687 = vsel %vm844, %v1682, %v1686
        %v1688 = vshrl.u32 %v1612, 16
        %v1690 = vor.u32 %v1688, %v1686
        %v1692 = vshll.u32 %v1613, 16
        %v1694 = vrot.slane %v1692, 1
        %v1695 = vsel %vm844, %v1690, %v1694
        %v1696 = vshrl.u32 %v1613, 16
        %v1698 = vor.u32 %v1696, %v1694
        %v1700 = vshll.u32 %v1614, 16
        %v1702 = vrot.slane %v1700, 1
        %v1703 = vsel %vm844, %v1698, %v1702
        %v1704 = vshrl.u32 %v1614, 16
        %v1706 = vor.u32 %v1704, %v1702
        %v1708 = vshll.u32 %v1615, 16
        %v1710 = vrot.slane %v1708, 1
        %v1711 = vsel %vm844, %v1706, %v1710
        %v1712 = vshrl.u32 %v1615, 16
        %v1714 = vor.u32 %v1712, %v1710
        %v1716 = vshll.u32 %v1616, 16
        %v1718 = vrot.slane %v1716, 1
        %v1719 = vsel %vm844, %v1714, %v1718
        %v1720 = vshrl.u32 %v1616, 16
        %v1722 = vor.u32 %v1720, %v1718
        %v1724 = vshll.u32 %v1617, 16
        %v1726 = vrot.slane %v1724, 1
        %v1727 = vsel %vm844, %v1722, %v1726
        %v1728 = vshrl.u32 %v1617, 16
        %v1730 = vor.u32 %v1728, %v1726
        %v1732 = vshll.u32 %v1618, 16
        %v1734 = vrot.slane %v1732, 1
        %v1735 = vsel %vm844, %v1730, %v1734
        %v1736 = vshrl.u32 %v1618, 16
        %v1738 = vor.u32 %v1736, %v1734
        %v1740 = vshll.u32 %v1619, 16
        %v1742 = vrot.slane %v1740, 1
        %v1743 = vsel %vm844, %v1738, %v1742
        %v1744 = vshrl.u32 %v1619, 16
        %v1746 = vor.u32 %v1744, %v1742
        %v1753 = vunpack.c.l.b16 %v1534
        %v1754 = vunpack.c.l.b16 %v1535
        %v1755 = vunpack.c.l.b16 %v1536
        %v1756 = vunpack.c.l.b16 %v1537
        %v1757 = vunpack.c.l.b16 %v1538
        %v1758 = vunpack.c.l.b16 %v1539
        %v1759 = vpack.c.b16 %v1754, %v1753
        %v1760 = vpack.c.b16 %v1756, %v1755
        %v1761 = vpack.c.b16 %v1758, %v1757
        %v1766 = vsel %vm990, %v1631, 0
        %v1769 = vsel %vm990, %v1639, 0
        %v1772 = vsel %vm990, %v1647, 0
        %v1775 = vsel %vm990, %v1655, 0
        %v1778 = vsel %vm990, %v1663, 0
        %v1781 = vsel %vm990, %v1671, 0
        %v1784 = vsel %vm990, %v1679, 0
        %v1787 = vsel %vm990, %v1687, 0
        %v1790 = vsel %vm990, %v1695, 0
        %v1793 = vsel %vm990, %v1703, 0
        %v1796 = vsel %vm990, %v1711, 0
        %v1799 = vsel %vm990, %v1719, 0
        %v1802 = vsel %vm990, %v1727, 0
        %v1805 = vsel %vm990, %v1735, 0
        %v1808 = vsel %vm990, %v1743, 0
        %v1811 = vsel %vm990, %v1746, 0
        %1813 = vmatpush.bf16.msra.mxu0 0
        %1814 = vmatpush.bf16.msra.mxu0 0
        %1815 = vmatpush.bf16.msra.mxu0 0
        %1816 = vmatpush.bf16.msra.mxu0 0
        %1817 = vmatpush.bf16.msra.mxu0 0
        %1818 = vmatpush.bf16.msra.mxu0 %v1761
        %1819 = vmatpush.bf16.msra.mxu0 %v1760
        %1820 = vmatpush.bf16.msra.mxu0 %v1759
        %1821 = vmatmul.bf16.gmra.mxu0 %v1766
        %v1822 = vpop.f32.mrf.mxu0
        %v1823 = vadd.f32 0.0, %v1822
        %v1824 = vpop.f32.mrf.mxu0
        %v1825 = vadd.f32 0.0, %v1824
        %1826 = vmatmul.bf16.gmra.mxu0 %v1769
        %v1827 = vpop.f32.mrf.mxu0
        %v1828 = vadd.f32 0.0, %v1827
        %v1829 = vpop.f32.mrf.mxu0
        %v1830 = vadd.f32 0.0, %v1829
        %1831 = vmatmul.bf16.gmra.mxu0 %v1772
        %v1832 = vpop.f32.mrf.mxu0
        %v1833 = vadd.f32 0.0, %v1832
        %v1834 = vpop.f32.mrf.mxu0
        %v1835 = vadd.f32 0.0, %v1834
        %1836 = vmatmul.bf16.gmra.mxu0 %v1775
        %v1837 = vpop.f32.mrf.mxu0
        %v1838 = vadd.f32 0.0, %v1837
        %v1839 = vpop.f32.mrf.mxu0
        %v1840 = vadd.f32 0.0, %v1839
        %1841 = vmatmul.bf16.gmra.mxu0 %v1778
        %v1842 = vpop.f32.mrf.mxu0
        %v1843 = vadd.f32 0.0, %v1842
        %v1844 = vpop.f32.mrf.mxu0
        %v1845 = vadd.f32 0.0, %v1844
        %1846 = vmatmul.bf16.gmra.mxu0 %v1781
        %v1847 = vpop.f32.mrf.mxu0
        %v1848 = vadd.f32 0.0, %v1847
        %v1849 = vpop.f32.mrf.mxu0
        %v1850 = vadd.f32 0.0, %v1849
        %1851 = vmatmul.bf16.gmra.mxu0 %v1784
        %v1852 = vpop.f32.mrf.mxu0
        %v1853 = vadd.f32 0.0, %v1852
        %v1854 = vpop.f32.mrf.mxu0
        %v1855 = vadd.f32 0.0, %v1854
        %1856 = vmatmul.bf16.gmra.mxu0 %v1787
        %v1857 = vpop.f32.mrf.mxu0
        %v1858 = vadd.f32 0.0, %v1857
        %v1859 = vpop.f32.mrf.mxu0
        %v1860 = vadd.f32 0.0, %v1859
        %1861 = vmatmul.bf16.gmra.mxu0 %v1790
        %v1862 = vpop.f32.mrf.mxu0
        %v1863 = vadd.f32 0.0, %v1862
        %v1864 = vpop.f32.mrf.mxu0
        %v1865 = vadd.f32 0.0, %v1864
        %1866 = vmatmul.bf16.gmra.mxu0 %v1793
        %v1867 = vpop.f32.mrf.mxu0
        %v1868 = vadd.f32 0.0, %v1867
        %v1869 = vpop.f32.mrf.mxu0
        %v1870 = vadd.f32 0.0, %v1869
        %1871 = vmatmul.bf16.gmra.mxu0 %v1796
        %v1872 = vpop.f32.mrf.mxu0
        %v1873 = vadd.f32 0.0, %v1872
        %v1874 = vpop.f32.mrf.mxu0
        %v1875 = vadd.f32 0.0, %v1874
        %1876 = vmatmul.bf16.gmra.mxu0 %v1799
        %v1877 = vpop.f32.mrf.mxu0
        %v1878 = vadd.f32 0.0, %v1877
        %v1879 = vpop.f32.mrf.mxu0
        %v1880 = vadd.f32 0.0, %v1879
        %1881 = vmatmul.bf16.gmra.mxu0 %v1802
        %v1882 = vpop.f32.mrf.mxu0
        %v1883 = vadd.f32 0.0, %v1882
        %v1884 = vpop.f32.mrf.mxu0
        %v1885 = vadd.f32 0.0, %v1884
        %1886 = vmatmul.bf16.gmra.mxu0 %v1805
        %v1887 = vpop.f32.mrf.mxu0
        %v1888 = vadd.f32 0.0, %v1887
        %v1889 = vpop.f32.mrf.mxu0
        %v1890 = vadd.f32 0.0, %v1889
        %1891 = vmatmul.bf16.gmra.mxu0 %v1808
        %v1892 = vpop.f32.mrf.mxu0
        %v1893 = vadd.f32 0.0, %v1892
        %v1894 = vpop.f32.mrf.mxu0
        %v1895 = vadd.f32 0.0, %v1894
        %1896 = vmatmul.bf16.gmra.mxu0 %v1811
        %v1897 = vpop.f32.mrf.mxu0
        %v1898 = vadd.f32 0.0, %v1897
        %v1899 = vpop.f32.mrf.mxu0
        %v1900 = vadd.f32 0.0, %v1899
        %1901 = vdwg.mxu0
        %v1902 = vadd.f32 %v1469, %v1823
        %v1903 = vadd.f32 %v1470, %v1825
        %v1904 = vadd.f32 %v1471, %v1828
        %v1905 = vadd.f32 %v1472, %v1830
        %v1906 = vadd.f32 %v1473, %v1833
        %v1907 = vadd.f32 %v1474, %v1835
        %v1908 = vadd.f32 %v1475, %v1838
        %v1909 = vadd.f32 %v1476, %v1840
        %v1910 = vadd.f32 %v1477, %v1843
        %v1911 = vadd.f32 %v1478, %v1845
        %v1912 = vadd.f32 %v1479, %v1848
        %v1913 = vadd.f32 %v1480, %v1850
        %v1914 = vadd.f32 %v1481, %v1853
        %v1915 = vadd.f32 %v1482, %v1855
        %v1916 = vadd.f32 %v1483, %v1858
        %v1917 = vadd.f32 %v1484, %v1860
        %v1918 = vadd.f32 %v1485, %v1863
        %v1919 = vadd.f32 %v1486, %v1865
        %v1920 = vadd.f32 %v1487, %v1868
        %v1921 = vadd.f32 %v1488, %v1870
        %v1922 = vadd.f32 %v1489, %v1873
        %v1923 = vadd.f32 %v1490, %v1875
        %v1924 = vadd.f32 %v1491, %v1878
        %v1925 = vadd.f32 %v1492, %v1880
        %v1926 = vadd.f32 %v1493, %v1883
        %v1927 = vadd.f32 %v1494, %v1885
        %v1928 = vadd.f32 %v1495, %v1888
        %v1929 = vadd.f32 %v1496, %v1890
        %v1930 = vadd.f32 %v1497, %v1893
        %v1931 = vadd.f32 %v1498, %v1895
        %v1932 = vadd.f32 %v1499, %v1898
        %v1933 = vadd.f32 %v1500, %v1900
        %v1934 = vld [vmem:[%s717 + $0x8] sm:$0xe]
        %v1935 = vld [vmem:[%s717 + $0x84] sm:$0xf]
        %s1936 = scalar_lea.vmem %s1, 96
        %v1937 = vld [vmem:[%s1936] sm:$0xf]
        %v1938 = vld [vmem:[%s1936 + $0x4] sm:$0xf]
        %v1939 = vld [vmem:[%s1936 + $0x8] sm:$0xf]
        %v1940 = vld [vmem:[%s1936 + $0xc] sm:$0xf]
        %v1941 = vld [vmem:[%s1936 + $0x10] sm:$0xf]
        %v1942 = vld [vmem:[%s1936 + $0x14] sm:$0xf]
        %v1945 = vunpack.c.l.b16 %v1934
        %v1946 = vunpack.c.l.b16 %v1935
        %v1947 = vpack.c.b16 %v1573, %v1945
        %v1948 = vpack.c.b16 %v1946, %v1602
        %v1949 = vrot.slane %v1947, 1
        %v1950 = vrot.slane %v1605, 1
        %v1951 = vsel %vm1282, %v1949, %v1950
        %v1952 = vrot.slane %v1606, 1
        %v1953 = vsel %vm1282, %v1950, %v1952
        %v1954 = vrot.slane %v1607, 1
        %v1955 = vsel %vm1282, %v1952, %v1954
        %v1956 = vrot.slane %v1608, 1
        %v1957 = vsel %vm1282, %v1954, %v1956
        %v1958 = vrot.slane %v1609, 1
        %v1959 = vsel %vm1282, %v1956, %v1958
        %v1960 = vrot.slane %v1610, 1
        %v1961 = vsel %vm1282, %v1958, %v1960
        %v1962 = vrot.slane %v1611, 1
        %v1963 = vsel %vm1282, %v1960, %v1962
        %v1964 = vrot.slane %v1612, 1
        %v1965 = vsel %vm1282, %v1962, %v1964
        %v1966 = vrot.slane %v1613, 1
        %v1967 = vsel %vm1282, %v1964, %v1966
        %v1968 = vrot.slane %v1614, 1
        %v1969 = vsel %vm1282, %v1966, %v1968
        %v1970 = vrot.slane %v1615, 1
        %v1971 = vsel %vm1282, %v1968, %v1970
        %v1972 = vrot.slane %v1616, 1
        %v1973 = vsel %vm1282, %v1970, %v1972
        %v1974 = vrot.slane %v1617, 1
        %v1975 = vsel %vm1282, %v1972, %v1974
        %v1976 = vrot.slane %v1618, 1
        %v1977 = vsel %vm1282, %v1974, %v1976
        %v1978 = vrot.slane %v1948, 1
        %v1979 = vsel %vm1282, %v1976, %v1978
        %v1986 = vunpack.c.l.b16 %v1937
        %v1987 = vunpack.c.l.b16 %v1938
        %v1988 = vunpack.c.l.b16 %v1939
        %v1989 = vunpack.c.l.b16 %v1940
        %v1990 = vunpack.c.l.b16 %v1941
        %v1991 = vunpack.c.l.b16 %v1942
        %v1992 = vpack.c.b16 %v1987, %v1986
        %v1993 = vpack.c.b16 %v1989, %v1988
        %v1994 = vpack.c.b16 %v1991, %v1990
        %v1999 = vsel %vm990, %v1951, 0
        %v2002 = vsel %vm990, %v1953, 0
        %v2005 = vsel %vm990, %v1955, 0
        %v2008 = vsel %vm990, %v1957, 0
        %v2011 = vsel %vm990, %v1959, 0
        %v2014 = vsel %vm990, %v1961, 0
        %v2017 = vsel %vm990, %v1963, 0
        %v2020 = vsel %vm990, %v1965, 0
        %v2023 = vsel %vm990, %v1967, 0
        %v2026 = vsel %vm990, %v1969, 0
        %v2029 = vsel %vm990, %v1971, 0
        %v2032 = vsel %vm990, %v1973, 0
        %v2035 = vsel %vm990, %v1975, 0
        %v2038 = vsel %vm990, %v1977, 0
        %v2041 = vsel %vm990, %v1979, 0
        %v2044 = vsel %vm990, %v1978, 0
        %2046 = vmatpush.bf16.msra.mxu0 0
        %2047 = vmatpush.bf16.msra.mxu0 0
        %2048 = vmatpush.bf16.msra.mxu0 0
        %2049 = vmatpush.bf16.msra.mxu0 0
        %2050 = vmatpush.bf16.msra.mxu0 0
        %2051 = vmatpush.bf16.msra.mxu0 %v1994
        %2052 = vmatpush.bf16.msra.mxu0 %v1993
        %2053 = vmatpush.bf16.msra.mxu0 %v1992
        %2054 = vmatmul.bf16.gmra.mxu0 %v1999
        %v2055 = vpop.f32.mrf.mxu0
        %v2056 = vadd.f32 0.0, %v2055
        %v2057 = vpop.f32.mrf.mxu0
        %v2058 = vadd.f32 0.0, %v2057
        %2059 = vmatmul.bf16.gmra.mxu0 %v2002
        %v2060 = vpop.f32.mrf.mxu0
        %v2061 = vadd.f32 0.0, %v2060
        %v2062 = vpop.f32.mrf.mxu0
        %v2063 = vadd.f32 0.0, %v2062
        %2064 = vmatmul.bf16.gmra.mxu0 %v2005
        %v2065 = vpop.f32.mrf.mxu0
        %v2066 = vadd.f32 0.0, %v2065
        %v2067 = vpop.f32.mrf.mxu0
        %v2068 = vadd.f32 0.0, %v2067
        %2069 = vmatmul.bf16.gmra.mxu0 %v2008
        %v2070 = vpop.f32.mrf.mxu0
        %v2071 = vadd.f32 0.0, %v2070
        %v2072 = vpop.f32.mrf.mxu0
        %v2073 = vadd.f32 0.0, %v2072
        %2074 = vmatmul.bf16.gmra.mxu0 %v2011
        %v2075 = vpop.f32.mrf.mxu0
        %v2076 = vadd.f32 0.0, %v2075
        %v2077 = vpop.f32.mrf.mxu0
        %v2078 = vadd.f32 0.0, %v2077
        %2079 = vmatmul.bf16.gmra.mxu0 %v2014
        %v2080 = vpop.f32.mrf.mxu0
        %v2081 = vadd.f32 0.0, %v2080
        %v2082 = vpop.f32.mrf.mxu0
        %v2083 = vadd.f32 0.0, %v2082
        %2084 = vmatmul.bf16.gmra.mxu0 %v2017
        %v2085 = vpop.f32.mrf.mxu0
        %v2086 = vadd.f32 0.0, %v2085
        %v2087 = vpop.f32.mrf.mxu0
        %v2088 = vadd.f32 0.0, %v2087
        %2089 = vmatmul.bf16.gmra.mxu0 %v2020
        %v2090 = vpop.f32.mrf.mxu0
        %v2091 = vadd.f32 0.0, %v2090
        %v2092 = vpop.f32.mrf.mxu0
        %v2093 = vadd.f32 0.0, %v2092
        %2094 = vmatmul.bf16.gmra.mxu0 %v2023
        %v2095 = vpop.f32.mrf.mxu0
        %v2096 = vadd.f32 0.0, %v2095
        %v2097 = vpop.f32.mrf.mxu0
        %v2098 = vadd.f32 0.0, %v2097
        %2099 = vmatmul.bf16.gmra.mxu0 %v2026
        %v2100 = vpop.f32.mrf.mxu0
        %v2101 = vadd.f32 0.0, %v2100
        %v2102 = vpop.f32.mrf.mxu0
        %v2103 = vadd.f32 0.0, %v2102
        %2104 = vmatmul.bf16.gmra.mxu0 %v2029
        %v2105 = vpop.f32.mrf.mxu0
        %v2106 = vadd.f32 0.0, %v2105
        %v2107 = vpop.f32.mrf.mxu0
        %v2108 = vadd.f32 0.0, %v2107
        %2109 = vmatmul.bf16.gmra.mxu0 %v2032
        %v2110 = vpop.f32.mrf.mxu0
        %v2111 = vadd.f32 0.0, %v2110
        %v2112 = vpop.f32.mrf.mxu0
        %v2113 = vadd.f32 0.0, %v2112
        %2114 = vmatmul.bf16.gmra.mxu0 %v2035
        %v2115 = vpop.f32.mrf.mxu0
        %v2116 = vadd.f32 0.0, %v2115
        %v2117 = vpop.f32.mrf.mxu0
        %v2118 = vadd.f32 0.0, %v2117
        %2119 = vmatmul.bf16.gmra.mxu0 %v2038
        %v2120 = vpop.f32.mrf.mxu0
        %v2121 = vadd.f32 0.0, %v2120
        %v2122 = vpop.f32.mrf.mxu0
        %v2123 = vadd.f32 0.0, %v2122
        %2124 = vmatmul.bf16.gmra.mxu0 %v2041
        %v2125 = vpop.f32.mrf.mxu0
        %v2126 = vadd.f32 0.0, %v2125
        %v2127 = vpop.f32.mrf.mxu0
        %v2128 = vadd.f32 0.0, %v2127
        %2129 = vmatmul.bf16.gmra.mxu0 %v2044
        %v2130 = vpop.f32.mrf.mxu0
        %v2131 = vadd.f32 0.0, %v2130
        %v2132 = vpop.f32.mrf.mxu0
        %v2133 = vadd.f32 0.0, %v2132
        %2134 = vdwg.mxu0
        %v2135 = vadd.f32 %v1902, %v2056
        %v2136 = vadd.f32 %v1903, %v2058
        %v2137 = vadd.f32 %v1904, %v2061
        %v2138 = vadd.f32 %v1905, %v2063
        %v2139 = vadd.f32 %v1906, %v2066
        %v2140 = vadd.f32 %v1907, %v2068
        %v2141 = vadd.f32 %v1908, %v2071
        %v2142 = vadd.f32 %v1909, %v2073
        %v2143 = vadd.f32 %v1910, %v2076
        %v2144 = vadd.f32 %v1911, %v2078
        %v2145 = vadd.f32 %v1912, %v2081
        %v2146 = vadd.f32 %v1913, %v2083
        %v2147 = vadd.f32 %v1914, %v2086
        %v2148 = vadd.f32 %v1915, %v2088
        %v2149 = vadd.f32 %v1916, %v2091
        %v2150 = vadd.f32 %v1917, %v2093
        %v2151 = vadd.f32 %v1918, %v2096
        %v2152 = vadd.f32 %v1919, %v2098
        %v2153 = vadd.f32 %v1920, %v2101
        %v2154 = vadd.f32 %v1921, %v2103
        %v2155 = vadd.f32 %v1922, %v2106
        %v2156 = vadd.f32 %v1923, %v2108
        %v2157 = vadd.f32 %v1924, %v2111
        %v2158 = vadd.f32 %v1925, %v2113
        %v2159 = vadd.f32 %v1926, %v2116
        %v2160 = vadd.f32 %v1927, %v2118
        %v2161 = vadd.f32 %v1928, %v2121
        %v2162 = vadd.f32 %v1929, %v2123
        %v2163 = vadd.f32 %v1930, %v2126
        %v2164 = vadd.f32 %v1931, %v2128
        %v2165 = vadd.f32 %v1932, %v2131
        %v2166 = vadd.f32 %v1933, %v2133
        %s2167 = scalar_lea.vmem %s1, 120
        %v2168 = vld [vmem:[%s2167] sm:$0xf]
        %v2169 = vld [vmem:[%s2167 + $0x4] sm:$0xf]
        %v2170 = vld [vmem:[%s2167 + $0x8] sm:$0xf]
        %v2171 = vld [vmem:[%s2167 + $0xc] sm:$0xf]
        %v2172 = vld [vmem:[%s2167 + $0x10] sm:$0xf]
        %v2173 = vld [vmem:[%s2167 + $0x14] sm:$0xf]
        %vm2174 = vsmask.f32 6400
        %v2176 = vshrl.u32 %v1947, 16
        %v2178 = vrot.slane %v2176, 1
        %v2179 = vshll.u32 %v1947, 16
        %v2181 = vrot.slane %v2179, 2
        %v2182 = vor.u32 %v2178, %v2181
        %v2183 = vrot.slane %v1632, 1
        %v2184 = vrot.slane %v1628, 2
        %v2185 = vor.u32 %v2183, %v2184
        %v2186 = vsel %vm2174, %v2182, %v2185
        %v2187 = vrot.slane %v1640, 1
        %v2188 = vrot.slane %v1636, 2
        %v2189 = vor.u32 %v2187, %v2188
        %v2190 = vsel %vm2174, %v2185, %v2189
        %v2191 = vrot.slane %v1648, 1
        %v2192 = vrot.slane %v1644, 2
        %v2193 = vor.u32 %v2191, %v2192
        %v2194 = vsel %vm2174, %v2189, %v2193
        %v2195 = vrot.slane %v1656, 1
        %v2196 = vrot.slane %v1652, 2
        %v2197 = vor.u32 %v2195, %v2196
        %v2198 = vsel %vm2174, %v2193, %v2197
        %v2199 = vrot.slane %v1664, 1
        %v2200 = vrot.slane %v1660, 2
        %v2201 = vor.u32 %v2199, %v2200
        %v2202 = vsel %vm2174, %v2197, %v2201
        %v2203 = vrot.slane %v1672, 1
        %v2204 = vrot.slane %v1668, 2
        %v2205 = vor.u32 %v2203, %v2204
        %v2206 = vsel %vm2174, %v2201, %v2205
        %v2207 = vrot.slane %v1680, 1
        %v2208 = vrot.slane %v1676, 2
        %v2209 = vor.u32 %v2207, %v2208
        %v2210 = vsel %vm2174, %v2205, %v2209
        %v2211 = vrot.slane %v1688, 1
        %v2212 = vrot.slane %v1684, 2
        %v2213 = vor.u32 %v2211, %v2212
        %v2214 = vsel %vm2174, %v2209, %v2213
        %v2215 = vrot.slane %v1696, 1
        %v2216 = vrot.slane %v1692, 2
        %v2217 = vor.u32 %v2215, %v2216
        %v2218 = vsel %vm2174, %v2213, %v2217
        %v2219 = vrot.slane %v1704, 1
        %v2220 = vrot.slane %v1700, 2
        %v2221 = vor.u32 %v2219, %v2220
        %v2222 = vsel %vm2174, %v2217, %v2221
        %v2223 = vrot.slane %v1712, 1
        %v2224 = vrot.slane %v1708, 2
        %v2225 = vor.u32 %v2223, %v2224
        %v2226 = vsel %vm2174, %v2221, %v2225
        %v2227 = vrot.slane %v1720, 1
        %v2228 = vrot.slane %v1716, 2
        %v2229 = vor.u32 %v2227, %v2228
        %v2230 = vsel %vm2174, %v2225, %v2229
        %v2231 = vrot.slane %v1728, 1
        %v2232 = vrot.slane %v1724, 2
        %v2233 = vor.u32 %v2231, %v2232
        %v2234 = vsel %vm2174, %v2229, %v2233
        %v2235 = vrot.slane %v1736, 1
        %v2236 = vrot.slane %v1732, 2
        %v2237 = vor.u32 %v2235, %v2236
        %v2238 = vsel %vm2174, %v2233, %v2237
        %v2240 = vshrl.u32 %v1948, 16
        %v2242 = vrot.slane %v2240, 1
        %v2243 = vshll.u32 %v1948, 16
        %v2245 = vrot.slane %v2243, 2
        %v2246 = vor.u32 %v2242, %v2245
        %v2247 = vsel %vm2174, %v2237, %v2246
        %v2254 = vunpack.c.l.b16 %v2168
        %v2255 = vunpack.c.l.b16 %v2169
        %v2256 = vunpack.c.l.b16 %v2170
        %v2257 = vunpack.c.l.b16 %v2171
        %v2258 = vunpack.c.l.b16 %v2172
        %v2259 = vunpack.c.l.b16 %v2173
        %v2260 = vpack.c.b16 %v2255, %v2254
        %v2261 = vpack.c.b16 %v2257, %v2256
        %v2262 = vpack.c.b16 %v2259, %v2258
        %v2267 = vsel %vm990, %v2186, 0
        %v2270 = vsel %vm990, %v2190, 0
        %v2273 = vsel %vm990, %v2194, 0
        %v2276 = vsel %vm990, %v2198, 0
        %v2279 = vsel %vm990, %v2202, 0
        %v2282 = vsel %vm990, %v2206, 0
        %v2285 = vsel %vm990, %v2210, 0
        %v2288 = vsel %vm990, %v2214, 0
        %v2291 = vsel %vm990, %v2218, 0
        %v2294 = vsel %vm990, %v2222, 0
        %v2297 = vsel %vm990, %v2226, 0
        %v2300 = vsel %vm990, %v2230, 0
        %v2303 = vsel %vm990, %v2234, 0
        %v2306 = vsel %vm990, %v2238, 0
        %v2309 = vsel %vm990, %v2247, 0
        %v2312 = vsel %vm990, %v2246, 0
        %2314 = vmatpush.bf16.msra.mxu0 0
        %2315 = vmatpush.bf16.msra.mxu0 0
        %2316 = vmatpush.bf16.msra.mxu0 0
        %2317 = vmatpush.bf16.msra.mxu0 0
        %2318 = vmatpush.bf16.msra.mxu0 0
        %2319 = vmatpush.bf16.msra.mxu0 %v2262
        %2320 = vmatpush.bf16.msra.mxu0 %v2261
        %2321 = vmatpush.bf16.msra.mxu0 %v2260
        %2322 = vmatmul.bf16.gmra.mxu0 %v2267
        %v2323 = vpop.f32.mrf.mxu0
        %v2324 = vadd.f32 0.0, %v2323
        %v2325 = vpop.f32.mrf.mxu0
        %v2326 = vadd.f32 0.0, %v2325
        %2327 = vmatmul.bf16.gmra.mxu0 %v2270
        %v2328 = vpop.f32.mrf.mxu0
        %v2329 = vadd.f32 0.0, %v2328
        %v2330 = vpop.f32.mrf.mxu0
        %v2331 = vadd.f32 0.0, %v2330
        %2332 = vmatmul.bf16.gmra.mxu0 %v2273
        %v2333 = vpop.f32.mrf.mxu0
        %v2334 = vadd.f32 0.0, %v2333
        %v2335 = vpop.f32.mrf.mxu0
        %v2336 = vadd.f32 0.0, %v2335
        %2337 = vmatmul.bf16.gmra.mxu0 %v2276
        %v2338 = vpop.f32.mrf.mxu0
        %v2339 = vadd.f32 0.0, %v2338
        %v2340 = vpop.f32.mrf.mxu0
        %v2341 = vadd.f32 0.0, %v2340
        %2342 = vmatmul.bf16.gmra.mxu0 %v2279
        %v2343 = vpop.f32.mrf.mxu0
        %v2344 = vadd.f32 0.0, %v2343
        %v2345 = vpop.f32.mrf.mxu0
        %v2346 = vadd.f32 0.0, %v2345
        %2347 = vmatmul.bf16.gmra.mxu0 %v2282
        %v2348 = vpop.f32.mrf.mxu0
        %v2349 = vadd.f32 0.0, %v2348
        %v2350 = vpop.f32.mrf.mxu0
        %v2351 = vadd.f32 0.0, %v2350
        %2352 = vmatmul.bf16.gmra.mxu0 %v2285
        %v2353 = vpop.f32.mrf.mxu0
        %v2354 = vadd.f32 0.0, %v2353
        %v2355 = vpop.f32.mrf.mxu0
        %v2356 = vadd.f32 0.0, %v2355
        %2357 = vmatmul.bf16.gmra.mxu0 %v2288
        %v2358 = vpop.f32.mrf.mxu0
        %v2359 = vadd.f32 0.0, %v2358
        %v2360 = vpop.f32.mrf.mxu0
        %v2361 = vadd.f32 0.0, %v2360
        %2362 = vmatmul.bf16.gmra.mxu0 %v2291
        %v2363 = vpop.f32.mrf.mxu0
        %v2364 = vadd.f32 0.0, %v2363
        %v2365 = vpop.f32.mrf.mxu0
        %v2366 = vadd.f32 0.0, %v2365
        %2367 = vmatmul.bf16.gmra.mxu0 %v2294
        %v2368 = vpop.f32.mrf.mxu0
        %v2369 = vadd.f32 0.0, %v2368
        %v2370 = vpop.f32.mrf.mxu0
        %v2371 = vadd.f32 0.0, %v2370
        %2372 = vmatmul.bf16.gmra.mxu0 %v2297
        %v2373 = vpop.f32.mrf.mxu0
        %v2374 = vadd.f32 0.0, %v2373
        %v2375 = vpop.f32.mrf.mxu0
        %v2376 = vadd.f32 0.0, %v2375
        %2377 = vmatmul.bf16.gmra.mxu0 %v2300
        %v2378 = vpop.f32.mrf.mxu0
        %v2379 = vadd.f32 0.0, %v2378
        %v2380 = vpop.f32.mrf.mxu0
        %v2381 = vadd.f32 0.0, %v2380
        %2382 = vmatmul.bf16.gmra.mxu0 %v2303
        %v2383 = vpop.f32.mrf.mxu0
        %v2384 = vadd.f32 0.0, %v2383
        %v2385 = vpop.f32.mrf.mxu0
        %v2386 = vadd.f32 0.0, %v2385
        %2387 = vmatmul.bf16.gmra.mxu0 %v2306
        %v2388 = vpop.f32.mrf.mxu0
        %v2389 = vadd.f32 0.0, %v2388
        %v2390 = vpop.f32.mrf.mxu0
        %v2391 = vadd.f32 0.0, %v2390
        %2392 = vmatmul.bf16.gmra.mxu0 %v2309
        %v2393 = vpop.f32.mrf.mxu0
        %v2394 = vadd.f32 0.0, %v2393
        %v2395 = vpop.f32.mrf.mxu0
        %v2396 = vadd.f32 0.0, %v2395
        %2397 = vmatmul.bf16.gmra.mxu0 %v2312
        %v2398 = vpop.f32.mrf.mxu0
        %v2399 = vadd.f32 0.0, %v2398
        %v2400 = vpop.f32.mrf.mxu0
        %v2401 = vadd.f32 0.0, %v2400
        %2402 = vdwg.mxu0
        %v2403 = vadd.f32 %v2135, %v2324
        %v2404 = vadd.f32 %v2136, %v2326
        %v2405 = vadd.f32 %v2137, %v2329
        %v2406 = vadd.f32 %v2138, %v2331
        %v2407 = vadd.f32 %v2139, %v2334
        %v2408 = vadd.f32 %v2140, %v2336
        %v2409 = vadd.f32 %v2141, %v2339
        %v2410 = vadd.f32 %v2142, %v2341
        %v2411 = vadd.f32 %v2143, %v2344
        %v2412 = vadd.f32 %v2144, %v2346
        %v2413 = vadd.f32 %v2145, %v2349
        %v2414 = vadd.f32 %v2146, %v2351
        %v2415 = vadd.f32 %v2147, %v2354
        %v2416 = vadd.f32 %v2148, %v2356
        %v2417 = vadd.f32 %v2149, %v2359
        %v2418 = vadd.f32 %v2150, %v2361
        %v2419 = vadd.f32 %v2151, %v2364
        %v2420 = vadd.f32 %v2152, %v2366
        %v2421 = vadd.f32 %v2153, %v2369
        %v2422 = vadd.f32 %v2154, %v2371
        %v2423 = vadd.f32 %v2155, %v2374
        %v2424 = vadd.f32 %v2156, %v2376
        %v2425 = vadd.f32 %v2157, %v2379
        %v2426 = vadd.f32 %v2158, %v2381
        %v2427 = vadd.f32 %v2159, %v2384
        %v2428 = vadd.f32 %v2160, %v2386
        %v2429 = vadd.f32 %v2161, %v2389
        %v2430 = vadd.f32 %v2162, %v2391
        %v2431 = vadd.f32 %v2163, %v2394
        %v2432 = vadd.f32 %v2164, %v2396
        %v2433 = vadd.f32 %v2165, %v2399
        %v2434 = vadd.f32 %v2166, %v2401
        %v2435 = vld [vmem:[%s717 + $0x10] sm:$0xe]
        %v2436 = vld [vmem:[%s717 + $0x14] sm:$0xf]
        %v2437 = vld [vmem:[%s717 + $0x18] sm:$0xf]
        %v2438 = vld [vmem:[%s717 + $0x1c] sm:$0xf]
        %v2439 = vld [vmem:[%s717 + $0x20] sm:$0xf]
        %v2440 = vld [vmem:[%s717 + $0x24] sm:$0xf]
        %v2441 = vld [vmem:[%s717 + $0x28] sm:$0xf]
        %v2442 = vld [vmem:[%s717 + $0x2c] sm:$0xf]
        %v2443 = vld [vmem:[%s717 + $0x30] sm:$0xf]
        %v2444 = vld [vmem:[%s717 + $0x34] sm:$0xf]
        %v2445 = vld [vmem:[%s717 + $0x38] sm:$0xf]
        %v2446 = vld [vmem:[%s717 + $0x3c] sm:$0xf]
        %v2447 = vld [vmem:[%s717 + $0x40] sm:$0xf]
        %v2448 = vld [vmem:[%s717 + $0x44] sm:$0xf]
        %v2449 = vld [vmem:[%s717 + $0x48] sm:$0xf]
        %v2450 = vld [vmem:[%s717 + $0x4c] sm:$0xf]
        %v2451 = vld [vmem:[%s717 + $0x50] sm:$0xf]
        %v2452 = vld [vmem:[%s717 + $0x54] sm:$0xf]
        %v2453 = vld [vmem:[%s717 + $0x58] sm:$0xf]
        %v2454 = vld [vmem:[%s717 + $0x5c] sm:$0xf]
        %v2455 = vld [vmem:[%s717 + $0x60] sm:$0xf]
        %v2456 = vld [vmem:[%s717 + $0x64] sm:$0xf]
        %v2457 = vld [vmem:[%s717 + $0x68] sm:$0xf]
        %v2458 = vld [vmem:[%s717 + $0x6c] sm:$0xf]
        %v2459 = vld [vmem:[%s717 + $0x70] sm:$0xf]
        %v2460 = vld [vmem:[%s717 + $0x74] sm:$0xf]
        %v2461 = vld [vmem:[%s717 + $0x78] sm:$0xf]
        %v2462 = vld [vmem:[%s717 + $0x7c] sm:$0xf]
        %v2463 = vld [vmem:[%s717 + $0x80] sm:$0xf]
        %v2464 = vld [vmem:[%s717 + $0x84] sm:$0xf]
        %v2465 = vld [vmem:[%s717 + $0x88] sm:$0xf]
        %v2466 = vld [vmem:[%s717 + $0x8c] sm:$0xf]
        %s2467 = scalar_lea.vmem %s1, 144
        %v2468 = vld [vmem:[%s2467] sm:$0xf]
        %v2469 = vld [vmem:[%s2467 + $0x4] sm:$0xf]
        %v2470 = vld [vmem:[%s2467 + $0x8] sm:$0xf]
        %v2471 = vld [vmem:[%s2467 + $0xc] sm:$0xf]
        %v2472 = vld [vmem:[%s2467 + $0x10] sm:$0xf]
        %v2473 = vld [vmem:[%s2467 + $0x14] sm:$0xf]
        %v2506 = vunpack.c.l.b16 %v2435
        %v2507 = vunpack.c.l.b16 %v2436
        %v2508 = vunpack.c.l.b16 %v2437
        %v2509 = vunpack.c.l.b16 %v2438
        %v2510 = vunpack.c.l.b16 %v2439
        %v2511 = vunpack.c.l.b16 %v2440
        %v2512 = vunpack.c.l.b16 %v2441
        %v2513 = vunpack.c.l.b16 %v2442
        %v2514 = vunpack.c.l.b16 %v2443
        %v2515 = vunpack.c.l.b16 %v2444
        %v2516 = vunpack.c.l.b16 %v2445
        %v2517 = vunpack.c.l.b16 %v2446
        %v2518 = vunpack.c.l.b16 %v2447
        %v2519 = vunpack.c.l.b16 %v2448
        %v2520 = vunpack.c.l.b16 %v2449
        %v2521 = vunpack.c.l.b16 %v2450
        %v2522 = vunpack.c.l.b16 %v2451
        %v2523 = vunpack.c.l.b16 %v2452
        %v2524 = vunpack.c.l.b16 %v2453
        %v2525 = vunpack.c.l.b16 %v2454
        %v2526 = vunpack.c.l.b16 %v2455
        %v2527 = vunpack.c.l.b16 %v2456
        %v2528 = vunpack.c.l.b16 %v2457
        %v2529 = vunpack.c.l.b16 %v2458
        %v2530 = vunpack.c.l.b16 %v2459
        %v2531 = vunpack.c.l.b16 %v2460
        %v2532 = vunpack.c.l.b16 %v2461
        %v2533 = vunpack.c.l.b16 %v2462
        %v2534 = vunpack.c.l.b16 %v2463
        %v2535 = vunpack.c.l.b16 %v2464
        %v2536 = vunpack.c.l.b16 %v2465
        %v2537 = vunpack.c.l.b16 %v2466
        %v2538 = vpack.c.b16 %v2507, %v2506
        %v2539 = vpack.c.b16 %v2509, %v2508
        %v2540 = vpack.c.b16 %v2511, %v2510
        %v2541 = vpack.c.b16 %v2513, %v2512
        %v2542 = vpack.c.b16 %v2515, %v2514
        %v2543 = vpack.c.b16 %v2517, %v2516
        %v2544 = vpack.c.b16 %v2519, %v2518
        %v2545 = vpack.c.b16 %v2521, %v2520
        %v2546 = vpack.c.b16 %v2523, %v2522
        %v2547 = vpack.c.b16 %v2525, %v2524
        %v2548 = vpack.c.b16 %v2527, %v2526
        %v2549 = vpack.c.b16 %v2529, %v2528
        %v2550 = vpack.c.b16 %v2531, %v2530
        %v2551 = vpack.c.b16 %v2533, %v2532
        %v2552 = vpack.c.b16 %v2535, %v2534
        %v2553 = vpack.c.b16 %v2537, %v2536
        %v2554 = vrot.slane %v2538, 1
        %v2555 = vrot.slane %v2539, 1
        %v2556 = vsel %vm1282, %v2554, %v2555
        %v2557 = vrot.slane %v2540, 1
        %v2558 = vsel %vm1282, %v2555, %v2557
        %v2559 = vrot.slane %v2541, 1
        %v2560 = vsel %vm1282, %v2557, %v2559
        %v2561 = vrot.slane %v2542, 1
        %v2562 = vsel %vm1282, %v2559, %v2561
        %v2563 = vrot.slane %v2543, 1
        %v2564 = vsel %vm1282, %v2561, %v2563
        %v2565 = vrot.slane %v2544, 1
        %v2566 = vsel %vm1282, %v2563, %v2565
        %v2567 = vrot.slane %v2545, 1
        %v2568 = vsel %vm1282, %v2565, %v2567
        %v2569 = vrot.slane %v2546, 1
        %v2570 = vsel %vm1282, %v2567, %v2569
        %v2571 = vrot.slane %v2547, 1
        %v2572 = vsel %vm1282, %v2569, %v2571
        %v2573 = vrot.slane %v2548, 1
        %v2574 = vsel %vm1282, %v2571, %v2573
        %v2575 = vrot.slane %v2549, 1
        %v2576 = vsel %vm1282, %v2573, %v2575
        %v2577 = vrot.slane %v2550, 1
        %v2578 = vsel %vm1282, %v2575, %v2577
        %v2579 = vrot.slane %v2551, 1
        %v2580 = vsel %vm1282, %v2577, %v2579
        %v2581 = vrot.slane %v2552, 1
        %v2582 = vsel %vm1282, %v2579, %v2581
        %v2583 = vrot.slane %v2553, 1
        %v2584 = vsel %vm1282, %v2581, %v2583
        %v2591 = vunpack.c.l.b16 %v2468
        %v2592 = vunpack.c.l.b16 %v2469
        %v2593 = vunpack.c.l.b16 %v2470
        %v2594 = vunpack.c.l.b16 %v2471
        %v2595 = vunpack.c.l.b16 %v2472
        %v2596 = vunpack.c.l.b16 %v2473
        %v2597 = vpack.c.b16 %v2592, %v2591
        %v2598 = vpack.c.b16 %v2594, %v2593
        %v2599 = vpack.c.b16 %v2596, %v2595
        %v2604 = vsel %vm990, %v2556, 0
        %v2607 = vsel %vm990, %v2558, 0
        %v2610 = vsel %vm990, %v2560, 0
        %v2613 = vsel %vm990, %v2562, 0
        %v2616 = vsel %vm990, %v2564, 0
        %v2619 = vsel %vm990, %v2566, 0
        %v2622 = vsel %vm990, %v2568, 0
        %v2625 = vsel %vm990, %v2570, 0
        %v2628 = vsel %vm990, %v2572, 0
        %v2631 = vsel %vm990, %v2574, 0
        %v2634 = vsel %vm990, %v2576, 0
        %v2637 = vsel %vm990, %v2578, 0
        %v2640 = vsel %vm990, %v2580, 0
        %v2643 = vsel %vm990, %v2582, 0
        %v2646 = vsel %vm990, %v2584, 0
        %v2649 = vsel %vm990, %v2583, 0
        %2651 = vmatpush.bf16.msra.mxu0 0
        %2652 = vmatpush.bf16.msra.mxu0 0
        %2653 = vmatpush.bf16.msra.mxu0 0
        %2654 = vmatpush.bf16.msra.mxu0 0
        %2655 = vmatpush.bf16.msra.mxu0 0
        %2656 = vmatpush.bf16.msra.mxu0 %v2599
        %2657 = vmatpush.bf16.msra.mxu0 %v2598
        %2658 = vmatpush.bf16.msra.mxu0 %v2597
        %2659 = vmatmul.bf16.gmra.mxu0 %v2604
        %v2660 = vpop.f32.mrf.mxu0
        %v2661 = vadd.f32 0.0, %v2660
        %v2662 = vpop.f32.mrf.mxu0
        %v2663 = vadd.f32 0.0, %v2662
        %2664 = vmatmul.bf16.gmra.mxu0 %v2607
        %v2665 = vpop.f32.mrf.mxu0
        %v2666 = vadd.f32 0.0, %v2665
        %v2667 = vpop.f32.mrf.mxu0
        %v2668 = vadd.f32 0.0, %v2667
        %2669 = vmatmul.bf16.gmra.mxu0 %v2610
        %v2670 = vpop.f32.mrf.mxu0
        %v2671 = vadd.f32 0.0, %v2670
        %v2672 = vpop.f32.mrf.mxu0
        %v2673 = vadd.f32 0.0, %v2672
        %2674 = vmatmul.bf16.gmra.mxu0 %v2613
        %v2675 = vpop.f32.mrf.mxu0
        %v2676 = vadd.f32 0.0, %v2675
        %v2677 = vpop.f32.mrf.mxu0
        %v2678 = vadd.f32 0.0, %v2677
        %2679 = vmatmul.bf16.gmra.mxu0 %v2616
        %v2680 = vpop.f32.mrf.mxu0
        %v2681 = vadd.f32 0.0, %v2680
        %v2682 = vpop.f32.mrf.mxu0
        %v2683 = vadd.f32 0.0, %v2682
        %2684 = vmatmul.bf16.gmra.mxu0 %v2619
        %v2685 = vpop.f32.mrf.mxu0
        %v2686 = vadd.f32 0.0, %v2685
        %v2687 = vpop.f32.mrf.mxu0
        %v2688 = vadd.f32 0.0, %v2687
        %2689 = vmatmul.bf16.gmra.mxu0 %v2622
        %v2690 = vpop.f32.mrf.mxu0
        %v2691 = vadd.f32 0.0, %v2690
        %v2692 = vpop.f32.mrf.mxu0
        %v2693 = vadd.f32 0.0, %v2692
        %2694 = vmatmul.bf16.gmra.mxu0 %v2625
        %v2695 = vpop.f32.mrf.mxu0
        %v2696 = vadd.f32 0.0, %v2695
        %v2697 = vpop.f32.mrf.mxu0
        %v2698 = vadd.f32 0.0, %v2697
        %2699 = vmatmul.bf16.gmra.mxu0 %v2628
        %v2700 = vpop.f32.mrf.mxu0
        %v2701 = vadd.f32 0.0, %v2700
        %v2702 = vpop.f32.mrf.mxu0
        %v2703 = vadd.f32 0.0, %v2702
        %2704 = vmatmul.bf16.gmra.mxu0 %v2631
        %v2705 = vpop.f32.mrf.mxu0
        %v2706 = vadd.f32 0.0, %v2705
        %v2707 = vpop.f32.mrf.mxu0
        %v2708 = vadd.f32 0.0, %v2707
        %2709 = vmatmul.bf16.gmra.mxu0 %v2634
        %v2710 = vpop.f32.mrf.mxu0
        %v2711 = vadd.f32 0.0, %v2710
        %v2712 = vpop.f32.mrf.mxu0
        %v2713 = vadd.f32 0.0, %v2712
        %2714 = vmatmul.bf16.gmra.mxu0 %v2637
        %v2715 = vpop.f32.mrf.mxu0
        %v2716 = vadd.f32 0.0, %v2715
        %v2717 = vpop.f32.mrf.mxu0
        %v2718 = vadd.f32 0.0, %v2717
        %2719 = vmatmul.bf16.gmra.mxu0 %v2640
        %v2720 = vpop.f32.mrf.mxu0
        %v2721 = vadd.f32 0.0, %v2720
        %v2722 = vpop.f32.mrf.mxu0
        %v2723 = vadd.f32 0.0, %v2722
        %2724 = vmatmul.bf16.gmra.mxu0 %v2643
        %v2725 = vpop.f32.mrf.mxu0
        %v2726 = vadd.f32 0.0, %v2725
        %v2727 = vpop.f32.mrf.mxu0
        %v2728 = vadd.f32 0.0, %v2727
        %2729 = vmatmul.bf16.gmra.mxu0 %v2646
        %v2730 = vpop.f32.mrf.mxu0
        %v2731 = vadd.f32 0.0, %v2730
        %v2732 = vpop.f32.mrf.mxu0
        %v2733 = vadd.f32 0.0, %v2732
        %2734 = vmatmul.bf16.gmra.mxu0 %v2649
        %v2735 = vpop.f32.mrf.mxu0
        %v2736 = vadd.f32 0.0, %v2735
        %v2737 = vpop.f32.mrf.mxu0
        %v2738 = vadd.f32 0.0, %v2737
        %2739 = vdwg.mxu0
        %v2740 = vadd.f32 %v2403, %v2661
        %v2741 = vadd.f32 %v2404, %v2663
        %v2742 = vadd.f32 %v2405, %v2666
        %v2743 = vadd.f32 %v2406, %v2668
        %v2744 = vadd.f32 %v2407, %v2671
        %v2745 = vadd.f32 %v2408, %v2673
        %v2746 = vadd.f32 %v2409, %v2676
        %v2747 = vadd.f32 %v2410, %v2678
        %v2748 = vadd.f32 %v2411, %v2681
        %v2749 = vadd.f32 %v2412, %v2683
        %v2750 = vadd.f32 %v2413, %v2686
        %v2751 = vadd.f32 %v2414, %v2688
        %v2752 = vadd.f32 %v2415, %v2691
        %v2753 = vadd.f32 %v2416, %v2693
        %v2754 = vadd.f32 %v2417, %v2696
        %v2755 = vadd.f32 %v2418, %v2698
        %v2756 = vadd.f32 %v2419, %v2701
        %v2757 = vadd.f32 %v2420, %v2703
        %v2758 = vadd.f32 %v2421, %v2706
        %v2759 = vadd.f32 %v2422, %v2708
        %v2760 = vadd.f32 %v2423, %v2711
        %v2761 = vadd.f32 %v2424, %v2713
        %v2762 = vadd.f32 %v2425, %v2716
        %v2763 = vadd.f32 %v2426, %v2718
        %v2764 = vadd.f32 %v2427, %v2721
        %v2765 = vadd.f32 %v2428, %v2723
        %v2766 = vadd.f32 %v2429, %v2726
        %v2767 = vadd.f32 %v2430, %v2728
        %v2768 = vadd.f32 %v2431, %v2731
        %v2769 = vadd.f32 %v2432, %v2733
        %v2770 = vadd.f32 %v2433, %v2736
        %v2771 = vadd.f32 %v2434, %v2738
        %s2772 = scalar_lea.vmem %s1, 168
        %v2773 = vld [vmem:[%s2772] sm:$0xf]
        %v2774 = vld [vmem:[%s2772 + $0x4] sm:$0xf]
        %v2775 = vld [vmem:[%s2772 + $0x8] sm:$0xf]
        %v2776 = vld [vmem:[%s2772 + $0xc] sm:$0xf]
        %v2777 = vld [vmem:[%s2772 + $0x10] sm:$0xf]
        %v2778 = vld [vmem:[%s2772 + $0x14] sm:$0xf]
        %v2780 = vshrl.u32 %v2538, 16
        %v2782 = vrot.slane %v2780, 1
        %v2783 = vshll.u32 %v2538, 16
        %v2785 = vrot.slane %v2783, 2
        %v2786 = vor.u32 %v2782, %v2785
        %v2788 = vshrl.u32 %v2539, 16
        %v2790 = vrot.slane %v2788, 1
        %v2791 = vshll.u32 %v2539, 16
        %v2793 = vrot.slane %v2791, 2
        %v2794 = vor.u32 %v2790, %v2793
        %v2795 = vsel %vm2174, %v2786, %v2794
        %v2797 = vshrl.u32 %v2540, 16
        %v2799 = vrot.slane %v2797, 1
        %v2800 = vshll.u32 %v2540, 16
        %v2802 = vrot.slane %v2800, 2
        %v2803 = vor.u32 %v2799, %v2802
        %v2804 = vsel %vm2174, %v2794, %v2803
        %v2806 = vshrl.u32 %v2541, 16
        %v2808 = vrot.slane %v2806, 1
        %v2809 = vshll.u32 %v2541, 16
        %v2811 = vrot.slane %v2809, 2
        %v2812 = vor.u32 %v2808, %v2811
        %v2813 = vsel %vm2174, %v2803, %v2812
        %v2815 = vshrl.u32 %v2542, 16
        %v2817 = vrot.slane %v2815, 1
        %v2818 = vshll.u32 %v2542, 16
        %v2820 = vrot.slane %v2818, 2
        %v2821 = vor.u32 %v2817, %v2820
        %v2822 = vsel %vm2174, %v2812, %v2821
        %v2824 = vshrl.u32 %v2543, 16
        %v2826 = vrot.slane %v2824, 1
        %v2827 = vshll.u32 %v2543, 16
        %v2829 = vrot.slane %v2827, 2
        %v2830 = vor.u32 %v2826, %v2829
        %v2831 = vsel %vm2174, %v2821, %v2830
        %v2833 = vshrl.u32 %v2544, 16
        %v2835 = vrot.slane %v2833, 1
        %v2836 = vshll.u32 %v2544, 16
        %v2838 = vrot.slane %v2836, 2
        %v2839 = vor.u32 %v2835, %v2838
        %v2840 = vsel %vm2174, %v2830, %v2839
        %v2842 = vshrl.u32 %v2545, 16
        %v2844 = vrot.slane %v2842, 1
        %v2845 = vshll.u32 %v2545, 16
        %v2847 = vrot.slane %v2845, 2
        %v2848 = vor.u32 %v2844, %v2847
        %v2849 = vsel %vm2174, %v2839, %v2848
        %v2851 = vshrl.u32 %v2546, 16
        %v2853 = vrot.slane %v2851, 1
        %v2854 = vshll.u32 %v2546, 16
        %v2856 = vrot.slane %v2854, 2
        %v2857 = vor.u32 %v2853, %v2856
        %v2858 = vsel %vm2174, %v2848, %v2857
        %v2860 = vshrl.u32 %v2547, 16
        %v2862 = vrot.slane %v2860, 1
        %v2863 = vshll.u32 %v2547, 16
        %v2865 = vrot.slane %v2863, 2
        %v2866 = vor.u32 %v2862, %v2865
        %v2867 = vsel %vm2174, %v2857, %v2866
        %v2869 = vshrl.u32 %v2548, 16
        %v2871 = vrot.slane %v2869, 1
        %v2872 = vshll.u32 %v2548, 16
        %v2874 = vrot.slane %v2872, 2
        %v2875 = vor.u32 %v2871, %v2874
        %v2876 = vsel %vm2174, %v2866, %v2875
        %v2878 = vshrl.u32 %v2549, 16
        %v2880 = vrot.slane %v2878, 1
        %v2881 = vshll.u32 %v2549, 16
        %v2883 = vrot.slane %v2881, 2
        %v2884 = vor.u32 %v2880, %v2883
        %v2885 = vsel %vm2174, %v2875, %v2884
        %v2887 = vshrl.u32 %v2550, 16
        %v2889 = vrot.slane %v2887, 1
        %v2890 = vshll.u32 %v2550, 16
        %v2892 = vrot.slane %v2890, 2
        %v2893 = vor.u32 %v2889, %v2892
        %v2894 = vsel %vm2174, %v2884, %v2893
        %v2896 = vshrl.u32 %v2551, 16
        %v2898 = vrot.slane %v2896, 1
        %v2899 = vshll.u32 %v2551, 16
        %v2901 = vrot.slane %v2899, 2
        %v2902 = vor.u32 %v2898, %v2901
        %v2903 = vsel %vm2174, %v2893, %v2902
        %v2905 = vshrl.u32 %v2552, 16
        %v2907 = vrot.slane %v2905, 1
        %v2908 = vshll.u32 %v2552, 16
        %v2910 = vrot.slane %v2908, 2
        %v2911 = vor.u32 %v2907, %v2910
        %v2912 = vsel %vm2174, %v2902, %v2911
        %v2914 = vshrl.u32 %v2553, 16
        %v2916 = vrot.slane %v2914, 1
        %v2917 = vshll.u32 %v2553, 16
        %v2919 = vrot.slane %v2917, 2
        %v2920 = vor.u32 %v2916, %v2919
        %v2921 = vsel %vm2174, %v2911, %v2920
        %v2928 = vunpack.c.l.b16 %v2773
        %v2929 = vunpack.c.l.b16 %v2774
        %v2930 = vunpack.c.l.b16 %v2775
        %v2931 = vunpack.c.l.b16 %v2776
        %v2932 = vunpack.c.l.b16 %v2777
        %v2933 = vunpack.c.l.b16 %v2778
        %v2934 = vpack.c.b16 %v2929, %v2928
        %v2935 = vpack.c.b16 %v2931, %v2930
        %v2936 = vpack.c.b16 %v2933, %v2932
        %v2941 = vsel %vm990, %v2795, 0
        %v2944 = vsel %vm990, %v2804, 0
        %v2947 = vsel %vm990, %v2813, 0
        %v2950 = vsel %vm990, %v2822, 0
        %v2953 = vsel %vm990, %v2831, 0
        %v2956 = vsel %vm990, %v2840, 0
        %v2959 = vsel %vm990, %v2849, 0
        %v2962 = vsel %vm990, %v2858, 0
        %v2965 = vsel %vm990, %v2867, 0
        %v2968 = vsel %vm990, %v2876, 0
        %v2971 = vsel %vm990, %v2885, 0
        %v2974 = vsel %vm990, %v2894, 0
        %v2977 = vsel %vm990, %v2903, 0
        %v2980 = vsel %vm990, %v2912, 0
        %v2983 = vsel %vm990, %v2921, 0
        %v2986 = vsel %vm990, %v2920, 0
        %2988 = vmatpush.bf16.msra.mxu0 0
        %2989 = vmatpush.bf16.msra.mxu0 0
        %2990 = vmatpush.bf16.msra.mxu0 0
        %2991 = vmatpush.bf16.msra.mxu0 0
        %2992 = vmatpush.bf16.msra.mxu0 0
        %2993 = vmatpush.bf16.msra.mxu0 %v2936
        %2994 = vmatpush.bf16.msra.mxu0 %v2935
        %2995 = vmatpush.bf16.msra.mxu0 %v2934
        %2996 = vmatmul.bf16.gmra.mxu0 %v2941
        %v2997 = vpop.f32.mrf.mxu0
        %v2998 = vadd.f32 0.0, %v2997
        %v2999 = vpop.f32.mrf.mxu0
        %v3000 = vadd.f32 0.0, %v2999
        %3001 = vmatmul.bf16.gmra.mxu0 %v2944
        %v3002 = vpop.f32.mrf.mxu0
        %v3003 = vadd.f32 0.0, %v3002
        %v3004 = vpop.f32.mrf.mxu0
        %v3005 = vadd.f32 0.0, %v3004
        %3006 = vmatmul.bf16.gmra.mxu0 %v2947
        %v3007 = vpop.f32.mrf.mxu0
        %v3008 = vadd.f32 0.0, %v3007
        %v3009 = vpop.f32.mrf.mxu0
        %v3010 = vadd.f32 0.0, %v3009
        %3011 = vmatmul.bf16.gmra.mxu0 %v2950
        %v3012 = vpop.f32.mrf.mxu0
        %v3013 = vadd.f32 0.0, %v3012
        %v3014 = vpop.f32.mrf.mxu0
        %v3015 = vadd.f32 0.0, %v3014
        %3016 = vmatmul.bf16.gmra.mxu0 %v2953
        %v3017 = vpop.f32.mrf.mxu0
        %v3018 = vadd.f32 0.0, %v3017
        %v3019 = vpop.f32.mrf.mxu0
        %v3020 = vadd.f32 0.0, %v3019
        %3021 = vmatmul.bf16.gmra.mxu0 %v2956
        %v3022 = vpop.f32.mrf.mxu0
        %v3023 = vadd.f32 0.0, %v3022
        %v3024 = vpop.f32.mrf.mxu0
        %v3025 = vadd.f32 0.0, %v3024
        %3026 = vmatmul.bf16.gmra.mxu0 %v2959
        %v3027 = vpop.f32.mrf.mxu0
        %v3028 = vadd.f32 0.0, %v3027
        %v3029 = vpop.f32.mrf.mxu0
        %v3030 = vadd.f32 0.0, %v3029
        %3031 = vmatmul.bf16.gmra.mxu0 %v2962
        %v3032 = vpop.f32.mrf.mxu0
        %v3033 = vadd.f32 0.0, %v3032
        %v3034 = vpop.f32.mrf.mxu0
        %v3035 = vadd.f32 0.0, %v3034
        %3036 = vmatmul.bf16.gmra.mxu0 %v2965
        %v3037 = vpop.f32.mrf.mxu0
        %v3038 = vadd.f32 0.0, %v3037
        %v3039 = vpop.f32.mrf.mxu0
        %v3040 = vadd.f32 0.0, %v3039
        %3041 = vmatmul.bf16.gmra.mxu0 %v2968
        %v3042 = vpop.f32.mrf.mxu0
        %v3043 = vadd.f32 0.0, %v3042
        %v3044 = vpop.f32.mrf.mxu0
        %v3045 = vadd.f32 0.0, %v3044
        %3046 = vmatmul.bf16.gmra.mxu0 %v2971
        %v3047 = vpop.f32.mrf.mxu0
        %v3048 = vadd.f32 0.0, %v3047
        %v3049 = vpop.f32.mrf.mxu0
        %v3050 = vadd.f32 0.0, %v3049
        %3051 = vmatmul.bf16.gmra.mxu0 %v2974
        %v3052 = vpop.f32.mrf.mxu0
        %v3053 = vadd.f32 0.0, %v3052
        %v3054 = vpop.f32.mrf.mxu0
        %v3055 = vadd.f32 0.0, %v3054
        %3056 = vmatmul.bf16.gmra.mxu0 %v2977
        %v3057 = vpop.f32.mrf.mxu0
        %v3058 = vadd.f32 0.0, %v3057
        %v3059 = vpop.f32.mrf.mxu0
        %v3060 = vadd.f32 0.0, %v3059
        %3061 = vmatmul.bf16.gmra.mxu0 %v2980
        %v3062 = vpop.f32.mrf.mxu0
        %v3063 = vadd.f32 0.0, %v3062
        %v3064 = vpop.f32.mrf.mxu0
        %v3065 = vadd.f32 0.0, %v3064
        %3066 = vmatmul.bf16.gmra.mxu0 %v2983
        %v3067 = vpop.f32.mrf.mxu0
        %v3068 = vadd.f32 0.0, %v3067
        %v3069 = vpop.f32.mrf.mxu0
        %v3070 = vadd.f32 0.0, %v3069
        %3071 = vmatmul.bf16.gmra.mxu0 %v2986
        %v3072 = vpop.f32.mrf.mxu0
        %v3073 = vadd.f32 0.0, %v3072
        %v3074 = vpop.f32.mrf.mxu0
        %v3075 = vadd.f32 0.0, %v3074
        %3076 = vdwg.mxu0
        %v3077 = vadd.f32 %v2740, %v2998
        %v3078 = vadd.f32 %v2741, %v3000
        %v3079 = vadd.f32 %v2742, %v3003
        %v3080 = vadd.f32 %v2743, %v3005
        %v3081 = vadd.f32 %v2744, %v3008
        %v3082 = vadd.f32 %v2745, %v3010
        %v3083 = vadd.f32 %v2746, %v3013
        %v3084 = vadd.f32 %v2747, %v3015
        %v3085 = vadd.f32 %v2748, %v3018
        %v3086 = vadd.f32 %v2749, %v3020
        %v3087 = vadd.f32 %v2750, %v3023
        %v3088 = vadd.f32 %v2751, %v3025
        %v3089 = vadd.f32 %v2752, %v3028
        %v3090 = vadd.f32 %v2753, %v3030
        %v3091 = vadd.f32 %v2754, %v3033
        %v3092 = vadd.f32 %v2755, %v3035
        %v3093 = vadd.f32 %v2756, %v3038
        %v3094 = vadd.f32 %v2757, %v3040
        %v3095 = vadd.f32 %v2758, %v3043
        %v3096 = vadd.f32 %v2759, %v3045
        %v3097 = vadd.f32 %v2760, %v3048
        %v3098 = vadd.f32 %v2761, %v3050
        %v3099 = vadd.f32 %v2762, %v3053
        %v3100 = vadd.f32 %v2763, %v3055
        %v3101 = vadd.f32 %v2764, %v3058
        %v3102 = vadd.f32 %v2765, %v3060
        %v3103 = vadd.f32 %v2766, %v3063
        %v3104 = vadd.f32 %v2767, %v3065
        %v3105 = vadd.f32 %v2768, %v3068
        %v3106 = vadd.f32 %v2769, %v3070
        %v3107 = vadd.f32 %v2770, %v3073
        %v3108 = vadd.f32 %v2771, %v3075
        %v3109 = vld [vmem:[%s717 + $0x10] sm:$0xc]
        %v3110 = vld [vmem:[%s717 + $0x14] sm:$0xf]
        %v3111 = vld [vmem:[%s717 + $0x18] sm:$0xf]
        %v3112 = vld [vmem:[%s717 + $0x1c] sm:$0xf]
        %v3113 = vld [vmem:[%s717 + $0x20] sm:$0xf]
        %v3114 = vld [vmem:[%s717 + $0x24] sm:$0xf]
        %v3115 = vld [vmem:[%s717 + $0x28] sm:$0xf]
        %v3116 = vld [vmem:[%s717 + $0x2c] sm:$0xf]
        %v3117 = vld [vmem:[%s717 + $0x30] sm:$0xf]
        %v3118 = vld [vmem:[%s717 + $0x34] sm:$0xf]
        %v3119 = vld [vmem:[%s717 + $0x38] sm:$0xf]
        %v3120 = vld [vmem:[%s717 + $0x3c] sm:$0xf]
        %v3121 = vld [vmem:[%s717 + $0x40] sm:$0xf]
        %v3122 = vld [vmem:[%s717 + $0x44] sm:$0xf]
        %v3123 = vld [vmem:[%s717 + $0x48] sm:$0xf]
        %v3124 = vld [vmem:[%s717 + $0x4c] sm:$0xf]
        %v3125 = vld [vmem:[%s717 + $0x50] sm:$0xf]
        %v3126 = vld [vmem:[%s717 + $0x54] sm:$0xf]
        %v3127 = vld [vmem:[%s717 + $0x58] sm:$0xf]
        %v3128 = vld [vmem:[%s717 + $0x5c] sm:$0xf]
        %v3129 = vld [vmem:[%s717 + $0x60] sm:$0xf]
        %v3130 = vld [vmem:[%s717 + $0x64] sm:$0xf]
        %v3131 = vld [vmem:[%s717 + $0x68] sm:$0xf]
        %v3132 = vld [vmem:[%s717 + $0x6c] sm:$0xf]
        %v3133 = vld [vmem:[%s717 + $0x70] sm:$0xf]
        %v3134 = vld [vmem:[%s717 + $0x74] sm:$0xf]
        %v3135 = vld [vmem:[%s717 + $0x78] sm:$0xf]
        %v3136 = vld [vmem:[%s717 + $0x7c] sm:$0xf]
        %v3137 = vld [vmem:[%s717 + $0x80] sm:$0xf]
        %v3138 = vld [vmem:[%s717 + $0x84] sm:$0xf]
        %v3139 = vld [vmem:[%s717 + $0x88] sm:$0xf]
        %v3140 = vld [vmem:[%s717 + $0x8c] sm:$0xf]
        %v3141 = vld [vmem:[%s717 + $0x90] sm:$0x1]
        %s3142 = scalar_lea.vmem %s1, 192
        %v3143 = vld [vmem:[%s3142] sm:$0xf]
        %v3144 = vld [vmem:[%s3142 + $0x4] sm:$0xf]
        %v3145 = vld [vmem:[%s3142 + $0x8] sm:$0xf]
        %v3146 = vld [vmem:[%s3142 + $0xc] sm:$0xf]
        %v3147 = vld [vmem:[%s3142 + $0x10] sm:$0xf]
        %v3148 = vld [vmem:[%s3142 + $0x14] sm:$0xf]
        %v3182 = vunpack.c.l.b16 %v3109
        %v3183 = vunpack.c.l.b16 %v3110
        %v3184 = vunpack.c.l.b16 %v3111
        %v3185 = vunpack.c.l.b16 %v3112
        %v3186 = vunpack.c.l.b16 %v3113
        %v3187 = vunpack.c.l.b16 %v3114
        %v3188 = vunpack.c.l.b16 %v3115
        %v3189 = vunpack.c.l.b16 %v3116
        %v3190 = vunpack.c.l.b16 %v3117
        %v3191 = vunpack.c.l.b16 %v3118
        %v3192 = vunpack.c.l.b16 %v3119
        %v3193 = vunpack.c.l.b16 %v3120
        %v3194 = vunpack.c.l.b16 %v3121
        %v3195 = vunpack.c.l.b16 %v3122
        %v3196 = vunpack.c.l.b16 %v3123
        %v3197 = vunpack.c.l.b16 %v3124
        %v3198 = vunpack.c.l.b16 %v3125
        %v3199 = vunpack.c.l.b16 %v3126
        %v3200 = vunpack.c.l.b16 %v3127
        %v3201 = vunpack.c.l.b16 %v3128
        %v3202 = vunpack.c.l.b16 %v3129
        %v3203 = vunpack.c.l.b16 %v3130
        %v3204 = vunpack.c.l.b16 %v3131
        %v3205 = vunpack.c.l.b16 %v3132
        %v3206 = vunpack.c.l.b16 %v3133
        %v3207 = vunpack.c.l.b16 %v3134
        %v3208 = vunpack.c.l.b16 %v3135
        %v3209 = vunpack.c.l.b16 %v3136
        %v3210 = vunpack.c.l.b16 %v3137
        %v3211 = vunpack.c.l.b16 %v3138
        %v3212 = vunpack.c.l.b16 %v3139
        %v3213 = vunpack.c.l.b16 %v3140
        %v3214 = vunpack.c.l.b16 %v3141
        %v3215 = vpack.c.b16 %v3183, %v3182
        %v3216 = vpack.c.b16 %v3185, %v3184
        %v3217 = vpack.c.b16 %v3187, %v3186
        %v3218 = vpack.c.b16 %v3189, %v3188
        %v3219 = vpack.c.b16 %v3191, %v3190
        %v3220 = vpack.c.b16 %v3193, %v3192
        %v3221 = vpack.c.b16 %v3195, %v3194
        %v3222 = vpack.c.b16 %v3197, %v3196
        %v3223 = vpack.c.b16 %v3199, %v3198
        %v3224 = vpack.c.b16 %v3201, %v3200
        %v3225 = vpack.c.b16 %v3203, %v3202
        %v3226 = vpack.c.b16 %v3205, %v3204
        %v3227 = vpack.c.b16 %v3207, %v3206
        %v3228 = vpack.c.b16 %v3209, %v3208
        %v3229 = vpack.c.b16 %v3211, %v3210
        %v3230 = vpack.c.b16 %v3213, %v3212
        %v3231 = vpack.c.b16 %v3214, %v3214
        %vm3232 = vcmask 1045504
        %v3233 = vrot.slane %v3215, 2
        %v3234 = vrot.slane %v3216, 2
        %v3235 = vsel %vm3232, %v3233, %v3234
        %v3236 = vrot.slane %v3217, 2
        %v3237 = vsel %vm3232, %v3234, %v3236
        %v3238 = vrot.slane %v3218, 2
        %v3239 = vsel %vm3232, %v3236, %v3238
        %v3240 = vrot.slane %v3219, 2
        %v3241 = vsel %vm3232, %v3238, %v3240
        %v3242 = vrot.slane %v3220, 2
        %v3243 = vsel %vm3232, %v3240, %v3242
        %v3244 = vrot.slane %v3221, 2
        %v3245 = vsel %vm3232, %v3242, %v3244
        %v3246 = vrot.slane %v3222, 2
        %v3247 = vsel %vm3232, %v3244, %v3246
        %v3248 = vrot.slane %v3223, 2
        %v3249 = vsel %vm3232, %v3246, %v3248
        %v3250 = vrot.slane %v3224, 2
        %v3251 = vsel %vm3232, %v3248, %v3250
        %v3252 = vrot.slane %v3225, 2
        %v3253 = vsel %vm3232, %v3250, %v3252
        %v3254 = vrot.slane %v3226, 2
        %v3255 = vsel %vm3232, %v3252, %v3254
        %v3256 = vrot.slane %v3227, 2
        %v3257 = vsel %vm3232, %v3254, %v3256
        %v3258 = vrot.slane %v3228, 2
        %v3259 = vsel %vm3232, %v3256, %v3258
        %v3260 = vrot.slane %v3229, 2
        %v3261 = vsel %vm3232, %v3258, %v3260
        %v3262 = vrot.slane %v3230, 2
        %v3263 = vsel %vm3232, %v3260, %v3262
        %v3264 = vrot.slane %v3231, 2
        %v3265 = vsel %vm3232, %v3262, %v3264
        %v3272 = vunpack.c.l.b16 %v3143
        %v3273 = vunpack.c.l.b16 %v3144
        %v3274 = vunpack.c.l.b16 %v3145
        %v3275 = vunpack.c.l.b16 %v3146
        %v3276 = vunpack.c.l.b16 %v3147
        %v3277 = vunpack.c.l.b16 %v3148
        %v3278 = vpack.c.b16 %v3273, %v3272
        %v3279 = vpack.c.b16 %v3275, %v3274
        %v3280 = vpack.c.b16 %v3277, %v3276
        %v3285 = vsel %vm990, %v3235, 0
        %v3288 = vsel %vm990, %v3237, 0
        %v3291 = vsel %vm990, %v3239, 0
        %v3294 = vsel %vm990, %v3241, 0
        %v3297 = vsel %vm990, %v3243, 0
        %v3300 = vsel %vm990, %v3245, 0
        %v3303 = vsel %vm990, %v3247, 0
        %v3306 = vsel %vm990, %v3249, 0
        %v3309 = vsel %vm990, %v3251, 0
        %v3312 = vsel %vm990, %v3253, 0
        %v3315 = vsel %vm990, %v3255, 0
        %v3318 = vsel %vm990, %v3257, 0
        %v3321 = vsel %vm990, %v3259, 0
        %v3324 = vsel %vm990, %v3261, 0
        %v3327 = vsel %vm990, %v3263, 0
        %v3330 = vsel %vm990, %v3265, 0
        %3332 = vmatpush.bf16.msra.mxu0 0
        %3333 = vmatpush.bf16.msra.mxu0 0
        %3334 = vmatpush.bf16.msra.mxu0 0
        %3335 = vmatpush.bf16.msra.mxu0 0
        %3336 = vmatpush.bf16.msra.mxu0 0
        %3337 = vmatpush.bf16.msra.mxu0 %v3280
        %3338 = vmatpush.bf16.msra.mxu0 %v3279
        %3339 = vmatpush.bf16.msra.mxu0 %v3278
        %3340 = vmatmul.bf16.gmra.mxu0 %v3285
        %v3341 = vpop.f32.mrf.mxu0
        %v3342 = vadd.f32 0.0, %v3341
        %v3343 = vpop.f32.mrf.mxu0
        %v3344 = vadd.f32 0.0, %v3343
        %3345 = vmatmul.bf16.gmra.mxu0 %v3288
        %v3346 = vpop.f32.mrf.mxu0
        %v3347 = vadd.f32 0.0, %v3346
        %v3348 = vpop.f32.mrf.mxu0
        %v3349 = vadd.f32 0.0, %v3348
        %3350 = vmatmul.bf16.gmra.mxu0 %v3291
        %v3351 = vpop.f32.mrf.mxu0
        %v3352 = vadd.f32 0.0, %v3351
        %v3353 = vpop.f32.mrf.mxu0
        %v3354 = vadd.f32 0.0, %v3353
        %3355 = vmatmul.bf16.gmra.mxu0 %v3294
        %v3356 = vpop.f32.mrf.mxu0
        %v3357 = vadd.f32 0.0, %v3356
        %v3358 = vpop.f32.mrf.mxu0
        %v3359 = vadd.f32 0.0, %v3358
        %3360 = vmatmul.bf16.gmra.mxu0 %v3297
        %v3361 = vpop.f32.mrf.mxu0
        %v3362 = vadd.f32 0.0, %v3361
        %v3363 = vpop.f32.mrf.mxu0
        %v3364 = vadd.f32 0.0, %v3363
        %3365 = vmatmul.bf16.gmra.mxu0 %v3300
        %v3366 = vpop.f32.mrf.mxu0
        %v3367 = vadd.f32 0.0, %v3366
        %v3368 = vpop.f32.mrf.mxu0
        %v3369 = vadd.f32 0.0, %v3368
        %3370 = vmatmul.bf16.gmra.mxu0 %v3303
        %v3371 = vpop.f32.mrf.mxu0
        %v3372 = vadd.f32 0.0, %v3371
        %v3373 = vpop.f32.mrf.mxu0
        %v3374 = vadd.f32 0.0, %v3373
        %3375 = vmatmul.bf16.gmra.mxu0 %v3306
        %v3376 = vpop.f32.mrf.mxu0
        %v3377 = vadd.f32 0.0, %v3376
        %v3378 = vpop.f32.mrf.mxu0
        %v3379 = vadd.f32 0.0, %v3378
        %3380 = vmatmul.bf16.gmra.mxu0 %v3309
        %v3381 = vpop.f32.mrf.mxu0
        %v3382 = vadd.f32 0.0, %v3381
        %v3383 = vpop.f32.mrf.mxu0
        %v3384 = vadd.f32 0.0, %v3383
        %3385 = vmatmul.bf16.gmra.mxu0 %v3312
        %v3386 = vpop.f32.mrf.mxu0
        %v3387 = vadd.f32 0.0, %v3386
        %v3388 = vpop.f32.mrf.mxu0
        %v3389 = vadd.f32 0.0, %v3388
        %3390 = vmatmul.bf16.gmra.mxu0 %v3315
        %v3391 = vpop.f32.mrf.mxu0
        %v3392 = vadd.f32 0.0, %v3391
        %v3393 = vpop.f32.mrf.mxu0
        %v3394 = vadd.f32 0.0, %v3393
        %3395 = vmatmul.bf16.gmra.mxu0 %v3318
        %v3396 = vpop.f32.mrf.mxu0
        %v3397 = vadd.f32 0.0, %v3396
        %v3398 = vpop.f32.mrf.mxu0
        %v3399 = vadd.f32 0.0, %v3398
        %3400 = vmatmul.bf16.gmra.mxu0 %v3321
        %v3401 = vpop.f32.mrf.mxu0
        %v3402 = vadd.f32 0.0, %v3401
        %v3403 = vpop.f32.mrf.mxu0
        %v3404 = vadd.f32 0.0, %v3403
        %3405 = vmatmul.bf16.gmra.mxu0 %v3324
        %v3406 = vpop.f32.mrf.mxu0
        %v3407 = vadd.f32 0.0, %v3406
        %v3408 = vpop.f32.mrf.mxu0
        %v3409 = vadd.f32 0.0, %v3408
        %3410 = vmatmul.bf16.gmra.mxu0 %v3327
        %v3411 = vpop.f32.mrf.mxu0
        %v3412 = vadd.f32 0.0, %v3411
        %v3413 = vpop.f32.mrf.mxu0
        %v3414 = vadd.f32 0.0, %v3413
        %3415 = vmatmul.bf16.gmra.mxu0 %v3330
        %v3416 = vpop.f32.mrf.mxu0
        %v3417 = vadd.f32 0.0, %v3416
        %v3418 = vpop.f32.mrf.mxu0
        %v3419 = vadd.f32 0.0, %v3418
        %3420 = vdwg.mxu0
        %v3421 = vadd.f32 %v3077, %v3342
        %v3422 = vadd.f32 %v3078, %v3344
        %v3423 = vadd.f32 %v3079, %v3347
        %v3424 = vadd.f32 %v3080, %v3349
        %v3425 = vadd.f32 %v3081, %v3352
        %v3426 = vadd.f32 %v3082, %v3354
        %v3427 = vadd.f32 %v3083, %v3357
        %v3428 = vadd.f32 %v3084, %v3359
        %v3429 = vadd.f32 %v3085, %v3362
        %v3430 = vadd.f32 %v3086, %v3364
        %v3431 = vadd.f32 %v3087, %v3367
        %v3432 = vadd.f32 %v3088, %v3369
        %v3433 = vadd.f32 %v3089, %v3372
        %v3434 = vadd.f32 %v3090, %v3374
        %v3435 = vadd.f32 %v3091, %v3377
        %v3436 = vadd.f32 %v3092, %v3379
        %v3437 = vadd.f32 %v3093, %v3382
        %v3438 = vadd.f32 %v3094, %v3384
        %v3439 = vadd.f32 %v3095, %v3387
        %v3440 = vadd.f32 %v3096, %v3389
        %v3441 = vadd.f32 %v3097, %v3392
        %v3442 = vadd.f32 %v3098, %v3394
        %v3443 = vadd.f32 %v3099, %v3397
        %v3444 = vadd.f32 %v3100, %v3399
        %v3445 = vadd.f32 %v3101, %v3402
        %v3446 = vadd.f32 %v3102, %v3404
        %v3447 = vadd.f32 %v3103, %v3407
        %v3448 = vadd.f32 %v3104, %v3409
        %v3449 = vadd.f32 %v3105, %v3412
        %v3450 = vadd.f32 %v3106, %v3414
        %v3451 = vadd.f32 %v3107, %v3417
        %v3452 = vadd.f32 %v3108, %v3419
        %v3453 = vld [vmem:[%s2] sm:$0x1]
        %v3455 = vperm.slane %v3453, 0
        %v3457 = vadd.f32 %v3421, %v3455
        %v3458 = vadd.f32 %v3422, %v3455
        %v3459 = vadd.f32 %v3423, %v3455
        %v3460 = vadd.f32 %v3424, %v3455
        %v3461 = vadd.f32 %v3425, %v3455
        %v3462 = vadd.f32 %v3426, %v3455
        %v3463 = vadd.f32 %v3427, %v3455
        %v3464 = vadd.f32 %v3428, %v3455
        %v3465 = vadd.f32 %v3429, %v3455
        %v3466 = vadd.f32 %v3430, %v3455
        %v3467 = vadd.f32 %v3431, %v3455
        %v3468 = vadd.f32 %v3432, %v3455
        %v3469 = vadd.f32 %v3433, %v3455
        %v3470 = vadd.f32 %v3434, %v3455
        %v3471 = vadd.f32 %v3435, %v3455
        %v3472 = vadd.f32 %v3436, %v3455
        %v3473 = vadd.f32 %v3437, %v3455
        %v3474 = vadd.f32 %v3438, %v3455
        %v3475 = vadd.f32 %v3439, %v3455
        %v3476 = vadd.f32 %v3440, %v3455
        %v3477 = vadd.f32 %v3441, %v3455
        %v3478 = vadd.f32 %v3442, %v3455
        %v3479 = vadd.f32 %v3443, %v3455
        %v3480 = vadd.f32 %v3444, %v3455
        %v3481 = vadd.f32 %v3445, %v3455
        %v3482 = vadd.f32 %v3446, %v3455
        %v3483 = vadd.f32 %v3447, %v3455
        %v3484 = vadd.f32 %v3448, %v3455
        %v3485 = vadd.f32 %v3449, %v3455
        %v3486 = vadd.f32 %v3450, %v3455
        %v3487 = vadd.f32 %v3451, %v3455
        %v3488 = vadd.f32 %v3452, %v3455
        %v3489 = vmax.f32 %v3457, 0.0
        %v3490 = vmax.f32 %v3458, 0.0
        %v3491 = vmax.f32 %v3459, 0.0
        %v3492 = vmax.f32 %v3460, 0.0
        %v3493 = vmax.f32 %v3461, 0.0
        %v3494 = vmax.f32 %v3462, 0.0
        %v3495 = vmax.f32 %v3463, 0.0
        %v3496 = vmax.f32 %v3464, 0.0
        %v3497 = vmax.f32 %v3465, 0.0
        %v3498 = vmax.f32 %v3466, 0.0
        %v3499 = vmax.f32 %v3467, 0.0
        %v3500 = vmax.f32 %v3468, 0.0
        %v3501 = vmax.f32 %v3469, 0.0
        %v3502 = vmax.f32 %v3470, 0.0
        %v3503 = vmax.f32 %v3471, 0.0
        %v3504 = vmax.f32 %v3472, 0.0
        %v3505 = vmax.f32 %v3473, 0.0
        %v3506 = vmax.f32 %v3474, 0.0
        %v3507 = vmax.f32 %v3475, 0.0
        %v3508 = vmax.f32 %v3476, 0.0
        %v3509 = vmax.f32 %v3477, 0.0
        %v3510 = vmax.f32 %v3478, 0.0
        %v3511 = vmax.f32 %v3479, 0.0
        %v3512 = vmax.f32 %v3480, 0.0
        %v3513 = vmax.f32 %v3481, 0.0
        %v3514 = vmax.f32 %v3482, 0.0
        %v3515 = vmax.f32 %v3483, 0.0
        %v3516 = vmax.f32 %v3484, 0.0
        %v3517 = vmax.f32 %v3485, 0.0
        %v3518 = vmax.f32 %v3486, 0.0
        %v3519 = vmax.f32 %v3487, 0.0
        %v3520 = vmax.f32 %v3488, 0.0
        %vm3521 = vcmask 130048
        %3522 = vst.msk [vmem:[#allocation2] sm:$0xff] %vm3521, %v3489
        %3523 = vst.msk [vmem:[#allocation2 + $0x8] sm:$0xff] %vm3521, %v3490
        %3524 = vst.msk [vmem:[#allocation2 + $0x10] sm:$0xff] %vm3521, %v3491
        %3525 = vst.msk [vmem:[#allocation2 + $0x18] sm:$0xff] %vm3521, %v3492
        %3526 = vst.msk [vmem:[#allocation2 + $0x20] sm:$0xff] %vm3521, %v3493
        %3527 = vst.msk [vmem:[#allocation2 + $0x28] sm:$0xff] %vm3521, %v3494
        %3528 = vst.msk [vmem:[#allocation2 + $0x30] sm:$0xff] %vm3521, %v3495
        %3529 = vst.msk [vmem:[#allocation2 + $0x38] sm:$0xff] %vm3521, %v3496
        %3530 = vst.msk [vmem:[#allocation2 + $0x40] sm:$0xff] %vm3521, %v3497
        %3531 = vst.msk [vmem:[#allocation2 + $0x48] sm:$0xff] %vm3521, %v3498
        %3532 = vst.msk [vmem:[#allocation2 + $0x50] sm:$0xff] %vm3521, %v3499
        %3533 = vst.msk [vmem:[#allocation2 + $0x58] sm:$0xff] %vm3521, %v3500
        %3534 = vst.msk [vmem:[#allocation2 + $0x60] sm:$0xff] %vm3521, %v3501
        %3535 = vst.msk [vmem:[#allocation2 + $0x68] sm:$0xff] %vm3521, %v3502
        %3536 = vst.msk [vmem:[#allocation2 + $0x70] sm:$0xff] %vm3521, %v3503
        %3537 = vst.msk [vmem:[#allocation2 + $0x78] sm:$0xff] %vm3521, %v3504
        %3538 = vst.msk [vmem:[#allocation2 + $0x80] sm:$0xff] %vm3521, %v3505
        %3539 = vst.msk [vmem:[#allocation2 + $0x88] sm:$0xff] %vm3521, %v3506
        %3540 = vst.msk [vmem:[#allocation2 + $0x90] sm:$0xff] %vm3521, %v3507
        %3541 = vst.msk [vmem:[#allocation2 + $0x98] sm:$0xff] %vm3521, %v3508
        %3542 = vst.msk [vmem:[#allocation2 + $0xa0] sm:$0xff] %vm3521, %v3509
        %3543 = vst.msk [vmem:[#allocation2 + $0xa8] sm:$0xff] %vm3521, %v3510
        %3544 = vst.msk [vmem:[#allocation2 + $0xb0] sm:$0xff] %vm3521, %v3511
        %3545 = vst.msk [vmem:[#allocation2 + $0xb8] sm:$0xff] %vm3521, %v3512
        %3546 = vst.msk [vmem:[#allocation2 + $0xc0] sm:$0xff] %vm3521, %v3513
        %3547 = vst.msk [vmem:[#allocation2 + $0xc8] sm:$0xff] %vm3521, %v3514
        %3548 = vst.msk [vmem:[#allocation2 + $0xd0] sm:$0xff] %vm3521, %v3515
        %3549 = vst.msk [vmem:[#allocation2 + $0xd8] sm:$0xff] %vm3521, %v3516
        %3550 = vst.msk [vmem:[#allocation2 + $0xe0] sm:$0xff] %vm3521, %v3517
        %3551 = vst.msk [vmem:[#allocation2 + $0xe8] sm:$0xff] %vm3521, %v3518
        %3552 = vst.msk [vmem:[#allocation2 + $0xf0] sm:$0xff] %vm3521, %v3519
        %vm3553 = vcmask 126976
        %3554 = vst.msk [vmem:[#allocation2 + $0xf8] sm:$0x1f] %vm3553, %v3520
        %v3555 = vld [vmem:[#allocation2] sm:$0xff]
        %v3556 = vld [vmem:[#allocation2 + $0x8] sm:$0xff]
        %v3557 = vld [vmem:[#allocation2 + $0x10] sm:$0xff]
        %v3558 = vld [vmem:[#allocation2 + $0x18] sm:$0xff]
        %v3559 = vld [vmem:[#allocation2 + $0x20] sm:$0xff]
        %v3560 = vld [vmem:[#allocation2 + $0x28] sm:$0xff]
        %v3561 = vld [vmem:[#allocation2 + $0x30] sm:$0xff]
        %v3562 = vld [vmem:[#allocation2 + $0x38] sm:$0xff]
        %v3563 = vld [vmem:[#allocation2 + $0x40] sm:$0xff]
        %v3564 = vld [vmem:[#allocation2 + $0x48] sm:$0xff]
        %v3565 = vld [vmem:[#allocation2 + $0x50] sm:$0xff]
        %v3566 = vld [vmem:[#allocation2 + $0x58] sm:$0xff]
        %v3567 = vld [vmem:[#allocation2 + $0x60] sm:$0xff]
        %v3568 = vld [vmem:[#allocation2 + $0x68] sm:$0xff]
        %v3569 = vld [vmem:[#allocation2 + $0x70] sm:$0xff]
        %v3570 = vld [vmem:[#allocation2 + $0x78] sm:$0xff]
        %v3571 = vld [vmem:[#allocation2 + $0x80] sm:$0xff]
        %v3572 = vld [vmem:[#allocation2 + $0x88] sm:$0xff]
        %v3573 = vld [vmem:[#allocation2 + $0x90] sm:$0xff]
        %v3574 = vld [vmem:[#allocation2 + $0x98] sm:$0xff]
        %v3575 = vld [vmem:[#allocation2 + $0xa0] sm:$0xff]
        %v3576 = vld [vmem:[#allocation2 + $0xa8] sm:$0xff]
        %v3577 = vld [vmem:[#allocation2 + $0xb0] sm:$0xff]
        %v3578 = vld [vmem:[#allocation2 + $0xb8] sm:$0xff]
        %v3579 = vld [vmem:[#allocation2 + $0xc0] sm:$0xff]
        %v3580 = vld [vmem:[#allocation2 + $0xc8] sm:$0xff]
        %v3581 = vld [vmem:[#allocation2 + $0xd0] sm:$0xff]
        %v3582 = vld [vmem:[#allocation2 + $0xd8] sm:$0x1]
        %v3583 = vld [vmem:[#allocation2 + $0x1] sm:$0xff]
        %v3584 = vld [vmem:[#allocation2 + $0x9] sm:$0xff]
        %v3585 = vld [vmem:[#allocation2 + $0x11] sm:$0xff]
        %v3586 = vld [vmem:[#allocation2 + $0x19] sm:$0xff]
        %v3587 = vld [vmem:[#allocation2 + $0x21] sm:$0xff]
        %v3588 = vld [vmem:[#allocation2 + $0x29] sm:$0xff]
        %v3589 = vld [vmem:[#allocation2 + $0x31] sm:$0xff]
        %v3590 = vld [vmem:[#allocation2 + $0x39] sm:$0xff]
        %v3591 = vld [vmem:[#allocation2 + $0x41] sm:$0xff]
        %v3592 = vld [vmem:[#allocation2 + $0x49] sm:$0xff]
        %v3593 = vld [vmem:[#allocation2 + $0x51] sm:$0xff]
        %v3594 = vld [vmem:[#allocation2 + $0x59] sm:$0xff]
        %v3595 = vld [vmem:[#allocation2 + $0x61] sm:$0xff]
        %v3596 = vld [vmem:[#allocation2 + $0x69] sm:$0xff]
        %v3597 = vld [vmem:[#allocation2 + $0x71] sm:$0xff]
        %v3598 = vld [vmem:[#allocation2 + $0x79] sm:$0xff]
        %v3599 = vld [vmem:[#allocation2 + $0x81] sm:$0xff]
        %v3600 = vld [vmem:[#allocation2 + $0x89] sm:$0xff]
        %v3601 = vld [vmem:[#allocation2 + $0x91] sm:$0xff]
        %v3602 = vld [vmem:[#allocation2 + $0x99] sm:$0xff]
        %v3603 = vld [vmem:[#allocation2 + $0xa1] sm:$0xff]
        %v3604 = vld [vmem:[#allocation2 + $0xa9] sm:$0xff]
        %v3605 = vld [vmem:[#allocation2 + $0xb1] sm:$0xff]
        %v3606 = vld [vmem:[#allocation2 + $0xb9] sm:$0xff]
        %v3607 = vld [vmem:[#allocation2 + $0xc1] sm:$0xff]
        %v3608 = vld [vmem:[#allocation2 + $0xc9] sm:$0xff]
        %v3609 = vld [vmem:[#allocation2 + $0xd1] sm:$0xff]
        %v3610 = vld [vmem:[#allocation2 + $0xd9] sm:$0x1]
        %v3611 = vmax.f32 %v3555, %v3583
        %v3612 = vmax.f32 %v3556, %v3584
        %v3613 = vmax.f32 %v3557, %v3585
        %v3614 = vmax.f32 %v3558, %v3586
        %v3615 = vmax.f32 %v3559, %v3587
        %v3616 = vmax.f32 %v3560, %v3588
        %v3617 = vmax.f32 %v3561, %v3589
        %v3618 = vmax.f32 %v3562, %v3590
        %v3619 = vmax.f32 %v3563, %v3591
        %v3620 = vmax.f32 %v3564, %v3592
        %v3621 = vmax.f32 %v3565, %v3593
        %v3622 = vmax.f32 %v3566, %v3594
        %v3623 = vmax.f32 %v3567, %v3595
        %v3624 = vmax.f32 %v3568, %v3596
        %v3625 = vmax.f32 %v3569, %v3597
        %v3626 = vmax.f32 %v3570, %v3598
        %v3627 = vmax.f32 %v3571, %v3599
        %v3628 = vmax.f32 %v3572, %v3600
        %v3629 = vmax.f32 %v3573, %v3601
        %v3630 = vmax.f32 %v3574, %v3602
        %v3631 = vmax.f32 %v3575, %v3603
        %v3632 = vmax.f32 %v3576, %v3604
        %v3633 = vmax.f32 %v3577, %v3605
        %v3634 = vmax.f32 %v3578, %v3606
        %v3635 = vmax.f32 %v3579, %v3607
        %v3636 = vmax.f32 %v3580, %v3608
        %v3637 = vmax.f32 %v3581, %v3609
        %v3638 = vmax.f32 %v3582, %v3610
        %v3639 = vld [vmem:[#allocation2 + $0x2] sm:$0xff]
        %v3640 = vld [vmem:[#allocation2 + $0xa] sm:$0xff]
        %v3641 = vld [vmem:[#allocation2 + $0x12] sm:$0xff]
        %v3642 = vld [vmem:[#allocation2 + $0x1a] sm:$0xff]
        %v3643 = vld [vmem:[#allocation2 + $0x22] sm:$0xff]
        %v3644 = vld [vmem:[#allocation2 + $0x2a] sm:$0xff]
        %v3645 = vld [vmem:[#allocation2 + $0x32] sm:$0xff]
        %v3646 = vld [vmem:[#allocation2 + $0x3a] sm:$0xff]
        %v3647 = vld [vmem:[#allocation2 + $0x42] sm:$0xff]
        %v3648 = vld [vmem:[#allocation2 + $0x4a] sm:$0xff]
        %v3649 = vld [vmem:[#allocation2 + $0x52] sm:$0xff]
        %v3650 = vld [vmem:[#allocation2 + $0x5a] sm:$0xff]
        %v3651 = vld [vmem:[#allocation2 + $0x62] sm:$0xff]
        %v3652 = vld [vmem:[#allocation2 + $0x6a] sm:$0xff]
        %v3653 = vld [vmem:[#allocation2 + $0x72] sm:$0xff]
        %v3654 = vld [vmem:[#allocation2 + $0x7a] sm:$0xff]
        %v3655 = vld [vmem:[#allocation2 + $0x82] sm:$0xff]
        %v3656 = vld [vmem:[#allocation2 + $0x8a] sm:$0xff]
        %v3657 = vld [vmem:[#allocation2 + $0x92] sm:$0xff]
        %v3658 = vld [vmem:[#allocation2 + $0x9a] sm:$0xff]
        %v3659 = vld [vmem:[#allocation2 + $0xa2] sm:$0xff]
        %v3660 = vld [vmem:[#allocation2 + $0xaa] sm:$0xff]
        %v3661 = vld [vmem:[#allocation2 + $0xb2] sm:$0xff]
        %v3662 = vld [vmem:[#allocation2 + $0xba] sm:$0xff]
        %v3663 = vld [vmem:[#allocation2 + $0xc2] sm:$0xff]
        %v3664 = vld [vmem:[#allocation2 + $0xca] sm:$0xff]
        %v3665 = vld [vmem:[#allocation2 + $0xd2] sm:$0xff]
        %v3666 = vld [vmem:[#allocation2 + $0xda] sm:$0x1]
        %v3667 = vmax.f32 %v3611, %v3639
        %v3668 = vmax.f32 %v3612, %v3640
        %v3669 = vmax.f32 %v3613, %v3641
        %v3670 = vmax.f32 %v3614, %v3642
        %v3671 = vmax.f32 %v3615, %v3643
        %v3672 = vmax.f32 %v3616, %v3644
        %v3673 = vmax.f32 %v3617, %v3645
        %v3674 = vmax.f32 %v3618, %v3646
        %v3675 = vmax.f32 %v3619, %v3647
        %v3676 = vmax.f32 %v3620, %v3648
        %v3677 = vmax.f32 %v3621, %v3649
        %v3678 = vmax.f32 %v3622, %v3650
        %v3679 = vmax.f32 %v3623, %v3651
        %v3680 = vmax.f32 %v3624, %v3652
        %v3681 = vmax.f32 %v3625, %v3653
        %v3682 = vmax.f32 %v3626, %v3654
        %v3683 = vmax.f32 %v3627, %v3655
        %v3684 = vmax.f32 %v3628, %v3656
        %v3685 = vmax.f32 %v3629, %v3657
        %v3686 = vmax.f32 %v3630, %v3658
        %v3687 = vmax.f32 %v3631, %v3659
        %v3688 = vmax.f32 %v3632, %v3660
        %v3689 = vmax.f32 %v3633, %v3661
        %v3690 = vmax.f32 %v3634, %v3662
        %v3691 = vmax.f32 %v3635, %v3663
        %v3692 = vmax.f32 %v3636, %v3664
        %v3693 = vmax.f32 %v3637, %v3665
        %v3694 = vmax.f32 %v3638, %v3666
        %v3695 = vld [vmem:[#allocation2 + $0xd9] sm:$0xff]
        %v3696 = vld [vmem:[#allocation2 + $0xe1] sm:$0xff]
        %v3697 = vld [vmem:[#allocation2 + $0xe9] sm:$0x1]
        %v3698 = vmax.f32 %v3667, %v3585
        %v3699 = vmax.f32 %v3668, %v3586
        %v3700 = vmax.f32 %v3669, %v3587
        %v3701 = vmax.f32 %v3670, %v3588
        %v3702 = vmax.f32 %v3671, %v3589
        %v3703 = vmax.f32 %v3672, %v3590
        %v3704 = vmax.f32 %v3673, %v3591
        %v3705 = vmax.f32 %v3674, %v3592
        %v3706 = vmax.f32 %v3675, %v3593
        %v3707 = vmax.f32 %v3676, %v3594
        %v3708 = vmax.f32 %v3677, %v3595
        %v3709 = vmax.f32 %v3678, %v3596
        %v3710 = vmax.f32 %v3679, %v3597
        %v3711 = vmax.f32 %v3680, %v3598
        %v3712 = vmax.f32 %v3681, %v3599
        %v3713 = vmax.f32 %v3682, %v3600
        %v3714 = vmax.f32 %v3683, %v3601
        %v3715 = vmax.f32 %v3684, %v3602
        %v3716 = vmax.f32 %v3685, %v3603
        %v3717 = vmax.f32 %v3686, %v3604
        %v3718 = vmax.f32 %v3687, %v3605
        %v3719 = vmax.f32 %v3688, %v3606
        %v3720 = vmax.f32 %v3689, %v3607
        %v3721 = vmax.f32 %v3690, %v3608
        %v3722 = vmax.f32 %v3691, %v3609
        %v3723 = vmax.f32 %v3692, %v3695
        %v3724 = vmax.f32 %v3693, %v3696
        %v3725 = vmax.f32 %v3694, %v3697
        %v3726 = vld [vmem:[#allocation2 + $0xda] sm:$0xff]
        %v3727 = vld [vmem:[#allocation2 + $0xe2] sm:$0xff]
        %v3728 = vld [vmem:[#allocation2 + $0xea] sm:$0x1]
        %v3729 = vmax.f32 %v3698, %v3641
        %v3730 = vmax.f32 %v3699, %v3642
        %v3731 = vmax.f32 %v3700, %v3643
        %v3732 = vmax.f32 %v3701, %v3644
        %v3733 = vmax.f32 %v3702, %v3645
        %v3734 = vmax.f32 %v3703, %v3646
        %v3735 = vmax.f32 %v3704, %v3647
        %v3736 = vmax.f32 %v3705, %v3648
        %v3737 = vmax.f32 %v3706, %v3649
        %v3738 = vmax.f32 %v3707, %v3650
        %v3739 = vmax.f32 %v3708, %v3651
        %v3740 = vmax.f32 %v3709, %v3652
        %v3741 = vmax.f32 %v3710, %v3653
        %v3742 = vmax.f32 %v3711, %v3654
        %v3743 = vmax.f32 %v3712, %v3655
        %v3744 = vmax.f32 %v3713, %v3656
        %v3745 = vmax.f32 %v3714, %v3657
        %v3746 = vmax.f32 %v3715, %v3658
        %v3747 = vmax.f32 %v3716, %v3659
        %v3748 = vmax.f32 %v3717, %v3660
        %v3749 = vmax.f32 %v3718, %v3661
        %v3750 = vmax.f32 %v3719, %v3662
        %v3751 = vmax.f32 %v3720, %v3663
        %v3752 = vmax.f32 %v3721, %v3664
        %v3753 = vmax.f32 %v3722, %v3665
        %v3754 = vmax.f32 %v3723, %v3726
        %v3755 = vmax.f32 %v3724, %v3727
        %v3756 = vmax.f32 %v3725, %v3728
        %v3757 = vld [vmem:[#allocation2 + $0x13] sm:$0xff]
        %v3758 = vld [vmem:[#allocation2 + $0x1b] sm:$0xff]
        %v3759 = vld [vmem:[#allocation2 + $0x23] sm:$0xff]
        %v3760 = vld [vmem:[#allocation2 + $0x2b] sm:$0xff]
        %v3761 = vld [vmem:[#allocation2 + $0x33] sm:$0xff]
        %v3762 = vld [vmem:[#allocation2 + $0x3b] sm:$0xff]
        %v3763 = vld [vmem:[#allocation2 + $0x43] sm:$0xff]
        %v3764 = vld [vmem:[#allocation2 + $0x4b] sm:$0xff]
        %v3765 = vld [vmem:[#allocation2 + $0x53] sm:$0xff]
        %v3766 = vld [vmem:[#allocation2 + $0x5b] sm:$0xff]
        %v3767 = vld [vmem:[#allocation2 + $0x63] sm:$0xff]
        %v3768 = vld [vmem:[#allocation2 + $0x6b] sm:$0xff]
        %v3769 = vld [vmem:[#allocation2 + $0x73] sm:$0xff]
        %v3770 = vld [vmem:[#allocation2 + $0x7b] sm:$0xff]
        %v3771 = vld [vmem:[#allocation2 + $0x83] sm:$0xff]
        %v3772 = vld [vmem:[#allocation2 + $0x8b] sm:$0xff]
        %v3773 = vld [vmem:[#allocation2 + $0x93] sm:$0xff]
        %v3774 = vld [vmem:[#allocation2 + $0x9b] sm:$0xff]
        %v3775 = vld [vmem:[#allocation2 + $0xa3] sm:$0xff]
        %v3776 = vld [vmem:[#allocation2 + $0xab] sm:$0xff]
        %v3777 = vld [vmem:[#allocation2 + $0xb3] sm:$0xff]
        %v3778 = vld [vmem:[#allocation2 + $0xbb] sm:$0xff]
        %v3779 = vld [vmem:[#allocation2 + $0xc3] sm:$0xff]
        %v3780 = vld [vmem:[#allocation2 + $0xcb] sm:$0xff]
        %v3781 = vld [vmem:[#allocation2 + $0xd3] sm:$0xff]
        %v3782 = vld [vmem:[#allocation2 + $0xdb] sm:$0xff]
        %v3783 = vld [vmem:[#allocation2 + $0xe3] sm:$0xff]
        %v3784 = vld [vmem:[#allocation2 + $0xeb] sm:$0x1]
        %v3785 = vmax.f32 %v3729, %v3757
        %v3786 = vmax.f32 %v3730, %v3758
        %v3787 = vmax.f32 %v3731, %v3759
        %v3788 = vmax.f32 %v3732, %v3760
        %v3789 = vmax.f32 %v3733, %v3761
        %v3790 = vmax.f32 %v3734, %v3762
        %v3791 = vmax.f32 %v3735, %v3763
        %v3792 = vmax.f32 %v3736, %v3764
        %v3793 = vmax.f32 %v3737, %v3765
        %v3794 = vmax.f32 %v3738, %v3766
        %v3795 = vmax.f32 %v3739, %v3767
        %v3796 = vmax.f32 %v3740, %v3768
        %v3797 = vmax.f32 %v3741, %v3769
        %v3798 = vmax.f32 %v3742, %v3770
        %v3799 = vmax.f32 %v3743, %v3771
        %v3800 = vmax.f32 %v3744, %v3772
        %v3801 = vmax.f32 %v3745, %v3773
        %v3802 = vmax.f32 %v3746, %v3774
        %v3803 = vmax.f32 %v3747, %v3775
        %v3804 = vmax.f32 %v3748, %v3776
        %v3805 = vmax.f32 %v3749, %v3777
        %v3806 = vmax.f32 %v3750, %v3778
        %v3807 = vmax.f32 %v3751, %v3779
        %v3808 = vmax.f32 %v3752, %v3780
        %v3809 = vmax.f32 %v3753, %v3781
        %v3810 = vmax.f32 %v3754, %v3782
        %v3811 = vmax.f32 %v3755, %v3783
        %v3812 = vmax.f32 %v3756, %v3784
        %v3813 = vld [vmem:[#allocation2 + $0xea] sm:$0xff]
        %v3814 = vld [vmem:[#allocation2 + $0xf2] sm:$0xff]
        %v3815 = vld [vmem:[#allocation2 + $0xfa] sm:$0x1]
        %v3816 = vmax.f32 %v3785, %v3643
        %v3817 = vmax.f32 %v3786, %v3644
        %v3818 = vmax.f32 %v3787, %v3645
        %v3819 = vmax.f32 %v3788, %v3646
        %v3820 = vmax.f32 %v3789, %v3647
        %v3821 = vmax.f32 %v3790, %v3648
        %v3822 = vmax.f32 %v3791, %v3649
        %v3823 = vmax.f32 %v3792, %v3650
        %v3824 = vmax.f32 %v3793, %v3651
        %v3825 = vmax.f32 %v3794, %v3652
        %v3826 = vmax.f32 %v3795, %v3653
        %v3827 = vmax.f32 %v3796, %v3654
        %v3828 = vmax.f32 %v3797, %v3655
        %v3829 = vmax.f32 %v3798, %v3656
        %v3830 = vmax.f32 %v3799, %v3657
        %v3831 = vmax.f32 %v3800, %v3658
        %v3832 = vmax.f32 %v3801, %v3659
        %v3833 = vmax.f32 %v3802, %v3660
        %v3834 = vmax.f32 %v3803, %v3661
        %v3835 = vmax.f32 %v3804, %v3662
        %v3836 = vmax.f32 %v3805, %v3663
        %v3837 = vmax.f32 %v3806, %v3664
        %v3838 = vmax.f32 %v3807, %v3665
        %v3839 = vmax.f32 %v3808, %v3726
        %v3840 = vmax.f32 %v3809, %v3727
        %v3841 = vmax.f32 %v3810, %v3813
        %v3842 = vmax.f32 %v3811, %v3814
        %v3843 = vmax.f32 %v3812, %v3815
        %v3844 = vld [vmem:[#allocation2 + $0xeb] sm:$0xff]
        %v3845 = vld [vmem:[#allocation2 + $0xf3] sm:$0xff]
        %v3846 = vld [vmem:[#allocation2 + $0xfb] sm:$0x1]
        %v3847 = vmax.f32 %v3816, %v3759
        %v3848 = vmax.f32 %v3817, %v3760
        %v3849 = vmax.f32 %v3818, %v3761
        %v3850 = vmax.f32 %v3819, %v3762
        %v3851 = vmax.f32 %v3820, %v3763
        %v3852 = vmax.f32 %v3821, %v3764
        %v3853 = vmax.f32 %v3822, %v3765
        %v3854 = vmax.f32 %v3823, %v3766
        %v3855 = vmax.f32 %v3824, %v3767
        %v3856 = vmax.f32 %v3825, %v3768
        %v3857 = vmax.f32 %v3826, %v3769
        %v3858 = vmax.f32 %v3827, %v3770
        %v3859 = vmax.f32 %v3828, %v3771
        %v3860 = vmax.f32 %v3829, %v3772
        %v3861 = vmax.f32 %v3830, %v3773
        %v3862 = vmax.f32 %v3831, %v3774
        %v3863 = vmax.f32 %v3832, %v3775
        %v3864 = vmax.f32 %v3833, %v3776
        %v3865 = vmax.f32 %v3834, %v3777
        %v3866 = vmax.f32 %v3835, %v3778
        %v3867 = vmax.f32 %v3836, %v3779
        %v3868 = vmax.f32 %v3837, %v3780
        %v3869 = vmax.f32 %v3838, %v3781
        %v3870 = vmax.f32 %v3839, %v3782
        %v3871 = vmax.f32 %v3840, %v3783
        %v3872 = vmax.f32 %v3841, %v3844
        %v3873 = vmax.f32 %v3842, %v3845
        %v3874 = vmax.f32 %v3843, %v3846
        %v3875 = vld [vmem:[#allocation2 + $0x24] sm:$0xff]
        %v3876 = vld [vmem:[#allocation2 + $0x2c] sm:$0xff]
        %v3877 = vld [vmem:[#allocation2 + $0x34] sm:$0xff]
        %v3878 = vld [vmem:[#allocation2 + $0x3c] sm:$0xff]
        %v3879 = vld [vmem:[#allocation2 + $0x44] sm:$0xff]
        %v3880 = vld [vmem:[#allocation2 + $0x4c] sm:$0xff]
        %v3881 = vld [vmem:[#allocation2 + $0x54] sm:$0xff]
        %v3882 = vld [vmem:[#allocation2 + $0x5c] sm:$0xff]
        %v3883 = vld [vmem:[#allocation2 + $0x64] sm:$0xff]
        %v3884 = vld [vmem:[#allocation2 + $0x6c] sm:$0xff]
        %v3885 = vld [vmem:[#allocation2 + $0x74] sm:$0xff]
        %v3886 = vld [vmem:[#allocation2 + $0x7c] sm:$0xff]
        %v3887 = vld [vmem:[#allocation2 + $0x84] sm:$0xff]
        %v3888 = vld [vmem:[#allocation2 + $0x8c] sm:$0xff]
        %v3889 = vld [vmem:[#allocation2 + $0x94] sm:$0xff]
        %v3890 = vld [vmem:[#allocation2 + $0x9c] sm:$0xff]
        %v3891 = vld [vmem:[#allocation2 + $0xa4] sm:$0xff]
        %v3892 = vld [vmem:[#allocation2 + $0xac] sm:$0xff]
        %v3893 = vld [vmem:[#allocation2 + $0xb4] sm:$0xff]
        %v3894 = vld [vmem:[#allocation2 + $0xbc] sm:$0xff]
        %v3895 = vld [vmem:[#allocation2 + $0xc4] sm:$0xff]
        %v3896 = vld [vmem:[#allocation2 + $0xcc] sm:$0xff]
        %v3897 = vld [vmem:[#allocation2 + $0xd4] sm:$0xff]
        %v3898 = vld [vmem:[#allocation2 + $0xdc] sm:$0xff]
        %v3899 = vld [vmem:[#allocation2 + $0xe4] sm:$0xff]
        %v3900 = vld [vmem:[#allocation2 + $0xec] sm:$0xff]
        %v3901 = vld [vmem:[#allocation2 + $0xf4] sm:$0xff]
        %v3902 = vld [vmem:[#allocation2 + $0xfc] sm:$0x1]
        %v3903 = vmax.f32 %v3847, %v3875
        %v3904 = vmax.f32 %v3848, %v3876
        %v3905 = vmax.f32 %v3849, %v3877
        %v3906 = vmax.f32 %v3850, %v3878
        %v3907 = vmax.f32 %v3851, %v3879
        %v3908 = vmax.f32 %v3852, %v3880
        %v3909 = vmax.f32 %v3853, %v3881
        %v3910 = vmax.f32 %v3854, %v3882
        %v3911 = vmax.f32 %v3855, %v3883
        %v3912 = vmax.f32 %v3856, %v3884
        %v3913 = vmax.f32 %v3857, %v3885
        %v3914 = vmax.f32 %v3858, %v3886
        %v3915 = vmax.f32 %v3859, %v3887
        %v3916 = vmax.f32 %v3860, %v3888
        %v3917 = vmax.f32 %v3861, %v3889
        %v3918 = vmax.f32 %v3862, %v3890
        %v3919 = vmax.f32 %v3863, %v3891
        %v3920 = vmax.f32 %v3864, %v3892
        %v3921 = vmax.f32 %v3865, %v3893
        %v3922 = vmax.f32 %v3866, %v3894
        %v3923 = vmax.f32 %v3867, %v3895
        %v3924 = vmax.f32 %v3868, %v3896
        %v3925 = vmax.f32 %v3869, %v3897
        %v3926 = vmax.f32 %v3870, %v3898
        %v3927 = vmax.f32 %v3871, %v3899
        %v3928 = vmax.f32 %v3872, %v3900
        %v3929 = vmax.f32 %v3873, %v3901
        %v3930 = vmax.f32 %v3874, %v3902
        %v3931 = vld [vmem:[%s11] sm:$0xff]
        %v3932 = vld [vmem:[%s11 + $0x8] sm:$0xff]
        %v3933 = vld [vmem:[%s11 + $0x10] sm:$0xff]
        %v3934 = vld [vmem:[%s11 + $0x18] sm:$0xff]
        %v3935 = vld [vmem:[%s11 + $0x20] sm:$0xff]
        %v3936 = vld [vmem:[%s11 + $0x28] sm:$0xff]
        %v3937 = vld [vmem:[%s11 + $0x30] sm:$0xff]
        %v3938 = vld [vmem:[%s11 + $0x38] sm:$0xff]
        %v3939 = vld [vmem:[%s11 + $0x40] sm:$0xff]
        %v3940 = vld [vmem:[%s11 + $0x48] sm:$0xff]
        %v3941 = vld [vmem:[%s11 + $0x50] sm:$0xff]
        %v3942 = vld [vmem:[%s11 + $0x58] sm:$0xff]
        %v3943 = vld [vmem:[%s11 + $0x60] sm:$0xff]
        %v3944 = vld [vmem:[%s11 + $0x68] sm:$0xff]
        %v3945 = vld [vmem:[%s11 + $0x70] sm:$0xff]
        %v3946 = vld [vmem:[%s11 + $0x78] sm:$0x11]
        %v3947 = vpack.c.bf16 %v3904, %v3903
        %v3948 = vpack.c.bf16 %v3906, %v3905
        %v3949 = vpack.c.bf16 %v3908, %v3907
        %v3950 = vpack.c.bf16 %v3910, %v3909
        %v3951 = vpack.c.bf16 %v3912, %v3911
        %v3952 = vpack.c.bf16 %v3914, %v3913
        %v3953 = vpack.c.bf16 %v3916, %v3915
        %v3954 = vpack.c.bf16 %v3918, %v3917
        %v3955 = vpack.c.bf16 %v3920, %v3919
        %v3956 = vpack.c.bf16 %v3922, %v3921
        %v3957 = vpack.c.bf16 %v3924, %v3923
        %v3958 = vpack.c.bf16 %v3926, %v3925
        %v3959 = vpack.c.bf16 %v3928, %v3927
        %v3960 = vpack.c.bf16 %v3930, %v3929
        %v3977 = vunpack.c.l.b16 %v3931
        %v3978 = vunpack.c.h.b16 %v3931
        %v3979 = vunpack.c.l.b16 %v3932
        %v3980 = vunpack.c.h.b16 %v3932
        %v3981 = vunpack.c.l.b16 %v3933
        %v3982 = vunpack.c.h.b16 %v3933
        %v3983 = vunpack.c.l.b16 %v3934
        %v3984 = vunpack.c.h.b16 %v3934
        %v3985 = vunpack.c.l.b16 %v3935
        %v3986 = vunpack.c.h.b16 %v3935
        %v3987 = vunpack.c.l.b16 %v3936
        %v3988 = vunpack.c.h.b16 %v3936
        %v3989 = vunpack.c.l.b16 %v3937
        %v3990 = vunpack.c.h.b16 %v3937
        %v3991 = vunpack.c.l.b16 %v3938
        %v3992 = vunpack.c.h.b16 %v3938
        %v3993 = vunpack.c.l.b16 %v3939
        %v3994 = vunpack.c.h.b16 %v3939
        %v3995 = vunpack.c.l.b16 %v3940
        %v3996 = vunpack.c.h.b16 %v3940
        %v3997 = vunpack.c.l.b16 %v3941
        %v3998 = vunpack.c.h.b16 %v3941
        %v3999 = vunpack.c.l.b16 %v3942
        %v4000 = vunpack.c.h.b16 %v3942
        %v4001 = vunpack.c.l.b16 %v3943
        %v4002 = vunpack.c.h.b16 %v3943
        %v4003 = vunpack.c.l.b16 %v3944
        %v4004 = vunpack.c.h.b16 %v3944
        %v4005 = vunpack.c.l.b16 %v3945
        %v4006 = vunpack.c.h.b16 %v3945
        %v4007 = vunpack.c.l.b16 %v3946
        %v4008 = vunpack.c.h.b16 %v3946
        %v4009 = vpack.c.b16 %v3979, %v3977
        %v4010 = vpack.c.b16 %v3980, %v3978
        %v4011 = vpack.c.b16 %v3983, %v3981
        %v4012 = vpack.c.b16 %v3984, %v3982
        %v4013 = vpack.c.b16 %v3987, %v3985
        %v4014 = vpack.c.b16 %v3988, %v3986
        %v4015 = vpack.c.b16 %v3991, %v3989
        %v4016 = vpack.c.b16 %v3992, %v3990
        %v4017 = vpack.c.b16 %v3995, %v3993
        %v4018 = vpack.c.b16 %v3996, %v3994
        %v4019 = vpack.c.b16 %v3999, %v3997
        %v4020 = vpack.c.b16 %v4000, %v3998
        %v4021 = vpack.c.b16 %v4003, %v4001
        %v4022 = vpack.c.b16 %v4004, %v4002
        %v4023 = vpack.c.b16 %v4007, %v4005
        %v4024 = vpack.c.b16 %v4008, %v4006
        %vm4033 = vcmask 728064
        %v4035 = vsel %vm4033, %v4010, 0
        %v4038 = vsel %vm4033, %v4012, 0
        %v4041 = vsel %vm4033, %v4014, 0
        %v4044 = vsel %vm4033, %v4016, 0
        %v4047 = vsel %vm4033, %v4018, 0
        %v4050 = vsel %vm4033, %v4020, 0
        %v4053 = vsel %vm4033, %v4022, 0
        %v4056 = vsel %vm4033, %v4024, 0
        %vm4058 = vcmask 1043456
        %vm4059 = vcmask 1044480
        %v4060 = vsel %vm4058, 4294967295, 65535
        %v4061 = vsel %vm4059, %v4060, 0
        %v4063 = vand.u32 %v3960, %v4061
        %4065 = vmatpush.bf16.msra.mxu0 %v3954
        %4066 = vmatpush.bf16.msra.mxu0 %v3953
        %4067 = vmatpush.bf16.msra.mxu0 %v3952
        %4068 = vmatpush.bf16.msra.mxu0 %v3951
        %4069 = vmatpush.bf16.msra.mxu0 %v3950
        %4070 = vmatpush.bf16.msra.mxu0 %v3949
        %4071 = vmatpush.bf16.msra.mxu0 %v3948
        %4072 = vmatpush.bf16.msra.mxu0 %v3947
        %4073 = vmatmul.bf16.gmra.mxu0 %v4009
        %v4074 = vpop.f32.mrf.mxu0
        %v4075 = vadd.f32 0.0, %v4074
        %v4076 = vpop.f32.mrf.mxu0
        %v4077 = vadd.f32 0.0, %v4076
        %4078 = vmatmul.bf16.gmra.mxu0 %v4011
        %v4079 = vpop.f32.mrf.mxu0
        %v4080 = vadd.f32 0.0, %v4079
        %v4081 = vpop.f32.mrf.mxu0
        %v4082 = vadd.f32 0.0, %v4081
        %4083 = vmatmul.bf16.gmra.mxu0 %v4013
        %v4084 = vpop.f32.mrf.mxu0
        %v4085 = vadd.f32 0.0, %v4084
        %v4086 = vpop.f32.mrf.mxu0
        %v4087 = vadd.f32 0.0, %v4086
        %4088 = vmatmul.bf16.gmra.mxu0 %v4015
        %v4089 = vpop.f32.mrf.mxu0
        %v4090 = vadd.f32 0.0, %v4089
        %v4091 = vpop.f32.mrf.mxu0
        %v4092 = vadd.f32 0.0, %v4091
        %4093 = vmatmul.bf16.gmra.mxu0 %v4017
        %v4094 = vpop.f32.mrf.mxu0
        %v4095 = vadd.f32 0.0, %v4094
        %v4096 = vpop.f32.mrf.mxu0
        %v4097 = vadd.f32 0.0, %v4096
        %4098 = vmatmul.bf16.gmra.mxu0 %v4019
        %v4099 = vpop.f32.mrf.mxu0
        %v4100 = vadd.f32 0.0, %v4099
        %v4101 = vpop.f32.mrf.mxu0
        %v4102 = vadd.f32 0.0, %v4101
        %4103 = vmatmul.bf16.gmra.mxu0 %v4021
        %v4104 = vpop.f32.mrf.mxu0
        %v4105 = vadd.f32 0.0, %v4104
        %v4106 = vpop.f32.mrf.mxu0
        %v4107 = vadd.f32 0.0, %v4106
        %4108 = vmatmul.bf16.gmra.mxu0 %v4023
        %v4109 = vpop.f32.mrf.mxu0
        %v4110 = vadd.f32 0.0, %v4109
        %v4111 = vpop.f32.mrf.mxu0
        %v4112 = vadd.f32 0.0, %v4111
        %4113 = vdwg.mxu0
        %4114 = vmatpush.bf16.msra.mxu0 0
        %4115 = vmatpush.bf16.msra.mxu0 0
        %4116 = vmatpush.bf16.msra.mxu0 %v4063
        %4117 = vmatpush.bf16.msra.mxu0 %v3959
        %4118 = vmatpush.bf16.msra.mxu0 %v3958
        %4119 = vmatpush.bf16.msra.mxu0 %v3957
        %4120 = vmatpush.bf16.msra.mxu0 %v3956
        %4121 = vmatpush.bf16.msra.mxu0 %v3955
        %4122 = vmatmul.bf16.gmra.mxu0 %v4035
        %v4123 = vpop.f32.mrf.mxu0
        %v4124 = vadd.f32 %v4075, %v4123
        %v4125 = vpop.f32.mrf.mxu0
        %v4126 = vadd.f32 %v4077, %v4125
        %4127 = vmatmul.bf16.gmra.mxu0 %v4038
        %v4128 = vpop.f32.mrf.mxu0
        %v4129 = vadd.f32 %v4080, %v4128
        %v4130 = vpop.f32.mrf.mxu0
        %v4131 = vadd.f32 %v4082, %v4130
        %4132 = vmatmul.bf16.gmra.mxu0 %v4041
        %v4133 = vpop.f32.mrf.mxu0
        %v4134 = vadd.f32 %v4085, %v4133
        %v4135 = vpop.f32.mrf.mxu0
        %v4136 = vadd.f32 %v4087, %v4135
        %4137 = vmatmul.bf16.gmra.mxu0 %v4044
        %v4138 = vpop.f32.mrf.mxu0
        %v4139 = vadd.f32 %v4090, %v4138
        %v4140 = vpop.f32.mrf.mxu0
        %v4141 = vadd.f32 %v4092, %v4140
        %4142 = vmatmul.bf16.gmra.mxu0 %v4047
        %v4143 = vpop.f32.mrf.mxu0
        %v4144 = vadd.f32 %v4095, %v4143
        %v4145 = vpop.f32.mrf.mxu0
        %v4146 = vadd.f32 %v4097, %v4145
        %4147 = vmatmul.bf16.gmra.mxu0 %v4050
        %v4148 = vpop.f32.mrf.mxu0
        %v4149 = vadd.f32 %v4100, %v4148
        %v4150 = vpop.f32.mrf.mxu0
        %v4151 = vadd.f32 %v4102, %v4150
        %4152 = vmatmul.bf16.gmra.mxu0 %v4053
        %v4153 = vpop.f32.mrf.mxu0
        %v4154 = vadd.f32 %v4105, %v4153
        %v4155 = vpop.f32.mrf.mxu0
        %v4156 = vadd.f32 %v4107, %v4155
        %4157 = vmatmul.bf16.gmra.mxu0 %v4056
        %v4158 = vpop.f32.mrf.mxu0
        %v4159 = vadd.f32 %v4110, %v4158
        %v4160 = vpop.f32.mrf.mxu0
        %v4161 = vadd.f32 %v4112, %v4160
        %4162 = vdwg.mxu0
        %4163 = vst.msk [vmem:[#allocation3] sm:$0xff] %vm3521, %v4124
        %4164 = vst.msk [vmem:[#allocation3 + $0x8] sm:$0xff] %vm3521, %v4126
        %4165 = vst.msk [vmem:[#allocation3 + $0x10] sm:$0xff] %vm3521, %v4129
        %4166 = vst.msk [vmem:[#allocation3 + $0x18] sm:$0xff] %vm3521, %v4131
        %4167 = vst.msk [vmem:[#allocation3 + $0x20] sm:$0xff] %vm3521, %v4134
        %4168 = vst.msk [vmem:[#allocation3 + $0x28] sm:$0xff] %vm3521, %v4136
        %4169 = vst.msk [vmem:[#allocation3 + $0x30] sm:$0xff] %vm3521, %v4139
        %4170 = vst.msk [vmem:[#allocation3 + $0x38] sm:$0xff] %vm3521, %v4141
        %4171 = vst.msk [vmem:[#allocation3 + $0x40] sm:$0xff] %vm3521, %v4144
        %4172 = vst.msk [vmem:[#allocation3 + $0x48] sm:$0xff] %vm3521, %v4146
        %4173 = vst.msk [vmem:[#allocation3 + $0x50] sm:$0xff] %vm3521, %v4149
        %4174 = vst.msk [vmem:[#allocation3 + $0x58] sm:$0xff] %vm3521, %v4151
        %4175 = vst.msk [vmem:[#allocation3 + $0x60] sm:$0xff] %vm3521, %v4154
        %4176 = vst.msk [vmem:[#allocation3 + $0x68] sm:$0xff] %vm3521, %v4156
        %4177 = vst.msk [vmem:[#allocation3 + $0x70] sm:$0xff] %vm3521, %v4159
        %vm4178 = vcmask 122880
        %4179 = vst.msk [vmem:[#allocation3 + $0x78] sm:$0x1] %vm4178, %v4161
        %v4180 = vld [vmem:[#allocation3] sm:$0xff]
        %v4181 = vld [vmem:[#allocation3 + $0x8] sm:$0xff]
        %v4182 = vld [vmem:[#allocation3 + $0x10] sm:$0xff]
        %v4183 = vld [vmem:[#allocation3 + $0x18] sm:$0xff]
        %v4184 = vld [vmem:[#allocation3 + $0x20] sm:$0xff]
        %v4185 = vld [vmem:[#allocation3 + $0x28] sm:$0xff]
        %v4186 = vld [vmem:[#allocation3 + $0x30] sm:$0xff]
        %v4187 = vld [vmem:[#allocation3 + $0x38] sm:$0xff]
        %v4188 = vld [vmem:[#allocation3 + $0x40] sm:$0xff]
        %v4189 = vld [vmem:[#allocation3 + $0x48] sm:$0x1]
        %v4190 = vpack.c.bf16 %v4181, %v4180
        %v4191 = vpack.c.bf16 %v4183, %v4182
        %v4192 = vpack.c.bf16 %v4185, %v4184
        %v4193 = vpack.c.bf16 %v4187, %v4186
        %v4194 = vpack.c.bf16 %v4189, %v4188
        %v4195 = vld [vmem:[%s3] sm:$0xf]
        %v4196 = vld [vmem:[%s3 + $0x4] sm:$0xf]
        %v4197 = vld [vmem:[#allocation3 + $0x1] sm:$0xff]
        %v4198 = vld [vmem:[#allocation3 + $0x9] sm:$0xff]
        %v4199 = vld [vmem:[#allocation3 + $0x11] sm:$0xff]
        %v4200 = vld [vmem:[#allocation3 + $0x19] sm:$0xff]
        %v4201 = vld [vmem:[#allocation3 + $0x21] sm:$0xff]
        %v4202 = vld [vmem:[#allocation3 + $0x29] sm:$0xff]
        %v4203 = vld [vmem:[#allocation3 + $0x31] sm:$0xff]
        %v4204 = vld [vmem:[#allocation3 + $0x39] sm:$0xff]
        %v4205 = vld [vmem:[#allocation3 + $0x41] sm:$0xff]
        %v4206 = vld [vmem:[#allocation3 + $0x49] sm:$0x1]
        %v4207 = vpack.c.bf16 %v4198, %v4197
        %v4208 = vpack.c.bf16 %v4200, %v4199
        %v4209 = vpack.c.bf16 %v4202, %v4201
        %v4210 = vpack.c.bf16 %v4204, %v4203
        %v4211 = vpack.c.bf16 %v4206, %v4205
        %s4212 = scalar_lea.vmem %s3, 8
        %v4213 = vld [vmem:[%s4212] sm:$0xf]
        %v4214 = vld [vmem:[%s4212 + $0x4] sm:$0xf]
        %v4217 = vunpack.c.l.b16 %v4213
        %v4218 = vunpack.c.l.b16 %v4214
        %v4219 = vpack.c.b16 %v4218, %v4217
        %v4222 = vsel %vm3521, %v4207, 0
        %v4225 = vsel %vm3521, %v4208, 0
        %v4228 = vsel %vm3521, %v4209, 0
        %v4231 = vsel %vm3521, %v4210, 0
        %v4234 = vsel %vm3521, %v4211, 0
        %4236 = vmatpush.bf16.msra.mxu0 0
        %4237 = vmatpush.bf16.msra.mxu0 0
        %4238 = vmatpush.bf16.msra.mxu0 0
        %4239 = vmatpush.bf16.msra.mxu0 0
        %4240 = vmatpush.bf16.msra.mxu0 0
        %4241 = vmatpush.bf16.msra.mxu0 0
        %4242 = vmatpush.bf16.msra.mxu0 0
        %4243 = vmatpush.bf16.msra.mxu0 %v4219
        %4244 = vmatmul.bf16.gmra.mxu0 %v4222
        %v4245 = vpop.f32.mrf.mxu0
        %v4246 = vadd.f32 0.0, %v4245
        %v4247 = vpop.f32.mrf.mxu0
        %v4248 = vadd.f32 0.0, %v4247
        %4249 = vmatmul.bf16.gmra.mxu0 %v4225
        %v4250 = vpop.f32.mrf.mxu0
        %v4251 = vadd.f32 0.0, %v4250
        %v4252 = vpop.f32.mrf.mxu0
        %v4253 = vadd.f32 0.0, %v4252
        %4254 = vmatmul.bf16.gmra.mxu0 %v4228
        %v4255 = vpop.f32.mrf.mxu0
        %v4256 = vadd.f32 0.0, %v4255
        %v4257 = vpop.f32.mrf.mxu0
        %v4258 = vadd.f32 0.0, %v4257
        %4259 = vmatmul.bf16.gmra.mxu0 %v4231
        %v4260 = vpop.f32.mrf.mxu0
        %v4261 = vadd.f32 0.0, %v4260
        %v4262 = vpop.f32.mrf.mxu0
        %v4263 = vadd.f32 0.0, %v4262
        %4264 = vmatmul.bf16.gmra.mxu0 %v4234
        %v4265 = vpop.f32.mrf.mxu0
        %v4266 = vadd.f32 0.0, %v4265
        %v4267 = vpop.f32.mrf.mxu0
        %v4268 = vadd.f32 0.0, %v4267
        %4269 = vdwg.mxu0
        %v4272 = vunpack.c.l.b16 %v4195
        %v4273 = vunpack.c.l.b16 %v4196
        %v4274 = vpack.c.b16 %v4273, %v4272
        %v4277 = vsel %vm3521, %v4190, 0
        %v4280 = vsel %vm3521, %v4191, 0
        %v4283 = vsel %vm3521, %v4192, 0
        %v4286 = vsel %vm3521, %v4193, 0
        %v4289 = vsel %vm3521, %v4194, 0
        %4291 = vmatpush.bf16.msra.mxu0 0
        %4292 = vmatpush.bf16.msra.mxu0 0
        %4293 = vmatpush.bf16.msra.mxu0 0
        %4294 = vmatpush.bf16.msra.mxu0 0
        %4295 = vmatpush.bf16.msra.mxu0 0
        %4296 = vmatpush.bf16.msra.mxu0 0
        %4297 = vmatpush.bf16.msra.mxu0 0
        %4298 = vmatpush.bf16.msra.mxu0 %v4274
        %4299 = vmatmul.bf16.gmra.mxu0 %v4277
        %v4300 = vpop.f32.mrf.mxu0
        %v4301 = vadd.f32 %v4246, %v4300
        %v4302 = vpop.f32.mrf.mxu0
        %v4303 = vadd.f32 %v4248, %v4302
        %4304 = vmatmul.bf16.gmra.mxu0 %v4280
        %v4305 = vpop.f32.mrf.mxu0
        %v4306 = vadd.f32 %v4251, %v4305
        %v4307 = vpop.f32.mrf.mxu0
        %v4308 = vadd.f32 %v4253, %v4307
        %4309 = vmatmul.bf16.gmra.mxu0 %v4283
        %v4310 = vpop.f32.mrf.mxu0
        %v4311 = vadd.f32 %v4256, %v4310
        %v4312 = vpop.f32.mrf.mxu0
        %v4313 = vadd.f32 %v4258, %v4312
        %4314 = vmatmul.bf16.gmra.mxu0 %v4286
        %v4315 = vpop.f32.mrf.mxu0
        %v4316 = vadd.f32 %v4261, %v4315
        %v4317 = vpop.f32.mrf.mxu0
        %v4318 = vadd.f32 %v4263, %v4317
        %4319 = vmatmul.bf16.gmra.mxu0 %v4289
        %v4320 = vpop.f32.mrf.mxu0
        %v4321 = vadd.f32 %v4266, %v4320
        %v4322 = vpop.f32.mrf.mxu0
        %v4323 = vadd.f32 %v4268, %v4322
        %4324 = vdwg.mxu0
        %v4325 = vld [vmem:[#allocation3 + $0x2] sm:$0xff]
        %v4326 = vld [vmem:[#allocation3 + $0xa] sm:$0xff]
        %v4327 = vld [vmem:[#allocation3 + $0x12] sm:$0xff]
        %v4328 = vld [vmem:[#allocation3 + $0x1a] sm:$0xff]
        %v4329 = vld [vmem:[#allocation3 + $0x22] sm:$0xff]
        %v4330 = vld [vmem:[#allocation3 + $0x2a] sm:$0xff]
        %v4331 = vld [vmem:[#allocation3 + $0x32] sm:$0xff]
        %v4332 = vld [vmem:[#allocation3 + $0x3a] sm:$0xff]
        %v4333 = vld [vmem:[#allocation3 + $0x42] sm:$0xff]
        %v4334 = vld [vmem:[#allocation3 + $0x4a] sm:$0x1]
        %v4335 = vpack.c.bf16 %v4326, %v4325
        %v4336 = vpack.c.bf16 %v4328, %v4327
        %v4337 = vpack.c.bf16 %v4330, %v4329
        %v4338 = vpack.c.bf16 %v4332, %v4331
        %v4339 = vpack.c.bf16 %v4334, %v4333
        %s4340 = scalar_lea.vmem %s3, 16
        %v4341 = vld [vmem:[%s4340] sm:$0xf]
        %v4342 = vld [vmem:[%s4340 + $0x4] sm:$0xf]
        %v4345 = vunpack.c.l.b16 %v4341
        %v4346 = vunpack.c.l.b16 %v4342
        %v4347 = vpack.c.b16 %v4346, %v4345
        %v4350 = vsel %vm3521, %v4335, 0
        %v4353 = vsel %vm3521, %v4336, 0
        %v4356 = vsel %vm3521, %v4337, 0
        %v4359 = vsel %vm3521, %v4338, 0
        %v4362 = vsel %vm3521, %v4339, 0
        %4364 = vmatpush.bf16.msra.mxu0 0
        %4365 = vmatpush.bf16.msra.mxu0 0
        %4366 = vmatpush.bf16.msra.mxu0 0
        %4367 = vmatpush.bf16.msra.mxu0 0
        %4368 = vmatpush.bf16.msra.mxu0 0
        %4369 = vmatpush.bf16.msra.mxu0 0
        %4370 = vmatpush.bf16.msra.mxu0 0
        %4371 = vmatpush.bf16.msra.mxu0 %v4347
        %4372 = vmatmul.bf16.gmra.mxu0 %v4350
        %v4373 = vpop.f32.mrf.mxu0
        %v4374 = vadd.f32 0.0, %v4373
        %v4375 = vpop.f32.mrf.mxu0
        %v4376 = vadd.f32 0.0, %v4375
        %4377 = vmatmul.bf16.gmra.mxu0 %v4353
        %v4378 = vpop.f32.mrf.mxu0
        %v4379 = vadd.f32 0.0, %v4378
        %v4380 = vpop.f32.mrf.mxu0
        %v4381 = vadd.f32 0.0, %v4380
        %4382 = vmatmul.bf16.gmra.mxu0 %v4356
        %v4383 = vpop.f32.mrf.mxu0
        %v4384 = vadd.f32 0.0, %v4383
        %v4385 = vpop.f32.mrf.mxu0
        %v4386 = vadd.f32 0.0, %v4385
        %4387 = vmatmul.bf16.gmra.mxu0 %v4359
        %v4388 = vpop.f32.mrf.mxu0
        %v4389 = vadd.f32 0.0, %v4388
        %v4390 = vpop.f32.mrf.mxu0
        %v4391 = vadd.f32 0.0, %v4390
        %4392 = vmatmul.bf16.gmra.mxu0 %v4362
        %v4393 = vpop.f32.mrf.mxu0
        %v4394 = vadd.f32 0.0, %v4393
        %v4395 = vpop.f32.mrf.mxu0
        %v4396 = vadd.f32 0.0, %v4395
        %4397 = vdwg.mxu0
        %v4398 = vadd.f32 %v4301, %v4374
        %v4399 = vadd.f32 %v4303, %v4376
        %v4400 = vadd.f32 %v4306, %v4379
        %v4401 = vadd.f32 %v4308, %v4381
        %v4402 = vadd.f32 %v4311, %v4384
        %v4403 = vadd.f32 %v4313, %v4386
        %v4404 = vadd.f32 %v4316, %v4389
        %v4405 = vadd.f32 %v4318, %v4391
        %v4406 = vadd.f32 %v4321, %v4394
        %v4407 = vadd.f32 %v4323, %v4396
        %v4408 = vld [vmem:[#allocation3 + $0x3] sm:$0xff]
        %v4409 = vld [vmem:[#allocation3 + $0xb] sm:$0xff]
        %v4410 = vld [vmem:[#allocation3 + $0x13] sm:$0xff]
        %v4411 = vld [vmem:[#allocation3 + $0x1b] sm:$0xff]
        %v4412 = vld [vmem:[#allocation3 + $0x23] sm:$0xff]
        %v4413 = vld [vmem:[#allocation3 + $0x2b] sm:$0xff]
        %v4414 = vld [vmem:[#allocation3 + $0x33] sm:$0xff]
        %v4415 = vld [vmem:[#allocation3 + $0x3b] sm:$0xff]
        %v4416 = vld [vmem:[#allocation3 + $0x43] sm:$0xff]
        %v4417 = vld [vmem:[#allocation3 + $0x4b] sm:$0x1]
        %v4418 = vpack.c.bf16 %v4409, %v4408
        %v4419 = vpack.c.bf16 %v4411, %v4410
        %v4420 = vpack.c.bf16 %v4413, %v4412
        %v4421 = vpack.c.bf16 %v4415, %v4414
        %v4422 = vpack.c.bf16 %v4417, %v4416
        %s4423 = scalar_lea.vmem %s3, 24
        %v4424 = vld [vmem:[%s4423] sm:$0xf]
        %v4425 = vld [vmem:[%s4423 + $0x4] sm:$0xf]
        %v4428 = vunpack.c.l.b16 %v4424
        %v4429 = vunpack.c.l.b16 %v4425
        %v4430 = vpack.c.b16 %v4429, %v4428
        %v4433 = vsel %vm3521, %v4418, 0
        %v4436 = vsel %vm3521, %v4419, 0
        %v4439 = vsel %vm3521, %v4420, 0
        %v4442 = vsel %vm3521, %v4421, 0
        %v4445 = vsel %vm3521, %v4422, 0
        %4447 = vmatpush.bf16.msra.mxu0 0
        %4448 = vmatpush.bf16.msra.mxu0 0
        %4449 = vmatpush.bf16.msra.mxu0 0
        %4450 = vmatpush.bf16.msra.mxu0 0
        %4451 = vmatpush.bf16.msra.mxu0 0
        %4452 = vmatpush.bf16.msra.mxu0 0
        %4453 = vmatpush.bf16.msra.mxu0 0
        %4454 = vmatpush.bf16.msra.mxu0 %v4430
        %4455 = vmatmul.bf16.gmra.mxu0 %v4433
        %v4456 = vpop.f32.mrf.mxu0
        %v4457 = vadd.f32 0.0, %v4456
        %v4458 = vpop.f32.mrf.mxu0
        %v4459 = vadd.f32 0.0, %v4458
        %4460 = vmatmul.bf16.gmra.mxu0 %v4436
        %v4461 = vpop.f32.mrf.mxu0
        %v4462 = vadd.f32 0.0, %v4461
        %v4463 = vpop.f32.mrf.mxu0
        %v4464 = vadd.f32 0.0, %v4463
        %4465 = vmatmul.bf16.gmra.mxu0 %v4439
        %v4466 = vpop.f32.mrf.mxu0
        %v4467 = vadd.f32 0.0, %v4466
        %v4468 = vpop.f32.mrf.mxu0
        %v4469 = vadd.f32 0.0, %v4468
        %4470 = vmatmul.bf16.gmra.mxu0 %v4442
        %v4471 = vpop.f32.mrf.mxu0
        %v4472 = vadd.f32 0.0, %v4471
        %v4473 = vpop.f32.mrf.mxu0
        %v4474 = vadd.f32 0.0, %v4473
        %4475 = vmatmul.bf16.gmra.mxu0 %v4445
        %v4476 = vpop.f32.mrf.mxu0
        %v4477 = vadd.f32 0.0, %v4476
        %v4478 = vpop.f32.mrf.mxu0
        %v4479 = vadd.f32 0.0, %v4478
        %4480 = vdwg.mxu0
        %v4481 = vadd.f32 %v4398, %v4457
        %v4482 = vadd.f32 %v4399, %v4459
        %v4483 = vadd.f32 %v4400, %v4462
        %v4484 = vadd.f32 %v4401, %v4464
        %v4485 = vadd.f32 %v4402, %v4467
        %v4486 = vadd.f32 %v4403, %v4469
        %v4487 = vadd.f32 %v4404, %v4472
        %v4488 = vadd.f32 %v4405, %v4474
        %v4489 = vadd.f32 %v4406, %v4477
        %v4490 = vadd.f32 %v4407, %v4479
        %v4491 = vld [vmem:[#allocation3 + $0x4] sm:$0xff]
        %v4492 = vld [vmem:[#allocation3 + $0xc] sm:$0xff]
        %v4493 = vld [vmem:[#allocation3 + $0x14] sm:$0xff]
        %v4494 = vld [vmem:[#allocation3 + $0x1c] sm:$0xff]
        %v4495 = vld [vmem:[#allocation3 + $0x24] sm:$0xff]
        %v4496 = vld [vmem:[#allocation3 + $0x2c] sm:$0xff]
        %v4497 = vld [vmem:[#allocation3 + $0x34] sm:$0xff]
        %v4498 = vld [vmem:[#allocation3 + $0x3c] sm:$0xff]
        %v4499 = vld [vmem:[#allocation3 + $0x44] sm:$0xff]
        %v4500 = vld [vmem:[#allocation3 + $0x4c] sm:$0x1]
        %v4501 = vpack.c.bf16 %v4492, %v4491
        %v4502 = vpack.c.bf16 %v4494, %v4493
        %v4503 = vpack.c.bf16 %v4496, %v4495
        %v4504 = vpack.c.bf16 %v4498, %v4497
        %v4505 = vpack.c.bf16 %v4500, %v4499
        %s4506 = scalar_lea.vmem %s3, 32
        %v4507 = vld [vmem:[%s4506] sm:$0xf]
        %v4508 = vld [vmem:[%s4506 + $0x4] sm:$0xf]
        %v4511 = vunpack.c.l.b16 %v4507
        %v4512 = vunpack.c.l.b16 %v4508
        %v4513 = vpack.c.b16 %v4512, %v4511
        %v4516 = vsel %vm3521, %v4501, 0
        %v4519 = vsel %vm3521, %v4502, 0
        %v4522 = vsel %vm3521, %v4503, 0
        %v4525 = vsel %vm3521, %v4504, 0
        %v4528 = vsel %vm3521, %v4505, 0
        %4530 = vmatpush.bf16.msra.mxu0 0
        %4531 = vmatpush.bf16.msra.mxu0 0
        %4532 = vmatpush.bf16.msra.mxu0 0
        %4533 = vmatpush.bf16.msra.mxu0 0
        %4534 = vmatpush.bf16.msra.mxu0 0
        %4535 = vmatpush.bf16.msra.mxu0 0
        %4536 = vmatpush.bf16.msra.mxu0 0
        %4537 = vmatpush.bf16.msra.mxu0 %v4513
        %4538 = vmatmul.bf16.gmra.mxu0 %v4516
        %v4539 = vpop.f32.mrf.mxu0
        %v4540 = vadd.f32 0.0, %v4539
        %v4541 = vpop.f32.mrf.mxu0
        %v4542 = vadd.f32 0.0, %v4541
        %4543 = vmatmul.bf16.gmra.mxu0 %v4519
        %v4544 = vpop.f32.mrf.mxu0
        %v4545 = vadd.f32 0.0, %v4544
        %v4546 = vpop.f32.mrf.mxu0
        %v4547 = vadd.f32 0.0, %v4546
        %4548 = vmatmul.bf16.gmra.mxu0 %v4522
        %v4549 = vpop.f32.mrf.mxu0
        %v4550 = vadd.f32 0.0, %v4549
        %v4551 = vpop.f32.mrf.mxu0
        %v4552 = vadd.f32 0.0, %v4551
        %4553 = vmatmul.bf16.gmra.mxu0 %v4525
        %v4554 = vpop.f32.mrf.mxu0
        %v4555 = vadd.f32 0.0, %v4554
        %v4556 = vpop.f32.mrf.mxu0
        %v4557 = vadd.f32 0.0, %v4556
        %4558 = vmatmul.bf16.gmra.mxu0 %v4528
        %v4559 = vpop.f32.mrf.mxu0
        %v4560 = vadd.f32 0.0, %v4559
        %v4561 = vpop.f32.mrf.mxu0
        %v4562 = vadd.f32 0.0, %v4561
        %4563 = vdwg.mxu0
        %v4564 = vadd.f32 %v4481, %v4540
        %v4565 = vadd.f32 %v4482, %v4542
        %v4566 = vadd.f32 %v4483, %v4545
        %v4567 = vadd.f32 %v4484, %v4547
        %v4568 = vadd.f32 %v4485, %v4550
        %v4569 = vadd.f32 %v4486, %v4552
        %v4570 = vadd.f32 %v4487, %v4555
        %v4571 = vadd.f32 %v4488, %v4557
        %v4572 = vadd.f32 %v4489, %v4560
        %v4573 = vadd.f32 %v4490, %v4562
        %v4574 = vld [vmem:[#allocation3 + $0xb] sm:$0xff]
        %v4575 = vld [vmem:[#allocation3 + $0x13] sm:$0xff]
        %v4576 = vld [vmem:[#allocation3 + $0x1b] sm:$0xff]
        %v4577 = vld [vmem:[#allocation3 + $0x23] sm:$0xff]
        %v4578 = vld [vmem:[#allocation3 + $0x2b] sm:$0xff]
        %v4579 = vld [vmem:[#allocation3 + $0x33] sm:$0xff]
        %v4580 = vld [vmem:[#allocation3 + $0x3b] sm:$0xff]
        %v4581 = vld [vmem:[#allocation3 + $0x43] sm:$0xff]
        %v4582 = vld [vmem:[#allocation3 + $0x4b] sm:$0xff]
        %v4583 = vld [vmem:[#allocation3 + $0x53] sm:$0x1]
        %v4584 = vpack.c.bf16 %v4575, %v4574
        %v4585 = vpack.c.bf16 %v4577, %v4576
        %v4586 = vpack.c.bf16 %v4579, %v4578
        %v4587 = vpack.c.bf16 %v4581, %v4580
        %v4588 = vpack.c.bf16 %v4583, %v4582
        %s4589 = scalar_lea.vmem %s3, 40
        %v4590 = vld [vmem:[%s4589] sm:$0xf]
        %v4591 = vld [vmem:[%s4589 + $0x4] sm:$0xf]
        %v4594 = vunpack.c.l.b16 %v4590
        %v4595 = vunpack.c.l.b16 %v4591
        %v4596 = vpack.c.b16 %v4595, %v4594
        %v4599 = vsel %vm3521, %v4584, 0
        %v4602 = vsel %vm3521, %v4585, 0
        %v4605 = vsel %vm3521, %v4586, 0
        %v4608 = vsel %vm3521, %v4587, 0
        %v4611 = vsel %vm3521, %v4588, 0
        %4613 = vmatpush.bf16.msra.mxu0 0
        %4614 = vmatpush.bf16.msra.mxu0 0
        %4615 = vmatpush.bf16.msra.mxu0 0
        %4616 = vmatpush.bf16.msra.mxu0 0
        %4617 = vmatpush.bf16.msra.mxu0 0
        %4618 = vmatpush.bf16.msra.mxu0 0
        %4619 = vmatpush.bf16.msra.mxu0 0
        %4620 = vmatpush.bf16.msra.mxu0 %v4596
        %4621 = vmatmul.bf16.gmra.mxu0 %v4599
        %v4622 = vpop.f32.mrf.mxu0
        %v4623 = vadd.f32 0.0, %v4622
        %v4624 = vpop.f32.mrf.mxu0
        %v4625 = vadd.f32 0.0, %v4624
        %4626 = vmatmul.bf16.gmra.mxu0 %v4602
        %v4627 = vpop.f32.mrf.mxu0
        %v4628 = vadd.f32 0.0, %v4627
        %v4629 = vpop.f32.mrf.mxu0
        %v4630 = vadd.f32 0.0, %v4629
        %4631 = vmatmul.bf16.gmra.mxu0 %v4605
        %v4632 = vpop.f32.mrf.mxu0
        %v4633 = vadd.f32 0.0, %v4632
        %v4634 = vpop.f32.mrf.mxu0
        %v4635 = vadd.f32 0.0, %v4634
        %4636 = vmatmul.bf16.gmra.mxu0 %v4608
        %v4637 = vpop.f32.mrf.mxu0
        %v4638 = vadd.f32 0.0, %v4637
        %v4639 = vpop.f32.mrf.mxu0
        %v4640 = vadd.f32 0.0, %v4639
        %4641 = vmatmul.bf16.gmra.mxu0 %v4611
        %v4642 = vpop.f32.mrf.mxu0
        %v4643 = vadd.f32 0.0, %v4642
        %v4644 = vpop.f32.mrf.mxu0
        %v4645 = vadd.f32 0.0, %v4644
        %4646 = vdwg.mxu0
        %v4647 = vadd.f32 %v4564, %v4623
        %v4648 = vadd.f32 %v4565, %v4625
        %v4649 = vadd.f32 %v4566, %v4628
        %v4650 = vadd.f32 %v4567, %v4630
        %v4651 = vadd.f32 %v4568, %v4633
        %v4652 = vadd.f32 %v4569, %v4635
        %v4653 = vadd.f32 %v4570, %v4638
        %v4654 = vadd.f32 %v4571, %v4640
        %v4655 = vadd.f32 %v4572, %v4643
        %v4656 = vadd.f32 %v4573, %v4645
        %v4657 = vld [vmem:[#allocation3 + $0xc] sm:$0xff]
        %v4658 = vld [vmem:[#allocation3 + $0x14] sm:$0xff]
        %v4659 = vld [vmem:[#allocation3 + $0x1c] sm:$0xff]
        %v4660 = vld [vmem:[#allocation3 + $0x24] sm:$0xff]
        %v4661 = vld [vmem:[#allocation3 + $0x2c] sm:$0xff]
        %v4662 = vld [vmem:[#allocation3 + $0x34] sm:$0xff]
        %v4663 = vld [vmem:[#allocation3 + $0x3c] sm:$0xff]
        %v4664 = vld [vmem:[#allocation3 + $0x44] sm:$0xff]
        %v4665 = vld [vmem:[#allocation3 + $0x4c] sm:$0xff]
        %v4666 = vld [vmem:[#allocation3 + $0x54] sm:$0x1]
        %v4667 = vpack.c.bf16 %v4658, %v4657
        %v4668 = vpack.c.bf16 %v4660, %v4659
        %v4669 = vpack.c.bf16 %v4662, %v4661
        %v4670 = vpack.c.bf16 %v4664, %v4663
        %v4671 = vpack.c.bf16 %v4666, %v4665
        %s4672 = scalar_lea.vmem %s3, 48
        %v4673 = vld [vmem:[%s4672] sm:$0xf]
        %v4674 = vld [vmem:[%s4672 + $0x4] sm:$0xf]
        %v4677 = vunpack.c.l.b16 %v4673
        %v4678 = vunpack.c.l.b16 %v4674
        %v4679 = vpack.c.b16 %v4678, %v4677
        %v4682 = vsel %vm3521, %v4667, 0
        %v4685 = vsel %vm3521, %v4668, 0
        %v4688 = vsel %vm3521, %v4669, 0
        %v4691 = vsel %vm3521, %v4670, 0
        %v4694 = vsel %vm3521, %v4671, 0
        %4696 = vmatpush.bf16.msra.mxu0 0
        %4697 = vmatpush.bf16.msra.mxu0 0
        %4698 = vmatpush.bf16.msra.mxu0 0
        %4699 = vmatpush.bf16.msra.mxu0 0
        %4700 = vmatpush.bf16.msra.mxu0 0
        %4701 = vmatpush.bf16.msra.mxu0 0
        %4702 = vmatpush.bf16.msra.mxu0 0
        %4703 = vmatpush.bf16.msra.mxu0 %v4679
        %4704 = vmatmul.bf16.gmra.mxu0 %v4682
        %v4705 = vpop.f32.mrf.mxu0
        %v4706 = vadd.f32 0.0, %v4705
        %v4707 = vpop.f32.mrf.mxu0
        %v4708 = vadd.f32 0.0, %v4707
        %4709 = vmatmul.bf16.gmra.mxu0 %v4685
        %v4710 = vpop.f32.mrf.mxu0
        %v4711 = vadd.f32 0.0, %v4710
        %v4712 = vpop.f32.mrf.mxu0
        %v4713 = vadd.f32 0.0, %v4712
        %4714 = vmatmul.bf16.gmra.mxu0 %v4688
        %v4715 = vpop.f32.mrf.mxu0
        %v4716 = vadd.f32 0.0, %v4715
        %v4717 = vpop.f32.mrf.mxu0
        %v4718 = vadd.f32 0.0, %v4717
        %4719 = vmatmul.bf16.gmra.mxu0 %v4691
        %v4720 = vpop.f32.mrf.mxu0
        %v4721 = vadd.f32 0.0, %v4720
        %v4722 = vpop.f32.mrf.mxu0
        %v4723 = vadd.f32 0.0, %v4722
        %4724 = vmatmul.bf16.gmra.mxu0 %v4694
        %v4725 = vpop.f32.mrf.mxu0
        %v4726 = vadd.f32 0.0, %v4725
        %v4727 = vpop.f32.mrf.mxu0
        %v4728 = vadd.f32 0.0, %v4727
        %4729 = vdwg.mxu0
        %v4730 = vadd.f32 %v4647, %v4706
        %v4731 = vadd.f32 %v4648, %v4708
        %v4732 = vadd.f32 %v4649, %v4711
        %v4733 = vadd.f32 %v4650, %v4713
        %v4734 = vadd.f32 %v4651, %v4716
        %v4735 = vadd.f32 %v4652, %v4718
        %v4736 = vadd.f32 %v4653, %v4721
        %v4737 = vadd.f32 %v4654, %v4723
        %v4738 = vadd.f32 %v4655, %v4726
        %v4739 = vadd.f32 %v4656, %v4728
        %v4740 = vld [vmem:[#allocation3 + $0xd] sm:$0xff]
        %v4741 = vld [vmem:[#allocation3 + $0x15] sm:$0xff]
        %v4742 = vld [vmem:[#allocation3 + $0x1d] sm:$0xff]
        %v4743 = vld [vmem:[#allocation3 + $0x25] sm:$0xff]
        %v4744 = vld [vmem:[#allocation3 + $0x2d] sm:$0xff]
        %v4745 = vld [vmem:[#allocation3 + $0x35] sm:$0xff]
        %v4746 = vld [vmem:[#allocation3 + $0x3d] sm:$0xff]
        %v4747 = vld [vmem:[#allocation3 + $0x45] sm:$0xff]
        %v4748 = vld [vmem:[#allocation3 + $0x4d] sm:$0xff]
        %v4749 = vld [vmem:[#allocation3 + $0x55] sm:$0x1]
        %v4750 = vpack.c.bf16 %v4741, %v4740
        %v4751 = vpack.c.bf16 %v4743, %v4742
        %v4752 = vpack.c.bf16 %v4745, %v4744
        %v4753 = vpack.c.bf16 %v4747, %v4746
        %v4754 = vpack.c.bf16 %v4749, %v4748
        %s4755 = scalar_lea.vmem %s3, 56
        %v4756 = vld [vmem:[%s4755] sm:$0xf]
        %v4757 = vld [vmem:[%s4755 + $0x4] sm:$0xf]
        %v4760 = vunpack.c.l.b16 %v4756
        %v4761 = vunpack.c.l.b16 %v4757
        %v4762 = vpack.c.b16 %v4761, %v4760
        %v4765 = vsel %vm3521, %v4750, 0
        %v4768 = vsel %vm3521, %v4751, 0
        %v4771 = vsel %vm3521, %v4752, 0
        %v4774 = vsel %vm3521, %v4753, 0
        %v4777 = vsel %vm3521, %v4754, 0
        %4779 = vmatpush.bf16.msra.mxu0 0
        %4780 = vmatpush.bf16.msra.mxu0 0
        %4781 = vmatpush.bf16.msra.mxu0 0
        %4782 = vmatpush.bf16.msra.mxu0 0
        %4783 = vmatpush.bf16.msra.mxu0 0
        %4784 = vmatpush.bf16.msra.mxu0 0
        %4785 = vmatpush.bf16.msra.mxu0 0
        %4786 = vmatpush.bf16.msra.mxu0 %v4762
        %4787 = vmatmul.bf16.gmra.mxu0 %v4765
        %v4788 = vpop.f32.mrf.mxu0
        %v4789 = vadd.f32 0.0, %v4788
        %v4790 = vpop.f32.mrf.mxu0
        %v4791 = vadd.f32 0.0, %v4790
        %4792 = vmatmul.bf16.gmra.mxu0 %v4768
        %v4793 = vpop.f32.mrf.mxu0
        %v4794 = vadd.f32 0.0, %v4793
        %v4795 = vpop.f32.mrf.mxu0
        %v4796 = vadd.f32 0.0, %v4795
        %4797 = vmatmul.bf16.gmra.mxu0 %v4771
        %v4798 = vpop.f32.mrf.mxu0
        %v4799 = vadd.f32 0.0, %v4798
        %v4800 = vpop.f32.mrf.mxu0
        %v4801 = vadd.f32 0.0, %v4800
        %4802 = vmatmul.bf16.gmra.mxu0 %v4774
        %v4803 = vpop.f32.mrf.mxu0
        %v4804 = vadd.f32 0.0, %v4803
        %v4805 = vpop.f32.mrf.mxu0
        %v4806 = vadd.f32 0.0, %v4805
        %4807 = vmatmul.bf16.gmra.mxu0 %v4777
        %v4808 = vpop.f32.mrf.mxu0
        %v4809 = vadd.f32 0.0, %v4808
        %v4810 = vpop.f32.mrf.mxu0
        %v4811 = vadd.f32 0.0, %v4810
        %4812 = vdwg.mxu0
        %v4813 = vadd.f32 %v4730, %v4789
        %v4814 = vadd.f32 %v4731, %v4791
        %v4815 = vadd.f32 %v4732, %v4794
        %v4816 = vadd.f32 %v4733, %v4796
        %v4817 = vadd.f32 %v4734, %v4799
        %v4818 = vadd.f32 %v4735, %v4801
        %v4819 = vadd.f32 %v4736, %v4804
        %v4820 = vadd.f32 %v4737, %v4806
        %v4821 = vadd.f32 %v4738, %v4809
        %v4822 = vadd.f32 %v4739, %v4811
        %v4823 = vld [vmem:[#allocation3 + $0xe] sm:$0xff]
        %v4824 = vld [vmem:[#allocation3 + $0x16] sm:$0xff]
        %v4825 = vld [vmem:[#allocation3 + $0x1e] sm:$0xff]
        %v4826 = vld [vmem:[#allocation3 + $0x26] sm:$0xff]
        %v4827 = vld [vmem:[#allocation3 + $0x2e] sm:$0xff]
        %v4828 = vld [vmem:[#allocation3 + $0x36] sm:$0xff]
        %v4829 = vld [vmem:[#allocation3 + $0x3e] sm:$0xff]
        %v4830 = vld [vmem:[#allocation3 + $0x46] sm:$0xff]
        %v4831 = vld [vmem:[#allocation3 + $0x4e] sm:$0xff]
        %v4832 = vld [vmem:[#allocation3 + $0x56] sm:$0x1]
        %v4833 = vpack.c.bf16 %v4824, %v4823
        %v4834 = vpack.c.bf16 %v4826, %v4825
        %v4835 = vpack.c.bf16 %v4828, %v4827
        %v4836 = vpack.c.bf16 %v4830, %v4829
        %v4837 = vpack.c.bf16 %v4832, %v4831
        %s4838 = scalar_lea.vmem %s3, 64
        %v4839 = vld [vmem:[%s4838] sm:$0xf]
        %v4840 = vld [vmem:[%s4838 + $0x4] sm:$0xf]
        %v4843 = vunpack.c.l.b16 %v4839
        %v4844 = vunpack.c.l.b16 %v4840
        %v4845 = vpack.c.b16 %v4844, %v4843
        %v4848 = vsel %vm3521, %v4833, 0
        %v4851 = vsel %vm3521, %v4834, 0
        %v4854 = vsel %vm3521, %v4835, 0
        %v4857 = vsel %vm3521, %v4836, 0
        %v4860 = vsel %vm3521, %v4837, 0
        %4862 = vmatpush.bf16.msra.mxu0 0
        %4863 = vmatpush.bf16.msra.mxu0 0
        %4864 = vmatpush.bf16.msra.mxu0 0
        %4865 = vmatpush.bf16.msra.mxu0 0
        %4866 = vmatpush.bf16.msra.mxu0 0
        %4867 = vmatpush.bf16.msra.mxu0 0
        %4868 = vmatpush.bf16.msra.mxu0 0
        %4869 = vmatpush.bf16.msra.mxu0 %v4845
        %4870 = vmatmul.bf16.gmra.mxu0 %v4848
        %v4871 = vpop.f32.mrf.mxu0
        %v4872 = vadd.f32 0.0, %v4871
        %v4873 = vpop.f32.mrf.mxu0
        %v4874 = vadd.f32 0.0, %v4873
        %4875 = vmatmul.bf16.gmra.mxu0 %v4851
        %v4876 = vpop.f32.mrf.mxu0
        %v4877 = vadd.f32 0.0, %v4876
        %v4878 = vpop.f32.mrf.mxu0
        %v4879 = vadd.f32 0.0, %v4878
        %4880 = vmatmul.bf16.gmra.mxu0 %v4854
        %v4881 = vpop.f32.mrf.mxu0
        %v4882 = vadd.f32 0.0, %v4881
        %v4883 = vpop.f32.mrf.mxu0
        %v4884 = vadd.f32 0.0, %v4883
        %4885 = vmatmul.bf16.gmra.mxu0 %v4857
        %v4886 = vpop.f32.mrf.mxu0
        %v4887 = vadd.f32 0.0, %v4886
        %v4888 = vpop.f32.mrf.mxu0
        %v4889 = vadd.f32 0.0, %v4888
        %4890 = vmatmul.bf16.gmra.mxu0 %v4860
        %v4891 = vpop.f32.mrf.mxu0
        %v4892 = vadd.f32 0.0, %v4891
        %v4893 = vpop.f32.mrf.mxu0
        %v4894 = vadd.f32 0.0, %v4893
        %4895 = vdwg.mxu0
        %v4896 = vadd.f32 %v4813, %v4872
        %v4897 = vadd.f32 %v4814, %v4874
        %v4898 = vadd.f32 %v4815, %v4877
        %v4899 = vadd.f32 %v4816, %v4879
        %v4900 = vadd.f32 %v4817, %v4882
        %v4901 = vadd.f32 %v4818, %v4884
        %v4902 = vadd.f32 %v4819, %v4887
        %v4903 = vadd.f32 %v4820, %v4889
        %v4904 = vadd.f32 %v4821, %v4892
        %v4905 = vadd.f32 %v4822, %v4894
        %v4906 = vld [vmem:[#allocation3 + $0xf] sm:$0xff]
        %v4907 = vld [vmem:[#allocation3 + $0x17] sm:$0xff]
        %v4908 = vld [vmem:[#allocation3 + $0x1f] sm:$0xff]
        %v4909 = vld [vmem:[#allocation3 + $0x27] sm:$0xff]
        %v4910 = vld [vmem:[#allocation3 + $0x2f] sm:$0xff]
        %v4911 = vld [vmem:[#allocation3 + $0x37] sm:$0xff]
        %v4912 = vld [vmem:[#allocation3 + $0x3f] sm:$0xff]
        %v4913 = vld [vmem:[#allocation3 + $0x47] sm:$0xff]
        %v4914 = vld [vmem:[#allocation3 + $0x4f] sm:$0xff]
        %v4915 = vld [vmem:[#allocation3 + $0x57] sm:$0x1]
        %v4916 = vpack.c.bf16 %v4907, %v4906
        %v4917 = vpack.c.bf16 %v4909, %v4908
        %v4918 = vpack.c.bf16 %v4911, %v4910
        %v4919 = vpack.c.bf16 %v4913, %v4912
        %v4920 = vpack.c.bf16 %v4915, %v4914
        %s4921 = scalar_lea.vmem %s3, 72
        %v4922 = vld [vmem:[%s4921] sm:$0xf]
        %v4923 = vld [vmem:[%s4921 + $0x4] sm:$0xf]
        %v4926 = vunpack.c.l.b16 %v4922
        %v4927 = vunpack.c.l.b16 %v4923
        %v4928 = vpack.c.b16 %v4927, %v4926
        %v4931 = vsel %vm3521, %v4916, 0
        %v4934 = vsel %vm3521, %v4917, 0
        %v4937 = vsel %vm3521, %v4918, 0
        %v4940 = vsel %vm3521, %v4919, 0
        %v4943 = vsel %vm3521, %v4920, 0
        %4945 = vmatpush.bf16.msra.mxu0 0
        %4946 = vmatpush.bf16.msra.mxu0 0
        %4947 = vmatpush.bf16.msra.mxu0 0
        %4948 = vmatpush.bf16.msra.mxu0 0
        %4949 = vmatpush.bf16.msra.mxu0 0
        %4950 = vmatpush.bf16.msra.mxu0 0
        %4951 = vmatpush.bf16.msra.mxu0 0
        %4952 = vmatpush.bf16.msra.mxu0 %v4928
        %4953 = vmatmul.bf16.gmra.mxu0 %v4931
        %v4954 = vpop.f32.mrf.mxu0
        %v4955 = vadd.f32 0.0, %v4954
        %v4956 = vpop.f32.mrf.mxu0
        %v4957 = vadd.f32 0.0, %v4956
        %4958 = vmatmul.bf16.gmra.mxu0 %v4934
        %v4959 = vpop.f32.mrf.mxu0
        %v4960 = vadd.f32 0.0, %v4959
        %v4961 = vpop.f32.mrf.mxu0
        %v4962 = vadd.f32 0.0, %v4961
        %4963 = vmatmul.bf16.gmra.mxu0 %v4937
        %v4964 = vpop.f32.mrf.mxu0
        %v4965 = vadd.f32 0.0, %v4964
        %v4966 = vpop.f32.mrf.mxu0
        %v4967 = vadd.f32 0.0, %v4966
        %4968 = vmatmul.bf16.gmra.mxu0 %v4940
        %v4969 = vpop.f32.mrf.mxu0
        %v4970 = vadd.f32 0.0, %v4969
        %v4971 = vpop.f32.mrf.mxu0
        %v4972 = vadd.f32 0.0, %v4971
        %4973 = vmatmul.bf16.gmra.mxu0 %v4943
        %v4974 = vpop.f32.mrf.mxu0
        %v4975 = vadd.f32 0.0, %v4974
        %v4976 = vpop.f32.mrf.mxu0
        %v4977 = vadd.f32 0.0, %v4976
        %4978 = vdwg.mxu0
        %v4979 = vadd.f32 %v4896, %v4955
        %v4980 = vadd.f32 %v4897, %v4957
        %v4981 = vadd.f32 %v4898, %v4960
        %v4982 = vadd.f32 %v4899, %v4962
        %v4983 = vadd.f32 %v4900, %v4965
        %v4984 = vadd.f32 %v4901, %v4967
        %v4985 = vadd.f32 %v4902, %v4970
        %v4986 = vadd.f32 %v4903, %v4972
        %v4987 = vadd.f32 %v4904, %v4975
        %v4988 = vadd.f32 %v4905, %v4977
        %v4989 = vld [vmem:[#allocation3 + $0x16] sm:$0xff]
        %v4990 = vld [vmem:[#allocation3 + $0x1e] sm:$0xff]
        %v4991 = vld [vmem:[#allocation3 + $0x26] sm:$0xff]
        %v4992 = vld [vmem:[#allocation3 + $0x2e] sm:$0xff]
        %v4993 = vld [vmem:[#allocation3 + $0x36] sm:$0xff]
        %v4994 = vld [vmem:[#allocation3 + $0x3e] sm:$0xff]
        %v4995 = vld [vmem:[#allocation3 + $0x46] sm:$0xff]
        %v4996 = vld [vmem:[#allocation3 + $0x4e] sm:$0xff]
        %v4997 = vld [vmem:[#allocation3 + $0x56] sm:$0xff]
        %v4998 = vld [vmem:[#allocation3 + $0x5e] sm:$0x1]
        %v4999 = vpack.c.bf16 %v4990, %v4989
        %v5000 = vpack.c.bf16 %v4992, %v4991
        %v5001 = vpack.c.bf16 %v4994, %v4993
        %v5002 = vpack.c.bf16 %v4996, %v4995
        %v5003 = vpack.c.bf16 %v4998, %v4997
        %s5004 = scalar_lea.vmem %s3, 80
        %v5005 = vld [vmem:[%s5004] sm:$0xf]
        %v5006 = vld [vmem:[%s5004 + $0x4] sm:$0xf]
        %v5009 = vunpack.c.l.b16 %v5005
        %v5010 = vunpack.c.l.b16 %v5006
        %v5011 = vpack.c.b16 %v5010, %v5009
        %v5014 = vsel %vm3521, %v4999, 0
        %v5017 = vsel %vm3521, %v5000, 0
        %v5020 = vsel %vm3521, %v5001, 0
        %v5023 = vsel %vm3521, %v5002, 0
        %v5026 = vsel %vm3521, %v5003, 0
        %5028 = vmatpush.bf16.msra.mxu0 0
        %5029 = vmatpush.bf16.msra.mxu0 0
        %5030 = vmatpush.bf16.msra.mxu0 0
        %5031 = vmatpush.bf16.msra.mxu0 0
        %5032 = vmatpush.bf16.msra.mxu0 0
        %5033 = vmatpush.bf16.msra.mxu0 0
        %5034 = vmatpush.bf16.msra.mxu0 0
        %5035 = vmatpush.bf16.msra.mxu0 %v5011
        %5036 = vmatmul.bf16.gmra.mxu0 %v5014
        %v5037 = vpop.f32.mrf.mxu0
        %v5038 = vadd.f32 0.0, %v5037
        %v5039 = vpop.f32.mrf.mxu0
        %v5040 = vadd.f32 0.0, %v5039
        %5041 = vmatmul.bf16.gmra.mxu0 %v5017
        %v5042 = vpop.f32.mrf.mxu0
        %v5043 = vadd.f32 0.0, %v5042
        %v5044 = vpop.f32.mrf.mxu0
        %v5045 = vadd.f32 0.0, %v5044
        %5046 = vmatmul.bf16.gmra.mxu0 %v5020
        %v5047 = vpop.f32.mrf.mxu0
        %v5048 = vadd.f32 0.0, %v5047
        %v5049 = vpop.f32.mrf.mxu0
        %v5050 = vadd.f32 0.0, %v5049
        %5051 = vmatmul.bf16.gmra.mxu0 %v5023
        %v5052 = vpop.f32.mrf.mxu0
        %v5053 = vadd.f32 0.0, %v5052
        %v5054 = vpop.f32.mrf.mxu0
        %v5055 = vadd.f32 0.0, %v5054
        %5056 = vmatmul.bf16.gmra.mxu0 %v5026
        %v5057 = vpop.f32.mrf.mxu0
        %v5058 = vadd.f32 0.0, %v5057
        %v5059 = vpop.f32.mrf.mxu0
        %v5060 = vadd.f32 0.0, %v5059
        %5061 = vdwg.mxu0
        %v5062 = vadd.f32 %v4979, %v5038
        %v5063 = vadd.f32 %v4980, %v5040
        %v5064 = vadd.f32 %v4981, %v5043
        %v5065 = vadd.f32 %v4982, %v5045
        %v5066 = vadd.f32 %v4983, %v5048
        %v5067 = vadd.f32 %v4984, %v5050
        %v5068 = vadd.f32 %v4985, %v5053
        %v5069 = vadd.f32 %v4986, %v5055
        %v5070 = vadd.f32 %v4987, %v5058
        %v5071 = vadd.f32 %v4988, %v5060
        %v5072 = vld [vmem:[#allocation3 + $0x17] sm:$0xff]
        %v5073 = vld [vmem:[#allocation3 + $0x1f] sm:$0xff]
        %v5074 = vld [vmem:[#allocation3 + $0x27] sm:$0xff]
        %v5075 = vld [vmem:[#allocation3 + $0x2f] sm:$0xff]
        %v5076 = vld [vmem:[#allocation3 + $0x37] sm:$0xff]
        %v5077 = vld [vmem:[#allocation3 + $0x3f] sm:$0xff]
        %v5078 = vld [vmem:[#allocation3 + $0x47] sm:$0xff]
        %v5079 = vld [vmem:[#allocation3 + $0x4f] sm:$0xff]
        %v5080 = vld [vmem:[#allocation3 + $0x57] sm:$0xff]
        %v5081 = vld [vmem:[#allocation3 + $0x5f] sm:$0x1]
        %v5082 = vpack.c.bf16 %v5073, %v5072
        %v5083 = vpack.c.bf16 %v5075, %v5074
        %v5084 = vpack.c.bf16 %v5077, %v5076
        %v5085 = vpack.c.bf16 %v5079, %v5078
        %v5086 = vpack.c.bf16 %v5081, %v5080
        %s5087 = scalar_lea.vmem %s3, 88
        %v5088 = vld [vmem:[%s5087] sm:$0xf]
        %v5089 = vld [vmem:[%s5087 + $0x4] sm:$0xf]
        %v5092 = vunpack.c.l.b16 %v5088
        %v5093 = vunpack.c.l.b16 %v5089
        %v5094 = vpack.c.b16 %v5093, %v5092
        %v5097 = vsel %vm3521, %v5082, 0
        %v5100 = vsel %vm3521, %v5083, 0
        %v5103 = vsel %vm3521, %v5084, 0
        %v5106 = vsel %vm3521, %v5085, 0
        %v5109 = vsel %vm3521, %v5086, 0
        %5111 = vmatpush.bf16.msra.mxu0 0
        %5112 = vmatpush.bf16.msra.mxu0 0
        %5113 = vmatpush.bf16.msra.mxu0 0
        %5114 = vmatpush.bf16.msra.mxu0 0
        %5115 = vmatpush.bf16.msra.mxu0 0
        %5116 = vmatpush.bf16.msra.mxu0 0
        %5117 = vmatpush.bf16.msra.mxu0 0
        %5118 = vmatpush.bf16.msra.mxu0 %v5094
        %5119 = vmatmul.bf16.gmra.mxu0 %v5097
        %v5120 = vpop.f32.mrf.mxu0
        %v5121 = vadd.f32 0.0, %v5120
        %v5122 = vpop.f32.mrf.mxu0
        %v5123 = vadd.f32 0.0, %v5122
        %5124 = vmatmul.bf16.gmra.mxu0 %v5100
        %v5125 = vpop.f32.mrf.mxu0
        %v5126 = vadd.f32 0.0, %v5125
        %v5127 = vpop.f32.mrf.mxu0
        %v5128 = vadd.f32 0.0, %v5127
        %5129 = vmatmul.bf16.gmra.mxu0 %v5103
        %v5130 = vpop.f32.mrf.mxu0
        %v5131 = vadd.f32 0.0, %v5130
        %v5132 = vpop.f32.mrf.mxu0
        %v5133 = vadd.f32 0.0, %v5132
        %5134 = vmatmul.bf16.gmra.mxu0 %v5106
        %v5135 = vpop.f32.mrf.mxu0
        %v5136 = vadd.f32 0.0, %v5135
        %v5137 = vpop.f32.mrf.mxu0
        %v5138 = vadd.f32 0.0, %v5137
        %5139 = vmatmul.bf16.gmra.mxu0 %v5109
        %v5140 = vpop.f32.mrf.mxu0
        %v5141 = vadd.f32 0.0, %v5140
        %v5142 = vpop.f32.mrf.mxu0
        %v5143 = vadd.f32 0.0, %v5142
        %5144 = vdwg.mxu0
        %v5145 = vadd.f32 %v5062, %v5121
        %v5146 = vadd.f32 %v5063, %v5123
        %v5147 = vadd.f32 %v5064, %v5126
        %v5148 = vadd.f32 %v5065, %v5128
        %v5149 = vadd.f32 %v5066, %v5131
        %v5150 = vadd.f32 %v5067, %v5133
        %v5151 = vadd.f32 %v5068, %v5136
        %v5152 = vadd.f32 %v5069, %v5138
        %v5153 = vadd.f32 %v5070, %v5141
        %v5154 = vadd.f32 %v5071, %v5143
        %v5155 = vld [vmem:[#allocation3 + $0x18] sm:$0xff]
        %v5156 = vld [vmem:[#allocation3 + $0x20] sm:$0xff]
        %v5157 = vld [vmem:[#allocation3 + $0x28] sm:$0xff]
        %v5158 = vld [vmem:[#allocation3 + $0x30] sm:$0xff]
        %v5159 = vld [vmem:[#allocation3 + $0x38] sm:$0xff]
        %v5160 = vld [vmem:[#allocation3 + $0x40] sm:$0xff]
        %v5161 = vld [vmem:[#allocation3 + $0x48] sm:$0xff]
        %v5162 = vld [vmem:[#allocation3 + $0x50] sm:$0xff]
        %v5163 = vld [vmem:[#allocation3 + $0x58] sm:$0xff]
        %v5164 = vld [vmem:[#allocation3 + $0x60] sm:$0x1]
        %v5165 = vpack.c.bf16 %v5156, %v5155
        %v5166 = vpack.c.bf16 %v5158, %v5157
        %v5167 = vpack.c.bf16 %v5160, %v5159
        %v5168 = vpack.c.bf16 %v5162, %v5161
        %v5169 = vpack.c.bf16 %v5164, %v5163
        %s5170 = scalar_lea.vmem %s3, 96
        %v5171 = vld [vmem:[%s5170] sm:$0xf]
        %v5172 = vld [vmem:[%s5170 + $0x4] sm:$0xf]
        %v5175 = vunpack.c.l.b16 %v5171
        %v5176 = vunpack.c.l.b16 %v5172
        %v5177 = vpack.c.b16 %v5176, %v5175
        %v5180 = vsel %vm3521, %v5165, 0
        %v5183 = vsel %vm3521, %v5166, 0
        %v5186 = vsel %vm3521, %v5167, 0
        %v5189 = vsel %vm3521, %v5168, 0
        %v5192 = vsel %vm3521, %v5169, 0
        %5194 = vmatpush.bf16.msra.mxu0 0
        %5195 = vmatpush.bf16.msra.mxu0 0
        %5196 = vmatpush.bf16.msra.mxu0 0
        %5197 = vmatpush.bf16.msra.mxu0 0
        %5198 = vmatpush.bf16.msra.mxu0 0
        %5199 = vmatpush.bf16.msra.mxu0 0
        %5200 = vmatpush.bf16.msra.mxu0 0
        %5201 = vmatpush.bf16.msra.mxu0 %v5177
        %5202 = vmatmul.bf16.gmra.mxu0 %v5180
        %v5203 = vpop.f32.mrf.mxu0
        %v5204 = vadd.f32 0.0, %v5203
        %v5205 = vpop.f32.mrf.mxu0
        %v5206 = vadd.f32 0.0, %v5205
        %5207 = vmatmul.bf16.gmra.mxu0 %v5183
        %v5208 = vpop.f32.mrf.mxu0
        %v5209 = vadd.f32 0.0, %v5208
        %v5210 = vpop.f32.mrf.mxu0
        %v5211 = vadd.f32 0.0, %v5210
        %5212 = vmatmul.bf16.gmra.mxu0 %v5186
        %v5213 = vpop.f32.mrf.mxu0
        %v5214 = vadd.f32 0.0, %v5213
        %v5215 = vpop.f32.mrf.mxu0
        %v5216 = vadd.f32 0.0, %v5215
        %5217 = vmatmul.bf16.gmra.mxu0 %v5189
        %v5218 = vpop.f32.mrf.mxu0
        %v5219 = vadd.f32 0.0, %v5218
        %v5220 = vpop.f32.mrf.mxu0
        %v5221 = vadd.f32 0.0, %v5220
        %5222 = vmatmul.bf16.gmra.mxu0 %v5192
        %v5223 = vpop.f32.mrf.mxu0
        %v5224 = vadd.f32 0.0, %v5223
        %v5225 = vpop.f32.mrf.mxu0
        %v5226 = vadd.f32 0.0, %v5225
        %5227 = vdwg.mxu0
        %v5228 = vadd.f32 %v5145, %v5204
        %v5229 = vadd.f32 %v5146, %v5206
        %v5230 = vadd.f32 %v5147, %v5209
        %v5231 = vadd.f32 %v5148, %v5211
        %v5232 = vadd.f32 %v5149, %v5214
        %v5233 = vadd.f32 %v5150, %v5216
        %v5234 = vadd.f32 %v5151, %v5219
        %v5235 = vadd.f32 %v5152, %v5221
        %v5236 = vadd.f32 %v5153, %v5224
        %v5237 = vadd.f32 %v5154, %v5226
        %v5238 = vld [vmem:[#allocation3 + $0x19] sm:$0xff]
        %v5239 = vld [vmem:[#allocation3 + $0x21] sm:$0xff]
        %v5240 = vld [vmem:[#allocation3 + $0x29] sm:$0xff]
        %v5241 = vld [vmem:[#allocation3 + $0x31] sm:$0xff]
        %v5242 = vld [vmem:[#allocation3 + $0x39] sm:$0xff]
        %v5243 = vld [vmem:[#allocation3 + $0x41] sm:$0xff]
        %v5244 = vld [vmem:[#allocation3 + $0x49] sm:$0xff]
        %v5245 = vld [vmem:[#allocation3 + $0x51] sm:$0xff]
        %v5246 = vld [vmem:[#allocation3 + $0x59] sm:$0xff]
        %v5247 = vld [vmem:[#allocation3 + $0x61] sm:$0x1]
        %v5248 = vpack.c.bf16 %v5239, %v5238
        %v5249 = vpack.c.bf16 %v5241, %v5240
        %v5250 = vpack.c.bf16 %v5243, %v5242
        %v5251 = vpack.c.bf16 %v5245, %v5244
        %v5252 = vpack.c.bf16 %v5247, %v5246
        %s5253 = scalar_lea.vmem %s3, 104
        %v5254 = vld [vmem:[%s5253] sm:$0xf]
        %v5255 = vld [vmem:[%s5253 + $0x4] sm:$0xf]
        %v5258 = vunpack.c.l.b16 %v5254
        %v5259 = vunpack.c.l.b16 %v5255
        %v5260 = vpack.c.b16 %v5259, %v5258
        %v5263 = vsel %vm3521, %v5248, 0
        %v5266 = vsel %vm3521, %v5249, 0
        %v5269 = vsel %vm3521, %v5250, 0
        %v5272 = vsel %vm3521, %v5251, 0
        %v5275 = vsel %vm3521, %v5252, 0
        %5277 = vmatpush.bf16.msra.mxu0 0
        %5278 = vmatpush.bf16.msra.mxu0 0
        %5279 = vmatpush.bf16.msra.mxu0 0
        %5280 = vmatpush.bf16.msra.mxu0 0
        %5281 = vmatpush.bf16.msra.mxu0 0
        %5282 = vmatpush.bf16.msra.mxu0 0
        %5283 = vmatpush.bf16.msra.mxu0 0
        %5284 = vmatpush.bf16.msra.mxu0 %v5260
        %5285 = vmatmul.bf16.gmra.mxu0 %v5263
        %v5286 = vpop.f32.mrf.mxu0
        %v5287 = vadd.f32 0.0, %v5286
        %v5288 = vpop.f32.mrf.mxu0
        %v5289 = vadd.f32 0.0, %v5288
        %5290 = vmatmul.bf16.gmra.mxu0 %v5266
        %v5291 = vpop.f32.mrf.mxu0
        %v5292 = vadd.f32 0.0, %v5291
        %v5293 = vpop.f32.mrf.mxu0
        %v5294 = vadd.f32 0.0, %v5293
        %5295 = vmatmul.bf16.gmra.mxu0 %v5269
        %v5296 = vpop.f32.mrf.mxu0
        %v5297 = vadd.f32 0.0, %v5296
        %v5298 = vpop.f32.mrf.mxu0
        %v5299 = vadd.f32 0.0, %v5298
        %5300 = vmatmul.bf16.gmra.mxu0 %v5272
        %v5301 = vpop.f32.mrf.mxu0
        %v5302 = vadd.f32 0.0, %v5301
        %v5303 = vpop.f32.mrf.mxu0
        %v5304 = vadd.f32 0.0, %v5303
        %5305 = vmatmul.bf16.gmra.mxu0 %v5275
        %v5306 = vpop.f32.mrf.mxu0
        %v5307 = vadd.f32 0.0, %v5306
        %v5308 = vpop.f32.mrf.mxu0
        %v5309 = vadd.f32 0.0, %v5308
        %5310 = vdwg.mxu0
        %v5311 = vadd.f32 %v5228, %v5287
        %v5312 = vadd.f32 %v5229, %v5289
        %v5313 = vadd.f32 %v5230, %v5292
        %v5314 = vadd.f32 %v5231, %v5294
        %v5315 = vadd.f32 %v5232, %v5297
        %v5316 = vadd.f32 %v5233, %v5299
        %v5317 = vadd.f32 %v5234, %v5302
        %v5318 = vadd.f32 %v5235, %v5304
        %v5319 = vadd.f32 %v5236, %v5307
        %v5320 = vadd.f32 %v5237, %v5309
        %v5321 = vld [vmem:[#allocation3 + $0x1a] sm:$0xff]
        %v5322 = vld [vmem:[#allocation3 + $0x22] sm:$0xff]
        %v5323 = vld [vmem:[#allocation3 + $0x2a] sm:$0xff]
        %v5324 = vld [vmem:[#allocation3 + $0x32] sm:$0xff]
        %v5325 = vld [vmem:[#allocation3 + $0x3a] sm:$0xff]
        %v5326 = vld [vmem:[#allocation3 + $0x42] sm:$0xff]
        %v5327 = vld [vmem:[#allocation3 + $0x4a] sm:$0xff]
        %v5328 = vld [vmem:[#allocation3 + $0x52] sm:$0xff]
        %v5329 = vld [vmem:[#allocation3 + $0x5a] sm:$0xff]
        %v5330 = vld [vmem:[#allocation3 + $0x62] sm:$0x1]
        %v5331 = vpack.c.bf16 %v5322, %v5321
        %v5332 = vpack.c.bf16 %v5324, %v5323
        %v5333 = vpack.c.bf16 %v5326, %v5325
        %v5334 = vpack.c.bf16 %v5328, %v5327
        %v5335 = vpack.c.bf16 %v5330, %v5329
        %s5336 = scalar_lea.vmem %s3, 112
        %v5337 = vld [vmem:[%s5336] sm:$0xf]
        %v5338 = vld [vmem:[%s5336 + $0x4] sm:$0xf]
        %v5341 = vunpack.c.l.b16 %v5337
        %v5342 = vunpack.c.l.b16 %v5338
        %v5343 = vpack.c.b16 %v5342, %v5341
        %v5346 = vsel %vm3521, %v5331, 0
        %v5349 = vsel %vm3521, %v5332, 0
        %v5352 = vsel %vm3521, %v5333, 0
        %v5355 = vsel %vm3521, %v5334, 0
        %v5358 = vsel %vm3521, %v5335, 0
        %5360 = vmatpush.bf16.msra.mxu0 0
        %5361 = vmatpush.bf16.msra.mxu0 0
        %5362 = vmatpush.bf16.msra.mxu0 0
        %5363 = vmatpush.bf16.msra.mxu0 0
        %5364 = vmatpush.bf16.msra.mxu0 0
        %5365 = vmatpush.bf16.msra.mxu0 0
        %5366 = vmatpush.bf16.msra.mxu0 0
        %5367 = vmatpush.bf16.msra.mxu0 %v5343
        %5368 = vmatmul.bf16.gmra.mxu0 %v5346
        %v5369 = vpop.f32.mrf.mxu0
        %v5370 = vadd.f32 0.0, %v5369
        %v5371 = vpop.f32.mrf.mxu0
        %v5372 = vadd.f32 0.0, %v5371
        %5373 = vmatmul.bf16.gmra.mxu0 %v5349
        %v5374 = vpop.f32.mrf.mxu0
        %v5375 = vadd.f32 0.0, %v5374
        %v5376 = vpop.f32.mrf.mxu0
        %v5377 = vadd.f32 0.0, %v5376
        %5378 = vmatmul.bf16.gmra.mxu0 %v5352
        %v5379 = vpop.f32.mrf.mxu0
        %v5380 = vadd.f32 0.0, %v5379
        %v5381 = vpop.f32.mrf.mxu0
        %v5382 = vadd.f32 0.0, %v5381
        %5383 = vmatmul.bf16.gmra.mxu0 %v5355
        %v5384 = vpop.f32.mrf.mxu0
        %v5385 = vadd.f32 0.0, %v5384
        %v5386 = vpop.f32.mrf.mxu0
        %v5387 = vadd.f32 0.0, %v5386
        %5388 = vmatmul.bf16.gmra.mxu0 %v5358
        %v5389 = vpop.f32.mrf.mxu0
        %v5390 = vadd.f32 0.0, %v5389
        %v5391 = vpop.f32.mrf.mxu0
        %v5392 = vadd.f32 0.0, %v5391
        %5393 = vdwg.mxu0
        %v5394 = vadd.f32 %v5311, %v5370
        %v5395 = vadd.f32 %v5312, %v5372
        %v5396 = vadd.f32 %v5313, %v5375
        %v5397 = vadd.f32 %v5314, %v5377
        %v5398 = vadd.f32 %v5315, %v5380
        %v5399 = vadd.f32 %v5316, %v5382
        %v5400 = vadd.f32 %v5317, %v5385
        %v5401 = vadd.f32 %v5318, %v5387
        %v5402 = vadd.f32 %v5319, %v5390
        %v5403 = vadd.f32 %v5320, %v5392
        %v5404 = vld [vmem:[#allocation3 + $0x21] sm:$0xff]
        %v5405 = vld [vmem:[#allocation3 + $0x29] sm:$0xff]
        %v5406 = vld [vmem:[#allocation3 + $0x31] sm:$0xff]
        %v5407 = vld [vmem:[#allocation3 + $0x39] sm:$0xff]
        %v5408 = vld [vmem:[#allocation3 + $0x41] sm:$0xff]
        %v5409 = vld [vmem:[#allocation3 + $0x49] sm:$0xff]
        %v5410 = vld [vmem:[#allocation3 + $0x51] sm:$0xff]
        %v5411 = vld [vmem:[#allocation3 + $0x59] sm:$0xff]
        %v5412 = vld [vmem:[#allocation3 + $0x61] sm:$0xff]
        %v5413 = vld [vmem:[#allocation3 + $0x69] sm:$0x1]
        %v5414 = vpack.c.bf16 %v5405, %v5404
        %v5415 = vpack.c.bf16 %v5407, %v5406
        %v5416 = vpack.c.bf16 %v5409, %v5408
        %v5417 = vpack.c.bf16 %v5411, %v5410
        %v5418 = vpack.c.bf16 %v5413, %v5412
        %s5419 = scalar_lea.vmem %s3, 120
        %v5420 = vld [vmem:[%s5419] sm:$0xf]
        %v5421 = vld [vmem:[%s5419 + $0x4] sm:$0xf]
        %v5424 = vunpack.c.l.b16 %v5420
        %v5425 = vunpack.c.l.b16 %v5421
        %v5426 = vpack.c.b16 %v5425, %v5424
        %v5429 = vsel %vm3521, %v5414, 0
        %v5432 = vsel %vm3521, %v5415, 0
        %v5435 = vsel %vm3521, %v5416, 0
        %v5438 = vsel %vm3521, %v5417, 0
        %v5441 = vsel %vm3521, %v5418, 0
        %5443 = vmatpush.bf16.msra.mxu0 0
        %5444 = vmatpush.bf16.msra.mxu0 0
        %5445 = vmatpush.bf16.msra.mxu0 0
        %5446 = vmatpush.bf16.msra.mxu0 0
        %5447 = vmatpush.bf16.msra.mxu0 0
        %5448 = vmatpush.bf16.msra.mxu0 0
        %5449 = vmatpush.bf16.msra.mxu0 0
        %5450 = vmatpush.bf16.msra.mxu0 %v5426
        %5451 = vmatmul.bf16.gmra.mxu0 %v5429
        %v5452 = vpop.f32.mrf.mxu0
        %v5453 = vadd.f32 0.0, %v5452
        %v5454 = vpop.f32.mrf.mxu0
        %v5455 = vadd.f32 0.0, %v5454
        %5456 = vmatmul.bf16.gmra.mxu0 %v5432
        %v5457 = vpop.f32.mrf.mxu0
        %v5458 = vadd.f32 0.0, %v5457
        %v5459 = vpop.f32.mrf.mxu0
        %v5460 = vadd.f32 0.0, %v5459
        %5461 = vmatmul.bf16.gmra.mxu0 %v5435
        %v5462 = vpop.f32.mrf.mxu0
        %v5463 = vadd.f32 0.0, %v5462
        %v5464 = vpop.f32.mrf.mxu0
        %v5465 = vadd.f32 0.0, %v5464
        %5466 = vmatmul.bf16.gmra.mxu0 %v5438
        %v5467 = vpop.f32.mrf.mxu0
        %v5468 = vadd.f32 0.0, %v5467
        %v5469 = vpop.f32.mrf.mxu0
        %v5470 = vadd.f32 0.0, %v5469
        %5471 = vmatmul.bf16.gmra.mxu0 %v5441
        %v5472 = vpop.f32.mrf.mxu0
        %v5473 = vadd.f32 0.0, %v5472
        %v5474 = vpop.f32.mrf.mxu0
        %v5475 = vadd.f32 0.0, %v5474
        %5476 = vdwg.mxu0
        %v5477 = vadd.f32 %v5394, %v5453
        %v5478 = vadd.f32 %v5395, %v5455
        %v5479 = vadd.f32 %v5396, %v5458
        %v5480 = vadd.f32 %v5397, %v5460
        %v5481 = vadd.f32 %v5398, %v5463
        %v5482 = vadd.f32 %v5399, %v5465
        %v5483 = vadd.f32 %v5400, %v5468
        %v5484 = vadd.f32 %v5401, %v5470
        %v5485 = vadd.f32 %v5402, %v5473
        %v5486 = vadd.f32 %v5403, %v5475
        %v5487 = vld [vmem:[#allocation3 + $0x22] sm:$0xff]
        %v5488 = vld [vmem:[#allocation3 + $0x2a] sm:$0xff]
        %v5489 = vld [vmem:[#allocation3 + $0x32] sm:$0xff]
        %v5490 = vld [vmem:[#allocation3 + $0x3a] sm:$0xff]
        %v5491 = vld [vmem:[#allocation3 + $0x42] sm:$0xff]
        %v5492 = vld [vmem:[#allocation3 + $0x4a] sm:$0xff]
        %v5493 = vld [vmem:[#allocation3 + $0x52] sm:$0xff]
        %v5494 = vld [vmem:[#allocation3 + $0x5a] sm:$0xff]
        %v5495 = vld [vmem:[#allocation3 + $0x62] sm:$0xff]
        %v5496 = vld [vmem:[#allocation3 + $0x6a] sm:$0x1]
        %v5497 = vpack.c.bf16 %v5488, %v5487
        %v5498 = vpack.c.bf16 %v5490, %v5489
        %v5499 = vpack.c.bf16 %v5492, %v5491
        %v5500 = vpack.c.bf16 %v5494, %v5493
        %v5501 = vpack.c.bf16 %v5496, %v5495
        %s5502 = scalar_lea.vmem %s3, 128
        %v5503 = vld [vmem:[%s5502] sm:$0xf]
        %v5504 = vld [vmem:[%s5502 + $0x4] sm:$0xf]
        %v5507 = vunpack.c.l.b16 %v5503
        %v5508 = vunpack.c.l.b16 %v5504
        %v5509 = vpack.c.b16 %v5508, %v5507
        %v5512 = vsel %vm3521, %v5497, 0
        %v5515 = vsel %vm3521, %v5498, 0
        %v5518 = vsel %vm3521, %v5499, 0
        %v5521 = vsel %vm3521, %v5500, 0
        %v5524 = vsel %vm3521, %v5501, 0
        %5526 = vmatpush.bf16.msra.mxu0 0
        %5527 = vmatpush.bf16.msra.mxu0 0
        %5528 = vmatpush.bf16.msra.mxu0 0
        %5529 = vmatpush.bf16.msra.mxu0 0
        %5530 = vmatpush.bf16.msra.mxu0 0
        %5531 = vmatpush.bf16.msra.mxu0 0
        %5532 = vmatpush.bf16.msra.mxu0 0
        %5533 = vmatpush.bf16.msra.mxu0 %v5509
        %5534 = vmatmul.bf16.gmra.mxu0 %v5512
        %v5535 = vpop.f32.mrf.mxu0
        %v5536 = vadd.f32 0.0, %v5535
        %v5537 = vpop.f32.mrf.mxu0
        %v5538 = vadd.f32 0.0, %v5537
        %5539 = vmatmul.bf16.gmra.mxu0 %v5515
        %v5540 = vpop.f32.mrf.mxu0
        %v5541 = vadd.f32 0.0, %v5540
        %v5542 = vpop.f32.mrf.mxu0
        %v5543 = vadd.f32 0.0, %v5542
        %5544 = vmatmul.bf16.gmra.mxu0 %v5518
        %v5545 = vpop.f32.mrf.mxu0
        %v5546 = vadd.f32 0.0, %v5545
        %v5547 = vpop.f32.mrf.mxu0
        %v5548 = vadd.f32 0.0, %v5547
        %5549 = vmatmul.bf16.gmra.mxu0 %v5521
        %v5550 = vpop.f32.mrf.mxu0
        %v5551 = vadd.f32 0.0, %v5550
        %v5552 = vpop.f32.mrf.mxu0
        %v5553 = vadd.f32 0.0, %v5552
        %5554 = vmatmul.bf16.gmra.mxu0 %v5524
        %v5555 = vpop.f32.mrf.mxu0
        %v5556 = vadd.f32 0.0, %v5555
        %v5557 = vpop.f32.mrf.mxu0
        %v5558 = vadd.f32 0.0, %v5557
        %5559 = vdwg.mxu0
        %v5560 = vadd.f32 %v5477, %v5536
        %v5561 = vadd.f32 %v5478, %v5538
        %v5562 = vadd.f32 %v5479, %v5541
        %v5563 = vadd.f32 %v5480, %v5543
        %v5564 = vadd.f32 %v5481, %v5546
        %v5565 = vadd.f32 %v5482, %v5548
        %v5566 = vadd.f32 %v5483, %v5551
        %v5567 = vadd.f32 %v5484, %v5553
        %v5568 = vadd.f32 %v5485, %v5556
        %v5569 = vadd.f32 %v5486, %v5558
        %v5570 = vld [vmem:[#allocation3 + $0x23] sm:$0xff]
        %v5571 = vld [vmem:[#allocation3 + $0x2b] sm:$0xff]
        %v5572 = vld [vmem:[#allocation3 + $0x33] sm:$0xff]
        %v5573 = vld [vmem:[#allocation3 + $0x3b] sm:$0xff]
        %v5574 = vld [vmem:[#allocation3 + $0x43] sm:$0xff]
        %v5575 = vld [vmem:[#allocation3 + $0x4b] sm:$0xff]
        %v5576 = vld [vmem:[#allocation3 + $0x53] sm:$0xff]
        %v5577 = vld [vmem:[#allocation3 + $0x5b] sm:$0xff]
        %v5578 = vld [vmem:[#allocation3 + $0x63] sm:$0xff]
        %v5579 = vld [vmem:[#allocation3 + $0x6b] sm:$0x1]
        %v5580 = vpack.c.bf16 %v5571, %v5570
        %v5581 = vpack.c.bf16 %v5573, %v5572
        %v5582 = vpack.c.bf16 %v5575, %v5574
        %v5583 = vpack.c.bf16 %v5577, %v5576
        %v5584 = vpack.c.bf16 %v5579, %v5578
        %s5585 = scalar_lea.vmem %s3, 136
        %v5586 = vld [vmem:[%s5585] sm:$0xf]
        %v5587 = vld [vmem:[%s5585 + $0x4] sm:$0xf]
        %v5590 = vunpack.c.l.b16 %v5586
        %v5591 = vunpack.c.l.b16 %v5587
        %v5592 = vpack.c.b16 %v5591, %v5590
        %v5595 = vsel %vm3521, %v5580, 0
        %v5598 = vsel %vm3521, %v5581, 0
        %v5601 = vsel %vm3521, %v5582, 0
        %v5604 = vsel %vm3521, %v5583, 0
        %v5607 = vsel %vm3521, %v5584, 0
        %5609 = vmatpush.bf16.msra.mxu0 0
        %5610 = vmatpush.bf16.msra.mxu0 0
        %5611 = vmatpush.bf16.msra.mxu0 0
        %5612 = vmatpush.bf16.msra.mxu0 0
        %5613 = vmatpush.bf16.msra.mxu0 0
        %5614 = vmatpush.bf16.msra.mxu0 0
        %5615 = vmatpush.bf16.msra.mxu0 0
        %5616 = vmatpush.bf16.msra.mxu0 %v5592
        %5617 = vmatmul.bf16.gmra.mxu0 %v5595
        %v5618 = vpop.f32.mrf.mxu0
        %v5619 = vadd.f32 0.0, %v5618
        %v5620 = vpop.f32.mrf.mxu0
        %v5621 = vadd.f32 0.0, %v5620
        %5622 = vmatmul.bf16.gmra.mxu0 %v5598
        %v5623 = vpop.f32.mrf.mxu0
        %v5624 = vadd.f32 0.0, %v5623
        %v5625 = vpop.f32.mrf.mxu0
        %v5626 = vadd.f32 0.0, %v5625
        %5627 = vmatmul.bf16.gmra.mxu0 %v5601
        %v5628 = vpop.f32.mrf.mxu0
        %v5629 = vadd.f32 0.0, %v5628
        %v5630 = vpop.f32.mrf.mxu0
        %v5631 = vadd.f32 0.0, %v5630
        %5632 = vmatmul.bf16.gmra.mxu0 %v5604
        %v5633 = vpop.f32.mrf.mxu0
        %v5634 = vadd.f32 0.0, %v5633
        %v5635 = vpop.f32.mrf.mxu0
        %v5636 = vadd.f32 0.0, %v5635
        %5637 = vmatmul.bf16.gmra.mxu0 %v5607
        %v5638 = vpop.f32.mrf.mxu0
        %v5639 = vadd.f32 0.0, %v5638
        %v5640 = vpop.f32.mrf.mxu0
        %v5641 = vadd.f32 0.0, %v5640
        %5642 = vdwg.mxu0
        %v5643 = vadd.f32 %v5560, %v5619
        %v5644 = vadd.f32 %v5561, %v5621
        %v5645 = vadd.f32 %v5562, %v5624
        %v5646 = vadd.f32 %v5563, %v5626
        %v5647 = vadd.f32 %v5564, %v5629
        %v5648 = vadd.f32 %v5565, %v5631
        %v5649 = vadd.f32 %v5566, %v5634
        %v5650 = vadd.f32 %v5567, %v5636
        %v5651 = vadd.f32 %v5568, %v5639
        %v5652 = vadd.f32 %v5569, %v5641
        %v5653 = vld [vmem:[#allocation3 + $0x24] sm:$0xff]
        %v5654 = vld [vmem:[#allocation3 + $0x2c] sm:$0xff]
        %v5655 = vld [vmem:[#allocation3 + $0x34] sm:$0xff]
        %v5656 = vld [vmem:[#allocation3 + $0x3c] sm:$0xff]
        %v5657 = vld [vmem:[#allocation3 + $0x44] sm:$0xff]
        %v5658 = vld [vmem:[#allocation3 + $0x4c] sm:$0xff]
        %v5659 = vld [vmem:[#allocation3 + $0x54] sm:$0xff]
        %v5660 = vld [vmem:[#allocation3 + $0x5c] sm:$0xff]
        %v5661 = vld [vmem:[#allocation3 + $0x64] sm:$0xff]
        %v5662 = vld [vmem:[#allocation3 + $0x6c] sm:$0x1]
        %v5663 = vpack.c.bf16 %v5654, %v5653
        %v5664 = vpack.c.bf16 %v5656, %v5655
        %v5665 = vpack.c.bf16 %v5658, %v5657
        %v5666 = vpack.c.bf16 %v5660, %v5659
        %v5667 = vpack.c.bf16 %v5662, %v5661
        %s5668 = scalar_lea.vmem %s3, 144
        %v5669 = vld [vmem:[%s5668] sm:$0xf]
        %v5670 = vld [vmem:[%s5668 + $0x4] sm:$0xf]
        %v5673 = vunpack.c.l.b16 %v5669
        %v5674 = vunpack.c.l.b16 %v5670
        %v5675 = vpack.c.b16 %v5674, %v5673
        %v5678 = vsel %vm3521, %v5663, 0
        %v5681 = vsel %vm3521, %v5664, 0
        %v5684 = vsel %vm3521, %v5665, 0
        %v5687 = vsel %vm3521, %v5666, 0
        %v5690 = vsel %vm3521, %v5667, 0
        %5692 = vmatpush.bf16.msra.mxu0 0
        %5693 = vmatpush.bf16.msra.mxu0 0
        %5694 = vmatpush.bf16.msra.mxu0 0
        %5695 = vmatpush.bf16.msra.mxu0 0
        %5696 = vmatpush.bf16.msra.mxu0 0
        %5697 = vmatpush.bf16.msra.mxu0 0
        %5698 = vmatpush.bf16.msra.mxu0 0
        %5699 = vmatpush.bf16.msra.mxu0 %v5675
        %5700 = vmatmul.bf16.gmra.mxu0 %v5678
        %v5701 = vpop.f32.mrf.mxu0
        %v5702 = vadd.f32 0.0, %v5701
        %v5703 = vpop.f32.mrf.mxu0
        %v5704 = vadd.f32 0.0, %v5703
        %5705 = vmatmul.bf16.gmra.mxu0 %v5681
        %v5706 = vpop.f32.mrf.mxu0
        %v5707 = vadd.f32 0.0, %v5706
        %v5708 = vpop.f32.mrf.mxu0
        %v5709 = vadd.f32 0.0, %v5708
        %5710 = vmatmul.bf16.gmra.mxu0 %v5684
        %v5711 = vpop.f32.mrf.mxu0
        %v5712 = vadd.f32 0.0, %v5711
        %v5713 = vpop.f32.mrf.mxu0
        %v5714 = vadd.f32 0.0, %v5713
        %5715 = vmatmul.bf16.gmra.mxu0 %v5687
        %v5716 = vpop.f32.mrf.mxu0
        %v5717 = vadd.f32 0.0, %v5716
        %v5718 = vpop.f32.mrf.mxu0
        %v5719 = vadd.f32 0.0, %v5718
        %5720 = vmatmul.bf16.gmra.mxu0 %v5690
        %v5721 = vpop.f32.mrf.mxu0
        %v5722 = vadd.f32 0.0, %v5721
        %v5723 = vpop.f32.mrf.mxu0
        %v5724 = vadd.f32 0.0, %v5723
        %5725 = vdwg.mxu0
        %v5726 = vadd.f32 %v5643, %v5702
        %v5727 = vadd.f32 %v5644, %v5704
        %v5728 = vadd.f32 %v5645, %v5707
        %v5729 = vadd.f32 %v5646, %v5709
        %v5730 = vadd.f32 %v5647, %v5712
        %v5731 = vadd.f32 %v5648, %v5714
        %v5732 = vadd.f32 %v5649, %v5717
        %v5733 = vadd.f32 %v5650, %v5719
        %v5734 = vadd.f32 %v5651, %v5722
        %v5735 = vadd.f32 %v5652, %v5724
        %v5736 = vld [vmem:[#allocation3 + $0x25] sm:$0xff]
        %v5737 = vld [vmem:[#allocation3 + $0x2d] sm:$0xff]
        %v5738 = vld [vmem:[#allocation3 + $0x35] sm:$0xff]
        %v5739 = vld [vmem:[#allocation3 + $0x3d] sm:$0xff]
        %v5740 = vld [vmem:[#allocation3 + $0x45] sm:$0xff]
        %v5741 = vld [vmem:[#allocation3 + $0x4d] sm:$0xff]
        %v5742 = vld [vmem:[#allocation3 + $0x55] sm:$0xff]
        %v5743 = vld [vmem:[#allocation3 + $0x5d] sm:$0xff]
        %v5744 = vld [vmem:[#allocation3 + $0x65] sm:$0xff]
        %v5745 = vld [vmem:[#allocation3 + $0x6d] sm:$0x1]
        %v5746 = vpack.c.bf16 %v5737, %v5736
        %v5747 = vpack.c.bf16 %v5739, %v5738
        %v5748 = vpack.c.bf16 %v5741, %v5740
        %v5749 = vpack.c.bf16 %v5743, %v5742
        %v5750 = vpack.c.bf16 %v5745, %v5744
        %s5751 = scalar_lea.vmem %s3, 152
        %v5752 = vld [vmem:[%s5751] sm:$0xf]
        %v5753 = vld [vmem:[%s5751 + $0x4] sm:$0xf]
        %v5756 = vunpack.c.l.b16 %v5752
        %v5757 = vunpack.c.l.b16 %v5753
        %v5758 = vpack.c.b16 %v5757, %v5756
        %v5761 = vsel %vm3521, %v5746, 0
        %v5764 = vsel %vm3521, %v5747, 0
        %v5767 = vsel %vm3521, %v5748, 0
        %v5770 = vsel %vm3521, %v5749, 0
        %v5773 = vsel %vm3521, %v5750, 0
        %5775 = vmatpush.bf16.msra.mxu0 0
        %5776 = vmatpush.bf16.msra.mxu0 0
        %5777 = vmatpush.bf16.msra.mxu0 0
        %5778 = vmatpush.bf16.msra.mxu0 0
        %5779 = vmatpush.bf16.msra.mxu0 0
        %5780 = vmatpush.bf16.msra.mxu0 0
        %5781 = vmatpush.bf16.msra.mxu0 0
        %5782 = vmatpush.bf16.msra.mxu0 %v5758
        %5783 = vmatmul.bf16.gmra.mxu0 %v5761
        %v5784 = vpop.f32.mrf.mxu0
        %v5785 = vadd.f32 0.0, %v5784
        %v5786 = vpop.f32.mrf.mxu0
        %v5787 = vadd.f32 0.0, %v5786
        %5788 = vmatmul.bf16.gmra.mxu0 %v5764
        %v5789 = vpop.f32.mrf.mxu0
        %v5790 = vadd.f32 0.0, %v5789
        %v5791 = vpop.f32.mrf.mxu0
        %v5792 = vadd.f32 0.0, %v5791
        %5793 = vmatmul.bf16.gmra.mxu0 %v5767
        %v5794 = vpop.f32.mrf.mxu0
        %v5795 = vadd.f32 0.0, %v5794
        %v5796 = vpop.f32.mrf.mxu0
        %v5797 = vadd.f32 0.0, %v5796
        %5798 = vmatmul.bf16.gmra.mxu0 %v5770
        %v5799 = vpop.f32.mrf.mxu0
        %v5800 = vadd.f32 0.0, %v5799
        %v5801 = vpop.f32.mrf.mxu0
        %v5802 = vadd.f32 0.0, %v5801
        %5803 = vmatmul.bf16.gmra.mxu0 %v5773
        %v5804 = vpop.f32.mrf.mxu0
        %v5805 = vadd.f32 0.0, %v5804
        %v5806 = vpop.f32.mrf.mxu0
        %v5807 = vadd.f32 0.0, %v5806
        %5808 = vdwg.mxu0
        %v5809 = vadd.f32 %v5726, %v5785
        %v5810 = vadd.f32 %v5727, %v5787
        %v5811 = vadd.f32 %v5728, %v5790
        %v5812 = vadd.f32 %v5729, %v5792
        %v5813 = vadd.f32 %v5730, %v5795
        %v5814 = vadd.f32 %v5731, %v5797
        %v5815 = vadd.f32 %v5732, %v5800
        %v5816 = vadd.f32 %v5733, %v5802
        %v5817 = vadd.f32 %v5734, %v5805
        %v5818 = vadd.f32 %v5735, %v5807
        %v5819 = vld [vmem:[#allocation3 + $0x2c] sm:$0xff]
        %v5820 = vld [vmem:[#allocation3 + $0x34] sm:$0xff]
        %v5821 = vld [vmem:[#allocation3 + $0x3c] sm:$0xff]
        %v5822 = vld [vmem:[#allocation3 + $0x44] sm:$0xff]
        %v5823 = vld [vmem:[#allocation3 + $0x4c] sm:$0xff]
        %v5824 = vld [vmem:[#allocation3 + $0x54] sm:$0xff]
        %v5825 = vld [vmem:[#allocation3 + $0x5c] sm:$0xff]
        %v5826 = vld [vmem:[#allocation3 + $0x64] sm:$0xff]
        %v5827 = vld [vmem:[#allocation3 + $0x6c] sm:$0xff]
        %v5828 = vld [vmem:[#allocation3 + $0x74] sm:$0x1]
        %v5829 = vpack.c.bf16 %v5820, %v5819
        %v5830 = vpack.c.bf16 %v5822, %v5821
        %v5831 = vpack.c.bf16 %v5824, %v5823
        %v5832 = vpack.c.bf16 %v5826, %v5825
        %v5833 = vpack.c.bf16 %v5828, %v5827
        %s5834 = scalar_lea.vmem %s3, 160
        %v5835 = vld [vmem:[%s5834] sm:$0xf]
        %v5836 = vld [vmem:[%s5834 + $0x4] sm:$0xf]
        %v5839 = vunpack.c.l.b16 %v5835
        %v5840 = vunpack.c.l.b16 %v5836
        %v5841 = vpack.c.b16 %v5840, %v5839
        %v5844 = vsel %vm3521, %v5829, 0
        %v5847 = vsel %vm3521, %v5830, 0
        %v5850 = vsel %vm3521, %v5831, 0
        %v5853 = vsel %vm3521, %v5832, 0
        %v5856 = vsel %vm3521, %v5833, 0
        %5858 = vmatpush.bf16.msra.mxu0 0
        %5859 = vmatpush.bf16.msra.mxu0 0
        %5860 = vmatpush.bf16.msra.mxu0 0
        %5861 = vmatpush.bf16.msra.mxu0 0
        %5862 = vmatpush.bf16.msra.mxu0 0
        %5863 = vmatpush.bf16.msra.mxu0 0
        %5864 = vmatpush.bf16.msra.mxu0 0
        %5865 = vmatpush.bf16.msra.mxu0 %v5841
        %5866 = vmatmul.bf16.gmra.mxu0 %v5844
        %v5867 = vpop.f32.mrf.mxu0
        %v5868 = vadd.f32 0.0, %v5867
        %v5869 = vpop.f32.mrf.mxu0
        %v5870 = vadd.f32 0.0, %v5869
        %5871 = vmatmul.bf16.gmra.mxu0 %v5847
        %v5872 = vpop.f32.mrf.mxu0
        %v5873 = vadd.f32 0.0, %v5872
        %v5874 = vpop.f32.mrf.mxu0
        %v5875 = vadd.f32 0.0, %v5874
        %5876 = vmatmul.bf16.gmra.mxu0 %v5850
        %v5877 = vpop.f32.mrf.mxu0
        %v5878 = vadd.f32 0.0, %v5877
        %v5879 = vpop.f32.mrf.mxu0
        %v5880 = vadd.f32 0.0, %v5879
        %5881 = vmatmul.bf16.gmra.mxu0 %v5853
        %v5882 = vpop.f32.mrf.mxu0
        %v5883 = vadd.f32 0.0, %v5882
        %v5884 = vpop.f32.mrf.mxu0
        %v5885 = vadd.f32 0.0, %v5884
        %5886 = vmatmul.bf16.gmra.mxu0 %v5856
        %v5887 = vpop.f32.mrf.mxu0
        %v5888 = vadd.f32 0.0, %v5887
        %v5889 = vpop.f32.mrf.mxu0
        %v5890 = vadd.f32 0.0, %v5889
        %5891 = vdwg.mxu0
        %v5892 = vadd.f32 %v5809, %v5868
        %v5893 = vadd.f32 %v5810, %v5870
        %v5894 = vadd.f32 %v5811, %v5873
        %v5895 = vadd.f32 %v5812, %v5875
        %v5896 = vadd.f32 %v5813, %v5878
        %v5897 = vadd.f32 %v5814, %v5880
        %v5898 = vadd.f32 %v5815, %v5883
        %v5899 = vadd.f32 %v5816, %v5885
        %v5900 = vadd.f32 %v5817, %v5888
        %v5901 = vadd.f32 %v5818, %v5890
        %v5902 = vld [vmem:[#allocation3 + $0x2d] sm:$0xff]
        %v5903 = vld [vmem:[#allocation3 + $0x35] sm:$0xff]
        %v5904 = vld [vmem:[#allocation3 + $0x3d] sm:$0xff]
        %v5905 = vld [vmem:[#allocation3 + $0x45] sm:$0xff]
        %v5906 = vld [vmem:[#allocation3 + $0x4d] sm:$0xff]
        %v5907 = vld [vmem:[#allocation3 + $0x55] sm:$0xff]
        %v5908 = vld [vmem:[#allocation3 + $0x5d] sm:$0xff]
        %v5909 = vld [vmem:[#allocation3 + $0x65] sm:$0xff]
        %v5910 = vld [vmem:[#allocation3 + $0x6d] sm:$0xff]
        %v5911 = vld [vmem:[#allocation3 + $0x75] sm:$0x1]
        %v5912 = vpack.c.bf16 %v5903, %v5902
        %v5913 = vpack.c.bf16 %v5905, %v5904
        %v5914 = vpack.c.bf16 %v5907, %v5906
        %v5915 = vpack.c.bf16 %v5909, %v5908
        %v5916 = vpack.c.bf16 %v5911, %v5910
        %s5917 = scalar_lea.vmem %s3, 168
        %v5918 = vld [vmem:[%s5917] sm:$0xf]
        %v5919 = vld [vmem:[%s5917 + $0x4] sm:$0xf]
        %v5922 = vunpack.c.l.b16 %v5918
        %v5923 = vunpack.c.l.b16 %v5919
        %v5924 = vpack.c.b16 %v5923, %v5922
        %v5927 = vsel %vm3521, %v5912, 0
        %v5930 = vsel %vm3521, %v5913, 0
        %v5933 = vsel %vm3521, %v5914, 0
        %v5936 = vsel %vm3521, %v5915, 0
        %v5939 = vsel %vm3521, %v5916, 0
        %5941 = vmatpush.bf16.msra.mxu0 0
        %5942 = vmatpush.bf16.msra.mxu0 0
        %5943 = vmatpush.bf16.msra.mxu0 0
        %5944 = vmatpush.bf16.msra.mxu0 0
        %5945 = vmatpush.bf16.msra.mxu0 0
        %5946 = vmatpush.bf16.msra.mxu0 0
        %5947 = vmatpush.bf16.msra.mxu0 0
        %5948 = vmatpush.bf16.msra.mxu0 %v5924
        %5949 = vmatmul.bf16.gmra.mxu0 %v5927
        %v5950 = vpop.f32.mrf.mxu0
        %v5951 = vadd.f32 0.0, %v5950
        %v5952 = vpop.f32.mrf.mxu0
        %v5953 = vadd.f32 0.0, %v5952
        %5954 = vmatmul.bf16.gmra.mxu0 %v5930
        %v5955 = vpop.f32.mrf.mxu0
        %v5956 = vadd.f32 0.0, %v5955
        %v5957 = vpop.f32.mrf.mxu0
        %v5958 = vadd.f32 0.0, %v5957
        %5959 = vmatmul.bf16.gmra.mxu0 %v5933
        %v5960 = vpop.f32.mrf.mxu0
        %v5961 = vadd.f32 0.0, %v5960
        %v5962 = vpop.f32.mrf.mxu0
        %v5963 = vadd.f32 0.0, %v5962
        %5964 = vmatmul.bf16.gmra.mxu0 %v5936
        %v5965 = vpop.f32.mrf.mxu0
        %v5966 = vadd.f32 0.0, %v5965
        %v5967 = vpop.f32.mrf.mxu0
        %v5968 = vadd.f32 0.0, %v5967
        %5969 = vmatmul.bf16.gmra.mxu0 %v5939
        %v5970 = vpop.f32.mrf.mxu0
        %v5971 = vadd.f32 0.0, %v5970
        %v5972 = vpop.f32.mrf.mxu0
        %v5973 = vadd.f32 0.0, %v5972
        %5974 = vdwg.mxu0
        %v5975 = vadd.f32 %v5892, %v5951
        %v5976 = vadd.f32 %v5893, %v5953
        %v5977 = vadd.f32 %v5894, %v5956
        %v5978 = vadd.f32 %v5895, %v5958
        %v5979 = vadd.f32 %v5896, %v5961
        %v5980 = vadd.f32 %v5897, %v5963
        %v5981 = vadd.f32 %v5898, %v5966
        %v5982 = vadd.f32 %v5899, %v5968
        %v5983 = vadd.f32 %v5900, %v5971
        %v5984 = vadd.f32 %v5901, %v5973
        %v5985 = vld [vmem:[#allocation3 + $0x2e] sm:$0xff]
        %v5986 = vld [vmem:[#allocation3 + $0x36] sm:$0xff]
        %v5987 = vld [vmem:[#allocation3 + $0x3e] sm:$0xff]
        %v5988 = vld [vmem:[#allocation3 + $0x46] sm:$0xff]
        %v5989 = vld [vmem:[#allocation3 + $0x4e] sm:$0xff]
        %v5990 = vld [vmem:[#allocation3 + $0x56] sm:$0xff]
        %v5991 = vld [vmem:[#allocation3 + $0x5e] sm:$0xff]
        %v5992 = vld [vmem:[#allocation3 + $0x66] sm:$0xff]
        %v5993 = vld [vmem:[#allocation3 + $0x6e] sm:$0xff]
        %v5994 = vld [vmem:[#allocation3 + $0x76] sm:$0x1]
        %v5995 = vpack.c.bf16 %v5986, %v5985
        %v5996 = vpack.c.bf16 %v5988, %v5987
        %v5997 = vpack.c.bf16 %v5990, %v5989
        %v5998 = vpack.c.bf16 %v5992, %v5991
        %v5999 = vpack.c.bf16 %v5994, %v5993
        %s6000 = scalar_lea.vmem %s3, 176
        %v6001 = vld [vmem:[%s6000] sm:$0xf]
        %v6002 = vld [vmem:[%s6000 + $0x4] sm:$0xf]
        %v6005 = vunpack.c.l.b16 %v6001
        %v6006 = vunpack.c.l.b16 %v6002
        %v6007 = vpack.c.b16 %v6006, %v6005
        %v6010 = vsel %vm3521, %v5995, 0
        %v6013 = vsel %vm3521, %v5996, 0
        %v6016 = vsel %vm3521, %v5997, 0
        %v6019 = vsel %vm3521, %v5998, 0
        %v6022 = vsel %vm3521, %v5999, 0
        %6024 = vmatpush.bf16.msra.mxu0 0
        %6025 = vmatpush.bf16.msra.mxu0 0
        %6026 = vmatpush.bf16.msra.mxu0 0
        %6027 = vmatpush.bf16.msra.mxu0 0
        %6028 = vmatpush.bf16.msra.mxu0 0
        %6029 = vmatpush.bf16.msra.mxu0 0
        %6030 = vmatpush.bf16.msra.mxu0 0
        %6031 = vmatpush.bf16.msra.mxu0 %v6007
        %6032 = vmatmul.bf16.gmra.mxu0 %v6010
        %v6033 = vpop.f32.mrf.mxu0
        %v6034 = vadd.f32 0.0, %v6033
        %v6035 = vpop.f32.mrf.mxu0
        %v6036 = vadd.f32 0.0, %v6035
        %6037 = vmatmul.bf16.gmra.mxu0 %v6013
        %v6038 = vpop.f32.mrf.mxu0
        %v6039 = vadd.f32 0.0, %v6038
        %v6040 = vpop.f32.mrf.mxu0
        %v6041 = vadd.f32 0.0, %v6040
        %6042 = vmatmul.bf16.gmra.mxu0 %v6016
        %v6043 = vpop.f32.mrf.mxu0
        %v6044 = vadd.f32 0.0, %v6043
        %v6045 = vpop.f32.mrf.mxu0
        %v6046 = vadd.f32 0.0, %v6045
        %6047 = vmatmul.bf16.gmra.mxu0 %v6019
        %v6048 = vpop.f32.mrf.mxu0
        %v6049 = vadd.f32 0.0, %v6048
        %v6050 = vpop.f32.mrf.mxu0
        %v6051 = vadd.f32 0.0, %v6050
        %6052 = vmatmul.bf16.gmra.mxu0 %v6022
        %v6053 = vpop.f32.mrf.mxu0
        %v6054 = vadd.f32 0.0, %v6053
        %v6055 = vpop.f32.mrf.mxu0
        %v6056 = vadd.f32 0.0, %v6055
        %6057 = vdwg.mxu0
        %v6058 = vadd.f32 %v5975, %v6034
        %v6059 = vadd.f32 %v5976, %v6036
        %v6060 = vadd.f32 %v5977, %v6039
        %v6061 = vadd.f32 %v5978, %v6041
        %v6062 = vadd.f32 %v5979, %v6044
        %v6063 = vadd.f32 %v5980, %v6046
        %v6064 = vadd.f32 %v5981, %v6049
        %v6065 = vadd.f32 %v5982, %v6051
        %v6066 = vadd.f32 %v5983, %v6054
        %v6067 = vadd.f32 %v5984, %v6056
        %v6068 = vld [vmem:[#allocation3 + $0x2f] sm:$0xff]
        %v6069 = vld [vmem:[#allocation3 + $0x37] sm:$0xff]
        %v6070 = vld [vmem:[#allocation3 + $0x3f] sm:$0xff]
        %v6071 = vld [vmem:[#allocation3 + $0x47] sm:$0xff]
        %v6072 = vld [vmem:[#allocation3 + $0x4f] sm:$0xff]
        %v6073 = vld [vmem:[#allocation3 + $0x57] sm:$0xff]
        %v6074 = vld [vmem:[#allocation3 + $0x5f] sm:$0xff]
        %v6075 = vld [vmem:[#allocation3 + $0x67] sm:$0xff]
        %v6076 = vld [vmem:[#allocation3 + $0x6f] sm:$0xff]
        %v6077 = vld [vmem:[#allocation3 + $0x77] sm:$0x1]
        %v6078 = vpack.c.bf16 %v6069, %v6068
        %v6079 = vpack.c.bf16 %v6071, %v6070
        %v6080 = vpack.c.bf16 %v6073, %v6072
        %v6081 = vpack.c.bf16 %v6075, %v6074
        %v6082 = vpack.c.bf16 %v6077, %v6076
        %s6083 = scalar_lea.vmem %s3, 184
        %v6084 = vld [vmem:[%s6083] sm:$0xf]
        %v6085 = vld [vmem:[%s6083 + $0x4] sm:$0xf]
        %v6088 = vunpack.c.l.b16 %v6084
        %v6089 = vunpack.c.l.b16 %v6085
        %v6090 = vpack.c.b16 %v6089, %v6088
        %v6093 = vsel %vm3521, %v6078, 0
        %v6096 = vsel %vm3521, %v6079, 0
        %v6099 = vsel %vm3521, %v6080, 0
        %v6102 = vsel %vm3521, %v6081, 0
        %v6105 = vsel %vm3521, %v6082, 0
        %6107 = vmatpush.bf16.msra.mxu0 0
        %6108 = vmatpush.bf16.msra.mxu0 0
        %6109 = vmatpush.bf16.msra.mxu0 0
        %6110 = vmatpush.bf16.msra.mxu0 0
        %6111 = vmatpush.bf16.msra.mxu0 0
        %6112 = vmatpush.bf16.msra.mxu0 0
        %6113 = vmatpush.bf16.msra.mxu0 0
        %6114 = vmatpush.bf16.msra.mxu0 %v6090
        %6115 = vmatmul.bf16.gmra.mxu0 %v6093
        %v6116 = vpop.f32.mrf.mxu0
        %v6117 = vadd.f32 0.0, %v6116
        %v6118 = vpop.f32.mrf.mxu0
        %v6119 = vadd.f32 0.0, %v6118
        %6120 = vmatmul.bf16.gmra.mxu0 %v6096
        %v6121 = vpop.f32.mrf.mxu0
        %v6122 = vadd.f32 0.0, %v6121
        %v6123 = vpop.f32.mrf.mxu0
        %v6124 = vadd.f32 0.0, %v6123
        %6125 = vmatmul.bf16.gmra.mxu0 %v6099
        %v6126 = vpop.f32.mrf.mxu0
        %v6127 = vadd.f32 0.0, %v6126
        %v6128 = vpop.f32.mrf.mxu0
        %v6129 = vadd.f32 0.0, %v6128
        %6130 = vmatmul.bf16.gmra.mxu0 %v6102
        %v6131 = vpop.f32.mrf.mxu0
        %v6132 = vadd.f32 0.0, %v6131
        %v6133 = vpop.f32.mrf.mxu0
        %v6134 = vadd.f32 0.0, %v6133
        %6135 = vmatmul.bf16.gmra.mxu0 %v6105
        %v6136 = vpop.f32.mrf.mxu0
        %v6137 = vadd.f32 0.0, %v6136
        %v6138 = vpop.f32.mrf.mxu0
        %v6139 = vadd.f32 0.0, %v6138
        %6140 = vdwg.mxu0
        %v6141 = vadd.f32 %v6058, %v6117
        %v6142 = vadd.f32 %v6059, %v6119
        %v6143 = vadd.f32 %v6060, %v6122
        %v6144 = vadd.f32 %v6061, %v6124
        %v6145 = vadd.f32 %v6062, %v6127
        %v6146 = vadd.f32 %v6063, %v6129
        %v6147 = vadd.f32 %v6064, %v6132
        %v6148 = vadd.f32 %v6065, %v6134
        %v6149 = vadd.f32 %v6066, %v6137
        %v6150 = vadd.f32 %v6067, %v6139
        %v6151 = vld [vmem:[#allocation3 + $0x30] sm:$0xff]
        %v6152 = vld [vmem:[#allocation3 + $0x38] sm:$0xff]
        %v6153 = vld [vmem:[#allocation3 + $0x40] sm:$0xff]
        %v6154 = vld [vmem:[#allocation3 + $0x48] sm:$0xff]
        %v6155 = vld [vmem:[#allocation3 + $0x50] sm:$0xff]
        %v6156 = vld [vmem:[#allocation3 + $0x58] sm:$0xff]
        %v6157 = vld [vmem:[#allocation3 + $0x60] sm:$0xff]
        %v6158 = vld [vmem:[#allocation3 + $0x68] sm:$0xff]
        %v6159 = vld [vmem:[#allocation3 + $0x70] sm:$0xff]
        %v6160 = vld [vmem:[#allocation3 + $0x78] sm:$0x1]
        %v6161 = vpack.c.bf16 %v6152, %v6151
        %v6162 = vpack.c.bf16 %v6154, %v6153
        %v6163 = vpack.c.bf16 %v6156, %v6155
        %v6164 = vpack.c.bf16 %v6158, %v6157
        %v6165 = vpack.c.bf16 %v6160, %v6159
        %s6166 = scalar_lea.vmem %s3, 192
        %v6167 = vld [vmem:[%s6166] sm:$0xf]
        %v6168 = vld [vmem:[%s6166 + $0x4] sm:$0xf]
        %v6171 = vunpack.c.l.b16 %v6167
        %v6172 = vunpack.c.l.b16 %v6168
        %v6173 = vpack.c.b16 %v6172, %v6171
        %v6176 = vsel %vm3521, %v6161, 0
        %v6179 = vsel %vm3521, %v6162, 0
        %v6182 = vsel %vm3521, %v6163, 0
        %v6185 = vsel %vm3521, %v6164, 0
        %v6188 = vsel %vm3521, %v6165, 0
        %6190 = vmatpush.bf16.msra.mxu0 0
        %6191 = vmatpush.bf16.msra.mxu0 0
        %6192 = vmatpush.bf16.msra.mxu0 0
        %6193 = vmatpush.bf16.msra.mxu0 0
        %6194 = vmatpush.bf16.msra.mxu0 0
        %6195 = vmatpush.bf16.msra.mxu0 0
        %6196 = vmatpush.bf16.msra.mxu0 0
        %6197 = vmatpush.bf16.msra.mxu0 %v6173
        %6198 = vmatmul.bf16.gmra.mxu0 %v6176
        %v6199 = vpop.f32.mrf.mxu0
        %v6200 = vadd.f32 0.0, %v6199
        %v6201 = vpop.f32.mrf.mxu0
        %v6202 = vadd.f32 0.0, %v6201
        %6203 = vmatmul.bf16.gmra.mxu0 %v6179
        %v6204 = vpop.f32.mrf.mxu0
        %v6205 = vadd.f32 0.0, %v6204
        %v6206 = vpop.f32.mrf.mxu0
        %v6207 = vadd.f32 0.0, %v6206
        %6208 = vmatmul.bf16.gmra.mxu0 %v6182
        %v6209 = vpop.f32.mrf.mxu0
        %v6210 = vadd.f32 0.0, %v6209
        %v6211 = vpop.f32.mrf.mxu0
        %v6212 = vadd.f32 0.0, %v6211
        %6213 = vmatmul.bf16.gmra.mxu0 %v6185
        %v6214 = vpop.f32.mrf.mxu0
        %v6215 = vadd.f32 0.0, %v6214
        %v6216 = vpop.f32.mrf.mxu0
        %v6217 = vadd.f32 0.0, %v6216
        %6218 = vmatmul.bf16.gmra.mxu0 %v6188
        %v6219 = vpop.f32.mrf.mxu0
        %v6220 = vadd.f32 0.0, %v6219
        %v6221 = vpop.f32.mrf.mxu0
        %v6222 = vadd.f32 0.0, %v6221
        %6223 = vdwg.mxu0
        %v6224 = vadd.f32 %v6141, %v6200
        %v6225 = vadd.f32 %v6142, %v6202
        %v6226 = vadd.f32 %v6143, %v6205
        %v6227 = vadd.f32 %v6144, %v6207
        %v6228 = vadd.f32 %v6145, %v6210
        %v6229 = vadd.f32 %v6146, %v6212
        %v6230 = vadd.f32 %v6147, %v6215
        %v6231 = vadd.f32 %v6148, %v6217
        %v6232 = vadd.f32 %v6149, %v6220
        %v6233 = vadd.f32 %v6150, %v6222
        %v6234 = vld [vmem:[%s4] sm:$0x1]
        %v6236 = vperm.slane %v6234, 0
        %v6238 = vadd.f32 %v6224, %v6236
        %v6239 = vadd.f32 %v6225, %v6236
        %v6240 = vadd.f32 %v6226, %v6236
        %v6241 = vadd.f32 %v6227, %v6236
        %v6242 = vadd.f32 %v6228, %v6236
        %v6243 = vadd.f32 %v6229, %v6236
        %v6244 = vadd.f32 %v6230, %v6236
        %v6245 = vadd.f32 %v6231, %v6236
        %v6246 = vadd.f32 %v6232, %v6236
        %v6247 = vadd.f32 %v6233, %v6236
        %v6248 = vmax.f32 %v6238, 0.0
        %v6249 = vmax.f32 %v6239, 0.0
        %v6250 = vmax.f32 %v6240, 0.0
        %v6251 = vmax.f32 %v6241, 0.0
        %v6252 = vmax.f32 %v6242, 0.0
        %v6253 = vmax.f32 %v6243, 0.0
        %v6254 = vmax.f32 %v6244, 0.0
        %v6255 = vmax.f32 %v6245, 0.0
        %v6256 = vmax.f32 %v6246, 0.0
        %v6257 = vmax.f32 %v6247, 0.0
        %vm6258 = vcmask 261120
        %6259 = vst.msk [vmem:[#allocation4] sm:$0xff] %vm6258, %v6248
        %6260 = vst.msk [vmem:[#allocation4 + $0x8] sm:$0xff] %vm6258, %v6249
        %6261 = vst.msk [vmem:[#allocation4 + $0x10] sm:$0xff] %vm6258, %v6250
        %6262 = vst.msk [vmem:[#allocation4 + $0x18] sm:$0xff] %vm6258, %v6251
        %6263 = vst.msk [vmem:[#allocation4 + $0x20] sm:$0xff] %vm6258, %v6252
        %6264 = vst.msk [vmem:[#allocation4 + $0x28] sm:$0xff] %vm6258, %v6253
        %6265 = vst.msk [vmem:[#allocation4 + $0x30] sm:$0xff] %vm6258, %v6254
        %6266 = vst.msk [vmem:[#allocation4 + $0x38] sm:$0xff] %vm6258, %v6255
        %6267 = vst.msk [vmem:[#allocation4 + $0x40] sm:$0xff] %vm6258, %v6256
        %vm6268 = vcmask 253952
        %6269 = vst.msk [vmem:[#allocation4 + $0x48] sm:$0x1] %vm6268, %v6257
        %v6270 = vld [vmem:[#allocation4] sm:$0xff]
        %v6271 = vld [vmem:[#allocation4 + $0x8] sm:$0xff]
        %v6272 = vld [vmem:[#allocation4 + $0x10] sm:$0xff]
        %v6273 = vld [vmem:[#allocation4 + $0x18] sm:$0xff]
        %v6274 = vld [vmem:[#allocation4 + $0x20] sm:$0xff]
        %v6275 = vld [vmem:[#allocation4 + $0x28] sm:$0xff]
        %v6276 = vld [vmem:[#allocation4 + $0x30] sm:$0x1]
        %v6277 = vld [vmem:[#allocation4 + $0x1] sm:$0xff]
        %v6278 = vld [vmem:[#allocation4 + $0x9] sm:$0xff]
        %v6279 = vld [vmem:[#allocation4 + $0x11] sm:$0xff]
        %v6280 = vld [vmem:[#allocation4 + $0x19] sm:$0xff]
        %v6281 = vld [vmem:[#allocation4 + $0x21] sm:$0xff]
        %v6282 = vld [vmem:[#allocation4 + $0x29] sm:$0xff]
        %v6283 = vld [vmem:[#allocation4 + $0x31] sm:$0x1]
        %v6284 = vmax.f32 %v6270, %v6277
        %v6285 = vmax.f32 %v6271, %v6278
        %v6286 = vmax.f32 %v6272, %v6279
        %v6287 = vmax.f32 %v6273, %v6280
        %v6288 = vmax.f32 %v6274, %v6281
        %v6289 = vmax.f32 %v6275, %v6282
        %v6290 = vmax.f32 %v6276, %v6283
        %v6291 = vld [vmem:[#allocation4 + $0x2] sm:$0xff]
        %v6292 = vld [vmem:[#allocation4 + $0xa] sm:$0xff]
        %v6293 = vld [vmem:[#allocation4 + $0x12] sm:$0xff]
        %v6294 = vld [vmem:[#allocation4 + $0x1a] sm:$0xff]
        %v6295 = vld [vmem:[#allocation4 + $0x22] sm:$0xff]
        %v6296 = vld [vmem:[#allocation4 + $0x2a] sm:$0xff]
        %v6297 = vld [vmem:[#allocation4 + $0x32] sm:$0x1]
        %v6298 = vmax.f32 %v6284, %v6291
        %v6299 = vmax.f32 %v6285, %v6292
        %v6300 = vmax.f32 %v6286, %v6293
        %v6301 = vmax.f32 %v6287, %v6294
        %v6302 = vmax.f32 %v6288, %v6295
        %v6303 = vmax.f32 %v6289, %v6296
        %v6304 = vmax.f32 %v6290, %v6297
        %v6305 = vld [vmem:[#allocation4 + $0xb] sm:$0xff]
        %v6306 = vld [vmem:[#allocation4 + $0x13] sm:$0xff]
        %v6307 = vld [vmem:[#allocation4 + $0x1b] sm:$0xff]
        %v6308 = vld [vmem:[#allocation4 + $0x23] sm:$0xff]
        %v6309 = vld [vmem:[#allocation4 + $0x2b] sm:$0xff]
        %v6310 = vld [vmem:[#allocation4 + $0x33] sm:$0xff]
        %v6311 = vld [vmem:[#allocation4 + $0x3b] sm:$0x1]
        %v6312 = vmax.f32 %v6298, %v6305
        %v6313 = vmax.f32 %v6299, %v6306
        %v6314 = vmax.f32 %v6300, %v6307
        %v6315 = vmax.f32 %v6301, %v6308
        %v6316 = vmax.f32 %v6302, %v6309
        %v6317 = vmax.f32 %v6303, %v6310
        %v6318 = vmax.f32 %v6304, %v6311
        %v6319 = vld [vmem:[#allocation4 + $0xc] sm:$0xff]
        %v6320 = vld [vmem:[#allocation4 + $0x14] sm:$0xff]
        %v6321 = vld [vmem:[#allocation4 + $0x1c] sm:$0xff]
        %v6322 = vld [vmem:[#allocation4 + $0x24] sm:$0xff]
        %v6323 = vld [vmem:[#allocation4 + $0x2c] sm:$0xff]
        %v6324 = vld [vmem:[#allocation4 + $0x34] sm:$0xff]
        %v6325 = vld [vmem:[#allocation4 + $0x3c] sm:$0x1]
        %v6326 = vmax.f32 %v6312, %v6319
        %v6327 = vmax.f32 %v6313, %v6320
        %v6328 = vmax.f32 %v6314, %v6321
        %v6329 = vmax.f32 %v6315, %v6322
        %v6330 = vmax.f32 %v6316, %v6323
        %v6331 = vmax.f32 %v6317, %v6324
        %v6332 = vmax.f32 %v6318, %v6325
        %v6333 = vld [vmem:[#allocation4 + $0xd] sm:$0xff]
        %v6334 = vld [vmem:[#allocation4 + $0x15] sm:$0xff]
        %v6335 = vld [vmem:[#allocation4 + $0x1d] sm:$0xff]
        %v6336 = vld [vmem:[#allocation4 + $0x25] sm:$0xff]
        %v6337 = vld [vmem:[#allocation4 + $0x2d] sm:$0xff]
        %v6338 = vld [vmem:[#allocation4 + $0x35] sm:$0xff]
        %v6339 = vld [vmem:[#allocation4 + $0x3d] sm:$0x1]
        %v6340 = vmax.f32 %v6326, %v6333
        %v6341 = vmax.f32 %v6327, %v6334
        %v6342 = vmax.f32 %v6328, %v6335
        %v6343 = vmax.f32 %v6329, %v6336
        %v6344 = vmax.f32 %v6330, %v6337
        %v6345 = vmax.f32 %v6331, %v6338
        %v6346 = vmax.f32 %v6332, %v6339
        %v6347 = vld [vmem:[#allocation4 + $0x16] sm:$0xff]
        %v6348 = vld [vmem:[#allocation4 + $0x1e] sm:$0xff]
        %v6349 = vld [vmem:[#allocation4 + $0x26] sm:$0xff]
        %v6350 = vld [vmem:[#allocation4 + $0x2e] sm:$0xff]
        %v6351 = vld [vmem:[#allocation4 + $0x36] sm:$0xff]
        %v6352 = vld [vmem:[#allocation4 + $0x3e] sm:$0xff]
        %v6353 = vld [vmem:[#allocation4 + $0x46] sm:$0x1]
        %v6354 = vmax.f32 %v6340, %v6347
        %v6355 = vmax.f32 %v6341, %v6348
        %v6356 = vmax.f32 %v6342, %v6349
        %v6357 = vmax.f32 %v6343, %v6350
        %v6358 = vmax.f32 %v6344, %v6351
        %v6359 = vmax.f32 %v6345, %v6352
        %v6360 = vmax.f32 %v6346, %v6353
        %v6361 = vld [vmem:[#allocation4 + $0x17] sm:$0xff]
        %v6362 = vld [vmem:[#allocation4 + $0x1f] sm:$0xff]
        %v6363 = vld [vmem:[#allocation4 + $0x27] sm:$0xff]
        %v6364 = vld [vmem:[#allocation4 + $0x2f] sm:$0xff]
        %v6365 = vld [vmem:[#allocation4 + $0x37] sm:$0xff]
        %v6366 = vld [vmem:[#allocation4 + $0x3f] sm:$0xff]
        %v6367 = vld [vmem:[#allocation4 + $0x47] sm:$0x1]
        %v6368 = vmax.f32 %v6354, %v6361
        %v6369 = vmax.f32 %v6355, %v6362
        %v6370 = vmax.f32 %v6356, %v6363
        %v6371 = vmax.f32 %v6357, %v6364
        %v6372 = vmax.f32 %v6358, %v6365
        %v6373 = vmax.f32 %v6359, %v6366
        %v6374 = vmax.f32 %v6360, %v6367
        %v6375 = vld [vmem:[#allocation4 + $0x30] sm:$0xff]
        %v6376 = vld [vmem:[#allocation4 + $0x38] sm:$0xff]
        %v6377 = vld [vmem:[#allocation4 + $0x40] sm:$0xff]
        %v6378 = vld [vmem:[#allocation4 + $0x48] sm:$0x1]
        %v6379 = vmax.f32 %v6368, %v6273
        %v6380 = vmax.f32 %v6369, %v6274
        %v6381 = vmax.f32 %v6370, %v6275
        %v6382 = vmax.f32 %v6371, %v6375
        %v6383 = vmax.f32 %v6372, %v6376
        %v6384 = vmax.f32 %v6373, %v6377
        %v6385 = vmax.f32 %v6374, %v6378
        %v6386 = vld [vmem:[%s12] sm:$0xf]
        %v6387 = vld [vmem:[%s12 + $0x4] sm:$0xf]
        %v6388 = vld [vmem:[%s12 + $0x8] sm:$0xf]
        %v6389 = vld [vmem:[%s12 + $0xc] sm:$0x1]
        %v6390 = vpack.c.bf16 %v6380, %v6379
        %v6391 = vpack.c.bf16 %v6382, %v6381
        %v6392 = vpack.c.bf16 %v6384, %v6383
        %v6393 = vpack.c.bf16 %v6385, %v6385
        %v6398 = vunpack.c.l.b16 %v6386
        %v6399 = vunpack.c.l.b16 %v6387
        %v6400 = vunpack.c.l.b16 %v6388
        %v6401 = vunpack.c.l.b16 %v6389
        %v6402 = vpack.c.b16 %v6399, %v6398
        %v6403 = vpack.c.b16 %v6401, %v6400
        %vm6404 = vcmask 400384
        %v6406 = vsel %vm6404, %v6402, 0
        %v6409 = vsel %vm6404, %v6403, 0
        %vm6411 = vcmask 1040384
        %v6412 = vsel 0, 4294967295, 65535
        %v6413 = vsel %vm6411, %v6412, 0
        %v6415 = vand.u32 %v6393, %v6413
        %6417 = vmatpush.bf16.msra.mxu0 0
        %6418 = vmatpush.bf16.msra.mxu0 0
        %6419 = vmatpush.bf16.msra.mxu0 0
        %6420 = vmatpush.bf16.msra.mxu0 0
        %6421 = vmatpush.bf16.msra.mxu0 %v6415
        %6422 = vmatpush.bf16.msra.mxu0 %v6392
        %6423 = vmatpush.bf16.msra.mxu0 %v6391
        %6424 = vmatpush.bf16.msra.mxu0 %v6390
        %6425 = vmatmul.bf16.gmra.mxu0 %v6406
        %v6426 = vpop.f32.mrf.mxu0
        %v6427 = vadd.f32 0.0, %v6426
        %v6428 = vpop.f32.mrf.mxu0
        %v6429 = vadd.f32 0.0, %v6428
        %6430 = vmatmul.bf16.gmra.mxu0 %v6409
        %v6431 = vpop.f32.mrf.mxu0
        %v6432 = vadd.f32 0.0, %v6431
        %v6433 = vpop.f32.mrf.mxu0
        %v6434 = vadd.f32 0.0, %v6433
        %6435 = vdwg.mxu0
        %6436 = vst.msk [vmem:[#allocation5] sm:$0xff] %vm6258, %v6427
        %6437 = vst.msk [vmem:[#allocation5 + $0x8] sm:$0xff] %vm6258, %v6429
        %6438 = vst.msk [vmem:[#allocation5 + $0x10] sm:$0xff] %vm6258, %v6432
        %6439 = vst.msk [vmem:[#allocation5 + $0x18] sm:$0x1] %vm6268, %v6434
        %v6440 = vld [vmem:[%s13] sm:$0xff]
        %v6441 = vld [vmem:[%s13 + $0x8] sm:$0x1f]
        %v6442 = vld [vmem:[#allocation5] sm:$0xff]
        %v6443 = vld [vmem:[#allocation5 + $0x8] sm:$0x1f]
        %v6444 = vpack.c.bf16 %v6443, %v6442
        %v6445 = vld [vmem:[%s5] sm:$0xf]
        %v6446 = vld [vmem:[%s5 + $0x4] sm:$0xf]
        %v6447 = vld [vmem:[%s5 + $0x8] sm:$0xf]
        %v6448 = vld [vmem:[%s5 + $0xc] sm:$0xf]
        %v6449 = vld [vmem:[#allocation5 + $0x1] sm:$0xff]
        %v6450 = vld [vmem:[#allocation5 + $0x9] sm:$0x1f]
        %v6451 = vpack.c.bf16 %v6450, %v6449
        %s6452 = scalar_lea.vmem %s5, 16
        %v6453 = vld [vmem:[%s6452] sm:$0xf]
        %v6454 = vld [vmem:[%s6452 + $0x4] sm:$0xf]
        %v6455 = vld [vmem:[%s6452 + $0x8] sm:$0xf]
        %v6456 = vld [vmem:[%s6452 + $0xc] sm:$0xf]
        %v6461 = vunpack.c.l.b16 %v6453
        %v6462 = vunpack.c.l.b16 %v6454
        %v6463 = vunpack.c.l.b16 %v6455
        %v6464 = vunpack.c.l.b16 %v6456
        %v6465 = vpack.c.b16 %v6462, %v6461
        %v6466 = vpack.c.b16 %v6464, %v6463
        %v6470 = vsel %vm6258, %v6451, 0
        %6472 = vmatpush.bf16.msra.mxu0 0
        %6473 = vmatpush.bf16.msra.mxu0 0
        %6474 = vmatpush.bf16.msra.mxu0 0
        %6475 = vmatpush.bf16.msra.mxu0 0
        %6476 = vmatpush.bf16.msra.mxu0 0
        %6477 = vmatpush.bf16.msra.mxu0 0
        %6478 = vmatpush.bf16.msra.mxu0 %v6466
        %6479 = vmatpush.bf16.msra.mxu0 %v6465
        %6480 = vmatmul.bf16.gmra.mxu0 %v6470
        %v6481 = vpop.f32.mrf.mxu0
        %v6482 = vadd.f32 0.0, %v6481
        %v6483 = vpop.f32.mrf.mxu0
        %v6484 = vadd.f32 0.0, %v6483
        %6485 = vdwg.mxu0
        %v6490 = vunpack.c.l.b16 %v6445
        %v6491 = vunpack.c.l.b16 %v6446
        %v6492 = vunpack.c.l.b16 %v6447
        %v6493 = vunpack.c.l.b16 %v6448
        %v6494 = vpack.c.b16 %v6491, %v6490
        %v6495 = vpack.c.b16 %v6493, %v6492
        %v6499 = vsel %vm6258, %v6444, 0
        %6501 = vmatpush.bf16.msra.mxu0 0
        %6502 = vmatpush.bf16.msra.mxu0 0
        %6503 = vmatpush.bf16.msra.mxu0 0
        %6504 = vmatpush.bf16.msra.mxu0 0
        %6505 = vmatpush.bf16.msra.mxu0 0
        %6506 = vmatpush.bf16.msra.mxu0 0
        %6507 = vmatpush.bf16.msra.mxu0 %v6495
        %6508 = vmatpush.bf16.msra.mxu0 %v6494
        %6509 = vmatmul.bf16.gmra.mxu0 %v6499
        %v6510 = vpop.f32.mrf.mxu0
        %v6511 = vadd.f32 %v6482, %v6510
        %v6512 = vpop.f32.mrf.mxu0
        %v6513 = vadd.f32 %v6484, %v6512
        %6514 = vdwg.mxu0
        %v6515 = vld [vmem:[#allocation5 + $0x2] sm:$0xff]
        %v6516 = vld [vmem:[#allocation5 + $0xa] sm:$0x1f]
        %v6517 = vpack.c.bf16 %v6516, %v6515
        %s6518 = scalar_lea.vmem %s5, 32
        %v6519 = vld [vmem:[%s6518] sm:$0xf]
        %v6520 = vld [vmem:[%s6518 + $0x4] sm:$0xf]
        %v6521 = vld [vmem:[%s6518 + $0x8] sm:$0xf]
        %v6522 = vld [vmem:[%s6518 + $0xc] sm:$0xf]
        %v6527 = vunpack.c.l.b16 %v6519
        %v6528 = vunpack.c.l.b16 %v6520
        %v6529 = vunpack.c.l.b16 %v6521
        %v6530 = vunpack.c.l.b16 %v6522
        %v6531 = vpack.c.b16 %v6528, %v6527
        %v6532 = vpack.c.b16 %v6530, %v6529
        %v6536 = vsel %vm6258, %v6517, 0
        %6538 = vmatpush.bf16.msra.mxu0 0
        %6539 = vmatpush.bf16.msra.mxu0 0
        %6540 = vmatpush.bf16.msra.mxu0 0
        %6541 = vmatpush.bf16.msra.mxu0 0
        %6542 = vmatpush.bf16.msra.mxu0 0
        %6543 = vmatpush.bf16.msra.mxu0 0
        %6544 = vmatpush.bf16.msra.mxu0 %v6532
        %6545 = vmatpush.bf16.msra.mxu0 %v6531
        %6546 = vmatmul.bf16.gmra.mxu0 %v6536
        %v6547 = vpop.f32.mrf.mxu0
        %v6548 = vadd.f32 0.0, %v6547
        %v6549 = vpop.f32.mrf.mxu0
        %v6550 = vadd.f32 0.0, %v6549
        %6551 = vdwg.mxu0
        %v6552 = vadd.f32 %v6511, %v6548
        %v6553 = vadd.f32 %v6513, %v6550
        %v6554 = vld [vmem:[#allocation5 + $0x5] sm:$0xff]
        %v6555 = vld [vmem:[#allocation5 + $0xd] sm:$0x1f]
        %v6556 = vpack.c.bf16 %v6555, %v6554
        %s6557 = scalar_lea.vmem %s5, 48
        %v6558 = vld [vmem:[%s6557] sm:$0xf]
        %v6559 = vld [vmem:[%s6557 + $0x4] sm:$0xf]
        %v6560 = vld [vmem:[%s6557 + $0x8] sm:$0xf]
        %v6561 = vld [vmem:[%s6557 + $0xc] sm:$0xf]
        %v6566 = vunpack.c.l.b16 %v6558
        %v6567 = vunpack.c.l.b16 %v6559
        %v6568 = vunpack.c.l.b16 %v6560
        %v6569 = vunpack.c.l.b16 %v6561
        %v6570 = vpack.c.b16 %v6567, %v6566
        %v6571 = vpack.c.b16 %v6569, %v6568
        %v6575 = vsel %vm6258, %v6556, 0
        %6577 = vmatpush.bf16.msra.mxu0 0
        %6578 = vmatpush.bf16.msra.mxu0 0
        %6579 = vmatpush.bf16.msra.mxu0 0
        %6580 = vmatpush.bf16.msra.mxu0 0
        %6581 = vmatpush.bf16.msra.mxu0 0
        %6582 = vmatpush.bf16.msra.mxu0 0
        %6583 = vmatpush.bf16.msra.mxu0 %v6571
        %6584 = vmatpush.bf16.msra.mxu0 %v6570
        %6585 = vmatmul.bf16.gmra.mxu0 %v6575
        %v6586 = vpop.f32.mrf.mxu0
        %v6587 = vadd.f32 0.0, %v6586
        %v6588 = vpop.f32.mrf.mxu0
        %v6589 = vadd.f32 0.0, %v6588
        %6590 = vdwg.mxu0
        %v6591 = vadd.f32 %v6552, %v6587
        %v6592 = vadd.f32 %v6553, %v6589
        %v6593 = vld [vmem:[#allocation5 + $0x6] sm:$0xff]
        %v6594 = vld [vmem:[#allocation5 + $0xe] sm:$0x1f]
        %v6595 = vpack.c.bf16 %v6594, %v6593
        %s6596 = scalar_lea.vmem %s5, 64
        %v6597 = vld [vmem:[%s6596] sm:$0xf]
        %v6598 = vld [vmem:[%s6596 + $0x4] sm:$0xf]
        %v6599 = vld [vmem:[%s6596 + $0x8] sm:$0xf]
        %v6600 = vld [vmem:[%s6596 + $0xc] sm:$0xf]
        %v6605 = vunpack.c.l.b16 %v6597
        %v6606 = vunpack.c.l.b16 %v6598
        %v6607 = vunpack.c.l.b16 %v6599
        %v6608 = vunpack.c.l.b16 %v6600
        %v6609 = vpack.c.b16 %v6606, %v6605
        %v6610 = vpack.c.b16 %v6608, %v6607
        %v6614 = vsel %vm6258, %v6595, 0
        %6616 = vmatpush.bf16.msra.mxu0 0
        %6617 = vmatpush.bf16.msra.mxu0 0
        %6618 = vmatpush.bf16.msra.mxu0 0
        %6619 = vmatpush.bf16.msra.mxu0 0
        %6620 = vmatpush.bf16.msra.mxu0 0
        %6621 = vmatpush.bf16.msra.mxu0 0
        %6622 = vmatpush.bf16.msra.mxu0 %v6610
        %6623 = vmatpush.bf16.msra.mxu0 %v6609
        %6624 = vmatmul.bf16.gmra.mxu0 %v6614
        %v6625 = vpop.f32.mrf.mxu0
        %v6626 = vadd.f32 0.0, %v6625
        %v6627 = vpop.f32.mrf.mxu0
        %v6628 = vadd.f32 0.0, %v6627
        %6629 = vdwg.mxu0
        %v6630 = vadd.f32 %v6591, %v6626
        %v6631 = vadd.f32 %v6592, %v6628
        %v6632 = vld [vmem:[#allocation5 + $0x7] sm:$0xff]
        %v6633 = vld [vmem:[#allocation5 + $0xf] sm:$0x1f]
        %v6634 = vpack.c.bf16 %v6633, %v6632
        %s6635 = scalar_lea.vmem %s5, 80
        %v6636 = vld [vmem:[%s6635] sm:$0xf]
        %v6637 = vld [vmem:[%s6635 + $0x4] sm:$0xf]
        %v6638 = vld [vmem:[%s6635 + $0x8] sm:$0xf]
        %v6639 = vld [vmem:[%s6635 + $0xc] sm:$0xf]
        %v6644 = vunpack.c.l.b16 %v6636
        %v6645 = vunpack.c.l.b16 %v6637
        %v6646 = vunpack.c.l.b16 %v6638
        %v6647 = vunpack.c.l.b16 %v6639
        %v6648 = vpack.c.b16 %v6645, %v6644
        %v6649 = vpack.c.b16 %v6647, %v6646
        %v6653 = vsel %vm6258, %v6634, 0
        %6655 = vmatpush.bf16.msra.mxu0 0
        %6656 = vmatpush.bf16.msra.mxu0 0
        %6657 = vmatpush.bf16.msra.mxu0 0
        %6658 = vmatpush.bf16.msra.mxu0 0
        %6659 = vmatpush.bf16.msra.mxu0 0
        %6660 = vmatpush.bf16.msra.mxu0 0
        %6661 = vmatpush.bf16.msra.mxu0 %v6649
        %6662 = vmatpush.bf16.msra.mxu0 %v6648
        %6663 = vmatmul.bf16.gmra.mxu0 %v6653
        %v6664 = vpop.f32.mrf.mxu0
        %v6665 = vadd.f32 0.0, %v6664
        %v6666 = vpop.f32.mrf.mxu0
        %v6667 = vadd.f32 0.0, %v6666
        %6668 = vdwg.mxu0
        %v6669 = vadd.f32 %v6630, %v6665
        %v6670 = vadd.f32 %v6631, %v6667
        %v6671 = vld [vmem:[#allocation5 + $0xa] sm:$0xff]
        %v6672 = vld [vmem:[#allocation5 + $0x12] sm:$0x1f]
        %v6673 = vpack.c.bf16 %v6672, %v6671
        %s6674 = scalar_lea.vmem %s5, 96
        %v6675 = vld [vmem:[%s6674] sm:$0xf]
        %v6676 = vld [vmem:[%s6674 + $0x4] sm:$0xf]
        %v6677 = vld [vmem:[%s6674 + $0x8] sm:$0xf]
        %v6678 = vld [vmem:[%s6674 + $0xc] sm:$0xf]
        %v6683 = vunpack.c.l.b16 %v6675
        %v6684 = vunpack.c.l.b16 %v6676
        %v6685 = vunpack.c.l.b16 %v6677
        %v6686 = vunpack.c.l.b16 %v6678
        %v6687 = vpack.c.b16 %v6684, %v6683
        %v6688 = vpack.c.b16 %v6686, %v6685
        %v6692 = vsel %vm6258, %v6673, 0
        %6694 = vmatpush.bf16.msra.mxu0 0
        %6695 = vmatpush.bf16.msra.mxu0 0
        %6696 = vmatpush.bf16.msra.mxu0 0
        %6697 = vmatpush.bf16.msra.mxu0 0
        %6698 = vmatpush.bf16.msra.mxu0 0
        %6699 = vmatpush.bf16.msra.mxu0 0
        %6700 = vmatpush.bf16.msra.mxu0 %v6688
        %6701 = vmatpush.bf16.msra.mxu0 %v6687
        %6702 = vmatmul.bf16.gmra.mxu0 %v6692
        %v6703 = vpop.f32.mrf.mxu0
        %v6704 = vadd.f32 0.0, %v6703
        %v6705 = vpop.f32.mrf.mxu0
        %v6706 = vadd.f32 0.0, %v6705
        %6707 = vdwg.mxu0
        %v6708 = vadd.f32 %v6669, %v6704
        %v6709 = vadd.f32 %v6670, %v6706
        %v6710 = vld [vmem:[#allocation5 + $0xb] sm:$0xff]
        %v6711 = vld [vmem:[#allocation5 + $0x13] sm:$0x1f]
        %v6712 = vpack.c.bf16 %v6711, %v6710
        %s6713 = scalar_lea.vmem %s5, 112
        %v6714 = vld [vmem:[%s6713] sm:$0xf]
        %v6715 = vld [vmem:[%s6713 + $0x4] sm:$0xf]
        %v6716 = vld [vmem:[%s6713 + $0x8] sm:$0xf]
        %v6717 = vld [vmem:[%s6713 + $0xc] sm:$0xf]
        %v6722 = vunpack.c.l.b16 %v6714
        %v6723 = vunpack.c.l.b16 %v6715
        %v6724 = vunpack.c.l.b16 %v6716
        %v6725 = vunpack.c.l.b16 %v6717
        %v6726 = vpack.c.b16 %v6723, %v6722
        %v6727 = vpack.c.b16 %v6725, %v6724
        %v6731 = vsel %vm6258, %v6712, 0
        %6733 = vmatpush.bf16.msra.mxu0 0
        %6734 = vmatpush.bf16.msra.mxu0 0
        %6735 = vmatpush.bf16.msra.mxu0 0
        %6736 = vmatpush.bf16.msra.mxu0 0
        %6737 = vmatpush.bf16.msra.mxu0 0
        %6738 = vmatpush.bf16.msra.mxu0 0
        %6739 = vmatpush.bf16.msra.mxu0 %v6727
        %6740 = vmatpush.bf16.msra.mxu0 %v6726
        %6741 = vmatmul.bf16.gmra.mxu0 %v6731
        %v6742 = vpop.f32.mrf.mxu0
        %v6743 = vadd.f32 0.0, %v6742
        %v6744 = vpop.f32.mrf.mxu0
        %v6745 = vadd.f32 0.0, %v6744
        %6746 = vdwg.mxu0
        %v6747 = vadd.f32 %v6708, %v6743
        %v6748 = vadd.f32 %v6709, %v6745
        %v6749 = vld [vmem:[#allocation5 + $0xc] sm:$0xff]
        %v6750 = vld [vmem:[#allocation5 + $0x14] sm:$0x1f]
        %v6751 = vpack.c.bf16 %v6750, %v6749
        %s6752 = scalar_lea.vmem %s5, 128
        %v6753 = vld [vmem:[%s6752] sm:$0xf]
        %v6754 = vld [vmem:[%s6752 + $0x4] sm:$0xf]
        %v6755 = vld [vmem:[%s6752 + $0x8] sm:$0xf]
        %v6756 = vld [vmem:[%s6752 + $0xc] sm:$0xf]
        %v6761 = vunpack.c.l.b16 %v6753
        %v6762 = vunpack.c.l.b16 %v6754
        %v6763 = vunpack.c.l.b16 %v6755
        %v6764 = vunpack.c.l.b16 %v6756
        %v6765 = vpack.c.b16 %v6762, %v6761
        %v6766 = vpack.c.b16 %v6764, %v6763
        %v6770 = vsel %vm6258, %v6751, 0
        %6772 = vmatpush.bf16.msra.mxu0 0
        %6773 = vmatpush.bf16.msra.mxu0 0
        %6774 = vmatpush.bf16.msra.mxu0 0
        %6775 = vmatpush.bf16.msra.mxu0 0
        %6776 = vmatpush.bf16.msra.mxu0 0
        %6777 = vmatpush.bf16.msra.mxu0 0
        %6778 = vmatpush.bf16.msra.mxu0 %v6766
        %6779 = vmatpush.bf16.msra.mxu0 %v6765
        %6780 = vmatmul.bf16.gmra.mxu0 %v6770
        %v6781 = vpop.f32.mrf.mxu0
        %v6782 = vadd.f32 0.0, %v6781
        %v6783 = vpop.f32.mrf.mxu0
        %v6784 = vadd.f32 0.0, %v6783
        %6785 = vdwg.mxu0
        %v6786 = vadd.f32 %v6747, %v6782
        %v6787 = vadd.f32 %v6748, %v6784
        %v6788 = vld [vmem:[%s6] sm:$0x1]
        %v6790 = vperm.slane %v6788, 0
        %v6792 = vadd.f32 %v6786, %v6790
        %v6793 = vadd.f32 %v6787, %v6790
        %v6794 = vmax.f32 %v6792, 0.0
        %v6795 = vmax.f32 %v6793, 0.0
        %6797 = vset.pattern.permute.xlu0 0
        %6798 = vperm.xlu0 %6797, %v6440
        %v6799 = vpop.permute.xlu0 %6798
        %6802 = vset.pattern.permute.xlu0 0
        %6803 = vperm.xlu0 %6802, %v6441
        %v6804 = vpop.permute.xlu0 %6803
        %v6806 = vmul.f32 %v6794, %v6799
        %v6807 = vmul.f32 %v6795, %v6804
        %vm6808 = vcmask 390144
        %6809 = vst.msk [vmem:[#allocation6] sm:$0x3f] %vm6808, 0.0
        %6810 = vst.msk [vmem:[#allocation6 + $0x13] sm:$0x3f] %vm6808, 0.0
        %6811 = vst.msk [vmem:[#allocation6 + $0x6] sm:$0xff] %vm990, %v6806
        %vm6812 = vcmask 389120
        %6813 = vst.msk [vmem:[#allocation6 + $0xe] sm:$0x1f] %vm6812, %v6807
        %v6814 = vld [vmem:[#allocation6] sm:$0xff]
        %v6815 = vld [vmem:[#allocation6 + $0x8] sm:$0x1f]
        %v6816 = vpack.c.bf16 %v6815, %v6814
        %v6817 = vld [vmem:[%s7] sm:$0xf]
        %v6818 = vld [vmem:[%s7 + $0x4] sm:$0xf]
        %v6819 = vld [vmem:[%s7 + $0x8] sm:$0xf]
        %v6820 = vld [vmem:[%s7 + $0xc] sm:$0xf]
        %v6821 = vld [vmem:[%s7 + $0x10] sm:$0xf]
        %v6822 = vld [vmem:[%s7 + $0x14] sm:$0xf]
        %v6823 = vld [vmem:[#allocation6 + $0x1] sm:$0xff]
        %v6824 = vld [vmem:[#allocation6 + $0x9] sm:$0x1f]
        %v6825 = vpack.c.bf16 %v6824, %v6823
        %s6826 = scalar_lea.vmem %s7, 24
        %v6827 = vld [vmem:[%s6826] sm:$0xf]
        %v6828 = vld [vmem:[%s6826 + $0x4] sm:$0xf]
        %v6829 = vld [vmem:[%s6826 + $0x8] sm:$0xf]
        %v6830 = vld [vmem:[%s6826 + $0xc] sm:$0xf]
        %v6831 = vld [vmem:[%s6826 + $0x10] sm:$0xf]
        %v6832 = vld [vmem:[%s6826 + $0x14] sm:$0xf]
        %v6839 = vunpack.c.l.b16 %v6827
        %v6840 = vunpack.c.l.b16 %v6828
        %v6841 = vunpack.c.l.b16 %v6829
        %v6842 = vunpack.c.l.b16 %v6830
        %v6843 = vunpack.c.l.b16 %v6831
        %v6844 = vunpack.c.l.b16 %v6832
        %v6845 = vpack.c.b16 %v6840, %v6839
        %v6846 = vpack.c.b16 %v6842, %v6841
        %v6847 = vpack.c.b16 %v6844, %v6843
        %v6852 = vsel %vm990, %v6825, 0
        %6854 = vmatpush.bf16.msra.mxu0 0
        %6855 = vmatpush.bf16.msra.mxu0 0
        %6856 = vmatpush.bf16.msra.mxu0 0
        %6857 = vmatpush.bf16.msra.mxu0 0
        %6858 = vmatpush.bf16.msra.mxu0 0
        %6859 = vmatpush.bf16.msra.mxu0 %v6847
        %6860 = vmatpush.bf16.msra.mxu0 %v6846
        %6861 = vmatpush.bf16.msra.mxu0 %v6845
        %6862 = vmatmul.bf16.gmra.mxu0 %v6852
        %v6863 = vpop.f32.mrf.mxu0
        %v6864 = vadd.f32 0.0, %v6863
        %v6865 = vpop.f32.mrf.mxu0
        %v6866 = vadd.f32 0.0, %v6865
        %6867 = vdwg.mxu0
        %v6874 = vunpack.c.l.b16 %v6817
        %v6875 = vunpack.c.l.b16 %v6818
        %v6876 = vunpack.c.l.b16 %v6819
        %v6877 = vunpack.c.l.b16 %v6820
        %v6878 = vunpack.c.l.b16 %v6821
        %v6879 = vunpack.c.l.b16 %v6822
        %v6880 = vpack.c.b16 %v6875, %v6874
        %v6881 = vpack.c.b16 %v6877, %v6876
        %v6882 = vpack.c.b16 %v6879, %v6878
        %v6887 = vsel %vm990, %v6816, 0
        %6889 = vmatpush.bf16.msra.mxu0 0
        %6890 = vmatpush.bf16.msra.mxu0 0
        %6891 = vmatpush.bf16.msra.mxu0 0
        %6892 = vmatpush.bf16.msra.mxu0 0
        %6893 = vmatpush.bf16.msra.mxu0 0
        %6894 = vmatpush.bf16.msra.mxu0 %v6882
        %6895 = vmatpush.bf16.msra.mxu0 %v6881
        %6896 = vmatpush.bf16.msra.mxu0 %v6880
        %6897 = vmatmul.bf16.gmra.mxu0 %v6887
        %v6898 = vpop.f32.mrf.mxu0
        %v6899 = vadd.f32 %v6864, %v6898
        %v6900 = vpop.f32.mrf.mxu0
        %v6901 = vadd.f32 %v6866, %v6900
        %6902 = vdwg.mxu0
        %v6903 = vld [vmem:[#allocation6 + $0x2] sm:$0xff]
        %v6904 = vld [vmem:[#allocation6 + $0xa] sm:$0x1f]
        %v6905 = vpack.c.bf16 %v6904, %v6903
        %s6906 = scalar_lea.vmem %s7, 48
        %v6907 = vld [vmem:[%s6906] sm:$0xf]
        %v6908 = vld [vmem:[%s6906 + $0x4] sm:$0xf]
        %v6909 = vld [vmem:[%s6906 + $0x8] sm:$0xf]
        %v6910 = vld [vmem:[%s6906 + $0xc] sm:$0xf]
        %v6911 = vld [vmem:[%s6906 + $0x10] sm:$0xf]
        %v6912 = vld [vmem:[%s6906 + $0x14] sm:$0xf]
        %v6919 = vunpack.c.l.b16 %v6907
        %v6920 = vunpack.c.l.b16 %v6908
        %v6921 = vunpack.c.l.b16 %v6909
        %v6922 = vunpack.c.l.b16 %v6910
        %v6923 = vunpack.c.l.b16 %v6911
        %v6924 = vunpack.c.l.b16 %v6912
        %v6925 = vpack.c.b16 %v6920, %v6919
        %v6926 = vpack.c.b16 %v6922, %v6921
        %v6927 = vpack.c.b16 %v6924, %v6923
        %v6932 = vsel %vm990, %v6905, 0
        %6934 = vmatpush.bf16.msra.mxu0 0
        %6935 = vmatpush.bf16.msra.mxu0 0
        %6936 = vmatpush.bf16.msra.mxu0 0
        %6937 = vmatpush.bf16.msra.mxu0 0
        %6938 = vmatpush.bf16.msra.mxu0 0
        %6939 = vmatpush.bf16.msra.mxu0 %v6927
        %6940 = vmatpush.bf16.msra.mxu0 %v6926
        %6941 = vmatpush.bf16.msra.mxu0 %v6925
        %6942 = vmatmul.bf16.gmra.mxu0 %v6932
        %v6943 = vpop.f32.mrf.mxu0
        %v6944 = vadd.f32 0.0, %v6943
        %v6945 = vpop.f32.mrf.mxu0
        %v6946 = vadd.f32 0.0, %v6945
        %6947 = vdwg.mxu0
        %v6948 = vadd.f32 %v6899, %v6944
        %v6949 = vadd.f32 %v6901, %v6946
        %v6950 = vld [vmem:[#allocation6 + $0x5] sm:$0xff]
        %v6951 = vld [vmem:[#allocation6 + $0xd] sm:$0x1f]
        %v6952 = vpack.c.bf16 %v6951, %v6950
        %s6953 = scalar_lea.vmem %s7, 72
        %v6954 = vld [vmem:[%s6953] sm:$0xf]
        %v6955 = vld [vmem:[%s6953 + $0x4] sm:$0xf]
        %v6956 = vld [vmem:[%s6953 + $0x8] sm:$0xf]
        %v6957 = vld [vmem:[%s6953 + $0xc] sm:$0xf]
        %v6958 = vld [vmem:[%s6953 + $0x10] sm:$0xf]
        %v6959 = vld [vmem:[%s6953 + $0x14] sm:$0xf]
        %v6966 = vunpack.c.l.b16 %v6954
        %v6967 = vunpack.c.l.b16 %v6955
        %v6968 = vunpack.c.l.b16 %v6956
        %v6969 = vunpack.c.l.b16 %v6957
        %v6970 = vunpack.c.l.b16 %v6958
        %v6971 = vunpack.c.l.b16 %v6959
        %v6972 = vpack.c.b16 %v6967, %v6966
        %v6973 = vpack.c.b16 %v6969, %v6968
        %v6974 = vpack.c.b16 %v6971, %v6970
        %v6979 = vsel %vm990, %v6952, 0
        %6981 = vmatpush.bf16.msra.mxu0 0
        %6982 = vmatpush.bf16.msra.mxu0 0
        %6983 = vmatpush.bf16.msra.mxu0 0
        %6984 = vmatpush.bf16.msra.mxu0 0
        %6985 = vmatpush.bf16.msra.mxu0 0
        %6986 = vmatpush.bf16.msra.mxu0 %v6974
        %6987 = vmatpush.bf16.msra.mxu0 %v6973
        %6988 = vmatpush.bf16.msra.mxu0 %v6972
        %6989 = vmatmul.bf16.gmra.mxu0 %v6979
        %v6990 = vpop.f32.mrf.mxu0
        %v6991 = vadd.f32 0.0, %v6990
        %v6992 = vpop.f32.mrf.mxu0
        %v6993 = vadd.f32 0.0, %v6992
        %6994 = vdwg.mxu0
        %v6995 = vadd.f32 %v6948, %v6991
        %v6996 = vadd.f32 %v6949, %v6993
        %v6997 = vld [vmem:[#allocation6 + $0x6] sm:$0xff]
        %v6998 = vld [vmem:[#allocation6 + $0xe] sm:$0x1f]
        %v6999 = vpack.c.bf16 %v6998, %v6997
        %s7000 = scalar_lea.vmem %s7, 96
        %v7001 = vld [vmem:[%s7000] sm:$0xf]
        %v7002 = vld [vmem:[%s7000 + $0x4] sm:$0xf]
        %v7003 = vld [vmem:[%s7000 + $0x8] sm:$0xf]
        %v7004 = vld [vmem:[%s7000 + $0xc] sm:$0xf]
        %v7005 = vld [vmem:[%s7000 + $0x10] sm:$0xf]
        %v7006 = vld [vmem:[%s7000 + $0x14] sm:$0xf]
        %v7013 = vunpack.c.l.b16 %v7001
        %v7014 = vunpack.c.l.b16 %v7002
        %v7015 = vunpack.c.l.b16 %v7003
        %v7016 = vunpack.c.l.b16 %v7004
        %v7017 = vunpack.c.l.b16 %v7005
        %v7018 = vunpack.c.l.b16 %v7006
        %v7019 = vpack.c.b16 %v7014, %v7013
        %v7020 = vpack.c.b16 %v7016, %v7015
        %v7021 = vpack.c.b16 %v7018, %v7017
        %v7026 = vsel %vm990, %v6999, 0
        %7028 = vmatpush.bf16.msra.mxu0 0
        %7029 = vmatpush.bf16.msra.mxu0 0
        %7030 = vmatpush.bf16.msra.mxu0 0
        %7031 = vmatpush.bf16.msra.mxu0 0
        %7032 = vmatpush.bf16.msra.mxu0 0
        %7033 = vmatpush.bf16.msra.mxu0 %v7021
        %7034 = vmatpush.bf16.msra.mxu0 %v7020
        %7035 = vmatpush.bf16.msra.mxu0 %v7019
        %7036 = vmatmul.bf16.gmra.mxu0 %v7026
        %v7037 = vpop.f32.mrf.mxu0
        %v7038 = vadd.f32 0.0, %v7037
        %v7039 = vpop.f32.mrf.mxu0
        %v7040 = vadd.f32 0.0, %v7039
        %7041 = vdwg.mxu0
        %v7042 = vadd.f32 %v6995, %v7038
        %v7043 = vadd.f32 %v6996, %v7040
        %v7044 = vld [vmem:[#allocation6 + $0x7] sm:$0xff]
        %v7045 = vld [vmem:[#allocation6 + $0xf] sm:$0x1f]
        %v7046 = vpack.c.bf16 %v7045, %v7044
        %s7047 = scalar_lea.vmem %s7, 120
        %v7048 = vld [vmem:[%s7047] sm:$0xf]
        %v7049 = vld [vmem:[%s7047 + $0x4] sm:$0xf]
        %v7050 = vld [vmem:[%s7047 + $0x8] sm:$0xf]
        %v7051 = vld [vmem:[%s7047 + $0xc] sm:$0xf]
        %v7052 = vld [vmem:[%s7047 + $0x10] sm:$0xf]
        %v7053 = vld [vmem:[%s7047 + $0x14] sm:$0xf]
        %v7060 = vunpack.c.l.b16 %v7048
        %v7061 = vunpack.c.l.b16 %v7049
        %v7062 = vunpack.c.l.b16 %v7050
        %v7063 = vunpack.c.l.b16 %v7051
        %v7064 = vunpack.c.l.b16 %v7052
        %v7065 = vunpack.c.l.b16 %v7053
        %v7066 = vpack.c.b16 %v7061, %v7060
        %v7067 = vpack.c.b16 %v7063, %v7062
        %v7068 = vpack.c.b16 %v7065, %v7064
        %v7073 = vsel %vm990, %v7046, 0
        %7075 = vmatpush.bf16.msra.mxu0 0
        %7076 = vmatpush.bf16.msra.mxu0 0
        %7077 = vmatpush.bf16.msra.mxu0 0
        %7078 = vmatpush.bf16.msra.mxu0 0
        %7079 = vmatpush.bf16.msra.mxu0 0
        %7080 = vmatpush.bf16.msra.mxu0 %v7068
        %7081 = vmatpush.bf16.msra.mxu0 %v7067
        %7082 = vmatpush.bf16.msra.mxu0 %v7066
        %7083 = vmatmul.bf16.gmra.mxu0 %v7073
        %v7084 = vpop.f32.mrf.mxu0
        %v7085 = vadd.f32 0.0, %v7084
        %v7086 = vpop.f32.mrf.mxu0
        %v7087 = vadd.f32 0.0, %v7086
        %7088 = vdwg.mxu0
        %v7089 = vadd.f32 %v7042, %v7085
        %v7090 = vadd.f32 %v7043, %v7087
        %v7091 = vld [vmem:[#allocation6 + $0xa] sm:$0xff]
        %v7092 = vld [vmem:[#allocation6 + $0x12] sm:$0x1f]
        %v7093 = vpack.c.bf16 %v7092, %v7091
        %s7094 = scalar_lea.vmem %s7, 144
        %v7095 = vld [vmem:[%s7094] sm:$0xf]
        %v7096 = vld [vmem:[%s7094 + $0x4] sm:$0xf]
        %v7097 = vld [vmem:[%s7094 + $0x8] sm:$0xf]
        %v7098 = vld [vmem:[%s7094 + $0xc] sm:$0xf]
        %v7099 = vld [vmem:[%s7094 + $0x10] sm:$0xf]
        %v7100 = vld [vmem:[%s7094 + $0x14] sm:$0xf]
        %v7107 = vunpack.c.l.b16 %v7095
        %v7108 = vunpack.c.l.b16 %v7096
        %v7109 = vunpack.c.l.b16 %v7097
        %v7110 = vunpack.c.l.b16 %v7098
        %v7111 = vunpack.c.l.b16 %v7099
        %v7112 = vunpack.c.l.b16 %v7100
        %v7113 = vpack.c.b16 %v7108, %v7107
        %v7114 = vpack.c.b16 %v7110, %v7109
        %v7115 = vpack.c.b16 %v7112, %v7111
        %v7120 = vsel %vm990, %v7093, 0
        %7122 = vmatpush.bf16.msra.mxu0 0
        %7123 = vmatpush.bf16.msra.mxu0 0
        %7124 = vmatpush.bf16.msra.mxu0 0
        %7125 = vmatpush.bf16.msra.mxu0 0
        %7126 = vmatpush.bf16.msra.mxu0 0
        %7127 = vmatpush.bf16.msra.mxu0 %v7115
        %7128 = vmatpush.bf16.msra.mxu0 %v7114
        %7129 = vmatpush.bf16.msra.mxu0 %v7113
        %7130 = vmatmul.bf16.gmra.mxu0 %v7120
        %v7131 = vpop.f32.mrf.mxu0
        %v7132 = vadd.f32 0.0, %v7131
        %v7133 = vpop.f32.mrf.mxu0
        %v7134 = vadd.f32 0.0, %v7133
        %7135 = vdwg.mxu0
        %v7136 = vadd.f32 %v7089, %v7132
        %v7137 = vadd.f32 %v7090, %v7134
        %v7138 = vld [vmem:[#allocation6 + $0xb] sm:$0xff]
        %v7139 = vld [vmem:[#allocation6 + $0x13] sm:$0x1f]
        %v7140 = vpack.c.bf16 %v7139, %v7138
        %s7141 = scalar_lea.vmem %s7, 168
        %v7142 = vld [vmem:[%s7141] sm:$0xf]
        %v7143 = vld [vmem:[%s7141 + $0x4] sm:$0xf]
        %v7144 = vld [vmem:[%s7141 + $0x8] sm:$0xf]
        %v7145 = vld [vmem:[%s7141 + $0xc] sm:$0xf]
        %v7146 = vld [vmem:[%s7141 + $0x10] sm:$0xf]
        %v7147 = vld [vmem:[%s7141 + $0x14] sm:$0xf]
        %v7154 = vunpack.c.l.b16 %v7142
        %v7155 = vunpack.c.l.b16 %v7143
        %v7156 = vunpack.c.l.b16 %v7144
        %v7157 = vunpack.c.l.b16 %v7145
        %v7158 = vunpack.c.l.b16 %v7146
        %v7159 = vunpack.c.l.b16 %v7147
        %v7160 = vpack.c.b16 %v7155, %v7154
        %v7161 = vpack.c.b16 %v7157, %v7156
        %v7162 = vpack.c.b16 %v7159, %v7158
        %v7167 = vsel %vm990, %v7140, 0
        %7169 = vmatpush.bf16.msra.mxu0 0
        %7170 = vmatpush.bf16.msra.mxu0 0
        %7171 = vmatpush.bf16.msra.mxu0 0
        %7172 = vmatpush.bf16.msra.mxu0 0
        %7173 = vmatpush.bf16.msra.mxu0 0
        %7174 = vmatpush.bf16.msra.mxu0 %v7162
        %7175 = vmatpush.bf16.msra.mxu0 %v7161
        %7176 = vmatpush.bf16.msra.mxu0 %v7160
        %7177 = vmatmul.bf16.gmra.mxu0 %v7167
        %v7178 = vpop.f32.mrf.mxu0
        %v7179 = vadd.f32 0.0, %v7178
        %v7180 = vpop.f32.mrf.mxu0
        %v7181 = vadd.f32 0.0, %v7180
        %7182 = vdwg.mxu0
        %v7183 = vadd.f32 %v7136, %v7179
        %v7184 = vadd.f32 %v7137, %v7181
        %v7185 = vld [vmem:[#allocation6 + $0xc] sm:$0xff]
        %v7186 = vld [vmem:[#allocation6 + $0x14] sm:$0x1f]
        %v7187 = vpack.c.bf16 %v7186, %v7185
        %s7188 = scalar_lea.vmem %s7, 192
        %v7189 = vld [vmem:[%s7188] sm:$0xf]
        %v7190 = vld [vmem:[%s7188 + $0x4] sm:$0xf]
        %v7191 = vld [vmem:[%s7188 + $0x8] sm:$0xf]
        %v7192 = vld [vmem:[%s7188 + $0xc] sm:$0xf]
        %v7193 = vld [vmem:[%s7188 + $0x10] sm:$0xf]
        %v7194 = vld [vmem:[%s7188 + $0x14] sm:$0xf]
        %v7201 = vunpack.c.l.b16 %v7189
        %v7202 = vunpack.c.l.b16 %v7190
        %v7203 = vunpack.c.l.b16 %v7191
        %v7204 = vunpack.c.l.b16 %v7192
        %v7205 = vunpack.c.l.b16 %v7193
        %v7206 = vunpack.c.l.b16 %v7194
        %v7207 = vpack.c.b16 %v7202, %v7201
        %v7208 = vpack.c.b16 %v7204, %v7203
        %v7209 = vpack.c.b16 %v7206, %v7205
        %v7214 = vsel %vm990, %v7187, 0
        %7216 = vmatpush.bf16.msra.mxu0 0
        %7217 = vmatpush.bf16.msra.mxu0 0
        %7218 = vmatpush.bf16.msra.mxu0 0
        %7219 = vmatpush.bf16.msra.mxu0 0
        %7220 = vmatpush.bf16.msra.mxu0 0
        %7221 = vmatpush.bf16.msra.mxu0 %v7209
        %7222 = vmatpush.bf16.msra.mxu0 %v7208
        %7223 = vmatpush.bf16.msra.mxu0 %v7207
        %7224 = vmatmul.bf16.gmra.mxu0 %v7214
        %v7225 = vpop.f32.mrf.mxu0
        %v7226 = vadd.f32 0.0, %v7225
        %v7227 = vpop.f32.mrf.mxu0
        %v7228 = vadd.f32 0.0, %v7227
        %7229 = vdwg.mxu0
        %v7230 = vadd.f32 %v7183, %v7226
        %v7231 = vadd.f32 %v7184, %v7228
        %v7232 = vld [vmem:[%s8] sm:$0x1]
        %v7234 = vperm.slane %v7232, 0
        %v7236 = vadd.f32 %v7230, %v7234
        %v7237 = vadd.f32 %v7231, %v7234
        %v7238 = vmax.f32 %v7236, 0.0
        %v7239 = vmax.f32 %v7237, 0.0
        %v7240 = vmul.f32 %v7238, %v6799
        %v7241 = vmul.f32 %v7239, %v6804
        %vm7242 = vcmask 259072
        %7243 = vst.msk [vmem:[#allocation7] sm:$0x3f] %vm7242, 0.0
        %7244 = vst.msk [vmem:[#allocation7 + $0x13] sm:$0x3f] %vm7242, 0.0
        %7245 = vst.msk [vmem:[#allocation7 + $0x6] sm:$0xff] %vm6258, %v7240
        %vm7246 = vcmask 258048
        %7247 = vst.msk [vmem:[#allocation7 + $0xe] sm:$0x1f] %vm7246, %v7241
        %v7248 = vld [vmem:[#allocation7] sm:$0xff]
        %v7249 = vld [vmem:[#allocation7 + $0x8] sm:$0x1f]
        %v7250 = vpack.c.bf16 %v7249, %v7248
        %v7251 = vld [vmem:[%s9] sm:$0xf]
        %v7252 = vld [vmem:[%s9 + $0x4] sm:$0xf]
        %v7253 = vld [vmem:[%s9 + $0x8] sm:$0xf]
        %v7254 = vld [vmem:[%s9 + $0xc] sm:$0xf]
        %v7255 = vld [vmem:[#allocation7 + $0x1] sm:$0xff]
        %v7256 = vld [vmem:[#allocation7 + $0x9] sm:$0x1f]
        %v7257 = vpack.c.bf16 %v7256, %v7255
        %s7258 = scalar_lea.vmem %s9, 16
        %v7259 = vld [vmem:[%s7258] sm:$0xf]
        %v7260 = vld [vmem:[%s7258 + $0x4] sm:$0xf]
        %v7261 = vld [vmem:[%s7258 + $0x8] sm:$0xf]
        %v7262 = vld [vmem:[%s7258 + $0xc] sm:$0xf]
        %v7267 = vunpack.c.l.b16 %v7259
        %v7268 = vunpack.c.l.b16 %v7260
        %v7269 = vunpack.c.l.b16 %v7261
        %v7270 = vunpack.c.l.b16 %v7262
        %v7271 = vpack.c.b16 %v7268, %v7267
        %v7272 = vpack.c.b16 %v7270, %v7269
        %v7276 = vsel %vm6258, %v7257, 0
        %7278 = vmatpush.bf16.msra.mxu0 0
        %7279 = vmatpush.bf16.msra.mxu0 0
        %7280 = vmatpush.bf16.msra.mxu0 0
        %7281 = vmatpush.bf16.msra.mxu0 0
        %7282 = vmatpush.bf16.msra.mxu0 0
        %7283 = vmatpush.bf16.msra.mxu0 0
        %7284 = vmatpush.bf16.msra.mxu0 %v7272
        %7285 = vmatpush.bf16.msra.mxu0 %v7271
        %7286 = vmatmul.bf16.gmra.mxu0 %v7276
        %v7287 = vpop.f32.mrf.mxu0
        %v7288 = vadd.f32 0.0, %v7287
        %v7289 = vpop.f32.mrf.mxu0
        %v7290 = vadd.f32 0.0, %v7289
        %7291 = vdwg.mxu0
        %v7296 = vunpack.c.l.b16 %v7251
        %v7297 = vunpack.c.l.b16 %v7252
        %v7298 = vunpack.c.l.b16 %v7253
        %v7299 = vunpack.c.l.b16 %v7254
        %v7300 = vpack.c.b16 %v7297, %v7296
        %v7301 = vpack.c.b16 %v7299, %v7298
        %v7305 = vsel %vm6258, %v7250, 0
        %7307 = vmatpush.bf16.msra.mxu0 0
        %7308 = vmatpush.bf16.msra.mxu0 0
        %7309 = vmatpush.bf16.msra.mxu0 0
        %7310 = vmatpush.bf16.msra.mxu0 0
        %7311 = vmatpush.bf16.msra.mxu0 0
        %7312 = vmatpush.bf16.msra.mxu0 0
        %7313 = vmatpush.bf16.msra.mxu0 %v7301
        %7314 = vmatpush.bf16.msra.mxu0 %v7300
        %7315 = vmatmul.bf16.gmra.mxu0 %v7305
        %v7316 = vpop.f32.mrf.mxu0
        %v7317 = vadd.f32 %v7288, %v7316
        %v7318 = vpop.f32.mrf.mxu0
        %v7319 = vadd.f32 %v7290, %v7318
        %7320 = vdwg.mxu0
        %v7321 = vld [vmem:[#allocation7 + $0x2] sm:$0xff]
        %v7322 = vld [vmem:[#allocation7 + $0xa] sm:$0x1f]
        %v7323 = vpack.c.bf16 %v7322, %v7321
        %s7324 = scalar_lea.vmem %s9, 32
        %v7325 = vld [vmem:[%s7324] sm:$0xf]
        %v7326 = vld [vmem:[%s7324 + $0x4] sm:$0xf]
        %v7327 = vld [vmem:[%s7324 + $0x8] sm:$0xf]
        %v7328 = vld [vmem:[%s7324 + $0xc] sm:$0xf]
        %v7333 = vunpack.c.l.b16 %v7325
        %v7334 = vunpack.c.l.b16 %v7326
        %v7335 = vunpack.c.l.b16 %v7327
        %v7336 = vunpack.c.l.b16 %v7328
        %v7337 = vpack.c.b16 %v7334, %v7333
        %v7338 = vpack.c.b16 %v7336, %v7335
        %v7342 = vsel %vm6258, %v7323, 0
        %7344 = vmatpush.bf16.msra.mxu0 0
        %7345 = vmatpush.bf16.msra.mxu0 0
        %7346 = vmatpush.bf16.msra.mxu0 0
        %7347 = vmatpush.bf16.msra.mxu0 0
        %7348 = vmatpush.bf16.msra.mxu0 0
        %7349 = vmatpush.bf16.msra.mxu0 0
        %7350 = vmatpush.bf16.msra.mxu0 %v7338
        %7351 = vmatpush.bf16.msra.mxu0 %v7337
        %7352 = vmatmul.bf16.gmra.mxu0 %v7342
        %v7353 = vpop.f32.mrf.mxu0
        %v7354 = vadd.f32 0.0, %v7353
        %v7355 = vpop.f32.mrf.mxu0
        %v7356 = vadd.f32 0.0, %v7355
        %7357 = vdwg.mxu0
        %v7358 = vadd.f32 %v7317, %v7354
        %v7359 = vadd.f32 %v7319, %v7356
        %v7360 = vld [vmem:[#allocation7 + $0x5] sm:$0xff]
        %v7361 = vld [vmem:[#allocation7 + $0xd] sm:$0x1f]
        %v7362 = vpack.c.bf16 %v7361, %v7360
        %s7363 = scalar_lea.vmem %s9, 48
        %v7364 = vld [vmem:[%s7363] sm:$0xf]
        %v7365 = vld [vmem:[%s7363 + $0x4] sm:$0xf]
        %v7366 = vld [vmem:[%s7363 + $0x8] sm:$0xf]
        %v7367 = vld [vmem:[%s7363 + $0xc] sm:$0xf]
        %v7372 = vunpack.c.l.b16 %v7364
        %v7373 = vunpack.c.l.b16 %v7365
        %v7374 = vunpack.c.l.b16 %v7366
        %v7375 = vunpack.c.l.b16 %v7367
        %v7376 = vpack.c.b16 %v7373, %v7372
        %v7377 = vpack.c.b16 %v7375, %v7374
        %v7381 = vsel %vm6258, %v7362, 0
        %7383 = vmatpush.bf16.msra.mxu0 0
        %7384 = vmatpush.bf16.msra.mxu0 0
        %7385 = vmatpush.bf16.msra.mxu0 0
        %7386 = vmatpush.bf16.msra.mxu0 0
        %7387 = vmatpush.bf16.msra.mxu0 0
        %7388 = vmatpush.bf16.msra.mxu0 0
        %7389 = vmatpush.bf16.msra.mxu0 %v7377
        %7390 = vmatpush.bf16.msra.mxu0 %v7376
        %7391 = vmatmul.bf16.gmra.mxu0 %v7381
        %v7392 = vpop.f32.mrf.mxu0
        %v7393 = vadd.f32 0.0, %v7392
        %v7394 = vpop.f32.mrf.mxu0
        %v7395 = vadd.f32 0.0, %v7394
        %7396 = vdwg.mxu0
        %v7397 = vadd.f32 %v7358, %v7393
        %v7398 = vadd.f32 %v7359, %v7395
        %v7399 = vld [vmem:[#allocation7 + $0x6] sm:$0xff]
        %v7400 = vld [vmem:[#allocation7 + $0xe] sm:$0x1f]
        %v7401 = vpack.c.bf16 %v7400, %v7399
        %s7402 = scalar_lea.vmem %s9, 64
        %v7403 = vld [vmem:[%s7402] sm:$0xf]
        %v7404 = vld [vmem:[%s7402 + $0x4] sm:$0xf]
        %v7405 = vld [vmem:[%s7402 + $0x8] sm:$0xf]
        %v7406 = vld [vmem:[%s7402 + $0xc] sm:$0xf]
        %v7411 = vunpack.c.l.b16 %v7403
        %v7412 = vunpack.c.l.b16 %v7404
        %v7413 = vunpack.c.l.b16 %v7405
        %v7414 = vunpack.c.l.b16 %v7406
        %v7415 = vpack.c.b16 %v7412, %v7411
        %v7416 = vpack.c.b16 %v7414, %v7413
        %v7420 = vsel %vm6258, %v7401, 0
        %7422 = vmatpush.bf16.msra.mxu0 0
        %7423 = vmatpush.bf16.msra.mxu0 0
        %7424 = vmatpush.bf16.msra.mxu0 0
        %7425 = vmatpush.bf16.msra.mxu0 0
        %7426 = vmatpush.bf16.msra.mxu0 0
        %7427 = vmatpush.bf16.msra.mxu0 0
        %7428 = vmatpush.bf16.msra.mxu0 %v7416
        %7429 = vmatpush.bf16.msra.mxu0 %v7415
        %7430 = vmatmul.bf16.gmra.mxu0 %v7420
        %v7431 = vpop.f32.mrf.mxu0
        %v7432 = vadd.f32 0.0, %v7431
        %v7433 = vpop.f32.mrf.mxu0
        %v7434 = vadd.f32 0.0, %v7433
        %7435 = vdwg.mxu0
        %v7436 = vadd.f32 %v7397, %v7432
        %v7437 = vadd.f32 %v7398, %v7434
        %v7438 = vld [vmem:[#allocation7 + $0x7] sm:$0xff]
        %v7439 = vld [vmem:[#allocation7 + $0xf] sm:$0x1f]
        %v7440 = vpack.c.bf16 %v7439, %v7438
        %s7441 = scalar_lea.vmem %s9, 80
        %v7442 = vld [vmem:[%s7441] sm:$0xf]
        %v7443 = vld [vmem:[%s7441 + $0x4] sm:$0xf]
        %v7444 = vld [vmem:[%s7441 + $0x8] sm:$0xf]
        %v7445 = vld [vmem:[%s7441 + $0xc] sm:$0xf]
        %v7450 = vunpack.c.l.b16 %v7442
        %v7451 = vunpack.c.l.b16 %v7443
        %v7452 = vunpack.c.l.b16 %v7444
        %v7453 = vunpack.c.l.b16 %v7445
        %v7454 = vpack.c.b16 %v7451, %v7450
        %v7455 = vpack.c.b16 %v7453, %v7452
        %v7459 = vsel %vm6258, %v7440, 0
        %7461 = vmatpush.bf16.msra.mxu0 0
        %7462 = vmatpush.bf16.msra.mxu0 0
        %7463 = vmatpush.bf16.msra.mxu0 0
        %7464 = vmatpush.bf16.msra.mxu0 0
        %7465 = vmatpush.bf16.msra.mxu0 0
        %7466 = vmatpush.bf16.msra.mxu0 0
        %7467 = vmatpush.bf16.msra.mxu0 %v7455
        %7468 = vmatpush.bf16.msra.mxu0 %v7454
        %7469 = vmatmul.bf16.gmra.mxu0 %v7459
        %v7470 = vpop.f32.mrf.mxu0
        %v7471 = vadd.f32 0.0, %v7470
        %v7472 = vpop.f32.mrf.mxu0
        %v7473 = vadd.f32 0.0, %v7472
        %7474 = vdwg.mxu0
        %v7475 = vadd.f32 %v7436, %v7471
        %v7476 = vadd.f32 %v7437, %v7473
        %v7477 = vld [vmem:[#allocation7 + $0xa] sm:$0xff]
        %v7478 = vld [vmem:[#allocation7 + $0x12] sm:$0x1f]
        %v7479 = vpack.c.bf16 %v7478, %v7477
        %s7480 = scalar_lea.vmem %s9, 96
        %v7481 = vld [vmem:[%s7480] sm:$0xf]
        %v7482 = vld [vmem:[%s7480 + $0x4] sm:$0xf]
        %v7483 = vld [vmem:[%s7480 + $0x8] sm:$0xf]
        %v7484 = vld [vmem:[%s7480 + $0xc] sm:$0xf]
        %v7489 = vunpack.c.l.b16 %v7481
        %v7490 = vunpack.c.l.b16 %v7482
        %v7491 = vunpack.c.l.b16 %v7483
        %v7492 = vunpack.c.l.b16 %v7484
        %v7493 = vpack.c.b16 %v7490, %v7489
        %v7494 = vpack.c.b16 %v7492, %v7491
        %v7498 = vsel %vm6258, %v7479, 0
        %7500 = vmatpush.bf16.msra.mxu0 0
        %7501 = vmatpush.bf16.msra.mxu0 0
        %7502 = vmatpush.bf16.msra.mxu0 0
        %7503 = vmatpush.bf16.msra.mxu0 0
        %7504 = vmatpush.bf16.msra.mxu0 0
        %7505 = vmatpush.bf16.msra.mxu0 0
        %7506 = vmatpush.bf16.msra.mxu0 %v7494
        %7507 = vmatpush.bf16.msra.mxu0 %v7493
        %7508 = vmatmul.bf16.gmra.mxu0 %v7498
        %v7509 = vpop.f32.mrf.mxu0
        %v7510 = vadd.f32 0.0, %v7509
        %v7511 = vpop.f32.mrf.mxu0
        %v7512 = vadd.f32 0.0, %v7511
        %7513 = vdwg.mxu0
        %v7514 = vadd.f32 %v7475, %v7510
        %v7515 = vadd.f32 %v7476, %v7512
        %v7516 = vld [vmem:[#allocation7 + $0xb] sm:$0xff]
        %v7517 = vld [vmem:[#allocation7 + $0x13] sm:$0x1f]
        %v7518 = vpack.c.bf16 %v7517, %v7516
        %s7519 = scalar_lea.vmem %s9, 112
        %v7520 = vld [vmem:[%s7519] sm:$0xf]
        %v7521 = vld [vmem:[%s7519 + $0x4] sm:$0xf]
        %v7522 = vld [vmem:[%s7519 + $0x8] sm:$0xf]
        %v7523 = vld [vmem:[%s7519 + $0xc] sm:$0xf]
        %v7528 = vunpack.c.l.b16 %v7520
        %v7529 = vunpack.c.l.b16 %v7521
        %v7530 = vunpack.c.l.b16 %v7522
        %v7531 = vunpack.c.l.b16 %v7523
        %v7532 = vpack.c.b16 %v7529, %v7528
        %v7533 = vpack.c.b16 %v7531, %v7530
        %v7537 = vsel %vm6258, %v7518, 0
        %7539 = vmatpush.bf16.msra.mxu0 0
        %7540 = vmatpush.bf16.msra.mxu0 0
        %7541 = vmatpush.bf16.msra.mxu0 0
        %7542 = vmatpush.bf16.msra.mxu0 0
        %7543 = vmatpush.bf16.msra.mxu0 0
        %7544 = vmatpush.bf16.msra.mxu0 0
        %7545 = vmatpush.bf16.msra.mxu0 %v7533
        %7546 = vmatpush.bf16.msra.mxu0 %v7532
        %7547 = vmatmul.bf16.gmra.mxu0 %v7537
        %v7548 = vpop.f32.mrf.mxu0
        %v7549 = vadd.f32 0.0, %v7548
        %v7550 = vpop.f32.mrf.mxu0
        %v7551 = vadd.f32 0.0, %v7550
        %7552 = vdwg.mxu0
        %v7553 = vadd.f32 %v7514, %v7549
        %v7554 = vadd.f32 %v7515, %v7551
        %v7555 = vld [vmem:[#allocation7 + $0xc] sm:$0xff]
        %v7556 = vld [vmem:[#allocation7 + $0x14] sm:$0x1f]
        %v7557 = vpack.c.bf16 %v7556, %v7555
        %s7558 = scalar_lea.vmem %s9, 128
        %v7559 = vld [vmem:[%s7558] sm:$0xf]
        %v7560 = vld [vmem:[%s7558 + $0x4] sm:$0xf]
        %v7561 = vld [vmem:[%s7558 + $0x8] sm:$0xf]
        %v7562 = vld [vmem:[%s7558 + $0xc] sm:$0xf]
        %v7567 = vunpack.c.l.b16 %v7559
        %v7568 = vunpack.c.l.b16 %v7560
        %v7569 = vunpack.c.l.b16 %v7561
        %v7570 = vunpack.c.l.b16 %v7562
        %v7571 = vpack.c.b16 %v7568, %v7567
        %v7572 = vpack.c.b16 %v7570, %v7569
        %v7576 = vsel %vm6258, %v7557, 0
        %7578 = vmatpush.bf16.msra.mxu0 0
        %7579 = vmatpush.bf16.msra.mxu0 0
        %7580 = vmatpush.bf16.msra.mxu0 0
        %7581 = vmatpush.bf16.msra.mxu0 0
        %7582 = vmatpush.bf16.msra.mxu0 0
        %7583 = vmatpush.bf16.msra.mxu0 0
        %7584 = vmatpush.bf16.msra.mxu0 %v7572
        %7585 = vmatpush.bf16.msra.mxu0 %v7571
        %7586 = vmatmul.bf16.gmra.mxu0 %v7576
        %v7587 = vpop.f32.mrf.mxu0
        %v7588 = vadd.f32 0.0, %v7587
        %v7589 = vpop.f32.mrf.mxu0
        %v7590 = vadd.f32 0.0, %v7589
        %7591 = vdwg.mxu0
        %v7592 = vadd.f32 %v7553, %v7588
        %v7593 = vadd.f32 %v7554, %v7590
        %v7594 = vld [vmem:[%s10] sm:$0x1]
        %v7596 = vperm.slane %v7594, 0
        %v7598 = vadd.f32 %v7592, %v7596
        %v7599 = vadd.f32 %v7593, %v7596
        %v7600 = vmax.f32 %v7598, 0.0
        %v7601 = vmax.f32 %v7599, 0.0
        %v7602 = vmul.f32 %v7600, %v6799
        %v7603 = vmul.f32 %v7601, %v6804
        %v7604 = vsel %vm6258, %v7602, -inf
        %v7605 = vsel %vm7246, %v7603, -inf
        %v7606 = vmax.f32 %v7604, %v7605
        %v7607 = vrot.slane %v7606, 4
        %v7608 = vmax.f32 %v7606, %v7607
        %v7609 = vrot.slane %v7608, 2
        %v7610 = vmax.f32 %v7608, %v7609
        %v7611 = vrot.slane %v7610, 1
        %v7612 = vmax.f32 %v7610, %v7611
        %v7613 = vpack.c.bf16 %v7612, %v7612
        %v7614 = vld [vmem:[%s14] sm:$0xff]
        %v7615 = vld [vmem:[%s14 + $0x8] sm:$0xff]
        %v7616 = vld [vmem:[%s14 + $0x10] sm:$0xff]
        %v7617 = vld [vmem:[%s14 + $0x18] sm:$0xff]
        %v7618 = vld [vmem:[%s15] sm:$0x3]
        %v7623 = vunpack.c.l.b16 %v7614
        %v7624 = vunpack.c.h.b16 %v7614
        %v7625 = vunpack.c.l.b16 %v7615
        %v7626 = vunpack.c.h.b16 %v7615
        %v7627 = vunpack.c.l.b16 %v7616
        %v7628 = vunpack.c.h.b16 %v7616
        %v7629 = vunpack.c.l.b16 %v7617
        %v7630 = vunpack.c.h.b16 %v7617
        %v7631 = vpack.c.b16 %v7625, %v7623
        %v7632 = vpack.c.b16 %v7626, %v7624
        %v7633 = vpack.c.b16 %v7629, %v7627
        %v7634 = vpack.c.b16 %v7630, %v7628
        %v7640 = vperm.slane %v7618, 0
        %v7641 = vperm.slane %v7618, 1
        %v7645 = vsel %vm6258, %v7613, 0
        %7647 = vmatpush.bf16.msra.mxu0 0
        %7648 = vmatpush.bf16.msra.mxu0 0
        %7649 = vmatpush.bf16.msra.mxu0 0
        %7650 = vmatpush.bf16.msra.mxu0 0
        %7651 = vmatpush.bf16.msra.mxu0 0
        %7652 = vmatpush.bf16.msra.mxu0 0
        %7653 = vmatpush.bf16.msra.mxu0 %v7633
        %7654 = vmatpush.bf16.msra.mxu0 %v7631
        %7655 = vmatmul.bf16.gmra.mxu0 %v7645
        %v7656 = vpop.f32.mrf.mxu0
        %v7657 = vadd.f32 %v7640, %v7656
        %v7658 = vpop.f32.mrf.mxu0
        %7659 = vdwg.mxu0
        %7660 = vmatpush.bf16.msra.mxu0 0
        %7661 = vmatpush.bf16.msra.mxu0 0
        %7662 = vmatpush.bf16.msra.mxu0 0
        %7663 = vmatpush.bf16.msra.mxu0 0
        %7664 = vmatpush.bf16.msra.mxu0 0
        %7665 = vmatpush.bf16.msra.mxu0 0
        %7666 = vmatpush.bf16.msra.mxu0 %v7634
        %7667 = vmatpush.bf16.msra.mxu0 %v7632
        %7668 = vmatmul.bf16.gmra.mxu0 %v7645
        %v7669 = vpop.f32.mrf.mxu0
        %v7670 = vadd.f32 %v7641, %v7669
        %v7671 = vpop.f32.mrf.mxu0
        %7672 = vdwg.mxu0
        %v7673 = vmax.f32 %v7657, 0.0
        %v7674 = vmax.f32 %v7670, 0.0
        %v7675 = vpack.c.bf16 %v7673, %v7673
        %v7676 = vpack.c.bf16 %v7674, %v7674
        %v7677 = vld [vmem:[%s16] sm:$0xff]
        %v7678 = vld [vmem:[%s16 + $0x8] sm:$0xff]
        %v7679 = vld [vmem:[%s16 + $0x10] sm:$0xff]
        %v7680 = vld [vmem:[%s16 + $0x18] sm:$0xff]
        %v7681 = vld [vmem:[%s16 + $0x20] sm:$0xff]
        %v7682 = vld [vmem:[%s16 + $0x28] sm:$0xff]
        %v7683 = vld [vmem:[%s16 + $0x30] sm:$0xff]
        %v7684 = vld [vmem:[%s16 + $0x38] sm:$0xff]
        %v7685 = vld [vmem:[%s16 + $0x40] sm:$0xff]
        %v7686 = vld [vmem:[%s16 + $0x48] sm:$0xff]
        %v7687 = vld [vmem:[%s16 + $0x50] sm:$0xff]
        %v7688 = vld [vmem:[%s16 + $0x58] sm:$0xff]
        %v7689 = vld [vmem:[%s16 + $0x60] sm:$0xff]
        %v7690 = vld [vmem:[%s16 + $0x68] sm:$0xff]
        %v7691 = vld [vmem:[%s16 + $0x70] sm:$0xff]
        %v7692 = vld [vmem:[%s16 + $0x78] sm:$0xff]
        %v7693 = vld [vmem:[%s16 + $0x80] sm:$0xff]
        %v7694 = vld [vmem:[%s16 + $0x88] sm:$0xff]
        %v7695 = vld [vmem:[%s16 + $0x90] sm:$0xff]
        %v7696 = vld [vmem:[%s16 + $0x98] sm:$0xff]
        %v7697 = vld [vmem:[%s16 + $0xa0] sm:$0xff]
        %v7698 = vld [vmem:[%s16 + $0xa8] sm:$0xff]
        %v7699 = vld [vmem:[%s16 + $0xb0] sm:$0xff]
        %v7700 = vld [vmem:[%s16 + $0xb8] sm:$0xff]
        %v7701 = vld [vmem:[%s16 + $0xc0] sm:$0xff]
        %v7702 = vld [vmem:[%s16 + $0xc8] sm:$0xff]
        %v7703 = vld [vmem:[%s16 + $0xd0] sm:$0xff]
        %v7704 = vld [vmem:[%s16 + $0xd8] sm:$0xff]
        %v7705 = vld [vmem:[%s16 + $0xe0] sm:$0xff]
        %v7706 = vld [vmem:[%s16 + $0xe8] sm:$0xff]
        %v7707 = vld [vmem:[%s16 + $0xf0] sm:$0xff]
        %v7708 = vld [vmem:[%s16 + $0xf8] sm:$0xff]
        %v7709 = vld [vmem:[%s17] sm:$0x3]
        %v7742 = vunpack.c.l.b16 %v7677
        %v7743 = vunpack.c.h.b16 %v7677
        %v7744 = vunpack.c.l.b16 %v7678
        %v7745 = vunpack.c.h.b16 %v7678
        %v7746 = vunpack.c.l.b16 %v7679
        %v7747 = vunpack.c.h.b16 %v7679
        %v7748 = vunpack.c.l.b16 %v7680
        %v7749 = vunpack.c.h.b16 %v7680
        %v7750 = vunpack.c.l.b16 %v7681
        %v7751 = vunpack.c.h.b16 %v7681
        %v7752 = vunpack.c.l.b16 %v7682
        %v7753 = vunpack.c.h.b16 %v7682
        %v7754 = vunpack.c.l.b16 %v7683
        %v7755 = vunpack.c.h.b16 %v7683
        %v7756 = vunpack.c.l.b16 %v7684
        %v7757 = vunpack.c.h.b16 %v7684
        %v7758 = vunpack.c.l.b16 %v7685
        %v7759 = vunpack.c.h.b16 %v7685
        %v7760 = vunpack.c.l.b16 %v7686
        %v7761 = vunpack.c.h.b16 %v7686
        %v7762 = vunpack.c.l.b16 %v7687
        %v7763 = vunpack.c.h.b16 %v7687
        %v7764 = vunpack.c.l.b16 %v7688
        %v7765 = vunpack.c.h.b16 %v7688
        %v7766 = vunpack.c.l.b16 %v7689
        %v7767 = vunpack.c.h.b16 %v7689
        %v7768 = vunpack.c.l.b16 %v7690
        %v7769 = vunpack.c.h.b16 %v7690
        %v7770 = vunpack.c.l.b16 %v7691
        %v7771 = vunpack.c.h.b16 %v7691
        %v7772 = vunpack.c.l.b16 %v7692
        %v7773 = vunpack.c.h.b16 %v7692
        %v7774 = vunpack.c.l.b16 %v7693
        %v7775 = vunpack.c.h.b16 %v7693
        %v7776 = vunpack.c.l.b16 %v7694
        %v7777 = vunpack.c.h.b16 %v7694
        %v7778 = vunpack.c.l.b16 %v7695
        %v7779 = vunpack.c.h.b16 %v7695
        %v7780 = vunpack.c.l.b16 %v7696
        %v7781 = vunpack.c.h.b16 %v7696
        %v7782 = vunpack.c.l.b16 %v7697
        %v7783 = vunpack.c.h.b16 %v7697
        %v7784 = vunpack.c.l.b16 %v7698
        %v7785 = vunpack.c.h.b16 %v7698
        %v7786 = vunpack.c.l.b16 %v7699
        %v7787 = vunpack.c.h.b16 %v7699
        %v7788 = vunpack.c.l.b16 %v7700
        %v7789 = vunpack.c.h.b16 %v7700
        %v7790 = vunpack.c.l.b16 %v7701
        %v7791 = vunpack.c.h.b16 %v7701
        %v7792 = vunpack.c.l.b16 %v7702
        %v7793 = vunpack.c.h.b16 %v7702
        %v7794 = vunpack.c.l.b16 %v7703
        %v7795 = vunpack.c.h.b16 %v7703
        %v7796 = vunpack.c.l.b16 %v7704
        %v7797 = vunpack.c.h.b16 %v7704
        %v7798 = vunpack.c.l.b16 %v7705
        %v7799 = vunpack.c.h.b16 %v7705
        %v7800 = vunpack.c.l.b16 %v7706
        %v7801 = vunpack.c.h.b16 %v7706
        %v7802 = vunpack.c.l.b16 %v7707
        %v7803 = vunpack.c.h.b16 %v7707
        %v7804 = vunpack.c.l.b16 %v7708
        %v7805 = vunpack.c.h.b16 %v7708
        %v7806 = vpack.c.b16 %v7744, %v7742
        %v7807 = vpack.c.b16 %v7745, %v7743
        %v7808 = vpack.c.b16 %v7748, %v7746
        %v7809 = vpack.c.b16 %v7749, %v7747
        %v7810 = vpack.c.b16 %v7752, %v7750
        %v7811 = vpack.c.b16 %v7753, %v7751
        %v7812 = vpack.c.b16 %v7756, %v7754
        %v7813 = vpack.c.b16 %v7757, %v7755
        %v7814 = vpack.c.b16 %v7760, %v7758
        %v7815 = vpack.c.b16 %v7761, %v7759
        %v7816 = vpack.c.b16 %v7764, %v7762
        %v7817 = vpack.c.b16 %v7765, %v7763
        %v7818 = vpack.c.b16 %v7768, %v7766
        %v7819 = vpack.c.b16 %v7769, %v7767
        %v7820 = vpack.c.b16 %v7772, %v7770
        %v7821 = vpack.c.b16 %v7773, %v7771
        %v7822 = vpack.c.b16 %v7776, %v7774
        %v7823 = vpack.c.b16 %v7777, %v7775
        %v7824 = vpack.c.b16 %v7780, %v7778
        %v7825 = vpack.c.b16 %v7781, %v7779
        %v7826 = vpack.c.b16 %v7784, %v7782
        %v7827 = vpack.c.b16 %v7785, %v7783
        %v7828 = vpack.c.b16 %v7788, %v7786
        %v7829 = vpack.c.b16 %v7789, %v7787
        %v7830 = vpack.c.b16 %v7792, %v7790
        %v7831 = vpack.c.b16 %v7793, %v7791
        %v7832 = vpack.c.b16 %v7796, %v7794
        %v7833 = vpack.c.b16 %v7797, %v7795
        %v7834 = vpack.c.b16 %v7800, %v7798
        %v7835 = vpack.c.b16 %v7801, %v7799
        %v7836 = vpack.c.b16 %v7804, %v7802
        %v7837 = vpack.c.b16 %v7805, %v7803
        %v7871 = vperm.slane %v7709, 0
        %v7872 = vperm.slane %v7709, 1
        %7875 = vmatpush.bf16.msra.mxu0 %v7820
        %7876 = vmatpush.bf16.msra.mxu0 %v7818
        %7877 = vmatpush.bf16.msra.mxu0 %v7816
        %7878 = vmatpush.bf16.msra.mxu0 %v7814
        %7879 = vmatpush.bf16.msra.mxu0 %v7812
        %7880 = vmatpush.bf16.msra.mxu0 %v7810
        %7881 = vmatpush.bf16.msra.mxu0 %v7808
        %7882 = vmatpush.bf16.msra.mxu0 %v7806
        %7883 = vmatmul.bf16.gmra.mxu0 %v7675
        %v7884 = vpop.f32.mrf.mxu0
        %v7885 = vadd.f32 %v7871, %v7884
        %v7886 = vpop.f32.mrf.mxu0
        %7887 = vdwg.mxu0
        %7888 = vmatpush.bf16.msra.mxu0 %v7836
        %7889 = vmatpush.bf16.msra.mxu0 %v7834
        %7890 = vmatpush.bf16.msra.mxu0 %v7832
        %7891 = vmatpush.bf16.msra.mxu0 %v7830
        %7892 = vmatpush.bf16.msra.mxu0 %v7828
        %7893 = vmatpush.bf16.msra.mxu0 %v7826
        %7894 = vmatpush.bf16.msra.mxu0 %v7824
        %7895 = vmatpush.bf16.msra.mxu0 %v7822
        %7896 = vmatmul.bf16.gmra.mxu0 %v7676
        %v7897 = vpop.f32.mrf.mxu0
        %v7898 = vadd.f32 %v7885, %v7897
        %v7899 = vpop.f32.mrf.mxu0
        %7900 = vdwg.mxu0
        %7901 = vmatpush.bf16.msra.mxu0 %v7821
        %7902 = vmatpush.bf16.msra.mxu0 %v7819
        %7903 = vmatpush.bf16.msra.mxu0 %v7817
        %7904 = vmatpush.bf16.msra.mxu0 %v7815
        %7905 = vmatpush.bf16.msra.mxu0 %v7813
        %7906 = vmatpush.bf16.msra.mxu0 %v7811
        %7907 = vmatpush.bf16.msra.mxu0 %v7809
        %7908 = vmatpush.bf16.msra.mxu0 %v7807
        %7909 = vmatmul.bf16.gmra.mxu0 %v7675
        %v7910 = vpop.f32.mrf.mxu0
        %v7911 = vadd.f32 %v7872, %v7910
        %v7912 = vpop.f32.mrf.mxu0
        %7913 = vdwg.mxu0
        %7914 = vmatpush.bf16.msra.mxu0 %v7837
        %7915 = vmatpush.bf16.msra.mxu0 %v7835
        %7916 = vmatpush.bf16.msra.mxu0 %v7833
        %7917 = vmatpush.bf16.msra.mxu0 %v7831
        %7918 = vmatpush.bf16.msra.mxu0 %v7829
        %7919 = vmatpush.bf16.msra.mxu0 %v7827
        %7920 = vmatpush.bf16.msra.mxu0 %v7825
        %7921 = vmatpush.bf16.msra.mxu0 %v7823
        %7922 = vmatmul.bf16.gmra.mxu0 %v7676
        %v7923 = vpop.f32.mrf.mxu0
        %v7924 = vadd.f32 %v7911, %v7923
        %v7925 = vpop.f32.mrf.mxu0
        %7926 = vdwg.mxu0
        %v7927 = vmax.f32 %v7898, 0.0
        %v7928 = vmax.f32 %v7924, 0.0
        %v7929 = vpack.c.bf16 %v7927, %v7927
        %v7930 = vpack.c.bf16 %v7928, %v7928
        %v7931 = vld [vmem:[%s18] sm:$0xff]
        %v7932 = vld [vmem:[%s18 + $0x8] sm:$0xff]
        %v7933 = vld [vmem:[%s18 + $0x10] sm:$0xff]
        %v7934 = vld [vmem:[%s18 + $0x18] sm:$0xff]
        %v7935 = vld [vmem:[%s18 + $0x20] sm:$0xff]
        %v7936 = vld [vmem:[%s18 + $0x28] sm:$0xff]
        %v7937 = vld [vmem:[%s18 + $0x30] sm:$0xff]
        %v7938 = vld [vmem:[%s18 + $0x38] sm:$0xff]
        %v7939 = vld [vmem:[%s18 + $0x40] sm:$0xff]
        %v7940 = vld [vmem:[%s18 + $0x48] sm:$0xff]
        %v7941 = vld [vmem:[%s18 + $0x50] sm:$0xff]
        %v7942 = vld [vmem:[%s18 + $0x58] sm:$0xff]
        %v7943 = vld [vmem:[%s18 + $0x60] sm:$0xff]
        %v7944 = vld [vmem:[%s18 + $0x68] sm:$0xff]
        %v7945 = vld [vmem:[%s18 + $0x70] sm:$0xff]
        %v7946 = vld [vmem:[%s18 + $0x78] sm:$0xff]
        %v7947 = vld [vmem:[%s18 + $0x80] sm:$0xff]
        %v7948 = vld [vmem:[%s18 + $0x88] sm:$0xff]
        %v7949 = vld [vmem:[%s18 + $0x90] sm:$0xff]
        %v7950 = vld [vmem:[%s18 + $0x98] sm:$0xff]
        %v7951 = vld [vmem:[%s18 + $0xa0] sm:$0xff]
        %v7952 = vld [vmem:[%s18 + $0xa8] sm:$0xff]
        %v7953 = vld [vmem:[%s18 + $0xb0] sm:$0xff]
        %v7954 = vld [vmem:[%s18 + $0xb8] sm:$0xff]
        %v7955 = vld [vmem:[%s18 + $0xc0] sm:$0xff]
        %v7956 = vld [vmem:[%s18 + $0xc8] sm:$0xff]
        %v7957 = vld [vmem:[%s18 + $0xd0] sm:$0xff]
        %v7958 = vld [vmem:[%s18 + $0xd8] sm:$0xff]
        %v7959 = vld [vmem:[%s18 + $0xe0] sm:$0xff]
        %v7960 = vld [vmem:[%s18 + $0xe8] sm:$0xff]
        %v7961 = vld [vmem:[%s18 + $0xf0] sm:$0xff]
        %v7962 = vld [vmem:[%s18 + $0xf8] sm:$0xff]
        %v7995 = vunpack.c.l.b16 %v7931
        %v7996 = vunpack.c.h.b16 %v7931
        %v7997 = vunpack.c.l.b16 %v7932
        %v7998 = vunpack.c.h.b16 %v7932
        %v7999 = vunpack.c.l.b16 %v7933
        %v8000 = vunpack.c.h.b16 %v7933
        %v8001 = vunpack.c.l.b16 %v7934
        %v8002 = vunpack.c.h.b16 %v7934
        %v8003 = vunpack.c.l.b16 %v7935
        %v8004 = vunpack.c.h.b16 %v7935
        %v8005 = vunpack.c.l.b16 %v7936
        %v8006 = vunpack.c.h.b16 %v7936
        %v8007 = vunpack.c.l.b16 %v7937
        %v8008 = vunpack.c.h.b16 %v7937
        %v8009 = vunpack.c.l.b16 %v7938
        %v8010 = vunpack.c.h.b16 %v7938
        %v8011 = vunpack.c.l.b16 %v7939
        %v8012 = vunpack.c.h.b16 %v7939
        %v8013 = vunpack.c.l.b16 %v7940
        %v8014 = vunpack.c.h.b16 %v7940
        %v8015 = vunpack.c.l.b16 %v7941
        %v8016 = vunpack.c.h.b16 %v7941
        %v8017 = vunpack.c.l.b16 %v7942
        %v8018 = vunpack.c.h.b16 %v7942
        %v8019 = vunpack.c.l.b16 %v7943
        %v8020 = vunpack.c.h.b16 %v7943
        %v8021 = vunpack.c.l.b16 %v7944
        %v8022 = vunpack.c.h.b16 %v7944
        %v8023 = vunpack.c.l.b16 %v7945
        %v8024 = vunpack.c.h.b16 %v7945
        %v8025 = vunpack.c.l.b16 %v7946
        %v8026 = vunpack.c.h.b16 %v7946
        %v8027 = vunpack.c.l.b16 %v7947
        %v8028 = vunpack.c.h.b16 %v7947
        %v8029 = vunpack.c.l.b16 %v7948
        %v8030 = vunpack.c.h.b16 %v7948
        %v8031 = vunpack.c.l.b16 %v7949
        %v8032 = vunpack.c.h.b16 %v7949
        %v8033 = vunpack.c.l.b16 %v7950
        %v8034 = vunpack.c.h.b16 %v7950
        %v8035 = vunpack.c.l.b16 %v7951
        %v8036 = vunpack.c.h.b16 %v7951
        %v8037 = vunpack.c.l.b16 %v7952
        %v8038 = vunpack.c.h.b16 %v7952
        %v8039 = vunpack.c.l.b16 %v7953
        %v8040 = vunpack.c.h.b16 %v7953
        %v8041 = vunpack.c.l.b16 %v7954
        %v8042 = vunpack.c.h.b16 %v7954
        %v8043 = vunpack.c.l.b16 %v7955
        %v8044 = vunpack.c.h.b16 %v7955
        %v8045 = vunpack.c.l.b16 %v7956
        %v8046 = vunpack.c.h.b16 %v7956
        %v8047 = vunpack.c.l.b16 %v7957
        %v8048 = vunpack.c.h.b16 %v7957
        %v8049 = vunpack.c.l.b16 %v7958
        %v8050 = vunpack.c.h.b16 %v7958
        %v8051 = vunpack.c.l.b16 %v7959
        %v8052 = vunpack.c.h.b16 %v7959
        %v8053 = vunpack.c.l.b16 %v7960
        %v8054 = vunpack.c.h.b16 %v7960
        %v8055 = vunpack.c.l.b16 %v7961
        %v8056 = vunpack.c.h.b16 %v7961
        %v8057 = vunpack.c.l.b16 %v7962
        %v8058 = vunpack.c.h.b16 %v7962
        %v8059 = vpack.c.b16 %v7997, %v7995
        %v8060 = vpack.c.b16 %v7998, %v7996
        %v8061 = vpack.c.b16 %v8001, %v7999
        %v8062 = vpack.c.b16 %v8002, %v8000
        %v8063 = vpack.c.b16 %v8005, %v8003
        %v8064 = vpack.c.b16 %v8006, %v8004
        %v8065 = vpack.c.b16 %v8009, %v8007
        %v8066 = vpack.c.b16 %v8010, %v8008
        %v8067 = vpack.c.b16 %v8013, %v8011
        %v8068 = vpack.c.b16 %v8014, %v8012
        %v8069 = vpack.c.b16 %v8017, %v8015
        %v8070 = vpack.c.b16 %v8018, %v8016
        %v8071 = vpack.c.b16 %v8021, %v8019
        %v8072 = vpack.c.b16 %v8022, %v8020
        %v8073 = vpack.c.b16 %v8025, %v8023
        %v8074 = vpack.c.b16 %v8026, %v8024
        %v8075 = vpack.c.b16 %v8029, %v8027
        %v8076 = vpack.c.b16 %v8030, %v8028
        %v8077 = vpack.c.b16 %v8033, %v8031
        %v8078 = vpack.c.b16 %v8034, %v8032
        %v8079 = vpack.c.b16 %v8037, %v8035
        %v8080 = vpack.c.b16 %v8038, %v8036
        %v8081 = vpack.c.b16 %v8041, %v8039
        %v8082 = vpack.c.b16 %v8042, %v8040
        %v8083 = vpack.c.b16 %v8045, %v8043
        %v8084 = vpack.c.b16 %v8046, %v8044
        %v8085 = vpack.c.b16 %v8049, %v8047
        %v8086 = vpack.c.b16 %v8050, %v8048
        %v8087 = vpack.c.b16 %v8053, %v8051
        %v8088 = vpack.c.b16 %v8054, %v8052
        %v8089 = vpack.c.b16 %v8057, %v8055
        %v8090 = vpack.c.b16 %v8058, %v8056
        %8123 = vmatpush.bf16.msra.mxu0 %v8073
        %8124 = vmatpush.bf16.msra.mxu0 %v8071
        %8125 = vmatpush.bf16.msra.mxu0 %v8069
        %8126 = vmatpush.bf16.msra.mxu0 %v8067
        %8127 = vmatpush.bf16.msra.mxu0 %v8065
        %8128 = vmatpush.bf16.msra.mxu0 %v8063
        %8129 = vmatpush.bf16.msra.mxu0 %v8061
        %8130 = vmatpush.bf16.msra.mxu0 %v8059
        %8131 = vmatmul.bf16.gmra.mxu0 %v7929
        %v8132 = vpop.f32.mrf.mxu0
        %v8133 = vadd.f32 0.0, %v8132
        %v8134 = vpop.f32.mrf.mxu0
        %8135 = vdwg.mxu0
        %8136 = vmatpush.bf16.msra.mxu0 %v8089
        %8137 = vmatpush.bf16.msra.mxu0 %v8087
        %8138 = vmatpush.bf16.msra.mxu0 %v8085
        %8139 = vmatpush.bf16.msra.mxu0 %v8083
        %8140 = vmatpush.bf16.msra.mxu0 %v8081
        %8141 = vmatpush.bf16.msra.mxu0 %v8079
        %8142 = vmatpush.bf16.msra.mxu0 %v8077
        %8143 = vmatpush.bf16.msra.mxu0 %v8075
        %8144 = vmatmul.bf16.gmra.mxu0 %v7930
        %v8145 = vpop.f32.mrf.mxu0
        %v8146 = vadd.f32 %v8133, %v8145
        %v8147 = vpop.f32.mrf.mxu0
        %8148 = vdwg.mxu0
        %8149 = vmatpush.bf16.msra.mxu0 %v8074
        %8150 = vmatpush.bf16.msra.mxu0 %v8072
        %8151 = vmatpush.bf16.msra.mxu0 %v8070
        %8152 = vmatpush.bf16.msra.mxu0 %v8068
        %8153 = vmatpush.bf16.msra.mxu0 %v8066
        %8154 = vmatpush.bf16.msra.mxu0 %v8064
        %8155 = vmatpush.bf16.msra.mxu0 %v8062
        %8156 = vmatpush.bf16.msra.mxu0 %v8060
        %8157 = vmatmul.bf16.gmra.mxu0 %v7929
        %v8158 = vpop.f32.mrf.mxu0
        %v8159 = vadd.f32 0.0, %v8158
        %v8160 = vpop.f32.mrf.mxu0
        %8161 = vdwg.mxu0
        %8162 = vmatpush.bf16.msra.mxu0 %v8090
        %8163 = vmatpush.bf16.msra.mxu0 %v8088
        %8164 = vmatpush.bf16.msra.mxu0 %v8086
        %8165 = vmatpush.bf16.msra.mxu0 %v8084
        %8166 = vmatpush.bf16.msra.mxu0 %v8082
        %8167 = vmatpush.bf16.msra.mxu0 %v8080
        %8168 = vmatpush.bf16.msra.mxu0 %v8078
        %8169 = vmatpush.bf16.msra.mxu0 %v8076
        %8170 = vmatmul.bf16.gmra.mxu0 %v7930
        %v8171 = vpop.f32.mrf.mxu0
        %v8172 = vadd.f32 %v8159, %v8171
        %v8173 = vpop.f32.mrf.mxu0
        %8174 = vdwg.mxu0
        %v8175 = vmax.f32 %v8146, 0.0
        %v8176 = vmax.f32 %v8172, 0.0
        %v8177 = vpack.c.bf16 %v8175, %v8175
        %v8178 = vpack.c.bf16 %v8176, %v8176
        %v8179 = vld [vmem:[%s19] sm:$0xf]
        %v8180 = vld [vmem:[%s19 + $0x4] sm:$0xf]
        %v8181 = vld [vmem:[%s19 + $0x8] sm:$0xf]
        %v8182 = vld [vmem:[%s19 + $0xc] sm:$0xf]
        %v8183 = vld [vmem:[%s19 + $0x10] sm:$0xf]
        %v8184 = vld [vmem:[%s19 + $0x14] sm:$0xf]
        %v8185 = vld [vmem:[%s19 + $0x18] sm:$0xf]
        %v8186 = vld [vmem:[%s19 + $0x1c] sm:$0xf]
        %v8187 = vld [vmem:[%s19 + $0x20] sm:$0xf]
        %v8188 = vld [vmem:[%s19 + $0x24] sm:$0xf]
        %v8189 = vld [vmem:[%s19 + $0x28] sm:$0xf]
        %v8190 = vld [vmem:[%s19 + $0x2c] sm:$0xf]
        %v8191 = vld [vmem:[%s19 + $0x30] sm:$0xf]
        %v8192 = vld [vmem:[%s19 + $0x34] sm:$0xf]
        %v8193 = vld [vmem:[%s19 + $0x38] sm:$0xf]
        %v8194 = vld [vmem:[%s19 + $0x3c] sm:$0xf]
        %v8195 = vld [vmem:[%s19 + $0x40] sm:$0xf]
        %v8196 = vld [vmem:[%s19 + $0x44] sm:$0xf]
        %v8197 = vld [vmem:[%s19 + $0x48] sm:$0xf]
        %v8198 = vld [vmem:[%s19 + $0x4c] sm:$0xf]
        %v8199 = vld [vmem:[%s19 + $0x50] sm:$0xf]
        %v8200 = vld [vmem:[%s19 + $0x54] sm:$0xf]
        %v8201 = vld [vmem:[%s19 + $0x58] sm:$0xf]
        %v8202 = vld [vmem:[%s19 + $0x5c] sm:$0xf]
        %v8203 = vld [vmem:[%s19 + $0x60] sm:$0xf]
        %v8204 = vld [vmem:[%s19 + $0x64] sm:$0xf]
        %v8205 = vld [vmem:[%s19 + $0x68] sm:$0xf]
        %v8206 = vld [vmem:[%s19 + $0x6c] sm:$0xf]
        %v8207 = vld [vmem:[%s19 + $0x70] sm:$0xf]
        %v8208 = vld [vmem:[%s19 + $0x74] sm:$0xf]
        %v8209 = vld [vmem:[%s19 + $0x78] sm:$0xf]
        %v8210 = vld [vmem:[%s19 + $0x7c] sm:$0xf]
        %v8243 = vunpack.c.l.b16 %v8179
        %v8244 = vunpack.c.l.b16 %v8180
        %v8245 = vunpack.c.l.b16 %v8181
        %v8246 = vunpack.c.l.b16 %v8182
        %v8247 = vunpack.c.l.b16 %v8183
        %v8248 = vunpack.c.l.b16 %v8184
        %v8249 = vunpack.c.l.b16 %v8185
        %v8250 = vunpack.c.l.b16 %v8186
        %v8251 = vunpack.c.l.b16 %v8187
        %v8252 = vunpack.c.l.b16 %v8188
        %v8253 = vunpack.c.l.b16 %v8189
        %v8254 = vunpack.c.l.b16 %v8190
        %v8255 = vunpack.c.l.b16 %v8191
        %v8256 = vunpack.c.l.b16 %v8192
        %v8257 = vunpack.c.l.b16 %v8193
        %v8258 = vunpack.c.l.b16 %v8194
        %v8259 = vunpack.c.l.b16 %v8195
        %v8260 = vunpack.c.l.b16 %v8196
        %v8261 = vunpack.c.l.b16 %v8197
        %v8262 = vunpack.c.l.b16 %v8198
        %v8263 = vunpack.c.l.b16 %v8199
        %v8264 = vunpack.c.l.b16 %v8200
        %v8265 = vunpack.c.l.b16 %v8201
        %v8266 = vunpack.c.l.b16 %v8202
        %v8267 = vunpack.c.l.b16 %v8203
        %v8268 = vunpack.c.l.b16 %v8204
        %v8269 = vunpack.c.l.b16 %v8205
        %v8270 = vunpack.c.l.b16 %v8206
        %v8271 = vunpack.c.l.b16 %v8207
        %v8272 = vunpack.c.l.b16 %v8208
        %v8273 = vunpack.c.l.b16 %v8209
        %v8274 = vunpack.c.l.b16 %v8210
        %v8275 = vpack.c.b16 %v8244, %v8243
        %v8276 = vpack.c.b16 %v8246, %v8245
        %v8277 = vpack.c.b16 %v8248, %v8247
        %v8278 = vpack.c.b16 %v8250, %v8249
        %v8279 = vpack.c.b16 %v8252, %v8251
        %v8280 = vpack.c.b16 %v8254, %v8253
        %v8281 = vpack.c.b16 %v8256, %v8255
        %v8282 = vpack.c.b16 %v8258, %v8257
        %v8283 = vpack.c.b16 %v8260, %v8259
        %v8284 = vpack.c.b16 %v8262, %v8261
        %v8285 = vpack.c.b16 %v8264, %v8263
        %v8286 = vpack.c.b16 %v8266, %v8265
        %v8287 = vpack.c.b16 %v8268, %v8267
        %v8288 = vpack.c.b16 %v8270, %v8269
        %v8289 = vpack.c.b16 %v8272, %v8271
        %v8290 = vpack.c.b16 %v8274, %v8273
        %8307 = vmatpush.bf16.msra.mxu0 %v8282
        %8308 = vmatpush.bf16.msra.mxu0 %v8281
        %8309 = vmatpush.bf16.msra.mxu0 %v8280
        %8310 = vmatpush.bf16.msra.mxu0 %v8279
        %8311 = vmatpush.bf16.msra.mxu0 %v8278
        %8312 = vmatpush.bf16.msra.mxu0 %v8277
        %8313 = vmatpush.bf16.msra.mxu0 %v8276
        %8314 = vmatpush.bf16.msra.mxu0 %v8275
        %8315 = vmatmul.bf16.gmra.mxu0 %v8177
        %v8316 = vpop.f32.mrf.mxu0
        %v8317 = vadd.f32 0.0, %v8316
        %v8318 = vpop.f32.mrf.mxu0
        %8319 = vdwg.mxu0
        %8320 = vmatpush.bf16.msra.mxu0 %v8290
        %8321 = vmatpush.bf16.msra.mxu0 %v8289
        %8322 = vmatpush.bf16.msra.mxu0 %v8288
        %8323 = vmatpush.bf16.msra.mxu0 %v8287
        %8324 = vmatpush.bf16.msra.mxu0 %v8286
        %8325 = vmatpush.bf16.msra.mxu0 %v8285
        %8326 = vmatpush.bf16.msra.mxu0 %v8284
        %8327 = vmatpush.bf16.msra.mxu0 %v8283
        %8328 = vmatmul.bf16.gmra.mxu0 %v8178
        %v8329 = vpop.f32.mrf.mxu0
        %v8330 = vadd.f32 %v8317, %v8329
        %v8331 = vpop.f32.mrf.mxu0
        %8332 = vdwg.mxu0
        %v8333 = vmul.f32 %v8330, 1.442695
        %v8334 = vpow.pop %v8333
        %vm8335 = vcmp.eq.f32.partialorder %v8334, 0.0
        %v8336 = vsel %vm8335, 2.220446e-16, %v8334
        %v8337 = vlog2.pop %v8336
        %v8338 = vmul.f32 %v8337, 0.6931472
        %v8339 = vmul.f32 %v8338, %v8338
        %v8340 = vsel %vm6268, %v8339, 0.0
        %8341 = vadd.xlane.f32.xlu0 %v8340
        %v8342 = vpop.xlane.xlu0 %8341
        %v8343 = vrsqrt.pop %v8342
        %v8344 = vmul.f32 %v8343, %v8342
        %v8345 = vmul.f32 %v8344, %v8343
        %v8346 = vmul.f32 0.5, %v8345
        %v8347 = vsub.f32 1.5, %v8346
        %v8348 = vmul.f32 %v8343, %v8347
        %v8349 = vmul.f32 %v8342, %v8348
        %vm8350 = vcmp.eq.f32.partialorder %v8342, inf
        %v8351 = vsel %vm8350, %v8342, %v8349
        %vm8352 = vcmp.eq.f32.partialorder %v8342, 0.0
        %v8353 = vand.u32 %v8342, 2147483648
        %v8354 = vsel %vm8352, %v8353, %v8351
        %v8355 = vmax.f32 %v8354, 1e-12
        %v8356 = vrcp.pop %v8355
        %v8357 = vmul.f32 %v8355, %v8356
        %v8358 = vsub.f32 1.0, %v8357
        %v8359 = vmul.f32 %v8356, %v8358
        %v8360 = vadd.f32 %v8356, %v8359
        %vm8361 = vweird.f32 %v8355
        %vm8362 = vweird.f32 %v8356
        %vm8363 = vmor %vm8361, %vm8362
        %v8364 = vsel %vm8363, %v8356, %v8360
        %v8365 = vand.u32 2147483647, %v8355
        %vm8366 = vcmp.eq.f32.partialorder %v8365, 8.507059e+37
        %v8367 = vand.u32 %v8355, 2147483648
        %v8368 = vor.u32 1.1754944e-38, %v8367
        %v8369 = vsel %vm8366, %v8368, %v8364
        %v8370 = vmul.f32 %v8338, %v8369
        %v8371 = vld [vmem:[%s20] sm:$0xff]
        %v8372 = vld [vmem:[%s20 + $0x8] sm:$0xff]
        %v8373 = vld [vmem:[%s20 + $0x10] sm:$0xff]
        %v8374 = vld [vmem:[%s20 + $0x18] sm:$0xff]
        %v8375 = vld [vmem:[%s21] sm:$0x1]
        %v8377 = vsel %vm6258, %v8370, 0
        %8379 = vmatpush.msra.mxu0 0.0
        %8380 = vmatpush.msra.mxu0 0.0
        %8381 = vmatpush.msra.mxu0 0.0
        %8382 = vmatpush.msra.mxu0 0.0
        %8383 = vmatpush.msra.mxu0 0.0
        %8384 = vmatpush.msra.mxu0 0.0
        %8385 = vmatpush.msra.mxu0 0.0
        %8386 = vmatpush.msra.mxu0 0.0
        %8387 = vmatpush.msra.mxu0 0.0
        %8388 = vmatpush.msra.mxu0 0.0
        %8389 = vmatpush.msra.mxu0 0.0
        %8390 = vmatpush.msra.mxu0 0.0
        %8391 = vmatpush.msra.mxu0 %v8374
        %8392 = vmatpush.msra.mxu0 %v8373
        %8393 = vmatpush.msra.mxu0 %v8372
        %8394 = vmatpush.msra.mxu0 %v8371
        %8395 = vmatmul.f32.gmra.mxu0 %v8377
        %v8396 = vpop.f32.mrf.mxu0
        %v8397 = vadd.f32 %v8375, %v8396
        %8398 = vdwg.mxu0
        %vm8399 = vcmask 73728
        %8400 = vst.msk [vmem:[%s706] sm:$0x1] %vm8399, %v8397
        %8401 = vst.msk [vmem:[%s712] sm:$0x1] %vm6268, %v8370
        %s8402 = sand.u32 %s516, 1
        %s8403 = scalar_lea.sflag [#allocation9], %s8402
        %s8404 = sand.u32 %s516, 1
        %s8405 = scalar_lea.vmem [#allocation8], %s8404
        %s8406 = sand.u32 %s542, 1
        %s8407 = scalar_lea.sflag [#allocation11], %s8406
        %s8408 = sand.u32 %s542, 1
        %s8409 = scalar_lea.vmem [#allocation10], %s8408
        // Predicated region
        $region109: #{alexnet_forward.1} parent=107 // pred_check
          %p8410 = pneg %p526
        $region110: #{alexnet_forward.1} parent=107 // pred_check_branch
          %8412 = sbr.rel (%p8410) target = $region112
        $region111: #{alexnet_forward.1} parent=107 // pred_region
          %8414 = vsyncadd %s8403, 0
          %s8415 = scalar_lea.hbm %s22, %s41
          %s8417 = sshll.u32 %s8405, 4
          %s8418 = int_to_ptr.vmem [resolvable:$true] %s8417
          %s8419 = sshll.u32 %s8415, 4
          %s8420 = int_to_ptr.hbm [resolvable:$true] %s8419
          %8422 = dma.vmem_to_hbm [thread:$0]  %s8418, 16, %s8420, %s8403
        $region112: #{alexnet_forward.1} parent=107 // pred_fallthru
          _
        // Predicated region
        $region113: #{alexnet_forward.1} parent=107 // pred_check
          %p8423 = pneg %p552
        $region114: #{alexnet_forward.1} parent=107 // pred_check_branch
          %8425 = sbr.rel (%p8423) target = $region116
        $region115: #{alexnet_forward.1} parent=107 // pred_region
          %8427 = vsyncadd %s8407, 0
          %s8428 = scalar_lea.hbm %s23, %s41
          %s8430 = sshll.u32 %s8409, 4
          %s8431 = int_to_ptr.vmem [resolvable:$true] %s8430
          %s8432 = sshll.u32 %s8428, 4
          %s8433 = int_to_ptr.hbm [resolvable:$true] %s8432
          %8435 = dma.vmem_to_hbm [thread:$0]  %s8431, 16, %s8433, %s8407
        $region116: #{alexnet_forward.1} parent=107 // pred_fallthru
          _
      $region108: #{alexnet_forward.1} parent=5 // pred_fallthru
        _
      %p8436 = scmp.le.s32.totalorder 2, %s36
      // Predicated region
      $region117: #{alexnet_forward.1} parent=5 // pred_check
        %p8437 = pneg %p8436
      $region118: #{alexnet_forward.1} parent=5 // pred_check_branch
        %8439 = sbr.rel (%p8437) target = $region120
      $region119: #{alexnet_forward.1} parent=5 // pred_region
        %s8440 = ssub.s32 %s36, 2
        // Predicated region
        $region121: #{alexnet_forward.1} parent=119 // pred_check
          %p8441 = pneg %p532
        $region122: #{alexnet_forward.1} parent=119 // pred_check_branch
          %8443 = sbr.rel (%p8441) target = $region124
        $region123: #{alexnet_forward.1} parent=119 // pred_region
          %s8444 = sand.u32 %s517, 1
          %s8445 = scalar_lea.sflag [#allocation9], %s8444
          %s8446 = sand.u32 %s517, 1
          %s8447 = scalar_lea.vmem [#allocation8], %s8446
          %8449 = dma.done %s8445, 16
        $region124: #{alexnet_forward.1} parent=119 // pred_fallthru
          _
        // Predicated region
        $region125: #{alexnet_forward.1} parent=119 // pred_check
          %p8450 = pneg %p558
        $region126: #{alexnet_forward.1} parent=119 // pred_check_branch
          %8452 = sbr.rel (%p8450) target = $region128
        $region127: #{alexnet_forward.1} parent=119 // pred_region
          %s8453 = sand.u32 %s543, 1
          %s8454 = scalar_lea.sflag [#allocation11], %s8453
          %s8455 = sand.u32 %s543, 1
          %s8456 = scalar_lea.vmem [#allocation10], %s8455
          %8458 = dma.done %s8454, 16
        $region128: #{alexnet_forward.1} parent=119 // pred_fallthru
          _
      $region120: #{alexnet_forward.1} parent=5 // pred_fallthru
        _
    $region6: #{alexnet_forward.1} parent=1 // loop_footer
      %s40 = sadd.s32 1, %s36
    $region7: #{alexnet_forward.1} parent=1 // loop_footer_branch
      %35 = sbr.rel target = $region3
    $region8: #{alexnet_forward.1} parent=1 // loop_exit
      _
    %8459 = vsyncpa [#allocation9], 1
    %s8460 = scalar_lea.sflag [#allocation9], 1
    %8461 = vsyncpa %s8460, 1
    %8462 = vsyncpa [#allocation11], 1
    %s8463 = scalar_lea.sflag [#allocation11], 1
    %8464 = vsyncpa %s8463, 1

</llo_original>
